<compile_context>
chip_gen: v7x
topology: tpu7x:2x2x1
jax: 0.10.0
libtpu: 0.0.40
codegen_flags: <defaults>
</compile_context>

<pallas_src>
import functools
import math

import jax
import jax.numpy as jnp
from jax.experimental import pallas as pl
from jax.experimental.pallas import tpu as pltpu


# ----------------------------------------------------------------------------
# Padding / tiling helpers
# ----------------------------------------------------------------------------
def _round_up(x, m):
    return (x + m - 1) // m * m


def _pick_tile(dim, candidates):
    for c in candidates:
        if dim % c == 0:
            return c
    return dim


def _lane_tiling(n):
    """Pad the lane (last) dim so the tile can be 512/256 wide (MXU / vst)."""
    np128 = _round_up(n, 128)
    if np128 >= 512:
        return _round_up(n, 512), 512
    if np128 >= 256:
        return _round_up(n, 256), 256
    return np128, np128


def _pad2(a, rows, cols):
    r, c = a.shape
    if r == rows and c == cols:
        return a
    return jnp.pad(a, ((0, rows - r), (0, cols - c)))


# ----------------------------------------------------------------------------
# Tiled matmul: bf16 MXU inputs, f32 accumulation directly in the resident
# output block; epilogue fuses bias add + per-column scale (NormLinear).
# ----------------------------------------------------------------------------
def _mm_kernel(x_ref, w_ref, b_ref, s_ref, o_ref):
    k = pl.program_id(2)

    @pl.when(k == 0)
    def _zero():
        o_ref[...] = jnp.zeros_like(o_ref)

    o_ref[...] += jnp.dot(x_ref[...], w_ref[...],
                          preferred_element_type=jnp.float32)

    @pl.when(k == pl.num_programs(2) - 1)
    def _finalize():
        o_ref[...] = (o_ref[...] + b_ref[...]) * s_ref[...]


def tiled_matmul(x, w, bias=None, scale=None):
    """(M,K) @ (K,N) (+ bias) (* per-column scale), f32 output."""
    M, K = x.shape
    Kw, N = w.shape
    assert K == Kw

    Mp = _round_up(M, 8)
    if Mp > 128:
        Mp = _round_up(M, 128)
        tm = _pick_tile(Mp, (512, 256, 128))
    else:
        tm = Mp
    Kp = _round_up(K, 128)
    tk = _pick_tile(Kp, (512, 256, 128))
    Np, tn = _lane_tiling(N)

    # bf16 cast fused with padding in the wrapper: kernels see bf16 in HBM.
    xp = _pad2(x.astype(jnp.bfloat16), Mp, Kp)
    wp = _pad2(w.astype(jnp.bfloat16), Kp, Np)
    if bias is None:
        bp = jnp.zeros((1, Np), jnp.float32)
    else:
        bp = _pad2(bias.astype(jnp.float32).reshape(1, N), 1, Np)
    if scale is None:
        sp = jnp.ones((1, Np), jnp.float32)
    else:
        sp = _pad2(scale.astype(jnp.float32).reshape(1, N), 1, Np)

    out = pl.pallas_call(
        _mm_kernel,
        out_shape=jax.ShapeDtypeStruct((Mp, Np), jnp.float32),
        grid_spec=pltpu.PrefetchScalarGridSpec(
            num_scalar_prefetch=0,
            grid=(Mp // tm, Np // tn, Kp // tk),
            in_specs=[
                pl.BlockSpec((tm, tk), lambda i, j, k: (i, k)),
                pl.BlockSpec((tk, tn), lambda i, j, k: (k, j)),
                pl.BlockSpec((1, tn), lambda i, j, k: (0, j)),
                pl.BlockSpec((1, tn), lambda i, j, k: (0, j)),
            ],
            out_specs=pl.BlockSpec((tm, tn), lambda i, j, k: (i, j)),
        ),
        compiler_params=pltpu.CompilerParams(
            dimension_semantics=("parallel", "parallel", "arbitrary")),
    )(xp, wp, bp, sp)

    if Mp != M or Np != N:
        out = out[:M, :N]
    return out


# ----------------------------------------------------------------------------
# TemporalConv stage (K5 + ReLU) with im2col fused into the kernel:
# x stays resident in VMEM; 5 time-shifted taps accumulate into the output.
# ----------------------------------------------------------------------------
def _conv_taps_kernel(x_ref, w_ref, b_ref, o_ref, *, taps, rows_out, bstride):
    o_ref[...] = jnp.dot(x_ref[0:rows_out, :], w_ref[0],
                         preferred_element_type=jnp.float32)
    for k in range(1, taps):
        o_ref[...] += jnp.dot(x_ref[k * bstride:k * bstride + rows_out, :],
                              w_ref[k], preferred_element_type=jnp.float32)
    o_ref[...] = jnp.maximum(o_ref[...] + b_ref[...], 0.0)


def conv1d_relu_stage(x_tbc, w_kco, bias):
    """x: (T, B, Cin), w: (K, Cin, Cout) -> (T-K+1, B, Cout), ReLU fused."""
    Kt, Cin, Cout = w_kco.shape
    T, B, _ = x_tbc.shape
    To = T - Kt + 1
    Bp = _round_up(B, 8)            # sublane-aligned tap slices (vregs are 8 rows)
    Cp = _round_up(Cin, 128)
    Np, tn = _lane_tiling(Cout)
    tn = min(tn, 256)               # keep the per-step resident set modest
    rows_out = To * Bp

    xp = jnp.pad(x_tbc.astype(jnp.bfloat16),
                 ((0, 0), (0, Bp - B), (0, Cp - Cin)))
    xf = xp.reshape(T * Bp, Cp)
    wp = jnp.pad(w_kco.astype(jnp.bfloat16),
                 ((0, 0), (0, Cp - Cin), (0, Np - Cout)))
    bp = jnp.pad(bias.astype(jnp.float32).reshape(1, Cout),
                 ((0, 0), (0, Np - Cout)))

    out = pl.pallas_call(
        functools.partial(_conv_taps_kernel, taps=Kt, rows_out=rows_out,
                          bstride=Bp),
        out_shape=jax.ShapeDtypeStruct((rows_out, Np), jnp.float32),
        grid_spec=pltpu.PrefetchScalarGridSpec(
            num_scalar_prefetch=0,
            grid=(Np // tn,),
            in_specs=[
                pl.BlockSpec((T * Bp, Cp), lambda j: (0, 0)),   # resident x
                pl.BlockSpec((Kt, Cp, tn), lambda j: (0, 0, j)),
                pl.BlockSpec((1, tn), lambda j: (0, j)),
            ],
            out_specs=pl.BlockSpec((rows_out, tn), lambda j: (0, j)),
        ),
        compiler_params=pltpu.CompilerParams(
            dimension_semantics=("parallel",),
            vmem_limit_bytes=32 * 1024 * 1024),   # headroom for long sequences
    )(xf, wp, bp)
    return out.reshape(To, Bp, Np)[:, :B, :Cout]


def maxpool_time(x_tbc):
    """MaxPool1d(kernel=2, stride=2) over time, floor semantics (odd-safe)."""
    To = (x_tbc.shape[0] // 2) * 2
    h = x_tbc[:To]
    return jnp.max(h.reshape(To // 2, 2, *x_tbc.shape[1:]), axis=1)


# ----------------------------------------------------------------------------
# BiLSTM recurrence: grid = (direction, time-chunk).  Direction is "parallel"
# (fwd/bwd on separate TensorCores on v7x); Tc timesteps are unrolled per grid
# step; h/c carried in VMEM scratch; w_hh resident; backward direction handled
# entirely by index-map + in-chunk reversal (gates stay in forward order).
# ----------------------------------------------------------------------------
def _lstm_chunk_kernel(g_ref, whh_ref, o_ref, h_ref, c_ref, *, tc, h2p):
    d = pl.program_id(0)            # 0 = forward, 1 = backward

    @pl.when(pl.program_id(1) == 0)
    def _init():
        h_ref[...] = jnp.zeros_like(h_ref)
        c_ref[...] = jnp.zeros_like(c_ref)

    w_hh = whh_ref[...]
    for t in range(tc):
        tl = (1 - d) * t + d * (tc - 1 - t)   # local time index (reversed for bwd)
        gates = g_ref[tl] + jnp.dot(h_ref[...], w_hh,
                                    preferred_element_type=jnp.float32)
        i_g = jax.nn.sigmoid(gates[:, 0 * h2p:1 * h2p])   # gate slices are
        f_g = jax.nn.sigmoid(gates[:, 1 * h2p:2 * h2p])   # 128-lane aligned
        g_g = jnp.tanh(gates[:, 2 * h2p:3 * h2p])
        o_g = jax.nn.sigmoid(gates[:, 3 * h2p:4 * h2p])
        c_new = f_g * c_ref[...] + i_g * g_g
        h_new = o_g * jnp.tanh(c_new)
        c_ref[...] = c_new
        h_ref[...] = h_new
        o_ref[tl] = h_new


def lstm_recurrence(gates, w_hh, h2p, tc):
    """gates: (T, B, 8*h2p) f32 (fwd cols [0:4h2p], bwd cols [4h2p:8h2p]).
    w_hh: (2, h2p, 4*h2p).  Returns (hs_fwd, hs_bwd), both forward-time order."""
    T, B, G2 = gates.shape
    G = G2 // 2
    Tp = _round_up(T, tc)
    if Tp != T:
        # zero gates at the tail are harmless: bwd processes them first and
        # h/c stay exactly 0; fwd processes them last (outputs sliced away).
        gates = jnp.pad(gates, ((0, Tp - T), (0, 0), (0, 0)))
    nchunks = Tp // tc

    def g_map(d, c):
        return ((1 - d) * c + d * (nchunks - 1 - c), 0, d)

    def o_map(d, c):
        return (d, (1 - d) * c + d * (nchunks - 1 - c), 0, 0)

    out = pl.pallas_call(
        functools.partial(_lstm_chunk_kernel, tc=tc, h2p=h2p),
        out_shape=jax.ShapeDtypeStruct((2, Tp, B, h2p), jnp.float32),
        grid_spec=pltpu.PrefetchScalarGridSpec(
            num_scalar_prefetch=0,
            grid=(2, nchunks),
            in_specs=[
                pl.BlockSpec((tc, B, G), g_map),
                pl.BlockSpec((None, h2p, G), lambda d, c: (d, 0, 0)),
            ],
            out_specs=pl.BlockSpec((None, tc, B, h2p), o_map),
            scratch_shapes=[pltpu.VMEM((B, h2p), jnp.float32),
                            pltpu.VMEM((B, h2p), jnp.float32)],
        ),
        compiler_params=pltpu.CompilerParams(
            dimension_semantics=("parallel", "arbitrary")),
    )(gates, w_hh)
    return out[0, :T], out[1, :T]


def bilstm_layer(x_tbh, layer, tc=16):
    """One bidirectional LSTM layer: fused fwd+bwd input projection (one big
    matmul, gate-padded columns, biases folded in) + Pallas recurrence."""
    T, B, D = x_tbh.shape
    h2 = D // 2
    h2p = layer['w_hh'].shape[1]
    gates = tiled_matmul(x_tbh.reshape(T * B, D), layer['w_in'],
                         bias=layer['b_in'])
    gates = gates.reshape(T, B, 8 * h2p)
    hs_f, hs_b = lstm_recurrence(gates, layer['w_hh'], h2p=h2p, tc=min(tc, T))
    return jnp.concatenate([hs_f[..., :h2], hs_b[..., :h2]], axis=-1)


# ----------------------------------------------------------------------------
# Shared NormLinear classifier: column-norm scale fused into matmul epilogue.
# ----------------------------------------------------------------------------
def norm_linear(feats, weight):
    col_norm = jnp.sqrt(jnp.sum(weight.astype(jnp.float32) ** 2, axis=0))
    inv = 1.0 / jnp.maximum(col_norm, 1e-12)     # F.normalize(dim=0, eps=1e-12)
    return tiled_matmul(feats, weight, bias=None, scale=inv)


# ----------------------------------------------------------------------------
# SLRModel forward (framewise path, eval semantics, share_classifier=True)
# ----------------------------------------------------------------------------
def slr_forward(params, x, len_x):
    hidden, ncls = params['cls_w'].shape

    # time-major once; downstream kernels keep (time*batch, channels) rows
    xt = jnp.transpose(x, (2, 0, 1))                       # (T, B, C)

    # ---- TemporalConv: ['K5','P2','K5','P2'], use_bn=False ----
    h = conv1d_relu_stage(xt, params['conv1_w'], params['conv1_b'])
    h = maxpool_time(h)
    h = conv1d_relu_stage(h, params['conv2_w'], params['conv2_b'])
    visual_feat = maxpool_time(h)                          # (T', B, H)
    lgt = ((len_x - 4) // 2 - 4) // 2                      # feat_len

    t_out, bsz, _ = visual_feat.shape

    # ---- BiLSTMLayer (2 layers, bidirectional) ----
    preds = visual_feat
    for layer in params['lstm']:
        preds = bilstm_layer(preds, layer)                 # (T', B, H)

    # ---- shared NormLinear classifier: both heads in one fused matmul ----
    feats = jnp.concatenate([visual_feat.reshape(t_out * bsz, hidden),
                             preds.reshape(t_out * bsz, hidden)], axis=0)
    logits = norm_linear(feats, params['cls_w'])           # (2*T'*B, ncls)
    conv_logits = logits[:t_out * bsz].reshape(t_out, bsz, ncls)
    seq_logits = logits[t_out * bsz:].reshape(t_out, bsz, ncls)

    return {
        'framewise_features': x,
        'visual_features': visual_feat,
        'feat_len': lgt,
        'conv_logits': conv_logits,
        'sequence_logits': seq_logits,
        'conv_sents': None,         # TODO(synk): beam decoder not implemented
        'recognized_sents': None,   # TODO(synk): beam decoder not implemented
        'loss_LiftPool_u': None,
        'loss_LiftPool_p': None,
    }


# ----------------------------------------------------------------------------
# Deterministic parameter init: generate PyTorch-natural LSTM weights, then
# pack into the fused, gate-padded kernel layout (exact: pads are zeros).
# ----------------------------------------------------------------------------
def _xavier_uniform(key, shape, gain):
    fan_in, fan_out = shape
    a = gain * math.sqrt(6.0 / (fan_in + fan_out))
    return jax.random.uniform(key, shape, jnp.float32, -a, a)


def _pack_gate_cols(m, h2, h2p):
    """(rows, 4*h2) -> (rows, 4*h2p): each i/f/g/o block padded to h2p lanes."""
    return jnp.concatenate(
        [jnp.pad(m[:, j * h2:(j + 1) * h2], ((0, 0), (0, h2p - h2)))
         for j in range(4)], axis=1)


def _pack_lstm_dir(w_ih, w_hh, b_ih, b_hh, h2, h2p):
    w_in = _pack_gate_cols(w_ih.T, h2, h2p)                        # (D, 4*h2p)
    b_in = _pack_gate_cols((b_ih + b_hh).reshape(1, -1), h2, h2p).reshape(-1)
    whh = _pack_gate_cols(w_hh.T, h2, h2p)                         # (h2, 4*h2p)
    whh = jnp.pad(whh, ((0, h2p - h2), (0, 0)))                    # (h2p, 4*h2p)
    return w_in, b_in, whh


def init_params(key, in_dim, hidden, num_classes):
    h2 = hidden // 2
    h2p = _round_up(h2, 128)
    keys = jax.random.split(key, 5)

    def conv_init(k, cin, cout, ksz):
        bound = 1.0 / math.sqrt(cin * ksz)
        kw, kb = jax.random.split(k)
        w = jax.random.uniform(kw, (ksz, cin, cout), jnp.float32, -bound, bound)
        b = jax.random.uniform(kb, (cout,), jnp.float32, -bound, bound)
        return w.astype(jnp.bfloat16), b       # weights stored bf16 (MXU rhs)

    def lstm_layer_init(k, din):
        ks = jax.random.split(k, 8)
        bound = 1.0 / math.sqrt(h2)

        def u(kk, shape):
            return jax.random.uniform(kk, shape, jnp.float32, -bound, bound)

        packed = []
        for d in range(2):                     # 0: forward, 1: backward
            w_ih = u(ks[4 * d + 0], (4 * h2, din))
            w_hh = u(ks[4 * d + 1], (4 * h2, h2))
            b_ih = u(ks[4 * d + 2], (4 * h2,))
            b_hh = u(ks[4 * d + 3], (4 * h2,))
            packed.append(_pack_lstm_dir(w_ih, w_hh, b_ih, b_hh, h2, h2p))
        (wif, bif, whf), (wib, bib, whb) = packed
        return {
            # fwd gates in cols [0:4h2p], bwd gates in cols [4h2p:8h2p]
            'w_in': jnp.concatenate([wif, wib], axis=1).astype(jnp.bfloat16),
            'b_in': jnp.concatenate([bif, bib], axis=0),           # f32
            'w_hh': jnp.stack([whf, whb], axis=0),                 # (2,h2p,4h2p) f32
        }

    c1w, c1b = conv_init(keys[0], in_dim, hidden, 5)
    c2w, c2b = conv_init(keys[1], hidden, hidden, 5)
    return {
        'conv1_w': c1w, 'conv1_b': c1b,
        'conv2_w': c2w, 'conv2_b': c2b,
        # NormLinear weight: xavier_uniform with relu gain (sqrt(2)), kept f32
        'cls_w': _xavier_uniform(keys[2], (hidden, num_classes),
                                 gain=math.sqrt(2.0)),
        'lstm': [lstm_layer_init(keys[3], hidden),
                 lstm_layer_init(keys[4], hidden)],
    }


# ----------------------------------------------------------------------------
if __name__ == "__main__":
    B, C, T = 2, 32, 32          # framewise features: (batch, hidden, time)
    HIDDEN = 32                  # hidden_size (== framewise feature dim)
    NUM_CLASSES = 16

    key = jax.random.PRNGKey(0)
    kp, kx = jax.random.split(key)
    params = init_params(kp, C, HIDDEN, NUM_CLASSES)

    x = jax.random.normal(kx, (B, C, T), jnp.float32)
    len_x = jnp.array([32, 28], jnp.int32)

    fwd = jax.jit(slr_forward)
    out = fwd(params, x, len_x)
    jax.block_until_ready(out['sequence_logits'])
    jax.block_until_ready(out['conv_logits'])
    jax.block_until_ready(out['feat_len'])

    t_exp = ((T - 4) // 2 - 4) // 2
    assert out['sequence_logits'].shape == (t_exp, B, NUM_CLASSES)
    assert out['conv_logits'].shape == (t_exp, B, NUM_CLASSES)
    assert out['visual_features'].shape == (t_exp, B, HIDDEN)
    assert out['feat_len'].shape == (B,)
    assert bool(jnp.all(jnp.isfinite(out['sequence_logits'])))
    assert bool(jnp.all(jnp.isfinite(out['conv_logits'])))
    print("KERNEL_OK")
</pallas_src>

<mosaic_0001>
module attributes {stable_mosaic.version = 11 : i64} {
  func.func @_conv_taps_kernel(%arg0: i32, %arg1: memref<256x128xbf16, #tpu.memory_space<vmem>>, %arg2: memref<5x128x128xbf16, #tpu.memory_space<vmem>>, %arg3: memref<1x128xf32, #tpu.memory_space<vmem>>, %arg4: memref<224x128xf32, #tpu.memory_space<vmem>>) attributes {dimension_semantics = [#tpu.dimension_semantics<parallel>], iteration_bounds = array<i64: 1>, scalar_prefetch = 0 : i64, scratch_operands = 0 : i64, tpu.core_type = #tpu.core_type<tc>, window_params = [{pipeline_mode = #tpu.pipeline_mode<synchronous>, transform_indices = @transform_0, window_bounds = array<i64: 256, 128>}, {transform_indices = @transform_1, window_bounds = array<i64: 5, 128, 128>}, {transform_indices = @transform_2, window_bounds = array<i64: 1, 128>}, {transform_indices = @transform_3, window_bounds = array<i64: 224, 128>}]} {
    %c0 = arith.constant 0 : index
    %c0_0 = arith.constant 0 : index
    %0 = vector.load %arg1[%c0, %c0_0] : memref<256x128xbf16, #tpu.memory_space<vmem>>, vector<224x128xbf16>
    %c0_1 = arith.constant 0 : index
    %c0_2 = arith.constant 0 : index
    %c0_3 = arith.constant 0 : index
    %1 = vector.load %arg2[%c0_1, %c0_2, %c0_3] : memref<5x128x128xbf16, #tpu.memory_space<vmem>>, vector<1x128x128xbf16>
    %2 = vector.shape_cast %1 : vector<1x128x128xbf16> to vector<128x128xbf16>
    %cst = arith.constant dense<0.000000e+00> : vector<224x128xf32>
    %3 = tpu.matmul %0, %2, %cst {dimension_numbers = #tpu.dot_dimension_numbers<[1], [0], [0], [1], [0, 0, 1, 1], [], []>} : vector<224x128xbf16>, vector<128x128xbf16>, vector<224x128xf32> -> vector<224x128xf32>
    %c0_4 = arith.constant 0 : index
    %c0_5 = arith.constant 0 : index
    %4 = vector.load %arg4[%c0_4, %c0_5] : memref<224x128xf32, #tpu.memory_space<vmem>>, vector<224x128xf32>
    tpu.vector_store %arg4[%c0_4, %c0_5], %3 {strides = array<i32>} : memref<224x128xf32, #tpu.memory_space<vmem>>, vector<224x128xf32>,
    %c0_6 = arith.constant 0 : index
    %c0_7 = arith.constant 0 : index
    %5 = vector.load %arg4[%c0_6, %c0_7] : memref<224x128xf32, #tpu.memory_space<vmem>>, vector<224x128xf32>
    %c8 = arith.constant 8 : index
    %c0_8 = arith.constant 0 : index
    %6 = vector.load %arg1[%c8, %c0_8] : memref<256x128xbf16, #tpu.memory_space<vmem>>, vector<224x128xbf16>
    %c1 = arith.constant 1 : index
    %c0_9 = arith.constant 0 : index
    %c0_10 = arith.constant 0 : index
    %7 = vector.load %arg2[%c1, %c0_9, %c0_10] : memref<5x128x128xbf16, #tpu.memory_space<vmem>>, vector<1x128x128xbf16>
    %8 = vector.shape_cast %7 : vector<1x128x128xbf16> to vector<128x128xbf16>
    %cst_11 = arith.constant dense<0.000000e+00> : vector<224x128xf32>
    %9 = tpu.matmul %6, %8, %cst_11 {dimension_numbers = #tpu.dot_dimension_numbers<[1], [0], [0], [1], [0, 0, 1, 1], [], []>} : vector<224x128xbf16>, vector<128x128xbf16>, vector<224x128xf32> -> vector<224x128xf32>
    %10 = arith.addf %5, %9 : vector<224x128xf32>
    %c0_12 = arith.constant 0 : index
    %c0_13 = arith.constant 0 : index
    %11 = vector.load %arg4[%c0_12, %c0_13] : memref<224x128xf32, #tpu.memory_space<vmem>>, vector<224x128xf32>
    tpu.vector_store %arg4[%c0_12, %c0_13], %10 {strides = array<i32>} : memref<224x128xf32, #tpu.memory_space<vmem>>, vector<224x128xf32>,
    %c0_14 = arith.constant 0 : index
    %c0_15 = arith.constant 0 : index
    %12 = vector.load %arg4[%c0_14, %c0_15] : memref<224x128xf32, #tpu.memory_space<vmem>>, vector<224x128xf32>
    %c16 = arith.constant 16 : index
    %c0_16 = arith.constant 0 : index
    %13 = vector.load %arg1[%c16, %c0_16] : memref<256x128xbf16, #tpu.memory_space<vmem>>, vector<224x128xbf16>
    %c2 = arith.constant 2 : index
    %c0_17 = arith.constant 0 : index
    %c0_18 = arith.constant 0 : index
    %14 = vector.load %arg2[%c2, %c0_17, %c0_18] : memref<5x128x128xbf16, #tpu.memory_space<vmem>>, vector<1x128x128xbf16>
    %15 = vector.shape_cast %14 : vector<1x128x128xbf16> to vector<128x128xbf16>
    %cst_19 = arith.constant dense<0.000000e+00> : vector<224x128xf32>
    %16 = tpu.matmul %13, %15, %cst_19 {dimension_numbers = #tpu.dot_dimension_numbers<[1], [0], [0], [1], [0, 0, 1, 1], [], []>} : vector<224x128xbf16>, vector<128x128xbf16>, vector<224x128xf32> -> vector<224x128xf32>
    %17 = arith.addf %12, %16 : vector<224x128xf32>
    %c0_20 = arith.constant 0 : index
    %c0_21 = arith.constant 0 : index
    %18 = vector.load %arg4[%c0_20, %c0_21] : memref<224x128xf32, #tpu.memory_space<vmem>>, vector<224x128xf32>
    tpu.vector_store %arg4[%c0_20, %c0_21], %17 {strides = array<i32>} : memref<224x128xf32, #tpu.memory_space<vmem>>, vector<224x128xf32>,
    %c0_22 = arith.constant 0 : index
    %c0_23 = arith.constant 0 : index
    %19 = vector.load %arg4[%c0_22, %c0_23] : memref<224x128xf32, #tpu.memory_space<vmem>>, vector<224x128xf32>
    %c24 = arith.constant 24 : index
    %c0_24 = arith.constant 0 : index
    %20 = vector.load %arg1[%c24, %c0_24] : memref<256x128xbf16, #tpu.memory_space<vmem>>, vector<224x128xbf16>
    %c3 = arith.constant 3 : index
    %c0_25 = arith.constant 0 : index
    %c0_26 = arith.constant 0 : index
    %21 = vector.load %arg2[%c3, %c0_25, %c0_26] : memref<5x128x128xbf16, #tpu.memory_space<vmem>>, vector<1x128x128xbf16>
    %22 = vector.shape_cast %21 : vector<1x128x128xbf16> to vector<128x128xbf16>
    %cst_27 = arith.constant dense<0.000000e+00> : vector<224x128xf32>
    %23 = tpu.matmul %20, %22, %cst_27 {dimension_numbers = #tpu.dot_dimension_numbers<[1], [0], [0], [1], [0, 0, 1, 1], [], []>} : vector<224x128xbf16>, vector<128x128xbf16>, vector<224x128xf32> -> vector<224x128xf32>
    %24 = arith.addf %19, %23 : vector<224x128xf32>
    %c0_28 = arith.constant 0 : index
    %c0_29 = arith.constant 0 : index
    %25 = vector.load %arg4[%c0_28, %c0_29] : memref<224x128xf32, #tpu.memory_space<vmem>>, vector<224x128xf32>
    tpu.vector_store %arg4[%c0_28, %c0_29], %24 {strides = array<i32>} : memref<224x128xf32, #tpu.memory_space<vmem>>, vector<224x128xf32>,
    %c0_30 = arith.constant 0 : index
    %c0_31 = arith.constant 0 : index
    %26 = vector.load %arg4[%c0_30, %c0_31] : memref<224x128xf32, #tpu.memory_space<vmem>>, vector<224x128xf32>
    %c32 = arith.constant 32 : index
    %c0_32 = arith.constant 0 : index
    %27 = vector.load %arg1[%c32, %c0_32] : memref<256x128xbf16, #tpu.memory_space<vmem>>, vector<224x128xbf16>
    %c4 = arith.constant 4 : index
    %c0_33 = arith.constant 0 : index
    %c0_34 = arith.constant 0 : index
    %28 = vector.load %arg2[%c4, %c0_33, %c0_34] : memref<5x128x128xbf16, #tpu.memory_space<vmem>>, vector<1x128x128xbf16>
    %29 = vector.shape_cast %28 : vector<1x128x128xbf16> to vector<128x128xbf16>
    %cst_35 = arith.constant dense<0.000000e+00> : vector<224x128xf32>
    %30 = tpu.matmul %27, %29, %cst_35 {dimension_numbers = #tpu.dot_dimension_numbers<[1], [0], [0], [1], [0, 0, 1, 1], [], []>} : vector<224x128xbf16>, vector<128x128xbf16>, vector<224x128xf32> -> vector<224x128xf32>
    %31 = arith.addf %26, %30 : vector<224x128xf32>
    %c0_36 = arith.constant 0 : index
    %c0_37 = arith.constant 0 : index
    %32 = vector.load %arg4[%c0_36, %c0_37] : memref<224x128xf32, #tpu.memory_space<vmem>>, vector<224x128xf32>
    tpu.vector_store %arg4[%c0_36, %c0_37], %31 {strides = array<i32>} : memref<224x128xf32, #tpu.memory_space<vmem>>, vector<224x128xf32>,
    %c0_38 = arith.constant 0 : index
    %c0_39 = arith.constant 0 : index
    %33 = vector.load %arg4[%c0_38, %c0_39] : memref<224x128xf32, #tpu.memory_space<vmem>>, vector<224x128xf32>
    %c0_40 = arith.constant 0 : index
    %c0_41 = arith.constant 0 : index
    %34 = vector.load %arg3[%c0_40, %c0_41] : memref<1x128xf32, #tpu.memory_space<vmem>>, vector<1x128xf32>
    %35 = vector.broadcast %34 : vector<1x128xf32> to vector<224x128xf32>
    %36 = arith.addf %33, %35 : vector<224x128xf32>
    %cst_42 = arith.constant 0.000000e+00 : f32
    %37 = vector.broadcast %cst_42 : f32 to vector<224x128xf32>
    %38 = arith.maximumf %36, %37 : vector<224x128xf32>
    %c0_43 = arith.constant 0 : index
    %c0_44 = arith.constant 0 : index
    %39 = vector.load %arg4[%c0_43, %c0_44] : memref<224x128xf32, #tpu.memory_space<vmem>>, vector<224x128xf32>
    tpu.vector_store %arg4[%c0_43, %c0_44], %38 {strides = array<i32>} : memref<224x128xf32, #tpu.memory_space<vmem>>, vector<224x128xf32>,
    return
  }
  func.func @transform_0(%arg0: i32) -> (i32, i32) {
    %c0_i32 = arith.constant 0 : i32
    %c0_i32_0 = arith.constant 0 : i32
    %c0_i32_1 = arith.constant 0 : i32
    return %c0_i32, %c0_i32_0 : i32, i32
  }
  func.func @transform_1(%arg0: i32) -> (i32, i32, i32) {
    %c0_i32 = arith.constant 0 : i32
    %c0_i32_0 = arith.constant 0 : i32
    %c0_i32_1 = arith.constant 0 : i32
    return %c0_i32, %c0_i32_0, %arg0 : i32, i32, i32
  }
  func.func @transform_2(%arg0: i32) -> (i32, i32) {
    %c0_i32 = arith.constant 0 : i32
    %c0_i32_0 = arith.constant 0 : i32
    return %c0_i32, %arg0 : i32, i32
  }
  func.func @transform_3(%arg0: i32) -> (i32, i32) {
    %c0_i32 = arith.constant 0 : i32
    %c0_i32_0 = arith.constant 0 : i32
    return %c0_i32, %arg0 : i32, i32
  }
}

module attributes {stable_mosaic.version = 11 : i64} {
  func.func @_conv_taps_kernel(%arg0: i32, %arg1: memref<112x128xbf16, #tpu.memory_space<vmem>>, %arg2: memref<5x128x128xbf16, #tpu.memory_space<vmem>>, %arg3: memref<1x128xf32, #tpu.memory_space<vmem>>, %arg4: memref<80x128xf32, #tpu.memory_space<vmem>>) attributes {dimension_semantics = [#tpu.dimension_semantics<parallel>], iteration_bounds = array<i64: 1>, scalar_prefetch = 0 : i64, scratch_operands = 0 : i64, tpu.core_type = #tpu.core_type<tc>, window_params = [{pipeline_mode = #tpu.pipeline_mode<synchronous>, transform_indices = @transform_0, window_bounds = array<i64: 112, 128>}, {transform_indices = @transform_1, window_bounds = array<i64: 5, 128, 128>}, {transform_indices = @transform_2, window_bounds = array<i64: 1, 128>}, {transform_indices = @transform_3, window_bounds = array<i64: 80, 128>}]} {
    %c0 = arith.constant 0 : index
    %c0_0 = arith.constant 0 : index
    %0 = vector.load %arg1[%c0, %c0_0] : memref<112x128xbf16, #tpu.memory_space<vmem>>, vector<80x128xbf16>
    %c0_1 = arith.constant 0 : index
    %c0_2 = arith.constant 0 : index
    %c0_3 = arith.constant 0 : index
    %1 = vector.load %arg2[%c0_1, %c0_2, %c0_3] : memref<5x128x128xbf16, #tpu.memory_space<vmem>>, vector<1x128x128xbf16>
    %2 = vector.shape_cast %1 : vector<1x128x128xbf16> to vector<128x128xbf16>
    %cst = arith.constant dense<0.000000e+00> : vector<80x128xf32>
    %3 = tpu.matmul %0, %2, %cst {dimension_numbers = #tpu.dot_dimension_numbers<[1], [0], [0], [1], [0, 0, 1, 1], [], []>} : vector<80x128xbf16>, vector<128x128xbf16>, vector<80x128xf32> -> vector<80x128xf32>
    %c0_4 = arith.constant 0 : index
    %c0_5 = arith.constant 0 : index
    %4 = vector.load %arg4[%c0_4, %c0_5] : memref<80x128xf32, #tpu.memory_space<vmem>>, vector<80x128xf32>
    tpu.vector_store %arg4[%c0_4, %c0_5], %3 {strides = array<i32>} : memref<80x128xf32, #tpu.memory_space<vmem>>, vector<80x128xf32>,
    %c0_6 = arith.constant 0 : index
    %c0_7 = arith.constant 0 : index
    %5 = vector.load %arg4[%c0_6, %c0_7] : memref<80x128xf32, #tpu.memory_space<vmem>>, vector<80x128xf32>
    %c8 = arith.constant 8 : index
    %c0_8 = arith.constant 0 : index
    %6 = vector.load %arg1[%c8, %c0_8] : memref<112x128xbf16, #tpu.memory_space<vmem>>, vector<80x128xbf16>
    %c1 = arith.constant 1 : index
    %c0_9 = arith.constant 0 : index
    %c0_10 = arith.constant 0 : index
    %7 = vector.load %arg2[%c1, %c0_9, %c0_10] : memref<5x128x128xbf16, #tpu.memory_space<vmem>>, vector<1x128x128xbf16>
    %8 = vector.shape_cast %7 : vector<1x128x128xbf16> to vector<128x128xbf16>
    %cst_11 = arith.constant dense<0.000000e+00> : vector<80x128xf32>
    %9 = tpu.matmul %6, %8, %cst_11 {dimension_numbers = #tpu.dot_dimension_numbers<[1], [0], [0], [1], [0, 0, 1, 1], [], []>} : vector<80x128xbf16>, vector<128x128xbf16>, vector<80x128xf32> -> vector<80x128xf32>
    %10 = arith.addf %5, %9 : vector<80x128xf32>
    %c0_12 = arith.constant 0 : index
    %c0_13 = arith.constant 0 : index
    %11 = vector.load %arg4[%c0_12, %c0_13] : memref<80x128xf32, #tpu.memory_space<vmem>>, vector<80x128xf32>
    tpu.vector_store %arg4[%c0_12, %c0_13], %10 {strides = array<i32>} : memref<80x128xf32, #tpu.memory_space<vmem>>, vector<80x128xf32>,
    %c0_14 = arith.constant 0 : index
    %c0_15 = arith.constant 0 : index
    %12 = vector.load %arg4[%c0_14, %c0_15] : memref<80x128xf32, #tpu.memory_space<vmem>>, vector<80x128xf32>
    %c16 = arith.constant 16 : index
    %c0_16 = arith.constant 0 : index
    %13 = vector.load %arg1[%c16, %c0_16] : memref<112x128xbf16, #tpu.memory_space<vmem>>, vector<80x128xbf16>
    %c2 = arith.constant 2 : index
    %c0_17 = arith.constant 0 : index
    %c0_18 = arith.constant 0 : index
    %14 = vector.load %arg2[%c2, %c0_17, %c0_18] : memref<5x128x128xbf16, #tpu.memory_space<vmem>>, vector<1x128x128xbf16>
    %15 = vector.shape_cast %14 : vector<1x128x128xbf16> to vector<128x128xbf16>
    %cst_19 = arith.constant dense<0.000000e+00> : vector<80x128xf32>
    %16 = tpu.matmul %13, %15, %cst_19 {dimension_numbers = #tpu.dot_dimension_numbers<[1], [0], [0], [1], [0, 0, 1, 1], [], []>} : vector<80x128xbf16>, vector<128x128xbf16>, vector<80x128xf32> -> vector<80x128xf32>
    %17 = arith.addf %12, %16 : vector<80x128xf32>
    %c0_20 = arith.constant 0 : index
    %c0_21 = arith.constant 0 : index
    %18 = vector.load %arg4[%c0_20, %c0_21] : memref<80x128xf32, #tpu.memory_space<vmem>>, vector<80x128xf32>
    tpu.vector_store %arg4[%c0_20, %c0_21], %17 {strides = array<i32>} : memref<80x128xf32, #tpu.memory_space<vmem>>, vector<80x128xf32>,
    %c0_22 = arith.constant 0 : index
    %c0_23 = arith.constant 0 : index
    %19 = vector.load %arg4[%c0_22, %c0_23] : memref<80x128xf32, #tpu.memory_space<vmem>>, vector<80x128xf32>
    %c24 = arith.constant 24 : index
    %c0_24 = arith.constant 0 : index
    %20 = vector.load %arg1[%c24, %c0_24] : memref<112x128xbf16, #tpu.memory_space<vmem>>, vector<80x128xbf16>
    %c3 = arith.constant 3 : index
    %c0_25 = arith.constant 0 : index
    %c0_26 = arith.constant 0 : index
    %21 = vector.load %arg2[%c3, %c0_25, %c0_26] : memref<5x128x128xbf16, #tpu.memory_space<vmem>>, vector<1x128x128xbf16>
    %22 = vector.shape_cast %21 : vector<1x128x128xbf16> to vector<128x128xbf16>
    %cst_27 = arith.constant dense<0.000000e+00> : vector<80x128xf32>
    %23 = tpu.matmul %20, %22, %cst_27 {dimension_numbers = #tpu.dot_dimension_numbers<[1], [0], [0], [1], [0, 0, 1, 1], [], []>} : vector<80x128xbf16>, vector<128x128xbf16>, vector<80x128xf32> -> vector<80x128xf32>
    %24 = arith.addf %19, %23 : vector<80x128xf32>
    %c0_28 = arith.constant 0 : index
    %c0_29 = arith.constant 0 : index
    %25 = vector.load %arg4[%c0_28, %c0_29] : memref<80x128xf32, #tpu.memory_space<vmem>>, vector<80x128xf32>
    tpu.vector_store %arg4[%c0_28, %c0_29], %24 {strides = array<i32>} : memref<80x128xf32, #tpu.memory_space<vmem>>, vector<80x128xf32>,
    %c0_30 = arith.constant 0 : index
    %c0_31 = arith.constant 0 : index
    %26 = vector.load %arg4[%c0_30, %c0_31] : memref<80x128xf32, #tpu.memory_space<vmem>>, vector<80x128xf32>
    %c32 = arith.constant 32 : index
    %c0_32 = arith.constant 0 : index
    %27 = vector.load %arg1[%c32, %c0_32] : memref<112x128xbf16, #tpu.memory_space<vmem>>, vector<80x128xbf16>
    %c4 = arith.constant 4 : index
    %c0_33 = arith.constant 0 : index
    %c0_34 = arith.constant 0 : index
    %28 = vector.load %arg2[%c4, %c0_33, %c0_34] : memref<5x128x128xbf16, #tpu.memory_space<vmem>>, vector<1x128x128xbf16>
    %29 = vector.shape_cast %28 : vector<1x128x128xbf16> to vector<128x128xbf16>
    %cst_35 = arith.constant dense<0.000000e+00> : vector<80x128xf32>
    %30 = tpu.matmul %27, %29, %cst_35 {dimension_numbers = #tpu.dot_dimension_numbers<[1], [0], [0], [1], [0, 0, 1, 1], [], []>} : vector<80x128xbf16>, vector<128x128xbf16>, vector<80x128xf32> -> vector<80x128xf32>
    %31 = arith.addf %26, %30 : vector<80x128xf32>
    %c0_36 = arith.constant 0 : index
    %c0_37 = arith.constant 0 : index
    %32 = vector.load %arg4[%c0_36, %c0_37] : memref<80x128xf32, #tpu.memory_space<vmem>>, vector<80x128xf32>
    tpu.vector_store %arg4[%c0_36, %c0_37], %31 {strides = array<i32>} : memref<80x128xf32, #tpu.memory_space<vmem>>, vector<80x128xf32>,
    %c0_38 = arith.constant 0 : index
    %c0_39 = arith.constant 0 : index
    %33 = vector.load %arg4[%c0_38, %c0_39] : memref<80x128xf32, #tpu.memory_space<vmem>>, vector<80x128xf32>
    %c0_40 = arith.constant 0 : index
    %c0_41 = arith.constant 0 : index
    %34 = vector.load %arg3[%c0_40, %c0_41] : memref<1x128xf32, #tpu.memory_space<vmem>>, vector<1x128xf32>
    %35 = vector.broadcast %34 : vector<1x128xf32> to vector<80x128xf32>
    %36 = arith.addf %33, %35 : vector<80x128xf32>
    %cst_42 = arith.constant 0.000000e+00 : f32
    %37 = vector.broadcast %cst_42 : f32 to vector<80x128xf32>
    %38 = arith.maximumf %36, %37 : vector<80x128xf32>
    %c0_43 = arith.constant 0 : index
    %c0_44 = arith.constant 0 : index
    %39 = vector.load %arg4[%c0_43, %c0_44] : memref<80x128xf32, #tpu.memory_space<vmem>>, vector<80x128xf32>
    tpu.vector_store %arg4[%c0_43, %c0_44], %38 {strides = array<i32>} : memref<80x128xf32, #tpu.memory_space<vmem>>, vector<80x128xf32>,
    return
  }
  func.func @transform_0(%arg0: i32) -> (i32, i32) {
    %c0_i32 = arith.constant 0 : i32
    %c0_i32_0 = arith.constant 0 : i32
    %c0_i32_1 = arith.constant 0 : i32
    return %c0_i32, %c0_i32_0 : i32, i32
  }
  func.func @transform_1(%arg0: i32) -> (i32, i32, i32) {
    %c0_i32 = arith.constant 0 : i32
    %c0_i32_0 = arith.constant 0 : i32
    %c0_i32_1 = arith.constant 0 : i32
    return %c0_i32, %c0_i32_0, %arg0 : i32, i32, i32
  }
  func.func @transform_2(%arg0: i32) -> (i32, i32) {
    %c0_i32 = arith.constant 0 : i32
    %c0_i32_0 = arith.constant 0 : i32
    return %c0_i32, %arg0 : i32, i32
  }
  func.func @transform_3(%arg0: i32) -> (i32, i32) {
    %c0_i32 = arith.constant 0 : i32
    %c0_i32_0 = arith.constant 0 : i32
    return %c0_i32, %arg0 : i32, i32
  }
}

module attributes {stable_mosaic.version = 11 : i64} {
  func.func @_mm_kernel(%arg0: i32, %arg1: i32, %arg2: i32, %arg3: memref<16x128xbf16, #tpu.memory_space<vmem>>, %arg4: memref<128x512xbf16, #tpu.memory_space<vmem>>, %arg5: memref<1x512xf32, #tpu.memory_space<vmem>>, %arg6: memref<1x512xf32, #tpu.memory_space<vmem>>, %arg7: memref<16x512xf32, #tpu.memory_space<vmem>>) attributes {dimension_semantics = [#tpu.dimension_semantics<parallel>, #tpu.dimension_semantics<parallel>, #tpu.dimension_semantics<arbitrary>], iteration_bounds = array<i64: 1, 2, 1>, scalar_prefetch = 0 : i64, scratch_operands = 0 : i64, tpu.core_type = #tpu.core_type<tc>, window_params = [{transform_indices = @transform_0, window_bounds = array<i64: 16, 128>}, {transform_indices = @transform_1, window_bounds = array<i64: 128, 512>}, {transform_indices = @transform_2, window_bounds = array<i64: 1, 512>}, {transform_indices = @transform_3, window_bounds = array<i64: 1, 512>}, {transform_indices = @transform_4, window_bounds = array<i64: 16, 512>}]} {
    %c0_i32 = arith.constant 0 : i32
    %0 = arith.cmpi eq, %arg2, %c0_i32 : i32
    %1 = arith.extui %0 : i1 to i32
    %c0_i32_0 = arith.constant 0 : i32
    %2 = arith.cmpi ne, %1, %c0_i32_0 : i32
    scf.if %2 {
      %cst_10 = arith.constant 0.000000e+00 : f32
      %12 = vector.broadcast %cst_10 : f32 to vector<16x512xf32>
      %c0_11 = arith.constant 0 : index
      %c0_12 = arith.constant 0 : index
      %13 = vector.load %arg7[%c0_11, %c0_12] : memref<16x512xf32, #tpu.memory_space<vmem>>, vector<16x512xf32>
      tpu.vector_store %arg7[%c0_11, %c0_12], %12 {strides = array<i32>} : memref<16x512xf32, #tpu.memory_space<vmem>>, vector<16x512xf32>,
    } else {
    }
    %c0 = arith.constant 0 : index
    %c0_1 = arith.constant 0 : index
    %3 = vector.load %arg7[%c0, %c0_1] : memref<16x512xf32, #tpu.memory_space<vmem>>, vector<16x512xf32>
    %c0_2 = arith.constant 0 : index
    %c0_3 = arith.constant 0 : index
    %4 = vector.load %arg3[%c0_2, %c0_3] : memref<16x128xbf16, #tpu.memory_space<vmem>>, vector<16x128xbf16>
    %c0_4 = arith.constant 0 : index
    %c0_5 = arith.constant 0 : index
    %5 = vector.load %arg4[%c0_4, %c0_5] : memref<128x512xbf16, #tpu.memory_space<vmem>>, vector<128x512xbf16>
    %cst = arith.constant dense<0.000000e+00> : vector<16x512xf32>
    %6 = tpu.matmul %4, %5, %cst {dimension_numbers = #tpu.dot_dimension_numbers<[1], [0], [0], [1], [0, 0, 1, 1], [], []>} : vector<16x128xbf16>, vector<128x512xbf16>, vector<16x512xf32> -> vector<16x512xf32>
    %7 = arith.addf %3, %6 : vector<16x512xf32>
    %c0_6 = arith.constant 0 : index
    %c0_7 = arith.constant 0 : index
    %8 = vector.load %arg7[%c0_6, %c0_7] : memref<16x512xf32, #tpu.memory_space<vmem>>, vector<16x512xf32>
    tpu.vector_store %arg7[%c0_6, %c0_7], %7 {strides = array<i32>} : memref<16x512xf32, #tpu.memory_space<vmem>>, vector<16x512xf32>,
    %c0_i32_8 = arith.constant 0 : i32
    %9 = arith.cmpi eq, %arg2, %c0_i32_8 : i32
    %10 = arith.extui %9 : i1 to i32
    %c0_i32_9 = arith.constant 0 : i32
    %11 = arith.cmpi ne, %10, %c0_i32_9 : i32
    scf.if %11 {
      %c0_10 = arith.constant 0 : index
      %c0_11 = arith.constant 0 : index
      %12 = vector.load %arg7[%c0_10, %c0_11] : memref<16x512xf32, #tpu.memory_space<vmem>>, vector<16x512xf32>
      %c0_12 = arith.constant 0 : index
      %c0_13 = arith.constant 0 : index
      %13 = vector.load %arg5[%c0_12, %c0_13] : memref<1x512xf32, #tpu.memory_space<vmem>>, vector<1x512xf32>
      %14 = vector.broadcast %13 : vector<1x512xf32> to vector<16x512xf32>
      %15 = arith.addf %12, %14 : vector<16x512xf32>
      %c0_14 = arith.constant 0 : index
      %c0_15 = arith.constant 0 : index
      %16 = vector.load %arg6[%c0_14, %c0_15] : memref<1x512xf32, #tpu.memory_space<vmem>>, vector<1x512xf32>
      %17 = vector.broadcast %16 : vector<1x512xf32> to vector<16x512xf32>
      %18 = arith.mulf %15, %17 : vector<16x512xf32>
      %c0_16 = arith.constant 0 : index
      %c0_17 = arith.constant 0 : index
      %19 = vector.load %arg7[%c0_16, %c0_17] : memref<16x512xf32, #tpu.memory_space<vmem>>, vector<16x512xf32>
      tpu.vector_store %arg7[%c0_16, %c0_17], %18 {strides = array<i32>} : memref<16x512xf32, #tpu.memory_space<vmem>>, vector<16x512xf32>,
    } else {
    }
    return
  }
  func.func @transform_0(%arg0: i32, %arg1: i32, %arg2: i32) -> (i32, i32) {
    %c0_i32 = arith.constant 0 : i32
    return %arg0, %arg2 : i32, i32
  }
  func.func @transform_1(%arg0: i32, %arg1: i32, %arg2: i32) -> (i32, i32) {
    %c0_i32 = arith.constant 0 : i32
    return %arg2, %arg1 : i32, i32
  }
  func.func @transform_2(%arg0: i32, %arg1: i32, %arg2: i32) -> (i32, i32) {
    %c0_i32 = arith.constant 0 : i32
    %c0_i32_0 = arith.constant 0 : i32
    return %c0_i32, %arg1 : i32, i32
  }
  func.func @transform_3(%arg0: i32, %arg1: i32, %arg2: i32) -> (i32, i32) {
    %c0_i32 = arith.constant 0 : i32
    %c0_i32_0 = arith.constant 0 : i32
    return %c0_i32, %arg1 : i32, i32
  }
  func.func @transform_4(%arg0: i32, %arg1: i32, %arg2: i32) -> (i32, i32) {
    %c0_i32 = arith.constant 0 : i32
    return %arg0, %arg1 : i32, i32
  }
}

module attributes {stable_mosaic.version = 11 : i64} {
  func.func @_lstm_chunk_kernel(%arg0: i32, %arg1: i32, %arg2: memref<5x2x512xf32, #tpu.memory_space<vmem>>, %arg3: memref<1x128x512xf32, #tpu.memory_space<vmem>>, %arg4: memref<1x5x2x128xf32, #tpu.memory_space<vmem>>, %arg5: memref<2x128xf32, #tpu.memory_space<vmem>>, %arg6: memref<2x128xf32, #tpu.memory_space<vmem>>) attributes {dimension_semantics = [#tpu.dimension_semantics<parallel>, #tpu.dimension_semantics<arbitrary>], iteration_bounds = array<i64: 2, 1>, scalar_prefetch = 0 : i64, scratch_operands = 2 : i64, tpu.core_type = #tpu.core_type<tc>, window_params = [{transform_indices = @transform_0, window_bounds = array<i64: 5, 2, 512>}, {transform_indices = @transform_1, window_bounds = array<i64: 1, 128, 512>}, {transform_indices = @transform_2, window_bounds = array<i64: 1, 5, 2, 128>}]} {
    %c0_i32 = arith.constant 0 : i32
    %0 = arith.cmpi eq, %arg1, %c0_i32 : i32
    %1 = arith.extui %0 : i1 to i32
    %c0_i32_0 = arith.constant 0 : i32
    %2 = arith.cmpi ne, %1, %c0_i32_0 : i32
    scf.if %2 {
      %cst_98 = arith.constant 0.000000e+00 : f32
      %215 = vector.broadcast %cst_98 : f32 to vector<2x128xf32>
      %c0_99 = arith.constant 0 : index
      %c0_100 = arith.constant 0 : index
      %216 = vector.load %arg5[%c0_99, %c0_100] : memref<2x128xf32, #tpu.memory_space<vmem>>, vector<2x128xf32>
      tpu.vector_store %arg5[%c0_99, %c0_100], %215 {strides = array<i32>} : memref<2x128xf32, #tpu.memory_space<vmem>>, vector<2x128xf32>,
      %cst_101 = arith.constant 0.000000e+00 : f32
      %217 = vector.broadcast %cst_101 : f32 to vector<2x128xf32>
      %c0_102 = arith.constant 0 : index
      %c0_103 = arith.constant 0 : index
      %218 = vector.load %arg6[%c0_102, %c0_103] : memref<2x128xf32, #tpu.memory_space<vmem>>, vector<2x128xf32>
      tpu.vector_store %arg6[%c0_102, %c0_103], %217 {strides = array<i32>} : memref<2x128xf32, #tpu.memory_space<vmem>>, vector<2x128xf32>,
    } else {
    }
    %c0 = arith.constant 0 : index
    %c0_1 = arith.constant 0 : index
    %c0_2 = arith.constant 0 : index
    %3 = vector.load %arg3[%c0, %c0_1, %c0_2] : memref<1x128x512xf32, #tpu.memory_space<vmem>>, vector<1x128x512xf32>
    %4 = vector.shape_cast %3 : vector<1x128x512xf32> to vector<128x512xf32>
    %c1_i32 = arith.constant 1 : i32
    %5 = arith.subi %c1_i32, %arg0 : i32
    %c0_i32_3 = arith.constant 0 : i32
    %6 = arith.muli %5, %c0_i32_3 : i32
    %c4_i32 = arith.constant 4 : i32
    %7 = arith.muli %arg0, %c4_i32 : i32
    %8 = arith.addi %6, %7 : i32
    %9 = arith.index_cast %8 : i32 to index
    %c0_4 = arith.constant 0 : index
    %c0_5 = arith.constant 0 : index
    %10 = vector.load %arg2[%9, %c0_4, %c0_5] : memref<5x2x512xf32, #tpu.memory_space<vmem>>, vector<1x2x512xf32>
    %11 = vector.shape_cast %10 : vector<1x2x512xf32> to vector<2x512xf32>
    %c0_6 = arith.constant 0 : index
    %c0_7 = arith.constant 0 : index
    %12 = vector.load %arg5[%c0_6, %c0_7] : memref<2x128xf32, #tpu.memory_space<vmem>>, vector<2x128xf32>
    %cst = arith.constant dense<0.000000e+00> : vector<2x512xf32>
    %13 = tpu.matmul %12, %4, %cst {dimension_numbers = #tpu.dot_dimension_numbers<[1], [0], [0], [1], [0, 0, 1, 1], [], []>} : vector<2x128xf32>, vector<128x512xf32>, vector<2x512xf32> -> vector<2x512xf32>
    %14 = arith.addf %11, %13 : vector<2x512xf32>
    %15 = vector.extract_strided_slice %14 {offsets = [0, 0], sizes = [2, 128], strides = [1, 1]} : vector<2x512xf32> to vector<2x128xf32>
    %16 = arith.negf %15 : vector<2x128xf32>
    %17 = math.exp %16 : vector<2x128xf32>
    %cst_8 = arith.constant 1.000000e+00 : f32
    %18 = vector.broadcast %cst_8 : f32 to vector<2x128xf32>
    %19 = arith.addf %18, %17 : vector<2x128xf32>
    %20 = arith.divf %18, %19 : vector<2x128xf32>
    %21 = vector.extract_strided_slice %14 {offsets = [0, 128], sizes = [2, 128], strides = [1, 1]} : vector<2x512xf32> to vector<2x128xf32>
    %22 = arith.negf %21 : vector<2x128xf32>
    %23 = math.exp %22 : vector<2x128xf32>
    %cst_9 = arith.constant 1.000000e+00 : f32
    %24 = vector.broadcast %cst_9 : f32 to vector<2x128xf32>
    %25 = arith.addf %24, %23 : vector<2x128xf32>
    %26 = arith.divf %24, %25 : vector<2x128xf32>
    %27 = vector.extract_strided_slice %14 {offsets = [0, 256], sizes = [2, 128], strides = [1, 1]} : vector<2x512xf32> to vector<2x128xf32>
    %28 = math.tanh %27 : vector<2x128xf32>
    %29 = vector.extract_strided_slice %14 {offsets = [0, 384], sizes = [2, 128], strides = [1, 1]} : vector<2x512xf32> to vector<2x128xf32>
    %30 = arith.negf %29 : vector<2x128xf32>
    %31 = math.exp %30 : vector<2x128xf32>
    %cst_10 = arith.constant 1.000000e+00 : f32
    %32 = vector.broadcast %cst_10 : f32 to vector<2x128xf32>
    %33 = arith.addf %32, %31 : vector<2x128xf32>
    %34 = arith.divf %32, %33 : vector<2x128xf32>
    %c0_11 = arith.constant 0 : index
    %c0_12 = arith.constant 0 : index
    %35 = vector.load %arg6[%c0_11, %c0_12] : memref<2x128xf32, #tpu.memory_space<vmem>>, vector<2x128xf32>
    %36 = arith.mulf %26, %35 : vector<2x128xf32>
    %37 = arith.mulf %20, %28 : vector<2x128xf32>
    %38 = arith.addf %36, %37 : vector<2x128xf32>
    %39 = math.tanh %38 : vector<2x128xf32>
    %40 = arith.mulf %34, %39 : vector<2x128xf32>
    %c0_13 = arith.constant 0 : index
    %c0_14 = arith.constant 0 : index
    %41 = vector.load %arg6[%c0_13, %c0_14] : memref<2x128xf32, #tpu.memory_space<vmem>>, vector<2x128xf32>
    tpu.vector_store %arg6[%c0_13, %c0_14], %38 {strides = array<i32>} : memref<2x128xf32, #tpu.memory_space<vmem>>, vector<2x128xf32>,
    %c0_15 = arith.constant 0 : index
    %c0_16 = arith.constant 0 : index
    %42 = vector.load %arg5[%c0_15, %c0_16] : memref<2x128xf32, #tpu.memory_space<vmem>>, vector<2x128xf32>
    tpu.vector_store %arg5[%c0_15, %c0_16], %40 {strides = array<i32>} : memref<2x128xf32, #tpu.memory_space<vmem>>, vector<2x128xf32>,
    %c0_17 = arith.constant 0 : index
    %43 = arith.index_cast %8 : i32 to index
    %c0_18 = arith.constant 0 : index
    %c0_19 = arith.constant 0 : index
    %44 = vector.load %arg4[%c0_17, %43, %c0_18, %c0_19] : memref<1x5x2x128xf32, #tpu.memory_space<vmem>>, vector<1x1x2x128xf32>
    %45 = vector.shape_cast %44 : vector<1x1x2x128xf32> to vector<2x128xf32>
    %46 = vector.shape_cast %40 : vector<2x128xf32> to vector<1x1x2x128xf32>
    tpu.vector_store %arg4[%c0_17, %43, %c0_18, %c0_19], %46 {strides = array<i32>} : memref<1x5x2x128xf32, #tpu.memory_space<vmem>>, vector<1x1x2x128xf32>,
    %c1_i32_20 = arith.constant 1 : i32
    %47 = arith.subi %c1_i32_20, %arg0 : i32
    %c1_i32_21 = arith.constant 1 : i32
    %48 = arith.muli %47, %c1_i32_21 : i32
    %c3_i32 = arith.constant 3 : i32
    %49 = arith.muli %arg0, %c3_i32 : i32
    %50 = arith.addi %48, %49 : i32
    %51 = arith.index_cast %50 : i32 to index
    %c0_22 = arith.constant 0 : index
    %c0_23 = arith.constant 0 : index
    %52 = vector.load %arg2[%51, %c0_22, %c0_23] : memref<5x2x512xf32, #tpu.memory_space<vmem>>, vector<1x2x512xf32>
    %53 = vector.shape_cast %52 : vector<1x2x512xf32> to vector<2x512xf32>
    %c0_24 = arith.constant 0 : index
    %c0_25 = arith.constant 0 : index
    %54 = vector.load %arg5[%c0_24, %c0_25] : memref<2x128xf32, #tpu.memory_space<vmem>>, vector<2x128xf32>
    %cst_26 = arith.constant dense<0.000000e+00> : vector<2x512xf32>
    %55 = tpu.matmul %54, %4, %cst_26 {dimension_numbers = #tpu.dot_dimension_numbers<[1], [0], [0], [1], [0, 0, 1, 1], [], []>} : vector<2x128xf32>, vector<128x512xf32>, vector<2x512xf32> -> vector<2x512xf32>
    %56 = arith.addf %53, %55 : vector<2x512xf32>
    %57 = vector.extract_strided_slice %56 {offsets = [0, 0], sizes = [2, 128], strides = [1, 1]} : vector<2x512xf32> to vector<2x128xf32>
    %58 = arith.negf %57 : vector<2x128xf32>
    %59 = math.exp %58 : vector<2x128xf32>
    %cst_27 = arith.constant 1.000000e+00 : f32
    %60 = vector.broadcast %cst_27 : f32 to vector<2x128xf32>
    %61 = arith.addf %60, %59 : vector<2x128xf32>
    %62 = arith.divf %60, %61 : vector<2x128xf32>
    %63 = vector.extract_strided_slice %56 {offsets = [0, 128], sizes = [2, 128], strides = [1, 1]} : vector<2x512xf32> to vector<2x128xf32>
    %64 = arith.negf %63 : vector<2x128xf32>
    %65 = math.exp %64 : vector<2x128xf32>
    %cst_28 = arith.constant 1.000000e+00 : f32
    %66 = vector.broadcast %cst_28 : f32 to vector<2x128xf32>
    %67 = arith.addf %66, %65 : vector<2x128xf32>
    %68 = arith.divf %66, %67 : vector<2x128xf32>
    %69 = vector.extract_strided_slice %56 {offsets = [0, 256], sizes = [2, 128], strides = [1, 1]} : vector<2x512xf32> to vector<2x128xf32>
    %70 = math.tanh %69 : vector<2x128xf32>
    %71 = vector.extract_strided_slice %56 {offsets = [0, 384], sizes = [2, 128], strides = [1, 1]} : vector<2x512xf32> to vector<2x128xf32>
    %72 = arith.negf %71 : vector<2x128xf32>
    %73 = math.exp %72 : vector<2x128xf32>
    %cst_29 = arith.constant 1.000000e+00 : f32
    %74 = vector.broadcast %cst_29 : f32 to vector<2x128xf32>
    %75 = arith.addf %74, %73 : vector<2x128xf32>
    %76 = arith.divf %74, %75 : vector<2x128xf32>
    %c0_30 = arith.constant 0 : index
    %c0_31 = arith.constant 0 : index
    %77 = vector.load %arg6[%c0_30, %c0_31] : memref<2x128xf32, #tpu.memory_space<vmem>>, vector<2x128xf32>
    %78 = arith.mulf %68, %77 : vector<2x128xf32>
    %79 = arith.mulf %62, %70 : vector<2x128xf32>
    %80 = arith.addf %78, %79 : vector<2x128xf32>
    %81 = math.tanh %80 : vector<2x128xf32>
    %82 = arith.mulf %76, %81 : vector<2x128xf32>
    %c0_32 = arith.constant 0 : index
    %c0_33 = arith.constant 0 : index
    %83 = vector.load %arg6[%c0_32, %c0_33] : memref<2x128xf32, #tpu.memory_space<vmem>>, vector<2x128xf32>
    tpu.vector_store %arg6[%c0_32, %c0_33], %80 {strides = array<i32>} : memref<2x128xf32, #tpu.memory_space<vmem>>, vector<2x128xf32>,
    %c0_34 = arith.constant 0 : index
    %c0_35 = arith.constant 0 : index
    %84 = vector.load %arg5[%c0_34, %c0_35] : memref<2x128xf32, #tpu.memory_space<vmem>>, vector<2x128xf32>
    tpu.vector_store %arg5[%c0_34, %c0_35], %82 {strides = array<i32>} : memref<2x128xf32, #tpu.memory_space<vmem>>, vector<2x128xf32>,
    %c0_36 = arith.constant 0 : index
    %85 = arith.index_cast %50 : i32 to index
    %c0_37 = arith.constant 0 : index
    %c0_38 = arith.constant 0 : index
    %86 = vector.load %arg4[%c0_36, %85, %c0_37, %c0_38] : memref<1x5x2x128xf32, #tpu.memory_space<vmem>>, vector<1x1x2x128xf32>
    %87 = vector.shape_cast %86 : vector<1x1x2x128xf32> to vector<2x128xf32>
    %88 = vector.shape_cast %82 : vector<2x128xf32> to vector<1x1x2x128xf32>
    tpu.vector_store %arg4[%c0_36, %85, %c0_37, %c0_38], %88 {strides = array<i32>} : memref<1x5x2x128xf32, #tpu.memory_space<vmem>>, vector<1x1x2x128xf32>,
    %c1_i32_39 = arith.constant 1 : i32
    %89 = arith.subi %c1_i32_39, %arg0 : i32
    %c2_i32 = arith.constant 2 : i32
    %90 = arith.muli %89, %c2_i32 : i32
    %c2_i32_40 = arith.constant 2 : i32
    %91 = arith.muli %arg0, %c2_i32_40 : i32
    %92 = arith.addi %90, %91 : i32
    %93 = arith.index_cast %92 : i32 to index
    %c0_41 = arith.constant 0 : index
    %c0_42 = arith.constant 0 : index
    %94 = vector.load %arg2[%93, %c0_41, %c0_42] : memref<5x2x512xf32, #tpu.memory_space<vmem>>, vector<1x2x512xf32>
    %95 = vector.shape_cast %94 : vector<1x2x512xf32> to vector<2x512xf32>
    %c0_43 = arith.constant 0 : index
    %c0_44 = arith.constant 0 : index
    %96 = vector.load %arg5[%c0_43, %c0_44] : memref<2x128xf32, #tpu.memory_space<vmem>>, vector<2x128xf32>
    %cst_45 = arith.constant dense<0.000000e+00> : vector<2x512xf32>
    %97 = tpu.matmul %96, %4, %cst_45 {dimension_numbers = #tpu.dot_dimension_numbers<[1], [0], [0], [1], [0, 0, 1, 1], [], []>} : vector<2x128xf32>, vector<128x512xf32>, vector<2x512xf32> -> vector<2x512xf32>
    %98 = arith.addf %95, %97 : vector<2x512xf32>
    %99 = vector.extract_strided_slice %98 {offsets = [0, 0], sizes = [2, 128], strides = [1, 1]} : vector<2x512xf32> to vector<2x128xf32>
    %100 = arith.negf %99 : vector<2x128xf32>
    %101 = math.exp %100 : vector<2x128xf32>
    %cst_46 = arith.constant 1.000000e+00 : f32
    %102 = vector.broadcast %cst_46 : f32 to vector<2x128xf32>
    %103 = arith.addf %102, %101 : vector<2x128xf32>
    %104 = arith.divf %102, %103 : vector<2x128xf32>
    %105 = vector.extract_strided_slice %98 {offsets = [0, 128], sizes = [2, 128], strides = [1, 1]} : vector<2x512xf32> to vector<2x128xf32>
    %106 = arith.negf %105 : vector<2x128xf32>
    %107 = math.exp %106 : vector<2x128xf32>
    %cst_47 = arith.constant 1.000000e+00 : f32
    %108 = vector.broadcast %cst_47 : f32 to vector<2x128xf32>
    %109 = arith.addf %108, %107 : vector<2x128xf32>
    %110 = arith.divf %108, %109 : vector<2x128xf32>
    %111 = vector.extract_strided_slice %98 {offsets = [0, 256], sizes = [2, 128], strides = [1, 1]} : vector<2x512xf32> to vector<2x128xf32>
    %112 = math.tanh %111 : vector<2x128xf32>
    %113 = vector.extract_strided_slice %98 {offsets = [0, 384], sizes = [2, 128], strides = [1, 1]} : vector<2x512xf32> to vector<2x128xf32>
    %114 = arith.negf %113 : vector<2x128xf32>
    %115 = math.exp %114 : vector<2x128xf32>
    %cst_48 = arith.constant 1.000000e+00 : f32
    %116 = vector.broadcast %cst_48 : f32 to vector<2x128xf32>
    %117 = arith.addf %116, %115 : vector<2x128xf32>
    %118 = arith.divf %116, %117 : vector<2x128xf32>
    %c0_49 = arith.constant 0 : index
    %c0_50 = arith.constant 0 : index
    %119 = vector.load %arg6[%c0_49, %c0_50] : memref<2x128xf32, #tpu.memory_space<vmem>>, vector<2x128xf32>
    %120 = arith.mulf %110, %119 : vector<2x128xf32>
    %121 = arith.mulf %104, %112 : vector<2x128xf32>
    %122 = arith.addf %120, %121 : vector<2x128xf32>
    %123 = math.tanh %122 : vector<2x128xf32>
    %124 = arith.mulf %118, %123 : vector<2x128xf32>
    %c0_51 = arith.constant 0 : index
    %c0_52 = arith.constant 0 : index
    %125 = vector.load %arg6[%c0_51, %c0_52] : memref<2x128xf32, #tpu.memory_space<vmem>>, vector<2x128xf32>
    tpu.vector_store %arg6[%c0_51, %c0_52], %122 {strides = array<i32>} : memref<2x128xf32, #tpu.memory_space<vmem>>, vector<2x128xf32>,
    %c0_53 = arith.constant 0 : index
    %c0_54 = arith.constant 0 : index
    %126 = vector.load %arg5[%c0_53, %c0_54] : memref<2x128xf32, #tpu.memory_space<vmem>>, vector<2x128xf32>
    tpu.vector_store %arg5[%c0_53, %c0_54], %124 {strides = array<i32>} : memref<2x128xf32, #tpu.memory_space<vmem>>, vector<2x128xf32>,
    %c0_55 = arith.constant 0 : index
    %127 = arith.index_cast %92 : i32 to index
    %c0_56 = arith.constant 0 : index
    %c0_57 = arith.constant 0 : index
    %128 = vector.load %arg4[%c0_55, %127, %c0_56, %c0_57] : memref<1x5x2x128xf32, #tpu.memory_space<vmem>>, vector<1x1x2x128xf32>
    %129 = vector.shape_cast %128 : vector<1x1x2x128xf32> to vector<2x128xf32>
    %130 = vector.shape_cast %124 : vector<2x128xf32> to vector<1x1x2x128xf32>
    tpu.vector_store %arg4[%c0_55, %127, %c0_56, %c0_57], %130 {strides = array<i32>} : memref<1x5x2x128xf32, #tpu.memory_space<vmem>>, vector<1x1x2x128xf32>,
    %c1_i32_58 = arith.constant 1 : i32
    %131 = arith.subi %c1_i32_58, %arg0 : i32
    %c3_i32_59 = arith.constant 3 : i32
    %132 = arith.muli %131, %c3_i32_59 : i32
    %c1_i32_60 = arith.constant 1 : i32
    %133 = arith.muli %arg0, %c1_i32_60 : i32
    %134 = arith.addi %132, %133 : i32
    %135 = arith.index_cast %134 : i32 to index
    %c0_61 = arith.constant 0 : index
    %c0_62 = arith.constant 0 : index
    %136 = vector.load %arg2[%135, %c0_61, %c0_62] : memref<5x2x512xf32, #tpu.memory_space<vmem>>, vector<1x2x512xf32>
    %137 = vector.shape_cast %136 : vector<1x2x512xf32> to vector<2x512xf32>
    %c0_63 = arith.constant 0 : index
    %c0_64 = arith.constant 0 : index
    %138 = vector.load %arg5[%c0_63, %c0_64] : memref<2x128xf32, #tpu.memory_space<vmem>>, vector<2x128xf32>
    %cst_65 = arith.constant dense<0.000000e+00> : vector<2x512xf32>
    %139 = tpu.matmul %138, %4, %cst_65 {dimension_numbers = #tpu.dot_dimension_numbers<[1], [0], [0], [1], [0, 0, 1, 1], [], []>} : vector<2x128xf32>, vector<128x512xf32>, vector<2x512xf32> -> vector<2x512xf32>
    %140 = arith.addf %137, %139 : vector<2x512xf32>
    %141 = vector.extract_strided_slice %140 {offsets = [0, 0], sizes = [2, 128], strides = [1, 1]} : vector<2x512xf32> to vector<2x128xf32>
    %142 = arith.negf %141 : vector<2x128xf32>
    %143 = math.exp %142 : vector<2x128xf32>
    %cst_66 = arith.constant 1.000000e+00 : f32
    %144 = vector.broadcast %cst_66 : f32 to vector<2x128xf32>
    %145 = arith.addf %144, %143 : vector<2x128xf32>
    %146 = arith.divf %144, %145 : vector<2x128xf32>
    %147 = vector.extract_strided_slice %140 {offsets = [0, 128], sizes = [2, 128], strides = [1, 1]} : vector<2x512xf32> to vector<2x128xf32>
    %148 = arith.negf %147 : vector<2x128xf32>
    %149 = math.exp %148 : vector<2x128xf32>
    %cst_67 = arith.constant 1.000000e+00 : f32
    %150 = vector.broadcast %cst_67 : f32 to vector<2x128xf32>
    %151 = arith.addf %150, %149 : vector<2x128xf32>
    %152 = arith.divf %150, %151 : vector<2x128xf32>
    %153 = vector.extract_strided_slice %140 {offsets = [0, 256], sizes = [2, 128], strides = [1, 1]} : vector<2x512xf32> to vector<2x128xf32>
    %154 = math.tanh %153 : vector<2x128xf32>
    %155 = vector.extract_strided_slice %140 {offsets = [0, 384], sizes = [2, 128], strides = [1, 1]} : vector<2x512xf32> to vector<2x128xf32>
    %156 = arith.negf %155 : vector<2x128xf32>
    %157 = math.exp %156 : vector<2x128xf32>
    %cst_68 = arith.constant 1.000000e+00 : f32
    %158 = vector.broadcast %cst_68 : f32 to vector<2x128xf32>
    %159 = arith.addf %158, %157 : vector<2x128xf32>
    %160 = arith.divf %158, %159 : vector<2x128xf32>
    %c0_69 = arith.constant 0 : index
    %c0_70 = arith.constant 0 : index
    %161 = vector.load %arg6[%c0_69, %c0_70] : memref<2x128xf32, #tpu.memory_space<vmem>>, vector<2x128xf32>
    %162 = arith.mulf %152, %161 : vector<2x128xf32>
    %163 = arith.mulf %146, %154 : vector<2x128xf32>
    %164 = arith.addf %162, %163 : vector<2x128xf32>
    %165 = math.tanh %164 : vector<2x128xf32>
    %166 = arith.mulf %160, %165 : vector<2x128xf32>
    %c0_71 = arith.constant 0 : index
    %c0_72 = arith.constant 0 : index
    %167 = vector.load %arg6[%c0_71, %c0_72] : memref<2x128xf32, #tpu.memory_space<vmem>>, vector<2x128xf32>
    tpu.vector_store %arg6[%c0_71, %c0_72], %164 {strides = array<i32>} : memref<2x128xf32, #tpu.memory_space<vmem>>, vector<2x128xf32>,
    %c0_73 = arith.constant 0 : index
    %c0_74 = arith.constant 0 : index
    %168 = vector.load %arg5[%c0_73, %c0_74] : memref<2x128xf32, #tpu.memory_space<vmem>>, vector<2x128xf32>
    tpu.vector_store %arg5[%c0_73, %c0_74], %166 {strides = array<i32>} : memref<2x128xf32, #tpu.memory_space<vmem>>, vector<2x128xf32>,
    %c0_75 = arith.constant 0 : index
    %169 = arith.index_cast %134 : i32 to index
    %c0_76 = arith.constant 0 : index
    %c0_77 = arith.constant 0 : index
    %170 = vector.load %arg4[%c0_75, %169, %c0_76, %c0_77] : memref<1x5x2x128xf32, #tpu.memory_space<vmem>>, vector<1x1x2x128xf32>
    %171 = vector.shape_cast %170 : vector<1x1x2x128xf32> to vector<2x128xf32>
    %172 = vector.shape_cast %166 : vector<2x128xf32> to vector<1x1x2x128xf32>
    tpu.vector_store %arg4[%c0_75, %169, %c0_76, %c0_77], %172 {strides = array<i32>} : memref<1x5x2x128xf32, #tpu.memory_space<vmem>>, vector<1x1x2x128xf32>,
    %c1_i32_78 = arith.constant 1 : i32
    %173 = arith.subi %c1_i32_78, %arg0 : i32
    %c4_i32_79 = arith.constant 4 : i32
    %174 = arith.muli %173, %c4_i32_79 : i32
    %c0_i32_80 = arith.constant 0 : i32
    %175 = arith.muli %arg0, %c0_i32_80 : i32
    %176 = arith.addi %174, %175 : i32
    %177 = arith.index_cast %176 : i32 to index
    %c0_81 = arith.constant 0 : index
    %c0_82 = arith.constant 0 : index
    %178 = vector.load %arg2[%177, %c0_81, %c0_82] : memref<5x2x512xf32, #tpu.memory_space<vmem>>, vector<1x2x512xf32>
    %179 = vector.shape_cast %178 : vector<1x2x512xf32> to vector<2x512xf32>
    %c0_83 = arith.constant 0 : index
    %c0_84 = arith.constant 0 : index
    %180 = vector.load %arg5[%c0_83, %c0_84] : memref<2x128xf32, #tpu.memory_space<vmem>>, vector<2x128xf32>
    %cst_85 = arith.constant dense<0.000000e+00> : vector<2x512xf32>
    %181 = tpu.matmul %180, %4, %cst_85 {dimension_numbers = #tpu.dot_dimension_numbers<[1], [0], [0], [1], [0, 0, 1, 1], [], []>} : vector<2x128xf32>, vector<128x512xf32>, vector<2x512xf32> -> vector<2x512xf32>
    %182 = arith.addf %179, %181 : vector<2x512xf32>
    %183 = vector.extract_strided_slice %182 {offsets = [0, 0], sizes = [2, 128], strides = [1, 1]} : vector<2x512xf32> to vector<2x128xf32>
    %184 = arith.negf %183 : vector<2x128xf32>
    %185 = math.exp %184 : vector<2x128xf32>
    %cst_86 = arith.constant 1.000000e+00 : f32
    %186 = vector.broadcast %cst_86 : f32 to vector<2x128xf32>
    %187 = arith.addf %186, %185 : vector<2x128xf32>
    %188 = arith.divf %186, %187 : vector<2x128xf32>
    %189 = vector.extract_strided_slice %182 {offsets = [0, 128], sizes = [2, 128], strides = [1, 1]} : vector<2x512xf32> to vector<2x128xf32>
    %190 = arith.negf %189 : vector<2x128xf32>
    %191 = math.exp %190 : vector<2x128xf32>
    %cst_87 = arith.constant 1.000000e+00 : f32
    %192 = vector.broadcast %cst_87 : f32 to vector<2x128xf32>
    %193 = arith.addf %192, %191 : vector<2x128xf32>
    %194 = arith.divf %192, %193 : vector<2x128xf32>
    %195 = vector.extract_strided_slice %182 {offsets = [0, 256], sizes = [2, 128], strides = [1, 1]} : vector<2x512xf32> to vector<2x128xf32>
    %196 = math.tanh %195 : vector<2x128xf32>
    %197 = vector.extract_strided_slice %182 {offsets = [0, 384], sizes = [2, 128], strides = [1, 1]} : vector<2x512xf32> to vector<2x128xf32>
    %198 = arith.negf %197 : vector<2x128xf32>
    %199 = math.exp %198 : vector<2x128xf32>
    %cst_88 = arith.constant 1.000000e+00 : f32
    %200 = vector.broadcast %cst_88 : f32 to vector<2x128xf32>
    %201 = arith.addf %200, %199 : vector<2x128xf32>
    %202 = arith.divf %200, %201 : vector<2x128xf32>
    %c0_89 = arith.constant 0 : index
    %c0_90 = arith.constant 0 : index
    %203 = vector.load %arg6[%c0_89, %c0_90] : memref<2x128xf32, #tpu.memory_space<vmem>>, vector<2x128xf32>
    %204 = arith.mulf %194, %203 : vector<2x128xf32>
    %205 = arith.mulf %188, %196 : vector<2x128xf32>
    %206 = arith.addf %204, %205 : vector<2x128xf32>
    %207 = math.tanh %206 : vector<2x128xf32>
    %208 = arith.mulf %202, %207 : vector<2x128xf32>
    %c0_91 = arith.constant 0 : index
    %c0_92 = arith.constant 0 : index
    %209 = vector.load %arg6[%c0_91, %c0_92] : memref<2x128xf32, #tpu.memory_space<vmem>>, vector<2x128xf32>
    tpu.vector_store %arg6[%c0_91, %c0_92], %206 {strides = array<i32>} : memref<2x128xf32, #tpu.memory_space<vmem>>, vector<2x128xf32>,
    %c0_93 = arith.constant 0 : index
    %c0_94 = arith.constant 0 : index
    %210 = vector.load %arg5[%c0_93, %c0_94] : memref<2x128xf32, #tpu.memory_space<vmem>>, vector<2x128xf32>
    tpu.vector_store %arg5[%c0_93, %c0_94], %208 {strides = array<i32>} : memref<2x128xf32, #tpu.memory_space<vmem>>, vector<2x128xf32>,
    %c0_95 = arith.constant 0 : index
    %211 = arith.index_cast %176 : i32 to index
    %c0_96 = arith.constant 0 : index
    %c0_97 = arith.constant 0 : index
    %212 = vector.load %arg4[%c0_95, %211, %c0_96, %c0_97] : memref<1x5x2x128xf32, #tpu.memory_space<vmem>>, vector<1x1x2x128xf32>
    %213 = vector.shape_cast %212 : vector<1x1x2x128xf32> to vector<2x128xf32>
    %214 = vector.shape_cast %208 : vector<2x128xf32> to vector<1x1x2x128xf32>
    tpu.vector_store %arg4[%c0_95, %211, %c0_96, %c0_97], %214 {strides = array<i32>} : memref<1x5x2x128xf32, #tpu.memory_space<vmem>>, vector<1x1x2x128xf32>,
    return
  }
  func.func @transform_0(%arg0: i32, %arg1: i32) -> (i32, i32, i32) {
    %c1_i32 = arith.constant 1 : i32
    %0 = arith.subi %c1_i32, %arg0 : i32
    %1 = arith.muli %0, %arg1 : i32
    %c0_i32 = arith.constant 0 : i32
    %2 = arith.subi %c0_i32, %arg1 : i32
    %3 = arith.muli %arg0, %2 : i32
    %4 = arith.addi %1, %3 : i32
    %c0_i32_0 = arith.constant 0 : i32
    %c0_i32_1 = arith.constant 0 : i32
    return %4, %c0_i32_0, %arg0 : i32, i32, i32
  }
  func.func @transform_1(%arg0: i32, %arg1: i32) -> (i32, i32, i32) {
    %c0_i32 = arith.constant 0 : i32
    %c0_i32_0 = arith.constant 0 : i32
    %c0_i32_1 = arith.constant 0 : i32
    return %arg0, %c0_i32, %c0_i32_0 : i32, i32, i32
  }
  func.func @transform_2(%arg0: i32, %arg1: i32) -> (i32, i32, i32, i32) {
    %c1_i32 = arith.constant 1 : i32
    %0 = arith.subi %c1_i32, %arg0 : i32
    %1 = arith.muli %0, %arg1 : i32
    %c0_i32 = arith.constant 0 : i32
    %2 = arith.subi %c0_i32, %arg1 : i32
    %3 = arith.muli %arg0, %2 : i32
    %4 = arith.addi %1, %3 : i32
    %c0_i32_0 = arith.constant 0 : i32
    %c0_i32_1 = arith.constant 0 : i32
    %c0_i32_2 = arith.constant 0 : i32
    return %arg0, %4, %c0_i32_0, %c0_i32_1 : i32, i32, i32, i32
  }
}

module attributes {stable_mosaic.version = 11 : i64} {
  func.func @_mm_kernel(%arg0: i32, %arg1: i32, %arg2: i32, %arg3: memref<24x128xbf16, #tpu.memory_space<vmem>>, %arg4: memref<128x128xbf16, #tpu.memory_space<vmem>>, %arg5: memref<1x128xf32, #tpu.memory_space<vmem>>, %arg6: memref<1x128xf32, #tpu.memory_space<vmem>>, %arg7: memref<24x128xf32, #tpu.memory_space<vmem>>) attributes {dimension_semantics = [#tpu.dimension_semantics<parallel>, #tpu.dimension_semantics<parallel>, #tpu.dimension_semantics<arbitrary>], iteration_bounds = array<i64: 1, 1, 1>, scalar_prefetch = 0 : i64, scratch_operands = 0 : i64, tpu.core_type = #tpu.core_type<tc>, window_params = [{transform_indices = @transform_0, window_bounds = array<i64: 24, 128>}, {transform_indices = @transform_1, window_bounds = array<i64: 128, 128>}, {transform_indices = @transform_2, window_bounds = array<i64: 1, 128>}, {transform_indices = @transform_3, window_bounds = array<i64: 1, 128>}, {transform_indices = @transform_4, window_bounds = array<i64: 24, 128>}]} {
    %c0_i32 = arith.constant 0 : i32
    %0 = arith.cmpi eq, %arg2, %c0_i32 : i32
    %1 = arith.extui %0 : i1 to i32
    %c0_i32_0 = arith.constant 0 : i32
    %2 = arith.cmpi ne, %1, %c0_i32_0 : i32
    scf.if %2 {
      %cst_10 = arith.constant 0.000000e+00 : f32
      %12 = vector.broadcast %cst_10 : f32 to vector<24x128xf32>
      %c0_11 = arith.constant 0 : index
      %c0_12 = arith.constant 0 : index
      %13 = vector.load %arg7[%c0_11, %c0_12] : memref<24x128xf32, #tpu.memory_space<vmem>>, vector<24x128xf32>
      tpu.vector_store %arg7[%c0_11, %c0_12], %12 {strides = array<i32>} : memref<24x128xf32, #tpu.memory_space<vmem>>, vector<24x128xf32>,
    } else {
    }
    %c0 = arith.constant 0 : index
    %c0_1 = arith.constant 0 : index
    %3 = vector.load %arg7[%c0, %c0_1] : memref<24x128xf32, #tpu.memory_space<vmem>>, vector<24x128xf32>
    %c0_2 = arith.constant 0 : index
    %c0_3 = arith.constant 0 : index
    %4 = vector.load %arg3[%c0_2, %c0_3] : memref<24x128xbf16, #tpu.memory_space<vmem>>, vector<24x128xbf16>
    %c0_4 = arith.constant 0 : index
    %c0_5 = arith.constant 0 : index
    %5 = vector.load %arg4[%c0_4, %c0_5] : memref<128x128xbf16, #tpu.memory_space<vmem>>, vector<128x128xbf16>
    %cst = arith.constant dense<0.000000e+00> : vector<24x128xf32>
    %6 = tpu.matmul %4, %5, %cst {dimension_numbers = #tpu.dot_dimension_numbers<[1], [0], [0], [1], [0, 0, 1, 1], [], []>} : vector<24x128xbf16>, vector<128x128xbf16>, vector<24x128xf32> -> vector<24x128xf32>
    %7 = arith.addf %3, %6 : vector<24x128xf32>
    %c0_6 = arith.constant 0 : index
    %c0_7 = arith.constant 0 : index
    %8 = vector.load %arg7[%c0_6, %c0_7] : memref<24x128xf32, #tpu.memory_space<vmem>>, vector<24x128xf32>
    tpu.vector_store %arg7[%c0_6, %c0_7], %7 {strides = array<i32>} : memref<24x128xf32, #tpu.memory_space<vmem>>, vector<24x128xf32>,
    %c0_i32_8 = arith.constant 0 : i32
    %9 = arith.cmpi eq, %arg2, %c0_i32_8 : i32
    %10 = arith.extui %9 : i1 to i32
    %c0_i32_9 = arith.constant 0 : i32
    %11 = arith.cmpi ne, %10, %c0_i32_9 : i32
    scf.if %11 {
      %c0_10 = arith.constant 0 : index
      %c0_11 = arith.constant 0 : index
      %12 = vector.load %arg7[%c0_10, %c0_11] : memref<24x128xf32, #tpu.memory_space<vmem>>, vector<24x128xf32>
      %c0_12 = arith.constant 0 : index
      %c0_13 = arith.constant 0 : index
      %13 = vector.load %arg5[%c0_12, %c0_13] : memref<1x128xf32, #tpu.memory_space<vmem>>, vector<1x128xf32>
      %14 = vector.broadcast %13 : vector<1x128xf32> to vector<24x128xf32>
      %15 = arith.addf %12, %14 : vector<24x128xf32>
      %c0_14 = arith.constant 0 : index
      %c0_15 = arith.constant 0 : index
      %16 = vector.load %arg6[%c0_14, %c0_15] : memref<1x128xf32, #tpu.memory_space<vmem>>, vector<1x128xf32>
      %17 = vector.broadcast %16 : vector<1x128xf32> to vector<24x128xf32>
      %18 = arith.mulf %15, %17 : vector<24x128xf32>
      %c0_16 = arith.constant 0 : index
      %c0_17 = arith.constant 0 : index
      %19 = vector.load %arg7[%c0_16, %c0_17] : memref<24x128xf32, #tpu.memory_space<vmem>>, vector<24x128xf32>
      tpu.vector_store %arg7[%c0_16, %c0_17], %18 {strides = array<i32>} : memref<24x128xf32, #tpu.memory_space<vmem>>, vector<24x128xf32>,
    } else {
    }
    return
  }
  func.func @transform_0(%arg0: i32, %arg1: i32, %arg2: i32) -> (i32, i32) {
    %c0_i32 = arith.constant 0 : i32
    return %arg0, %arg2 : i32, i32
  }
  func.func @transform_1(%arg0: i32, %arg1: i32, %arg2: i32) -> (i32, i32) {
    %c0_i32 = arith.constant 0 : i32
    return %arg2, %arg1 : i32, i32
  }
  func.func @transform_2(%arg0: i32, %arg1: i32, %arg2: i32) -> (i32, i32) {
    %c0_i32 = arith.constant 0 : i32
    %c0_i32_0 = arith.constant 0 : i32
    return %c0_i32, %arg1 : i32, i32
  }
  func.func @transform_3(%arg0: i32, %arg1: i32, %arg2: i32) -> (i32, i32) {
    %c0_i32 = arith.constant 0 : i32
    %c0_i32_0 = arith.constant 0 : i32
    return %c0_i32, %arg1 : i32, i32
  }
  func.func @transform_4(%arg0: i32, %arg1: i32, %arg2: i32) -> (i32, i32) {
    %c0_i32 = arith.constant 0 : i32
    return %arg0, %arg1 : i32, i32
  }
}

</mosaic_0001>

<llo_original>
// kernel: slr_forward.9
$region0: #{slr_forward.9}
  #allocation0 [shape = 'u32[]', space=smem, size = 0x4, offset = 0x4, fixed_abs, tag = 'smem constant byte address 0x4 - core index']
  #allocation1 [shape = 'u32[144,128]{1,0:T(1,128)}', space=vmem, size = 0x12000, scoped, tag = 'internal scratch']
  %s0 = inlined_call_operand.vmem [shape: bf16[16,128], index: 0, kind: input, shape index: {}]
  %s1 = inlined_call_operand.vmem [shape: bf16[128,1024], index: 1, kind: input, shape index: {}]
  %s2 = inlined_call_operand.vmem [shape: f32[1,1024], index: 2, kind: input, shape index: {}]
  %s3 = inlined_call_operand.vmem [shape: f32[1,1024], index: 3, kind: input, shape index: {}]
  %s4 = inlined_call_operand.vmem [shape: f32[16,1024], index: 4, kind: output, shape index: {}]
  %s5 = sld [smem:[#allocation0]]
  $region99: #{slr_forward.9} parent=0
    _
  %s7 = ssub.s32 1, %s5
  %s8 = scalar_select 0, %s7, %s5
  $region1: #{slr_forward.9} parent=0
    #allocation2 [shape = 'u8[262144]{0}', space=vmem, size = 0x40000, scoped, tag = 'input window, operand 1']
    #allocation3 [shape = 'u8[65536]{0}', space=vmem, size = 0x10000, scoped, tag = 'output window, operand 0']
    loop: start=0, step=1, limit=4
    $region2: #{slr_forward.9} parent=1 // loop_pre_header
      _
    $region3: #{slr_forward.9} parent=1 // loop_header
      %s10 = sphi 0, %s14
      %p11 = scmp.ge.s32.totalorder %s10, 4
      %s17 = sphi 0, %s36
      %s18 = sphi 0, %s32
      %s19 = sphi 0, %s28
      %s20 = sphi 0, %s17
      %s21 = sphi 0, %s18
      %s22 = sphi 0, %s19
      %s23 = sphi 0, %s20
      %s24 = sphi 0, %s21
      %s25 = sphi 0, %s22
      %s41 = sphi 0, %s43
      %s44 = sphi 0, %s41
      %s45 = sphi 0, %s44
      %s61 = sphi 0, %s45
      %s69 = sphi 0, %s71
      %s72 = sphi 0, %s69
      %s73 = sphi 0, %s72
      %s89 = sphi 0, %s73
      %s95 = sphi 0, %s97
      %s98 = sphi 0, %s95
      %s99 = sphi 0, %s98
      %s115 = sphi 0, %s99
      %s121 = sphi 0, %s123
      %s124 = sphi 0, %s121
      %s125 = sphi 0, %s124
      %s141 = sphi 0, %s125
      %s149 = sphi 0, %s151
      %s152 = sphi 0, %s149
      %s153 = sphi 0, %s152
      %s169 = sphi 0, %s153
    $region4: #{slr_forward.9} parent=1 // loop_header_branch
      %13 = sbr.rel (%p11) target = $region8
    $region5: #{slr_forward.9} parent=1 // loop_body
      %s15 = ssub.s32 %s10, 1
      %s16 = ssub.s32 %s10, 2
      %s26 = sadd.s32 1, %s19
      %p27 = scmp.ge.s32.totalorder %s26, 1
      %s28 = scalar_select %p27, 0, %s26
      %s29 = sadd.s32 1, %s18
      %s30 = scalar_select %p27, %s29, %s18
      %p31 = scmp.ge.s32.totalorder %s30, 2
      %s32 = scalar_select %p31, 0, %s30
      %s33 = sadd.s32 1, %s17
      %s34 = scalar_select %p31, %s33, %s17
      %p35 = scmp.ge.s32.totalorder %s34, 1
      %s36 = scalar_select %p35, 0, %s34
      %s37 = ssub.s32 %s17, %s36
      %s38 = ssub.s32 %s19, %s28
      %s39 = sor.u32 %s37, %s38
      %p40 = scmp.eq.s32.totalorder %s39, 0
      %s42 = sadd.s32 %s41, 1
      %s43 = scalar_select %p40, %s41, %s42
      %p46 = pneg %p40
      %p47 = scmp.eq.s32.totalorder %s10, 1
      %p48 = por %p46, %p47
      %p49 = scmp.ne.s32.totalorder %s41, %s44
      %p50 = scmp.eq.s32.totalorder %s10, 0
      %p51 = por %p49, %p50
      %p52 = scmp.ne.s32.totalorder %s41, %s44
      %p53 = scmp.eq.s32.totalorder %s15, 1
      %p54 = por %p52, %p53
      %p55 = scmp.ne.s32.totalorder %s44, %s45
      %p56 = scmp.eq.s32.totalorder %s15, 0
      %p57 = por %p55, %p56
      %p58 = scmp.ne.s32.totalorder %s44, %s45
      %p59 = scmp.eq.s32.totalorder %s16, 1
      %p60 = por %p58, %p59
      %p62 = scmp.ne.s32.totalorder %s45, %s61
      %p63 = scmp.eq.s32.totalorder %s16, 0
      %p64 = por %p62, %p63
      %s65 = ssub.s32 %s19, %s28
      %s66 = ssub.s32 %s18, %s32
      %s67 = sor.u32 %s65, %s66
      %p68 = scmp.eq.s32.totalorder %s67, 0
      %s70 = sadd.s32 %s69, 1
      %s71 = scalar_select %p68, %s69, %s70
      %p74 = pneg %p68
      %p75 = scmp.eq.s32.totalorder %s10, 1
      %p76 = por %p74, %p75
      %p77 = scmp.ne.s32.totalorder %s69, %s72
      %p78 = scmp.eq.s32.totalorder %s10, 0
      %p79 = por %p77, %p78
      %p80 = scmp.ne.s32.totalorder %s69, %s72
      %p81 = scmp.eq.s32.totalorder %s15, 1
      %p82 = por %p80, %p81
      %p83 = scmp.ne.s32.totalorder %s72, %s73
      %p84 = scmp.eq.s32.totalorder %s15, 0
      %p85 = por %p83, %p84
      %p86 = scmp.ne.s32.totalorder %s72, %s73
      %p87 = scmp.eq.s32.totalorder %s16, 1
      %p88 = por %p86, %p87
      %p90 = scmp.ne.s32.totalorder %s73, %s89
      %p91 = scmp.eq.s32.totalorder %s16, 0
      %p92 = por %p90, %p91
      %s93 = ssub.s32 %s18, %s32
      %p94 = scmp.eq.s32.totalorder %s93, 0
      %s96 = sadd.s32 %s95, 1
      %s97 = scalar_select %p94, %s95, %s96
      %p100 = pneg %p94
      %p101 = scmp.eq.s32.totalorder %s10, 1
      %p102 = por %p100, %p101
      %p103 = scmp.ne.s32.totalorder %s95, %s98
      %p104 = scmp.eq.s32.totalorder %s10, 0
      %p105 = por %p103, %p104
      %p106 = scmp.ne.s32.totalorder %s95, %s98
      %p107 = scmp.eq.s32.totalorder %s15, 1
      %p108 = por %p106, %p107
      %p109 = scmp.ne.s32.totalorder %s98, %s99
      %p110 = scmp.eq.s32.totalorder %s15, 0
      %p111 = por %p109, %p110
      %p112 = scmp.ne.s32.totalorder %s98, %s99
      %p113 = scmp.eq.s32.totalorder %s16, 1
      %p114 = por %p112, %p113
      %p116 = scmp.ne.s32.totalorder %s99, %s115
      %p117 = scmp.eq.s32.totalorder %s16, 0
      %p118 = por %p116, %p117
      %s119 = ssub.s32 %s18, %s32
      %p120 = scmp.eq.s32.totalorder %s119, 0
      %s122 = sadd.s32 %s121, 1
      %s123 = scalar_select %p120, %s121, %s122
      %p126 = pneg %p120
      %p127 = scmp.eq.s32.totalorder %s10, 1
      %p128 = por %p126, %p127
      %p129 = scmp.ne.s32.totalorder %s121, %s124
      %p130 = scmp.eq.s32.totalorder %s10, 0
      %p131 = por %p129, %p130
      %p132 = scmp.ne.s32.totalorder %s121, %s124
      %p133 = scmp.eq.s32.totalorder %s15, 1
      %p134 = por %p132, %p133
      %p135 = scmp.ne.s32.totalorder %s124, %s125
      %p136 = scmp.eq.s32.totalorder %s15, 0
      %p137 = por %p135, %p136
      %p138 = scmp.ne.s32.totalorder %s124, %s125
      %p139 = scmp.eq.s32.totalorder %s16, 1
      %p140 = por %p138, %p139
      %p142 = scmp.ne.s32.totalorder %s125, %s141
      %p143 = scmp.eq.s32.totalorder %s16, 0
      %p144 = por %p142, %p143
      %s145 = ssub.s32 %s17, %s36
      %s146 = ssub.s32 %s18, %s32
      %s147 = sor.u32 %s145, %s146
      %p148 = scmp.eq.s32.totalorder %s147, 0
      %s150 = sadd.s32 %s149, 1
      %s151 = scalar_select %p148, %s149, %s150
      %p154 = pneg %p148
      %p155 = scmp.eq.s32.totalorder %s10, 1
      %p156 = por %p154, %p155
      %p157 = scmp.ne.s32.totalorder %s149, %s152
      %p158 = scmp.eq.s32.totalorder %s10, 0
      %p159 = por %p157, %p158
      %p160 = scmp.ne.s32.totalorder %s149, %s152
      %p161 = scmp.eq.s32.totalorder %s15, 1
      %p162 = por %p160, %p161
      %p163 = scmp.ne.s32.totalorder %s152, %s153
      %p164 = scmp.eq.s32.totalorder %s15, 0
      %p165 = por %p163, %p164
      %p166 = scmp.ne.s32.totalorder %s152, %s153
      %p167 = scmp.eq.s32.totalorder %s16, 1
      %p168 = por %p166, %p167
      %p170 = scmp.ne.s32.totalorder %s153, %s169
      %p171 = scmp.eq.s32.totalorder %s16, 0
      %p172 = por %p170, %p171
      %p173 = scmp.le.s32.totalorder 1, %s10
      %p174 = scmp.lt.s32.totalorder %s10, 3
      %p175 = pnand %p173, %p174
      %p176 = pneg %p175
      // Predicated region
      $region9: #{slr_forward.9} parent=5 // pred_check
        _
      $region10: #{slr_forward.9} parent=5 // pred_check_branch
        %178 = sbr.rel (%p175) target = $region12
      $region11: #{slr_forward.9} parent=5 // pred_region
        %s179 = ssub.s32 %s10, 1
        // Predicated region
        $region13: #{slr_forward.9} parent=11 // pred_check
          %p180 = pneg %p57
        $region14: #{slr_forward.9} parent=11 // pred_check_branch
          %182 = sbr.rel (%p180) target = $region16
        $region15: #{slr_forward.9} parent=11 // pred_region
          %s183 = smul.u32 2, %s20
          %p184 = scmp.lt.s32.totalorder %s183, 1
          %s185 = scalar_select %p184, %s183, 1
          %p186 = scmp.lt.s32.totalorder %s22, 0
          %s187 = scalar_select %p186, %s22, 0
          %s188 = sadd.s32 %s187, %s185
          %s189 = smul.addr %s188, 4
          %s190 = scalar_lea.vmem %s0, %s189
          %s191 = smul.u32 2, %s20
        $region16: #{slr_forward.9} parent=11 // pred_fallthru
          _
      $region12: #{slr_forward.9} parent=5 // pred_fallthru
        _
      %p192 = scmp.lt.s32.totalorder %s10, 2
      // Predicated region
      $region17: #{slr_forward.9} parent=5 // pred_check
        %p193 = pneg %p192
      $region18: #{slr_forward.9} parent=5 // pred_check_branch
        %195 = sbr.rel (%p193) target = $region20
      $region19: #{slr_forward.9} parent=5 // pred_region
        // Predicated region
        $region21: #{slr_forward.9} parent=19 // pred_check
          %p196 = pneg %p79
        $region22: #{slr_forward.9} parent=19 // pred_check_branch
          %198 = sbr.rel (%p196) target = $region24
        $region23: #{slr_forward.9} parent=19 // pred_region
          %s199 = sand.u32 %s69, 1
          %s200 = sand.u32 %s69, 1
          %s201 = smul.addr %s200, 256
          %s202 = scalar_lea.vmem [#allocation2], %s201
          %s203 = smul.u32 16, %s19
          %s204 = smul.u32 4, %s18
          %s205 = smul.addr %s203, 8
          %s206 = sadd.s32 %s204, %s205
          %s207 = smul.addr %s206, 4
          %s208 = scalar_lea.vmem %s1, %s207
          // Predicated region
          $region25: #{slr_forward.9} parent=23 // pred_check
            _
          $region26: #{slr_forward.9} parent=23 // pred_check_branch
            %210 = sbr.rel (0) target = $region28
          $region27: #{slr_forward.9} parent=23 // pred_region
            // Predicated region
            $region29: #{slr_forward.9} parent=27 // pred_check
              _
            $region30: #{slr_forward.9} parent=27 // pred_check_branch
              %212 = sbr.rel (0) target = $region32
            $region31: #{slr_forward.9} parent=27 // pred_region
              loop: start=0, step=1, limit=1
              $region33: #{slr_forward.9} parent=31 // loop_pre_header
                _
              $region34: #{slr_forward.9} parent=31 // loop_header
                %s214 = sphi 0, %s218
                %p215 = scmp.ge.s32.totalorder %s214, 1
                %s219 = sphi %s208, %s208
                %s220 = sphi %s202, %s202
              $region35: #{slr_forward.9} parent=31 // loop_header_branch
                %217 = sbr.rel (%p215) target = $region39
              $region36: #{slr_forward.9} parent=31 // loop_body
                %v221 = vld [vmem:[%s219] sm:$0xff]
                %222 = vst [vmem:[%s220] sm:$0xff] %v221
                %v223 = vld [vmem:[%s219 + $0x8] sm:$0xff]
                %224 = vst [vmem:[%s220 + $0x8] sm:$0xff] %v223
                %v225 = vld [vmem:[%s219 + $0x20] sm:$0xff]
                %226 = vst [vmem:[%s220 + $0x10] sm:$0xff] %v225
                %v227 = vld [vmem:[%s219 + $0x28] sm:$0xff]
                %228 = vst [vmem:[%s220 + $0x18] sm:$0xff] %v227
                %v229 = vld [vmem:[%s219 + $0x40] sm:$0xff]
                %230 = vst [vmem:[%s220 + $0x20] sm:$0xff] %v229
                %v231 = vld [vmem:[%s219 + $0x48] sm:$0xff]
                %232 = vst [vmem:[%s220 + $0x28] sm:$0xff] %v231
                %v233 = vld [vmem:[%s219 + $0x60] sm:$0xff]
                %234 = vst [vmem:[%s220 + $0x30] sm:$0xff] %v233
                %v235 = vld [vmem:[%s219 + $0x68] sm:$0xff]
                %236 = vst [vmem:[%s220 + $0x38] sm:$0xff] %v235
                %v237 = vld [vmem:[%s219 + $0x80] sm:$0xff]
                %238 = vst [vmem:[%s220 + $0x40] sm:$0xff] %v237
                %v239 = vld [vmem:[%s219 + $0x88] sm:$0xff]
                %240 = vst [vmem:[%s220 + $0x48] sm:$0xff] %v239
                %v241 = vld [vmem:[%s219 + $0xa0] sm:$0xff]
                %242 = vst [vmem:[%s220 + $0x50] sm:$0xff] %v241
                %v243 = vld [vmem:[%s219 + $0xa8] sm:$0xff]
                %244 = vst [vmem:[%s220 + $0x58] sm:$0xff] %v243
                %v245 = vld [vmem:[%s219 + $0xc0] sm:$0xff]
                %246 = vst [vmem:[%s220 + $0x60] sm:$0xff] %v245
                %v247 = vld [vmem:[%s219 + $0xc8] sm:$0xff]
                %248 = vst [vmem:[%s220 + $0x68] sm:$0xff] %v247
                %v249 = vld [vmem:[%s219 + $0xe0] sm:$0xff]
                %250 = vst [vmem:[%s220 + $0x70] sm:$0xff] %v249
                %v251 = vld [vmem:[%s219 + $0xe8] sm:$0xff]
                %252 = vst [vmem:[%s220 + $0x78] sm:$0xff] %v251
                %v253 = vld [vmem:[%s219 + $0x100] sm:$0xff]
                %254 = vst [vmem:[%s220 + $0x80] sm:$0xff] %v253
                %v255 = vld [vmem:[%s219 + $0x108] sm:$0xff]
                %256 = vst [vmem:[%s220 + $0x88] sm:$0xff] %v255
                %v257 = vld [vmem:[%s219 + $0x120] sm:$0xff]
                %258 = vst [vmem:[%s220 + $0x90] sm:$0xff] %v257
                %v259 = vld [vmem:[%s219 + $0x128] sm:$0xff]
                %260 = vst [vmem:[%s220 + $0x98] sm:$0xff] %v259
                %v261 = vld [vmem:[%s219 + $0x140] sm:$0xff]
                %262 = vst [vmem:[%s220 + $0xa0] sm:$0xff] %v261
                %v263 = vld [vmem:[%s219 + $0x148] sm:$0xff]
                %264 = vst [vmem:[%s220 + $0xa8] sm:$0xff] %v263
                %v265 = vld [vmem:[%s219 + $0x160] sm:$0xff]
                %266 = vst [vmem:[%s220 + $0xb0] sm:$0xff] %v265
                %v267 = vld [vmem:[%s219 + $0x168] sm:$0xff]
                %268 = vst [vmem:[%s220 + $0xb8] sm:$0xff] %v267
                %v269 = vld [vmem:[%s219 + $0x180] sm:$0xff]
                %270 = vst [vmem:[%s220 + $0xc0] sm:$0xff] %v269
                %v271 = vld [vmem:[%s219 + $0x188] sm:$0xff]
                %272 = vst [vmem:[%s220 + $0xc8] sm:$0xff] %v271
                %v273 = vld [vmem:[%s219 + $0x1a0] sm:$0xff]
                %274 = vst [vmem:[%s220 + $0xd0] sm:$0xff] %v273
                %v275 = vld [vmem:[%s219 + $0x1a8] sm:$0xff]
                %276 = vst [vmem:[%s220 + $0xd8] sm:$0xff] %v275
                %v277 = vld [vmem:[%s219 + $0x1c0] sm:$0xff]
                %278 = vst [vmem:[%s220 + $0xe0] sm:$0xff] %v277
                %v279 = vld [vmem:[%s219 + $0x1c8] sm:$0xff]
                %280 = vst [vmem:[%s220 + $0xe8] sm:$0xff] %v279
                %v281 = vld [vmem:[%s219 + $0x1e0] sm:$0xff]
                %282 = vst [vmem:[%s220 + $0xf0] sm:$0xff] %v281
                %v283 = vld [vmem:[%s219 + $0x1e8] sm:$0xff]
                %284 = vst [vmem:[%s220 + $0xf8] sm:$0xff] %v283
              $region37: #{slr_forward.9} parent=31 // loop_footer
                %s218 = sadd.s32 1, %s214
              $region38: #{slr_forward.9} parent=31 // loop_footer_branch
                %213 = sbr.rel target = $region34
              $region39: #{slr_forward.9} parent=31 // loop_exit
                _
            $region32: #{slr_forward.9} parent=27 // pred_fallthru
              _
            // Predicated region
            $region40: #{slr_forward.9} parent=27 // pred_check
              _
            $region41: #{slr_forward.9} parent=27 // pred_check_branch
              %286 = sbr.rel target = $region43
            $region42: #{slr_forward.9} parent=27 // pred_region
              _
            $region43: #{slr_forward.9} parent=27 // pred_fallthru
              _
          $region28: #{slr_forward.9} parent=23 // pred_fallthru
            _
          %287 = vnop
        $region24: #{slr_forward.9} parent=19 // pred_fallthru
          _
        // Predicated region
        $region44: #{slr_forward.9} parent=19 // pred_check
          %p288 = pneg %p105
        $region45: #{slr_forward.9} parent=19 // pred_check_branch
          %290 = sbr.rel (%p288) target = $region47
        $region46: #{slr_forward.9} parent=19 // pred_region
          %s291 = smul.u32 4, %s18
          %p292 = scmp.lt.s32.totalorder %s291, 7
          %s293 = scalar_select %p292, %s291, 7
          %s294 = scalar_lea.vmem %s2, %s293
          %s295 = smul.u32 4, %s18
        $region47: #{slr_forward.9} parent=19 // pred_fallthru
          _
        // Predicated region
        $region48: #{slr_forward.9} parent=19 // pred_check
          %p296 = pneg %p131
        $region49: #{slr_forward.9} parent=19 // pred_check_branch
          %298 = sbr.rel (%p296) target = $region51
        $region50: #{slr_forward.9} parent=19 // pred_region
          %s299 = smul.u32 4, %s18
          %p300 = scmp.lt.s32.totalorder %s299, 7
          %s301 = scalar_select %p300, %s299, 7
          %s302 = scalar_lea.vmem %s3, %s301
          %s303 = smul.u32 4, %s18
        $region51: #{slr_forward.9} parent=19 // pred_fallthru
          _
      $region20: #{slr_forward.9} parent=5 // pred_fallthru
        _
      %p304 = scmp.le.s32.totalorder 1, %s10
      %p305 = scmp.lt.s32.totalorder %s10, 3
      %p306 = pnand %p304, %p305
      %p307 = pneg %p306
      // Predicated region
      $region52: #{slr_forward.9} parent=5 // pred_check
        _
      $region53: #{slr_forward.9} parent=5 // pred_check_branch
        %309 = sbr.rel (%p306) target = $region55
      $region54: #{slr_forward.9} parent=5 // pred_region
        %s310 = ssub.s32 %s10, 1
        %s311 = sand.u32 %s72, 1
        %s312 = sand.u32 %s72, 1
        %s313 = smul.addr %s312, 256
        %s314 = scalar_lea.vmem [#allocation2], %s313
        // Predicated region
        $region56: #{slr_forward.9} parent=54 // pred_check
          %p315 = pneg %p85
        $region57: #{slr_forward.9} parent=54 // pred_check_branch
          %317 = sbr.rel (%p315) target = $region59
        $region58: #{slr_forward.9} parent=54 // pred_region
          _
        $region59: #{slr_forward.9} parent=54 // pred_fallthru
          _
        %s318 = smul.u32 2, %s20
        %p319 = scmp.lt.s32.totalorder %s318, 1
        %s320 = scalar_select %p319, %s318, 1
        %p321 = scmp.lt.s32.totalorder %s22, 0
        %s322 = scalar_select %p321, %s22, 0
        %s323 = sadd.s32 %s322, %s320
        %s324 = smul.addr %s323, 4
        %s325 = scalar_lea.vmem %s0, %s324
        %p326 = pneg %p57
        %p327 = pneg %p54
        %s328 = sand.u32 %s72, 1
        %s329 = sand.u32 %s72, 1
        %s330 = smul.addr %s329, 256
        %s331 = scalar_lea.vmem [#allocation2], %s330
        %p332 = pneg %p85
        %p333 = pneg %p82
        %s334 = smul.u32 4, %s21
        %p335 = scmp.lt.s32.totalorder %s334, 7
        %s336 = scalar_select %p335, %s334, 7
        %s337 = scalar_lea.vmem %s2, %s336
        %p338 = pneg %p111
        %p339 = pneg %p108
        %s340 = smul.u32 4, %s21
        %p341 = scmp.lt.s32.totalorder %s340, 7
        %s342 = scalar_select %p341, %s340, 7
        %s343 = scalar_lea.vmem %s3, %s342
        %p344 = pneg %p137
        %p345 = pneg %p134
        %p346 = pneg %p165
        %p347 = pneg %p162
        %s348 = sand.u32 %s152, 1
        %s349 = sand.u32 %s152, 1
        %s350 = smul.addr %s349, 64
        %s351 = scalar_lea.vmem [#allocation3], %s350
        %s352 = smul.u32 2, %s20
        %p353 = scmp.lt.s32.totalorder %s352, 1
        %s354 = scalar_select %p353, %s352, 1
        %p355 = scmp.lt.s32.totalorder %s22, 0
        %s356 = scalar_select %p355, %s22, 0
        %s357 = sadd.s32 %s356, %s354
        %s358 = smul.addr %s357, 4
        %s359 = scalar_lea.vmem %s0, %s358
        %s360 = smul.u32 2, %s20
        %s361 = smul.u32 16, %s22
        %s362 = smul.u32 4, %s21
        %s363 = smul.u32 4, %s21
        %p364 = scmp.lt.s32.totalorder %s363, 7
        %s365 = scalar_select %p364, %s363, 7
        %s366 = scalar_lea.vmem %s2, %s365
        %s367 = smul.u32 4, %s21
        %s368 = smul.u32 4, %s21
        %p369 = scmp.lt.s32.totalorder %s368, 7
        %s370 = scalar_select %p369, %s368, 7
        %s371 = scalar_lea.vmem %s3, %s370
        %s372 = smul.u32 4, %s21
        %s373 = smul.u32 2, %s20
        %s374 = smul.u32 4, %s21
        %p376 = scmp.eq.s32.totalorder %s22, 0
        // Predicated region
        $region60: #{slr_forward.9} parent=54 // pred_check
          %p377 = pneg %p376
        $region61: #{slr_forward.9} parent=54 // pred_check_branch
          %379 = sbr.rel (%p377) target = $region63
        $region62: #{slr_forward.9} parent=54 // pred_region
          %380 = vst [vmem:[%s351] sm:$0xff] 0.0
          %381 = vst [vmem:[%s351 + $0x8] sm:$0xff] 0.0
          %382 = vst [vmem:[%s351 + $0x10] sm:$0xff] 0.0
          %383 = vst [vmem:[%s351 + $0x18] sm:$0xff] 0.0
          %384 = vst [vmem:[%s351 + $0x20] sm:$0xff] 0.0
          %385 = vst [vmem:[%s351 + $0x28] sm:$0xff] 0.0
          %386 = vst [vmem:[%s351 + $0x30] sm:$0xff] 0.0
          %387 = vst [vmem:[%s351 + $0x38] sm:$0xff] 0.0
        $region63: #{slr_forward.9} parent=54 // pred_fallthru
          _
        %v388 = vld [vmem:[%s351] sm:$0xff]
        %v389 = vld [vmem:[%s351 + $0x8] sm:$0xff]
        %v390 = vld [vmem:[%s351 + $0x10] sm:$0xff]
        %v391 = vld [vmem:[%s351 + $0x18] sm:$0xff]
        %v392 = vld [vmem:[%s351 + $0x20] sm:$0xff]
        %v393 = vld [vmem:[%s351 + $0x28] sm:$0xff]
        %v394 = vld [vmem:[%s351 + $0x30] sm:$0xff]
        %v395 = vld [vmem:[%s351 + $0x38] sm:$0xff]
        %v396 = vld [vmem:[%s359] sm:$0xf]
        %v397 = vld [vmem:[%s359 + $0x4] sm:$0xf]
        %v398 = vld [vmem:[%s314] sm:$0xff]
        %v399 = vld [vmem:[%s314 + $0x8] sm:$0xff]
        %v400 = vld [vmem:[%s314 + $0x10] sm:$0xff]
        %v401 = vld [vmem:[%s314 + $0x18] sm:$0xff]
        %v402 = vld [vmem:[%s314 + $0x20] sm:$0xff]
        %v403 = vld [vmem:[%s314 + $0x28] sm:$0xff]
        %v404 = vld [vmem:[%s314 + $0x30] sm:$0xff]
        %v405 = vld [vmem:[%s314 + $0x38] sm:$0xff]
        %v406 = vld [vmem:[%s314 + $0x40] sm:$0xff]
        %v407 = vld [vmem:[%s314 + $0x48] sm:$0xff]
        %v408 = vld [vmem:[%s314 + $0x50] sm:$0xff]
        %v409 = vld [vmem:[%s314 + $0x58] sm:$0xff]
        %v410 = vld [vmem:[%s314 + $0x60] sm:$0xff]
        %v411 = vld [vmem:[%s314 + $0x68] sm:$0xff]
        %v412 = vld [vmem:[%s314 + $0x70] sm:$0xff]
        %v413 = vld [vmem:[%s314 + $0x78] sm:$0xff]
        %v414 = vld [vmem:[%s314 + $0x80] sm:$0xff]
        %v415 = vld [vmem:[%s314 + $0x88] sm:$0xff]
        %v416 = vld [vmem:[%s314 + $0x90] sm:$0xff]
        %v417 = vld [vmem:[%s314 + $0x98] sm:$0xff]
        %v418 = vld [vmem:[%s314 + $0xa0] sm:$0xff]
        %v419 = vld [vmem:[%s314 + $0xa8] sm:$0xff]
        %v420 = vld [vmem:[%s314 + $0xb0] sm:$0xff]
        %v421 = vld [vmem:[%s314 + $0xb8] sm:$0xff]
        %v422 = vld [vmem:[%s314 + $0xc0] sm:$0xff]
        %v423 = vld [vmem:[%s314 + $0xc8] sm:$0xff]
        %v424 = vld [vmem:[%s314 + $0xd0] sm:$0xff]
        %v425 = vld [vmem:[%s314 + $0xd8] sm:$0xff]
        %v426 = vld [vmem:[%s314 + $0xe0] sm:$0xff]
        %v427 = vld [vmem:[%s314 + $0xe8] sm:$0xff]
        %v428 = vld [vmem:[%s314 + $0xf0] sm:$0xff]
        %v429 = vld [vmem:[%s314 + $0xf8] sm:$0xff]
        %v432 = vunpack.c.l.b16 %v396
        %v433 = vunpack.c.l.b16 %v397
        %v434 = vpack.c.b16 %v433, %v432
        %v468 = vunpack.c.l.b16 %v398
        %v469 = vunpack.c.h.b16 %v398
        %v470 = vunpack.c.l.b16 %v399
        %v471 = vunpack.c.h.b16 %v399
        %v472 = vunpack.c.l.b16 %v400
        %v473 = vunpack.c.h.b16 %v400
        %v474 = vunpack.c.l.b16 %v401
        %v475 = vunpack.c.h.b16 %v401
        %v476 = vunpack.c.l.b16 %v402
        %v477 = vunpack.c.h.b16 %v402
        %v478 = vunpack.c.l.b16 %v403
        %v479 = vunpack.c.h.b16 %v403
        %v480 = vunpack.c.l.b16 %v404
        %v481 = vunpack.c.h.b16 %v404
        %v482 = vunpack.c.l.b16 %v405
        %v483 = vunpack.c.h.b16 %v405
        %v484 = vunpack.c.l.b16 %v406
        %v485 = vunpack.c.h.b16 %v406
        %v486 = vunpack.c.l.b16 %v407
        %v487 = vunpack.c.h.b16 %v407
        %v488 = vunpack.c.l.b16 %v408
        %v489 = vunpack.c.h.b16 %v408
        %v490 = vunpack.c.l.b16 %v409
        %v491 = vunpack.c.h.b16 %v409
        %v492 = vunpack.c.l.b16 %v410
        %v493 = vunpack.c.h.b16 %v410
        %v494 = vunpack.c.l.b16 %v411
        %v495 = vunpack.c.h.b16 %v411
        %v496 = vunpack.c.l.b16 %v412
        %v497 = vunpack.c.h.b16 %v412
        %v498 = vunpack.c.l.b16 %v413
        %v499 = vunpack.c.h.b16 %v413
        %v500 = vunpack.c.l.b16 %v414
        %v501 = vunpack.c.h.b16 %v414
        %v502 = vunpack.c.l.b16 %v415
        %v503 = vunpack.c.h.b16 %v415
        %v504 = vunpack.c.l.b16 %v416
        %v505 = vunpack.c.h.b16 %v416
        %v506 = vunpack.c.l.b16 %v417
        %v507 = vunpack.c.h.b16 %v417
        %v508 = vunpack.c.l.b16 %v418
        %v509 = vunpack.c.h.b16 %v418
        %v510 = vunpack.c.l.b16 %v419
        %v511 = vunpack.c.h.b16 %v419
        %v512 = vunpack.c.l.b16 %v420
        %v513 = vunpack.c.h.b16 %v420
        %v514 = vunpack.c.l.b16 %v421
        %v515 = vunpack.c.h.b16 %v421
        %v516 = vunpack.c.l.b16 %v422
        %v517 = vunpack.c.h.b16 %v422
        %v518 = vunpack.c.l.b16 %v423
        %v519 = vunpack.c.h.b16 %v423
        %v520 = vunpack.c.l.b16 %v424
        %v521 = vunpack.c.h.b16 %v424
        %v522 = vunpack.c.l.b16 %v425
        %v523 = vunpack.c.h.b16 %v425
        %v524 = vunpack.c.l.b16 %v426
        %v525 = vunpack.c.h.b16 %v426
        %v526 = vunpack.c.l.b16 %v427
        %v527 = vunpack.c.h.b16 %v427
        %v528 = vunpack.c.l.b16 %v428
        %v529 = vunpack.c.h.b16 %v428
        %v530 = vunpack.c.l.b16 %v429
        %v531 = vunpack.c.h.b16 %v429
        %v532 = vpack.c.b16 %v472, %v468
        %v533 = vpack.c.b16 %v473, %v469
        %v534 = vpack.c.b16 %v474, %v470
        %v535 = vpack.c.b16 %v475, %v471
        %v536 = vpack.c.b16 %v480, %v476
        %v537 = vpack.c.b16 %v481, %v477
        %v538 = vpack.c.b16 %v482, %v478
        %v539 = vpack.c.b16 %v483, %v479
        %v540 = vpack.c.b16 %v488, %v484
        %v541 = vpack.c.b16 %v489, %v485
        %v542 = vpack.c.b16 %v490, %v486
        %v543 = vpack.c.b16 %v491, %v487
        %v544 = vpack.c.b16 %v496, %v492
        %v545 = vpack.c.b16 %v497, %v493
        %v546 = vpack.c.b16 %v498, %v494
        %v547 = vpack.c.b16 %v499, %v495
        %v548 = vpack.c.b16 %v504, %v500
        %v549 = vpack.c.b16 %v505, %v501
        %v550 = vpack.c.b16 %v506, %v502
        %v551 = vpack.c.b16 %v507, %v503
        %v552 = vpack.c.b16 %v512, %v508
        %v553 = vpack.c.b16 %v513, %v509
        %v554 = vpack.c.b16 %v514, %v510
        %v555 = vpack.c.b16 %v515, %v511
        %v556 = vpack.c.b16 %v520, %v516
        %v557 = vpack.c.b16 %v521, %v517
        %v558 = vpack.c.b16 %v522, %v518
        %v559 = vpack.c.b16 %v523, %v519
        %v560 = vpack.c.b16 %v528, %v524
        %v561 = vpack.c.b16 %v529, %v525
        %v562 = vpack.c.b16 %v530, %v526
        %v563 = vpack.c.b16 %v531, %v527
        %596 = vmatprep.subr.bf16.mxu0 %v533
        %597 = vmatpush1.bf16.msra.mxu0 %v532
        %598 = vmatprep.subr.bf16.mxu0 %v537
        %599 = vmatpush1.bf16.msra.mxu0 %v536
        %600 = vmatprep.subr.bf16.mxu0 %v541
        %601 = vmatpush1.bf16.msra.mxu0 %v540
        %602 = vmatprep.subr.bf16.mxu0 %v545
        %603 = vmatpush1.bf16.msra.mxu0 %v544
        %604 = vmatprep.subr.bf16.mxu0 %v549
        %605 = vmatpush1.bf16.msra.mxu0 %v548
        %606 = vmatprep.subr.bf16.mxu0 %v553
        %607 = vmatpush1.bf16.msra.mxu0 %v552
        %608 = vmatprep.subr.bf16.mxu0 %v557
        %609 = vmatpush1.bf16.msra.mxu0 %v556
        %610 = vmatprep.subr.bf16.mxu0 %v561
        %611 = vmatpush1.bf16.msra.mxu0 %v560
        %612 = vmatprep.subr.bf16.mxu0 0
        %613 = vmatpush1.bf16.msra.mxu0 0
        %614 = vmatprep.subr.bf16.mxu0 0
        %615 = vmatpush1.bf16.msra.mxu0 0
        %616 = vmatprep.subr.bf16.mxu0 0
        %617 = vmatpush1.bf16.msra.mxu0 0
        %618 = vmatprep.subr.bf16.mxu0 0
        %619 = vmatpush1.bf16.msra.mxu0 0
        %620 = vmatprep.subr.bf16.mxu0 0
        %621 = vmatpush1.bf16.msra.mxu0 0
        %622 = vmatprep.subr.bf16.mxu0 0
        %623 = vmatpush1.bf16.msra.mxu0 0
        %624 = vmatprep.subr.bf16.mxu0 0
        %625 = vmatpush1.bf16.msra.mxu0 0
        %626 = vmatprep.subr.bf16.mxu0 0
        %627 = vmatpush1.bf16.msra.mxu0 0
        %628 = vmatprep.mubr.bf16.mxu0 0
        %629 = vmatmul.mubr.bf16.gmra.mrb[0].mxu0 %v434
        %v630 = vpop.f32.mrb[0].mxu0
        %v631 = vadd.f32 0.0, %v630
        %v632 = vpop.f32.mrb[0].mxu0
        %v633 = vadd.f32 0.0, %v632
        %v634 = vpop.f32.mrb[0].mxu0
        %v635 = vadd.f32 0.0, %v634
        %v636 = vpop.f32.mrb[0].mxu0
        %v637 = vadd.f32 0.0, %v636
        %638 = vdwg.mxu0
        %639 = vmatprep.subr.bf16.mxu0 %v535
        %640 = vmatpush1.bf16.msra.mxu0 %v534
        %641 = vmatprep.subr.bf16.mxu0 %v539
        %642 = vmatpush1.bf16.msra.mxu0 %v538
        %643 = vmatprep.subr.bf16.mxu0 %v543
        %644 = vmatpush1.bf16.msra.mxu0 %v542
        %645 = vmatprep.subr.bf16.mxu0 %v547
        %646 = vmatpush1.bf16.msra.mxu0 %v546
        %647 = vmatprep.subr.bf16.mxu0 %v551
        %648 = vmatpush1.bf16.msra.mxu0 %v550
        %649 = vmatprep.subr.bf16.mxu0 %v555
        %650 = vmatpush1.bf16.msra.mxu0 %v554
        %651 = vmatprep.subr.bf16.mxu0 %v559
        %652 = vmatpush1.bf16.msra.mxu0 %v558
        %653 = vmatprep.subr.bf16.mxu0 %v563
        %654 = vmatpush1.bf16.msra.mxu0 %v562
        %655 = vmatprep.subr.bf16.mxu0 0
        %656 = vmatpush1.bf16.msra.mxu0 0
        %657 = vmatprep.subr.bf16.mxu0 0
        %658 = vmatpush1.bf16.msra.mxu0 0
        %659 = vmatprep.subr.bf16.mxu0 0
        %660 = vmatpush1.bf16.msra.mxu0 0
        %661 = vmatprep.subr.bf16.mxu0 0
        %662 = vmatpush1.bf16.msra.mxu0 0
        %663 = vmatprep.subr.bf16.mxu0 0
        %664 = vmatpush1.bf16.msra.mxu0 0
        %665 = vmatprep.subr.bf16.mxu0 0
        %666 = vmatpush1.bf16.msra.mxu0 0
        %667 = vmatprep.subr.bf16.mxu0 0
        %668 = vmatpush1.bf16.msra.mxu0 0
        %669 = vmatprep.subr.bf16.mxu0 0
        %670 = vmatpush1.bf16.msra.mxu0 0
        %671 = vmatprep.mubr.bf16.mxu0 0
        %672 = vmatmul.mubr.bf16.gmra.mrb[0].mxu0 %v434
        %v673 = vpop.f32.mrb[0].mxu0
        %v674 = vadd.f32 0.0, %v673
        %v675 = vpop.f32.mrb[0].mxu0
        %v676 = vadd.f32 0.0, %v675
        %v677 = vpop.f32.mrb[0].mxu0
        %v678 = vadd.f32 0.0, %v677
        %v679 = vpop.f32.mrb[0].mxu0
        %v680 = vadd.f32 0.0, %v679
        %681 = vdwg.mxu0
        %v682 = vadd.f32 %v388, %v631
        %v683 = vadd.f32 %v389, %v633
        %v684 = vadd.f32 %v390, %v674
        %v685 = vadd.f32 %v391, %v676
        %v686 = vadd.f32 %v392, %v635
        %v687 = vadd.f32 %v393, %v637
        %v688 = vadd.f32 %v394, %v678
        %v689 = vadd.f32 %v395, %v680
        %690 = vst [vmem:[%s351] sm:$0xff] %v682
        %691 = vst [vmem:[%s351 + $0x8] sm:$0xff] %v683
        %692 = vst [vmem:[%s351 + $0x10] sm:$0xff] %v684
        %693 = vst [vmem:[%s351 + $0x18] sm:$0xff] %v685
        %694 = vst [vmem:[%s351 + $0x20] sm:$0xff] %v686
        %695 = vst [vmem:[%s351 + $0x28] sm:$0xff] %v687
        %696 = vst [vmem:[%s351 + $0x30] sm:$0xff] %v688
        %697 = vst [vmem:[%s351 + $0x38] sm:$0xff] %v689
        // Predicated region
        $region64: #{slr_forward.9} parent=54 // pred_check
          %p698 = pneg %p376
        $region65: #{slr_forward.9} parent=54 // pred_check_branch
          %700 = sbr.rel (%p698) target = $region67
        $region66: #{slr_forward.9} parent=54 // pred_region
          %v701 = vld [vmem:[%s351] sm:$0xff]
          %v702 = vld [vmem:[%s351 + $0x8] sm:$0xff]
          %v703 = vld [vmem:[%s351 + $0x10] sm:$0xff]
          %v704 = vld [vmem:[%s351 + $0x18] sm:$0xff]
          %v705 = vld [vmem:[%s351 + $0x20] sm:$0xff]
          %v706 = vld [vmem:[%s351 + $0x28] sm:$0xff]
          %v707 = vld [vmem:[%s351 + $0x30] sm:$0xff]
          %v708 = vld [vmem:[%s351 + $0x38] sm:$0xff]
          %v709 = vld [vmem:[%s366] sm:$0xf]
          %v711 = vlaneseq
          %v712 = vshrl.u32 %v711, 7
          %v713 = vsub.s32 0, %v712
          %v714 = vrot.slane %v709, %v713
          %v715 = vlaneseq
          %v716 = vshrl.u32 %v715, 7
          %v717 = vsub.s32 1, %v716
          %v718 = vrot.slane %v709, %v717
          %v719 = vlaneseq
          %v720 = vshrl.u32 %v719, 7
          %v721 = vsub.s32 2, %v720
          %v722 = vrot.slane %v709, %v721
          %v723 = vlaneseq
          %v724 = vshrl.u32 %v723, 7
          %v725 = vsub.s32 3, %v724
          %v726 = vrot.slane %v709, %v725
          %v731 = vadd.f32 %v701, %v714
          %v732 = vadd.f32 %v702, %v718
          %v733 = vadd.f32 %v703, %v722
          %v734 = vadd.f32 %v704, %v726
          %v735 = vadd.f32 %v705, %v714
          %v736 = vadd.f32 %v706, %v718
          %v737 = vadd.f32 %v707, %v722
          %v738 = vadd.f32 %v708, %v726
          %v739 = vld [vmem:[%s371] sm:$0xf]
          %v741 = vlaneseq
          %v742 = vshrl.u32 %v741, 7
          %v743 = vsub.s32 0, %v742
          %v744 = vrot.slane %v739, %v743
          %v745 = vlaneseq
          %v746 = vshrl.u32 %v745, 7
          %v747 = vsub.s32 1, %v746
          %v748 = vrot.slane %v739, %v747
          %v749 = vlaneseq
          %v750 = vshrl.u32 %v749, 7
          %v751 = vsub.s32 2, %v750
          %v752 = vrot.slane %v739, %v751
          %v753 = vlaneseq
          %v754 = vshrl.u32 %v753, 7
          %v755 = vsub.s32 3, %v754
          %v756 = vrot.slane %v739, %v755
          %v761 = vmul.f32 %v731, %v744
          %v762 = vmul.f32 %v732, %v748
          %v763 = vmul.f32 %v733, %v752
          %v764 = vmul.f32 %v734, %v756
          %v765 = vmul.f32 %v735, %v744
          %v766 = vmul.f32 %v736, %v748
          %v767 = vmul.f32 %v737, %v752
          %v768 = vmul.f32 %v738, %v756
          %769 = vst [vmem:[%s351] sm:$0xff] %v761
          %770 = vst [vmem:[%s351 + $0x8] sm:$0xff] %v762
          %771 = vst [vmem:[%s351 + $0x10] sm:$0xff] %v763
          %772 = vst [vmem:[%s351 + $0x18] sm:$0xff] %v764
          %773 = vst [vmem:[%s351 + $0x20] sm:$0xff] %v765
          %774 = vst [vmem:[%s351 + $0x28] sm:$0xff] %v766
          %775 = vst [vmem:[%s351 + $0x30] sm:$0xff] %v767
          %776 = vst [vmem:[%s351 + $0x38] sm:$0xff] %v768
        $region67: #{slr_forward.9} parent=54 // pred_fallthru
          _
        %s777 = sand.u32 %s152, 1
        %s778 = sand.u32 %s152, 1
        %s779 = smul.addr %s778, 64
        %s780 = scalar_lea.vmem [#allocation3], %s779
        // Predicated region
        $region68: #{slr_forward.9} parent=54 // pred_check
          %p781 = pneg %p162
        $region69: #{slr_forward.9} parent=54 // pred_check_branch
          %783 = sbr.rel (%p781) target = $region71
        $region70: #{slr_forward.9} parent=54 // pred_region
          %s784 = smul.u32 2, %s20
          %s785 = smul.u32 4, %s21
          %s786 = smul.addr %s784, 8
          %s787 = sadd.s32 %s785, %s786
          %s788 = smul.addr %s787, 8
          %s789 = scalar_lea.vmem %s4, %s788
          // Predicated region
          $region72: #{slr_forward.9} parent=70 // pred_check
            _
          $region73: #{slr_forward.9} parent=70 // pred_check_branch
            %791 = sbr.rel (0) target = $region75
          $region74: #{slr_forward.9} parent=70 // pred_region
            // Predicated region
            $region76: #{slr_forward.9} parent=74 // pred_check
              _
            $region77: #{slr_forward.9} parent=74 // pred_check_branch
              %793 = sbr.rel (0) target = $region79
            $region78: #{slr_forward.9} parent=74 // pred_region
              loop: start=0, step=1, limit=1
              $region80: #{slr_forward.9} parent=78 // loop_pre_header
                _
              $region81: #{slr_forward.9} parent=78 // loop_header
                %s795 = sphi 0, %s799
                %p796 = scmp.ge.s32.totalorder %s795, 1
                %s800 = sphi %s780, %s780
                %s801 = sphi %s789, %s789
              $region82: #{slr_forward.9} parent=78 // loop_header_branch
                %798 = sbr.rel (%p796) target = $region86
              $region83: #{slr_forward.9} parent=78 // loop_body
                %v802 = vld [vmem:[%s800] sm:$0xff]
                %803 = vst [vmem:[%s801] sm:$0xff] %v802
                %v804 = vld [vmem:[%s800 + $0x8] sm:$0xff]
                %805 = vst [vmem:[%s801 + $0x8] sm:$0xff] %v804
                %v806 = vld [vmem:[%s800 + $0x10] sm:$0xff]
                %807 = vst [vmem:[%s801 + $0x10] sm:$0xff] %v806
                %v808 = vld [vmem:[%s800 + $0x18] sm:$0xff]
                %809 = vst [vmem:[%s801 + $0x18] sm:$0xff] %v808
                %v810 = vld [vmem:[%s800 + $0x20] sm:$0xff]
                %811 = vst [vmem:[%s801 + $0x40] sm:$0xff] %v810
                %v812 = vld [vmem:[%s800 + $0x28] sm:$0xff]
                %813 = vst [vmem:[%s801 + $0x48] sm:$0xff] %v812
                %v814 = vld [vmem:[%s800 + $0x30] sm:$0xff]
                %815 = vst [vmem:[%s801 + $0x50] sm:$0xff] %v814
                %v816 = vld [vmem:[%s800 + $0x38] sm:$0xff]
                %817 = vst [vmem:[%s801 + $0x58] sm:$0xff] %v816
              $region84: #{slr_forward.9} parent=78 // loop_footer
                %s799 = sadd.s32 1, %s795
              $region85: #{slr_forward.9} parent=78 // loop_footer_branch
                %794 = sbr.rel target = $region81
              $region86: #{slr_forward.9} parent=78 // loop_exit
                _
            $region79: #{slr_forward.9} parent=74 // pred_fallthru
              _
            // Predicated region
            $region87: #{slr_forward.9} parent=74 // pred_check
              _
            $region88: #{slr_forward.9} parent=74 // pred_check_branch
              %819 = sbr.rel target = $region90
            $region89: #{slr_forward.9} parent=74 // pred_region
              _
            $region90: #{slr_forward.9} parent=74 // pred_fallthru
              _
          $region75: #{slr_forward.9} parent=70 // pred_fallthru
            _
          %820 = vnop
        $region71: #{slr_forward.9} parent=54 // pred_fallthru
          _
      $region55: #{slr_forward.9} parent=5 // pred_fallthru
        _
      %p821 = scmp.le.s32.totalorder 2, %s10
      // Predicated region
      $region91: #{slr_forward.9} parent=5 // pred_check
        %p822 = pneg %p821
      $region92: #{slr_forward.9} parent=5 // pred_check_branch
        %824 = sbr.rel (%p822) target = $region94
      $region93: #{slr_forward.9} parent=5 // pred_region
        %s825 = ssub.s32 %s10, 2
        // Predicated region
        $region95: #{slr_forward.9} parent=93 // pred_check
          %p826 = pneg %p168
        $region96: #{slr_forward.9} parent=93 // pred_check_branch
          %828 = sbr.rel (%p826) target = $region98
        $region97: #{slr_forward.9} parent=93 // pred_region
          %s829 = sand.u32 %s153, 1
          %s830 = sand.u32 %s153, 1
          %s831 = smul.addr %s830, 64
          %s832 = scalar_lea.vmem [#allocation3], %s831
        $region98: #{slr_forward.9} parent=93 // pred_fallthru
          _
      $region94: #{slr_forward.9} parent=5 // pred_fallthru
        _
    $region6: #{slr_forward.9} parent=1 // loop_footer
      %s14 = sadd.s32 1, %s10
    $region7: #{slr_forward.9} parent=1 // loop_footer_branch
      %9 = sbr.rel target = $region3
    $region8: #{slr_forward.9} parent=1 // loop_exit
      _

// kernel: slr_forward.8
$region0: #{slr_forward.8}
  #allocation0 [shape = 'u32[]', space=smem, size = 0x4, offset = 0x4, fixed_abs, tag = 'smem constant byte address 0x4 - core index']
  #allocation1 [shape = 'u32[144,128]{1,0:T(1,128)}', space=vmem, size = 0x12000, scoped, tag = 'internal scratch']
  %s0 = inlined_call_operand.vmem [shape: bf16[112,128], index: 0, kind: input, shape index: {}]
  %s1 = inlined_call_operand.vmem [shape: bf16[5,128,128], index: 1, kind: input, shape index: {}]
  %s2 = inlined_call_operand.vmem [shape: f32[1,128], index: 2, kind: input, shape index: {}]
  %s3 = inlined_call_operand.vmem [shape: f32[80,128], index: 3, kind: output, shape index: {}]
  %s4 = sld [smem:[#allocation0]]
  $region22: #{slr_forward.8} parent=0
    _
  %s6 = ssub.s32 1, %s4
  %s7 = scalar_select 0, %s6, %s4
  // Predicated region
  $region2: #{slr_forward.8} parent=0 // pred_check
    _
  $region3: #{slr_forward.8} parent=0 // pred_check_branch
    %9 = sbr.rel (0) target = $region5
  $region4: #{slr_forward.8} parent=0 // pred_region
    _
  $region5: #{slr_forward.8} parent=0 // pred_fallthru
    _
  // Predicated region
  $region6: #{slr_forward.8} parent=0 // pred_check
    _
  $region7: #{slr_forward.8} parent=0 // pred_check_branch
    %11 = sbr.rel (0) target = $region9
  $region8: #{slr_forward.8} parent=0 // pred_region
    _
  $region9: #{slr_forward.8} parent=0 // pred_fallthru
    _
  // Predicated region
  $region10: #{slr_forward.8} parent=0 // pred_check
    _
  $region11: #{slr_forward.8} parent=0 // pred_check_branch
    %13 = sbr.rel (0) target = $region13
  $region12: #{slr_forward.8} parent=0 // pred_region
    _
  $region13: #{slr_forward.8} parent=0 // pred_fallthru
    _
  %v15 = vld [vmem:[%s0] sm:$0xf]
  %v16 = vld [vmem:[%s0 + $0x4] sm:$0xf]
  %v17 = vld [vmem:[%s0 + $0x8] sm:$0xf]
  %v18 = vld [vmem:[%s0 + $0xc] sm:$0xf]
  %v19 = vld [vmem:[%s0 + $0x10] sm:$0xf]
  %v20 = vld [vmem:[%s0 + $0x14] sm:$0xf]
  %v21 = vld [vmem:[%s0 + $0x18] sm:$0xf]
  %v22 = vld [vmem:[%s0 + $0x1c] sm:$0xf]
  %v23 = vld [vmem:[%s0 + $0x20] sm:$0xf]
  %v24 = vld [vmem:[%s0 + $0x24] sm:$0xf]
  %v25 = vld [vmem:[%s1] sm:$0xf]
  %v26 = vld [vmem:[%s1 + $0x4] sm:$0xf]
  %v27 = vld [vmem:[%s1 + $0x8] sm:$0xf]
  %v28 = vld [vmem:[%s1 + $0xc] sm:$0xf]
  %v29 = vld [vmem:[%s1 + $0x10] sm:$0xf]
  %v30 = vld [vmem:[%s1 + $0x14] sm:$0xf]
  %v31 = vld [vmem:[%s1 + $0x18] sm:$0xf]
  %v32 = vld [vmem:[%s1 + $0x1c] sm:$0xf]
  %v33 = vld [vmem:[%s1 + $0x20] sm:$0xf]
  %v34 = vld [vmem:[%s1 + $0x24] sm:$0xf]
  %v35 = vld [vmem:[%s1 + $0x28] sm:$0xf]
  %v36 = vld [vmem:[%s1 + $0x2c] sm:$0xf]
  %v37 = vld [vmem:[%s1 + $0x30] sm:$0xf]
  %v38 = vld [vmem:[%s1 + $0x34] sm:$0xf]
  %v39 = vld [vmem:[%s1 + $0x38] sm:$0xf]
  %v40 = vld [vmem:[%s1 + $0x3c] sm:$0xf]
  %v51 = vunpack.c.l.b16 %v15
  %v52 = vunpack.c.l.b16 %v16
  %v53 = vunpack.c.l.b16 %v17
  %v54 = vunpack.c.l.b16 %v18
  %v55 = vunpack.c.l.b16 %v19
  %v56 = vunpack.c.l.b16 %v20
  %v57 = vunpack.c.l.b16 %v21
  %v58 = vunpack.c.l.b16 %v22
  %v59 = vunpack.c.l.b16 %v23
  %v60 = vunpack.c.l.b16 %v24
  %v61 = vpack.c.b16 %v52, %v51
  %v62 = vpack.c.b16 %v54, %v53
  %v63 = vpack.c.b16 %v56, %v55
  %v64 = vpack.c.b16 %v58, %v57
  %v65 = vpack.c.b16 %v60, %v59
  %v87 = vunpack.c.l.b16 %v25
  %v88 = vunpack.c.l.b16 %v26
  %v89 = vunpack.c.l.b16 %v27
  %v90 = vunpack.c.l.b16 %v28
  %v91 = vunpack.c.l.b16 %v29
  %v92 = vunpack.c.l.b16 %v30
  %v93 = vunpack.c.l.b16 %v31
  %v94 = vunpack.c.l.b16 %v32
  %v95 = vunpack.c.l.b16 %v33
  %v96 = vunpack.c.l.b16 %v34
  %v97 = vunpack.c.l.b16 %v35
  %v98 = vunpack.c.l.b16 %v36
  %v99 = vunpack.c.l.b16 %v37
  %v100 = vunpack.c.l.b16 %v38
  %v101 = vunpack.c.l.b16 %v39
  %v102 = vunpack.c.l.b16 %v40
  %v103 = vpack.c.b16 %v88, %v87
  %v104 = vpack.c.b16 %v90, %v89
  %v105 = vpack.c.b16 %v92, %v91
  %v106 = vpack.c.b16 %v94, %v93
  %v107 = vpack.c.b16 %v96, %v95
  %v108 = vpack.c.b16 %v98, %v97
  %v109 = vpack.c.b16 %v100, %v99
  %v110 = vpack.c.b16 %v102, %v101
  %119 = vmatprep.subr.bf16.mxu0 0
  %120 = vmatpush1.bf16.msra.mxu0 %v103
  %121 = vmatprep.subr.bf16.mxu0 0
  %122 = vmatpush1.bf16.msra.mxu0 %v104
  %123 = vmatprep.subr.bf16.mxu0 0
  %124 = vmatpush1.bf16.msra.mxu0 %v105
  %125 = vmatprep.subr.bf16.mxu0 0
  %126 = vmatpush1.bf16.msra.mxu0 %v106
  %127 = vmatprep.subr.bf16.mxu0 0
  %128 = vmatpush1.bf16.msra.mxu0 %v107
  %129 = vmatprep.subr.bf16.mxu0 0
  %130 = vmatpush1.bf16.msra.mxu0 %v108
  %131 = vmatprep.subr.bf16.mxu0 0
  %132 = vmatpush1.bf16.msra.mxu0 %v109
  %133 = vmatprep.subr.bf16.mxu0 0
  %134 = vmatpush1.bf16.msra.mxu0 %v110
  %135 = vmatprep.subr.bf16.mxu0 0
  %136 = vmatpush1.bf16.msra.mxu0 0
  %137 = vmatprep.subr.bf16.mxu0 0
  %138 = vmatpush1.bf16.msra.mxu0 0
  %139 = vmatprep.subr.bf16.mxu0 0
  %140 = vmatpush1.bf16.msra.mxu0 0
  %141 = vmatprep.subr.bf16.mxu0 0
  %142 = vmatpush1.bf16.msra.mxu0 0
  %143 = vmatprep.subr.bf16.mxu0 0
  %144 = vmatpush1.bf16.msra.mxu0 0
  %145 = vmatprep.subr.bf16.mxu0 0
  %146 = vmatpush1.bf16.msra.mxu0 0
  %147 = vmatprep.subr.bf16.mxu0 0
  %148 = vmatpush1.bf16.msra.mxu0 0
  %149 = vmatprep.subr.bf16.mxu0 0
  %150 = vmatpush1.bf16.msra.mxu0 0
  %151 = vmatprep.mubr.bf16.mxu0 0
  %152 = vmatmul.mubr.bf16.gmra.mrb[0].mxu0 %v61
  %v153 = vpop.f32.mrb[0].mxu0
  %v154 = vadd.f32 0.0, %v153
  %v155 = vpop.f32.mrb[0].mxu0
  %v156 = vpop.f32.mrb[0].mxu0
  %v157 = vadd.f32 0.0, %v156
  %v158 = vpop.f32.mrb[0].mxu0
  %159 = vmatprep.mubr.bf16.mxu0 0
  %160 = vmatmul.mubr.bf16.gmra.mrb[0].mxu0 %v62
  %v161 = vpop.f32.mrb[0].mxu0
  %v162 = vadd.f32 0.0, %v161
  %v163 = vpop.f32.mrb[0].mxu0
  %v164 = vpop.f32.mrb[0].mxu0
  %v165 = vadd.f32 0.0, %v164
  %v166 = vpop.f32.mrb[0].mxu0
  %167 = vmatprep.mubr.bf16.mxu0 0
  %168 = vmatmul.mubr.bf16.gmra.mrb[0].mxu0 %v63
  %v169 = vpop.f32.mrb[0].mxu0
  %v170 = vadd.f32 0.0, %v169
  %v171 = vpop.f32.mrb[0].mxu0
  %v172 = vpop.f32.mrb[0].mxu0
  %v173 = vadd.f32 0.0, %v172
  %v174 = vpop.f32.mrb[0].mxu0
  %175 = vmatprep.mubr.bf16.mxu0 0
  %176 = vmatmul.mubr.bf16.gmra.mrb[0].mxu0 %v64
  %v177 = vpop.f32.mrb[0].mxu0
  %v178 = vadd.f32 0.0, %v177
  %v179 = vpop.f32.mrb[0].mxu0
  %v180 = vpop.f32.mrb[0].mxu0
  %v181 = vadd.f32 0.0, %v180
  %v182 = vpop.f32.mrb[0].mxu0
  %183 = vmatprep.mubr.bf16.mxu0 0
  %184 = vmatmul.mubr.bf16.gmra.mrb[0].mxu0 %v65
  %v185 = vpop.f32.mrb[0].mxu0
  %v186 = vadd.f32 0.0, %v185
  %v187 = vpop.f32.mrb[0].mxu0
  %v188 = vpop.f32.mrb[0].mxu0
  %v189 = vadd.f32 0.0, %v188
  %v190 = vpop.f32.mrb[0].mxu0
  %191 = vdwg.mxu0
  %192 = vst [vmem:[%s3] sm:$0xff] %v154
  %193 = vst [vmem:[%s3 + $0x8] sm:$0xff] %v157
  %194 = vst [vmem:[%s3 + $0x10] sm:$0xff] %v162
  %195 = vst [vmem:[%s3 + $0x18] sm:$0xff] %v165
  %196 = vst [vmem:[%s3 + $0x20] sm:$0xff] %v170
  %197 = vst [vmem:[%s3 + $0x28] sm:$0xff] %v173
  %198 = vst [vmem:[%s3 + $0x30] sm:$0xff] %v178
  %199 = vst [vmem:[%s3 + $0x38] sm:$0xff] %v181
  %200 = vst [vmem:[%s3 + $0x40] sm:$0xff] %v186
  %201 = vst [vmem:[%s3 + $0x48] sm:$0xff] %v189
  %v202 = vld [vmem:[%s3] sm:$0xff]
  %v203 = vld [vmem:[%s3 + $0x8] sm:$0xff]
  %v204 = vld [vmem:[%s3 + $0x10] sm:$0xff]
  %v205 = vld [vmem:[%s3 + $0x18] sm:$0xff]
  %v206 = vld [vmem:[%s3 + $0x20] sm:$0xff]
  %v207 = vld [vmem:[%s3 + $0x28] sm:$0xff]
  %v208 = vld [vmem:[%s3 + $0x30] sm:$0xff]
  %v209 = vld [vmem:[%s3 + $0x38] sm:$0xff]
  %v210 = vld [vmem:[%s3 + $0x40] sm:$0xff]
  %v211 = vld [vmem:[%s3 + $0x48] sm:$0xff]
  %v212 = vld [vmem:[%s0 + $0x4] sm:$0xf]
  %v213 = vld [vmem:[%s0 + $0x8] sm:$0xf]
  %v214 = vld [vmem:[%s0 + $0xc] sm:$0xf]
  %v215 = vld [vmem:[%s0 + $0x10] sm:$0xf]
  %v216 = vld [vmem:[%s0 + $0x14] sm:$0xf]
  %v217 = vld [vmem:[%s0 + $0x18] sm:$0xf]
  %v218 = vld [vmem:[%s0 + $0x1c] sm:$0xf]
  %v219 = vld [vmem:[%s0 + $0x20] sm:$0xf]
  %v220 = vld [vmem:[%s0 + $0x24] sm:$0xf]
  %v221 = vld [vmem:[%s0 + $0x28] sm:$0xf]
  %s222 = scalar_lea.vmem %s1, 64
  %v223 = vld [vmem:[%s222] sm:$0xf]
  %v224 = vld [vmem:[%s222 + $0x4] sm:$0xf]
  %v225 = vld [vmem:[%s222 + $0x8] sm:$0xf]
  %v226 = vld [vmem:[%s222 + $0xc] sm:$0xf]
  %v227 = vld [vmem:[%s222 + $0x10] sm:$0xf]
  %v228 = vld [vmem:[%s222 + $0x14] sm:$0xf]
  %v229 = vld [vmem:[%s222 + $0x18] sm:$0xf]
  %v230 = vld [vmem:[%s222 + $0x1c] sm:$0xf]
  %v231 = vld [vmem:[%s222 + $0x20] sm:$0xf]
  %v232 = vld [vmem:[%s222 + $0x24] sm:$0xf]
  %v233 = vld [vmem:[%s222 + $0x28] sm:$0xf]
  %v234 = vld [vmem:[%s222 + $0x2c] sm:$0xf]
  %v235 = vld [vmem:[%s222 + $0x30] sm:$0xf]
  %v236 = vld [vmem:[%s222 + $0x34] sm:$0xf]
  %v237 = vld [vmem:[%s222 + $0x38] sm:$0xf]
  %v238 = vld [vmem:[%s222 + $0x3c] sm:$0xf]
  %v249 = vunpack.c.l.b16 %v212
  %v250 = vunpack.c.l.b16 %v213
  %v251 = vunpack.c.l.b16 %v214
  %v252 = vunpack.c.l.b16 %v215
  %v253 = vunpack.c.l.b16 %v216
  %v254 = vunpack.c.l.b16 %v217
  %v255 = vunpack.c.l.b16 %v218
  %v256 = vunpack.c.l.b16 %v219
  %v257 = vunpack.c.l.b16 %v220
  %v258 = vunpack.c.l.b16 %v221
  %v259 = vpack.c.b16 %v250, %v249
  %v260 = vpack.c.b16 %v252, %v251
  %v261 = vpack.c.b16 %v254, %v253
  %v262 = vpack.c.b16 %v256, %v255
  %v263 = vpack.c.b16 %v258, %v257
  %v285 = vunpack.c.l.b16 %v223
  %v286 = vunpack.c.l.b16 %v224
  %v287 = vunpack.c.l.b16 %v225
  %v288 = vunpack.c.l.b16 %v226
  %v289 = vunpack.c.l.b16 %v227
  %v290 = vunpack.c.l.b16 %v228
  %v291 = vunpack.c.l.b16 %v229
  %v292 = vunpack.c.l.b16 %v230
  %v293 = vunpack.c.l.b16 %v231
  %v294 = vunpack.c.l.b16 %v232
  %v295 = vunpack.c.l.b16 %v233
  %v296 = vunpack.c.l.b16 %v234
  %v297 = vunpack.c.l.b16 %v235
  %v298 = vunpack.c.l.b16 %v236
  %v299 = vunpack.c.l.b16 %v237
  %v300 = vunpack.c.l.b16 %v238
  %v301 = vpack.c.b16 %v286, %v285
  %v302 = vpack.c.b16 %v288, %v287
  %v303 = vpack.c.b16 %v290, %v289
  %v304 = vpack.c.b16 %v292, %v291
  %v305 = vpack.c.b16 %v294, %v293
  %v306 = vpack.c.b16 %v296, %v295
  %v307 = vpack.c.b16 %v298, %v297
  %v308 = vpack.c.b16 %v300, %v299
  %317 = vmatprep.subr.bf16.mxu0 0
  %318 = vmatpush1.bf16.msra.mxu0 %v301
  %319 = vmatprep.subr.bf16.mxu0 0
  %320 = vmatpush1.bf16.msra.mxu0 %v302
  %321 = vmatprep.subr.bf16.mxu0 0
  %322 = vmatpush1.bf16.msra.mxu0 %v303
  %323 = vmatprep.subr.bf16.mxu0 0
  %324 = vmatpush1.bf16.msra.mxu0 %v304
  %325 = vmatprep.subr.bf16.mxu0 0
  %326 = vmatpush1.bf16.msra.mxu0 %v305
  %327 = vmatprep.subr.bf16.mxu0 0
  %328 = vmatpush1.bf16.msra.mxu0 %v306
  %329 = vmatprep.subr.bf16.mxu0 0
  %330 = vmatpush1.bf16.msra.mxu0 %v307
  %331 = vmatprep.subr.bf16.mxu0 0
  %332 = vmatpush1.bf16.msra.mxu0 %v308
  %333 = vmatprep.subr.bf16.mxu0 0
  %334 = vmatpush1.bf16.msra.mxu0 0
  %335 = vmatprep.subr.bf16.mxu0 0
  %336 = vmatpush1.bf16.msra.mxu0 0
  %337 = vmatprep.subr.bf16.mxu0 0
  %338 = vmatpush1.bf16.msra.mxu0 0
  %339 = vmatprep.subr.bf16.mxu0 0
  %340 = vmatpush1.bf16.msra.mxu0 0
  %341 = vmatprep.subr.bf16.mxu0 0
  %342 = vmatpush1.bf16.msra.mxu0 0
  %343 = vmatprep.subr.bf16.mxu0 0
  %344 = vmatpush1.bf16.msra.mxu0 0
  %345 = vmatprep.subr.bf16.mxu0 0
  %346 = vmatpush1.bf16.msra.mxu0 0
  %347 = vmatprep.subr.bf16.mxu0 0
  %348 = vmatpush1.bf16.msra.mxu0 0
  %349 = vmatprep.mubr.bf16.mxu0 0
  %350 = vmatmul.mubr.bf16.gmra.mrb[0].mxu0 %v259
  %v351 = vpop.f32.mrb[0].mxu0
  %v352 = vadd.f32 0.0, %v351
  %v353 = vpop.f32.mrb[0].mxu0
  %v354 = vpop.f32.mrb[0].mxu0
  %v355 = vadd.f32 0.0, %v354
  %v356 = vpop.f32.mrb[0].mxu0
  %357 = vmatprep.mubr.bf16.mxu0 0
  %358 = vmatmul.mubr.bf16.gmra.mrb[0].mxu0 %v260
  %v359 = vpop.f32.mrb[0].mxu0
  %v360 = vadd.f32 0.0, %v359
  %v361 = vpop.f32.mrb[0].mxu0
  %v362 = vpop.f32.mrb[0].mxu0
  %v363 = vadd.f32 0.0, %v362
  %v364 = vpop.f32.mrb[0].mxu0
  %365 = vmatprep.mubr.bf16.mxu0 0
  %366 = vmatmul.mubr.bf16.gmra.mrb[0].mxu0 %v261
  %v367 = vpop.f32.mrb[0].mxu0
  %v368 = vadd.f32 0.0, %v367
  %v369 = vpop.f32.mrb[0].mxu0
  %v370 = vpop.f32.mrb[0].mxu0
  %v371 = vadd.f32 0.0, %v370
  %v372 = vpop.f32.mrb[0].mxu0
  %373 = vmatprep.mubr.bf16.mxu0 0
  %374 = vmatmul.mubr.bf16.gmra.mrb[0].mxu0 %v262
  %v375 = vpop.f32.mrb[0].mxu0
  %v376 = vadd.f32 0.0, %v375
  %v377 = vpop.f32.mrb[0].mxu0
  %v378 = vpop.f32.mrb[0].mxu0
  %v379 = vadd.f32 0.0, %v378
  %v380 = vpop.f32.mrb[0].mxu0
  %381 = vmatprep.mubr.bf16.mxu0 0
  %382 = vmatmul.mubr.bf16.gmra.mrb[0].mxu0 %v263
  %v383 = vpop.f32.mrb[0].mxu0
  %v384 = vadd.f32 0.0, %v383
  %v385 = vpop.f32.mrb[0].mxu0
  %v386 = vpop.f32.mrb[0].mxu0
  %v387 = vadd.f32 0.0, %v386
  %v388 = vpop.f32.mrb[0].mxu0
  %389 = vdwg.mxu0
  %v390 = vadd.f32 %v202, %v352
  %v391 = vadd.f32 %v203, %v355
  %v392 = vadd.f32 %v204, %v360
  %v393 = vadd.f32 %v205, %v363
  %v394 = vadd.f32 %v206, %v368
  %v395 = vadd.f32 %v207, %v371
  %v396 = vadd.f32 %v208, %v376
  %v397 = vadd.f32 %v209, %v379
  %v398 = vadd.f32 %v210, %v384
  %v399 = vadd.f32 %v211, %v387
  %400 = vst [vmem:[%s3] sm:$0xff] %v390
  %401 = vst [vmem:[%s3 + $0x8] sm:$0xff] %v391
  %402 = vst [vmem:[%s3 + $0x10] sm:$0xff] %v392
  %403 = vst [vmem:[%s3 + $0x18] sm:$0xff] %v393
  %404 = vst [vmem:[%s3 + $0x20] sm:$0xff] %v394
  %405 = vst [vmem:[%s3 + $0x28] sm:$0xff] %v395
  %406 = vst [vmem:[%s3 + $0x30] sm:$0xff] %v396
  %407 = vst [vmem:[%s3 + $0x38] sm:$0xff] %v397
  %408 = vst [vmem:[%s3 + $0x40] sm:$0xff] %v398
  %409 = vst [vmem:[%s3 + $0x48] sm:$0xff] %v399
  %v410 = vld [vmem:[%s3] sm:$0xff]
  %v411 = vld [vmem:[%s3 + $0x8] sm:$0xff]
  %v412 = vld [vmem:[%s3 + $0x10] sm:$0xff]
  %v413 = vld [vmem:[%s3 + $0x18] sm:$0xff]
  %v414 = vld [vmem:[%s3 + $0x20] sm:$0xff]
  %v415 = vld [vmem:[%s3 + $0x28] sm:$0xff]
  %v416 = vld [vmem:[%s3 + $0x30] sm:$0xff]
  %v417 = vld [vmem:[%s3 + $0x38] sm:$0xff]
  %v418 = vld [vmem:[%s3 + $0x40] sm:$0xff]
  %v419 = vld [vmem:[%s3 + $0x48] sm:$0xff]
  %v420 = vld [vmem:[%s0 + $0x8] sm:$0xf]
  %v421 = vld [vmem:[%s0 + $0xc] sm:$0xf]
  %v422 = vld [vmem:[%s0 + $0x10] sm:$0xf]
  %v423 = vld [vmem:[%s0 + $0x14] sm:$0xf]
  %v424 = vld [vmem:[%s0 + $0x18] sm:$0xf]
  %v425 = vld [vmem:[%s0 + $0x1c] sm:$0xf]
  %v426 = vld [vmem:[%s0 + $0x20] sm:$0xf]
  %v427 = vld [vmem:[%s0 + $0x24] sm:$0xf]
  %v428 = vld [vmem:[%s0 + $0x28] sm:$0xf]
  %v429 = vld [vmem:[%s0 + $0x2c] sm:$0xf]
  %s430 = scalar_lea.vmem %s1, 128
  %v431 = vld [vmem:[%s430] sm:$0xf]
  %v432 = vld [vmem:[%s430 + $0x4] sm:$0xf]
  %v433 = vld [vmem:[%s430 + $0x8] sm:$0xf]
  %v434 = vld [vmem:[%s430 + $0xc] sm:$0xf]
  %v435 = vld [vmem:[%s430 + $0x10] sm:$0xf]
  %v436 = vld [vmem:[%s430 + $0x14] sm:$0xf]
  %v437 = vld [vmem:[%s430 + $0x18] sm:$0xf]
  %v438 = vld [vmem:[%s430 + $0x1c] sm:$0xf]
  %v439 = vld [vmem:[%s430 + $0x20] sm:$0xf]
  %v440 = vld [vmem:[%s430 + $0x24] sm:$0xf]
  %v441 = vld [vmem:[%s430 + $0x28] sm:$0xf]
  %v442 = vld [vmem:[%s430 + $0x2c] sm:$0xf]
  %v443 = vld [vmem:[%s430 + $0x30] sm:$0xf]
  %v444 = vld [vmem:[%s430 + $0x34] sm:$0xf]
  %v445 = vld [vmem:[%s430 + $0x38] sm:$0xf]
  %v446 = vld [vmem:[%s430 + $0x3c] sm:$0xf]
  %v457 = vunpack.c.l.b16 %v420
  %v458 = vunpack.c.l.b16 %v421
  %v459 = vunpack.c.l.b16 %v422
  %v460 = vunpack.c.l.b16 %v423
  %v461 = vunpack.c.l.b16 %v424
  %v462 = vunpack.c.l.b16 %v425
  %v463 = vunpack.c.l.b16 %v426
  %v464 = vunpack.c.l.b16 %v427
  %v465 = vunpack.c.l.b16 %v428
  %v466 = vunpack.c.l.b16 %v429
  %v467 = vpack.c.b16 %v458, %v457
  %v468 = vpack.c.b16 %v460, %v459
  %v469 = vpack.c.b16 %v462, %v461
  %v470 = vpack.c.b16 %v464, %v463
  %v471 = vpack.c.b16 %v466, %v465
  %v493 = vunpack.c.l.b16 %v431
  %v494 = vunpack.c.l.b16 %v432
  %v495 = vunpack.c.l.b16 %v433
  %v496 = vunpack.c.l.b16 %v434
  %v497 = vunpack.c.l.b16 %v435
  %v498 = vunpack.c.l.b16 %v436
  %v499 = vunpack.c.l.b16 %v437
  %v500 = vunpack.c.l.b16 %v438
  %v501 = vunpack.c.l.b16 %v439
  %v502 = vunpack.c.l.b16 %v440
  %v503 = vunpack.c.l.b16 %v441
  %v504 = vunpack.c.l.b16 %v442
  %v505 = vunpack.c.l.b16 %v443
  %v506 = vunpack.c.l.b16 %v444
  %v507 = vunpack.c.l.b16 %v445
  %v508 = vunpack.c.l.b16 %v446
  %v509 = vpack.c.b16 %v494, %v493
  %v510 = vpack.c.b16 %v496, %v495
  %v511 = vpack.c.b16 %v498, %v497
  %v512 = vpack.c.b16 %v500, %v499
  %v513 = vpack.c.b16 %v502, %v501
  %v514 = vpack.c.b16 %v504, %v503
  %v515 = vpack.c.b16 %v506, %v505
  %v516 = vpack.c.b16 %v508, %v507
  %525 = vmatprep.subr.bf16.mxu0 0
  %526 = vmatpush1.bf16.msra.mxu0 %v509
  %527 = vmatprep.subr.bf16.mxu0 0
  %528 = vmatpush1.bf16.msra.mxu0 %v510
  %529 = vmatprep.subr.bf16.mxu0 0
  %530 = vmatpush1.bf16.msra.mxu0 %v511
  %531 = vmatprep.subr.bf16.mxu0 0
  %532 = vmatpush1.bf16.msra.mxu0 %v512
  %533 = vmatprep.subr.bf16.mxu0 0
  %534 = vmatpush1.bf16.msra.mxu0 %v513
  %535 = vmatprep.subr.bf16.mxu0 0
  %536 = vmatpush1.bf16.msra.mxu0 %v514
  %537 = vmatprep.subr.bf16.mxu0 0
  %538 = vmatpush1.bf16.msra.mxu0 %v515
  %539 = vmatprep.subr.bf16.mxu0 0
  %540 = vmatpush1.bf16.msra.mxu0 %v516
  %541 = vmatprep.subr.bf16.mxu0 0
  %542 = vmatpush1.bf16.msra.mxu0 0
  %543 = vmatprep.subr.bf16.mxu0 0
  %544 = vmatpush1.bf16.msra.mxu0 0
  %545 = vmatprep.subr.bf16.mxu0 0
  %546 = vmatpush1.bf16.msra.mxu0 0
  %547 = vmatprep.subr.bf16.mxu0 0
  %548 = vmatpush1.bf16.msra.mxu0 0
  %549 = vmatprep.subr.bf16.mxu0 0
  %550 = vmatpush1.bf16.msra.mxu0 0
  %551 = vmatprep.subr.bf16.mxu0 0
  %552 = vmatpush1.bf16.msra.mxu0 0
  %553 = vmatprep.subr.bf16.mxu0 0
  %554 = vmatpush1.bf16.msra.mxu0 0
  %555 = vmatprep.subr.bf16.mxu0 0
  %556 = vmatpush1.bf16.msra.mxu0 0
  %557 = vmatprep.mubr.bf16.mxu0 0
  %558 = vmatmul.mubr.bf16.gmra.mrb[0].mxu0 %v467
  %v559 = vpop.f32.mrb[0].mxu0
  %v560 = vadd.f32 0.0, %v559
  %v561 = vpop.f32.mrb[0].mxu0
  %v562 = vpop.f32.mrb[0].mxu0
  %v563 = vadd.f32 0.0, %v562
  %v564 = vpop.f32.mrb[0].mxu0
  %565 = vmatprep.mubr.bf16.mxu0 0
  %566 = vmatmul.mubr.bf16.gmra.mrb[0].mxu0 %v468
  %v567 = vpop.f32.mrb[0].mxu0
  %v568 = vadd.f32 0.0, %v567
  %v569 = vpop.f32.mrb[0].mxu0
  %v570 = vpop.f32.mrb[0].mxu0
  %v571 = vadd.f32 0.0, %v570
  %v572 = vpop.f32.mrb[0].mxu0
  %573 = vmatprep.mubr.bf16.mxu0 0
  %574 = vmatmul.mubr.bf16.gmra.mrb[0].mxu0 %v469
  %v575 = vpop.f32.mrb[0].mxu0
  %v576 = vadd.f32 0.0, %v575
  %v577 = vpop.f32.mrb[0].mxu0
  %v578 = vpop.f32.mrb[0].mxu0
  %v579 = vadd.f32 0.0, %v578
  %v580 = vpop.f32.mrb[0].mxu0
  %581 = vmatprep.mubr.bf16.mxu0 0
  %582 = vmatmul.mubr.bf16.gmra.mrb[0].mxu0 %v470
  %v583 = vpop.f32.mrb[0].mxu0
  %v584 = vadd.f32 0.0, %v583
  %v585 = vpop.f32.mrb[0].mxu0
  %v586 = vpop.f32.mrb[0].mxu0
  %v587 = vadd.f32 0.0, %v586
  %v588 = vpop.f32.mrb[0].mxu0
  %589 = vmatprep.mubr.bf16.mxu0 0
  %590 = vmatmul.mubr.bf16.gmra.mrb[0].mxu0 %v471
  %v591 = vpop.f32.mrb[0].mxu0
  %v592 = vadd.f32 0.0, %v591
  %v593 = vpop.f32.mrb[0].mxu0
  %v594 = vpop.f32.mrb[0].mxu0
  %v595 = vadd.f32 0.0, %v594
  %v596 = vpop.f32.mrb[0].mxu0
  %597 = vdwg.mxu0
  %v598 = vadd.f32 %v410, %v560
  %v599 = vadd.f32 %v411, %v563
  %v600 = vadd.f32 %v412, %v568
  %v601 = vadd.f32 %v413, %v571
  %v602 = vadd.f32 %v414, %v576
  %v603 = vadd.f32 %v415, %v579
  %v604 = vadd.f32 %v416, %v584
  %v605 = vadd.f32 %v417, %v587
  %v606 = vadd.f32 %v418, %v592
  %v607 = vadd.f32 %v419, %v595
  %608 = vst [vmem:[%s3] sm:$0xff] %v598
  %609 = vst [vmem:[%s3 + $0x8] sm:$0xff] %v599
  %610 = vst [vmem:[%s3 + $0x10] sm:$0xff] %v600
  %611 = vst [vmem:[%s3 + $0x18] sm:$0xff] %v601
  %612 = vst [vmem:[%s3 + $0x20] sm:$0xff] %v602
  %613 = vst [vmem:[%s3 + $0x28] sm:$0xff] %v603
  %614 = vst [vmem:[%s3 + $0x30] sm:$0xff] %v604
  %615 = vst [vmem:[%s3 + $0x38] sm:$0xff] %v605
  %616 = vst [vmem:[%s3 + $0x40] sm:$0xff] %v606
  %617 = vst [vmem:[%s3 + $0x48] sm:$0xff] %v607
  %v618 = vld [vmem:[%s3] sm:$0xff]
  %v619 = vld [vmem:[%s3 + $0x8] sm:$0xff]
  %v620 = vld [vmem:[%s3 + $0x10] sm:$0xff]
  %v621 = vld [vmem:[%s3 + $0x18] sm:$0xff]
  %v622 = vld [vmem:[%s3 + $0x20] sm:$0xff]
  %v623 = vld [vmem:[%s3 + $0x28] sm:$0xff]
  %v624 = vld [vmem:[%s3 + $0x30] sm:$0xff]
  %v625 = vld [vmem:[%s3 + $0x38] sm:$0xff]
  %v626 = vld [vmem:[%s3 + $0x40] sm:$0xff]
  %v627 = vld [vmem:[%s3 + $0x48] sm:$0xff]
  %v628 = vld [vmem:[%s0 + $0xc] sm:$0xf]
  %v629 = vld [vmem:[%s0 + $0x10] sm:$0xf]
  %v630 = vld [vmem:[%s0 + $0x14] sm:$0xf]
  %v631 = vld [vmem:[%s0 + $0x18] sm:$0xf]
  %v632 = vld [vmem:[%s0 + $0x1c] sm:$0xf]
  %v633 = vld [vmem:[%s0 + $0x20] sm:$0xf]
  %v634 = vld [vmem:[%s0 + $0x24] sm:$0xf]
  %v635 = vld [vmem:[%s0 + $0x28] sm:$0xf]
  %v636 = vld [vmem:[%s0 + $0x2c] sm:$0xf]
  %v637 = vld [vmem:[%s0 + $0x30] sm:$0xf]
  %s638 = scalar_lea.vmem %s1, 192
  %v639 = vld [vmem:[%s638] sm:$0xf]
  %v640 = vld [vmem:[%s638 + $0x4] sm:$0xf]
  %v641 = vld [vmem:[%s638 + $0x8] sm:$0xf]
  %v642 = vld [vmem:[%s638 + $0xc] sm:$0xf]
  %v643 = vld [vmem:[%s638 + $0x10] sm:$0xf]
  %v644 = vld [vmem:[%s638 + $0x14] sm:$0xf]
  %v645 = vld [vmem:[%s638 + $0x18] sm:$0xf]
  %v646 = vld [vmem:[%s638 + $0x1c] sm:$0xf]
  %v647 = vld [vmem:[%s638 + $0x20] sm:$0xf]
  %v648 = vld [vmem:[%s638 + $0x24] sm:$0xf]
  %v649 = vld [vmem:[%s638 + $0x28] sm:$0xf]
  %v650 = vld [vmem:[%s638 + $0x2c] sm:$0xf]
  %v651 = vld [vmem:[%s638 + $0x30] sm:$0xf]
  %v652 = vld [vmem:[%s638 + $0x34] sm:$0xf]
  %v653 = vld [vmem:[%s638 + $0x38] sm:$0xf]
  %v654 = vld [vmem:[%s638 + $0x3c] sm:$0xf]
  %v665 = vunpack.c.l.b16 %v628
  %v666 = vunpack.c.l.b16 %v629
  %v667 = vunpack.c.l.b16 %v630
  %v668 = vunpack.c.l.b16 %v631
  %v669 = vunpack.c.l.b16 %v632
  %v670 = vunpack.c.l.b16 %v633
  %v671 = vunpack.c.l.b16 %v634
  %v672 = vunpack.c.l.b16 %v635
  %v673 = vunpack.c.l.b16 %v636
  %v674 = vunpack.c.l.b16 %v637
  %v675 = vpack.c.b16 %v666, %v665
  %v676 = vpack.c.b16 %v668, %v667
  %v677 = vpack.c.b16 %v670, %v669
  %v678 = vpack.c.b16 %v672, %v671
  %v679 = vpack.c.b16 %v674, %v673
  %v701 = vunpack.c.l.b16 %v639
  %v702 = vunpack.c.l.b16 %v640
  %v703 = vunpack.c.l.b16 %v641
  %v704 = vunpack.c.l.b16 %v642
  %v705 = vunpack.c.l.b16 %v643
  %v706 = vunpack.c.l.b16 %v644
  %v707 = vunpack.c.l.b16 %v645
  %v708 = vunpack.c.l.b16 %v646
  %v709 = vunpack.c.l.b16 %v647
  %v710 = vunpack.c.l.b16 %v648
  %v711 = vunpack.c.l.b16 %v649
  %v712 = vunpack.c.l.b16 %v650
  %v713 = vunpack.c.l.b16 %v651
  %v714 = vunpack.c.l.b16 %v652
  %v715 = vunpack.c.l.b16 %v653
  %v716 = vunpack.c.l.b16 %v654
  %v717 = vpack.c.b16 %v702, %v701
  %v718 = vpack.c.b16 %v704, %v703
  %v719 = vpack.c.b16 %v706, %v705
  %v720 = vpack.c.b16 %v708, %v707
  %v721 = vpack.c.b16 %v710, %v709
  %v722 = vpack.c.b16 %v712, %v711
  %v723 = vpack.c.b16 %v714, %v713
  %v724 = vpack.c.b16 %v716, %v715
  %733 = vmatprep.subr.bf16.mxu0 0
  %734 = vmatpush1.bf16.msra.mxu0 %v717
  %735 = vmatprep.subr.bf16.mxu0 0
  %736 = vmatpush1.bf16.msra.mxu0 %v718
  %737 = vmatprep.subr.bf16.mxu0 0
  %738 = vmatpush1.bf16.msra.mxu0 %v719
  %739 = vmatprep.subr.bf16.mxu0 0
  %740 = vmatpush1.bf16.msra.mxu0 %v720
  %741 = vmatprep.subr.bf16.mxu0 0
  %742 = vmatpush1.bf16.msra.mxu0 %v721
  %743 = vmatprep.subr.bf16.mxu0 0
  %744 = vmatpush1.bf16.msra.mxu0 %v722
  %745 = vmatprep.subr.bf16.mxu0 0
  %746 = vmatpush1.bf16.msra.mxu0 %v723
  %747 = vmatprep.subr.bf16.mxu0 0
  %748 = vmatpush1.bf16.msra.mxu0 %v724
  %749 = vmatprep.subr.bf16.mxu0 0
  %750 = vmatpush1.bf16.msra.mxu0 0
  %751 = vmatprep.subr.bf16.mxu0 0
  %752 = vmatpush1.bf16.msra.mxu0 0
  %753 = vmatprep.subr.bf16.mxu0 0
  %754 = vmatpush1.bf16.msra.mxu0 0
  %755 = vmatprep.subr.bf16.mxu0 0
  %756 = vmatpush1.bf16.msra.mxu0 0
  %757 = vmatprep.subr.bf16.mxu0 0
  %758 = vmatpush1.bf16.msra.mxu0 0
  %759 = vmatprep.subr.bf16.mxu0 0
  %760 = vmatpush1.bf16.msra.mxu0 0
  %761 = vmatprep.subr.bf16.mxu0 0
  %762 = vmatpush1.bf16.msra.mxu0 0
  %763 = vmatprep.subr.bf16.mxu0 0
  %764 = vmatpush1.bf16.msra.mxu0 0
  %765 = vmatprep.mubr.bf16.mxu0 0
  %766 = vmatmul.mubr.bf16.gmra.mrb[0].mxu0 %v675
  %v767 = vpop.f32.mrb[0].mxu0
  %v768 = vadd.f32 0.0, %v767
  %v769 = vpop.f32.mrb[0].mxu0
  %v770 = vpop.f32.mrb[0].mxu0
  %v771 = vadd.f32 0.0, %v770
  %v772 = vpop.f32.mrb[0].mxu0
  %773 = vmatprep.mubr.bf16.mxu0 0
  %774 = vmatmul.mubr.bf16.gmra.mrb[0].mxu0 %v676
  %v775 = vpop.f32.mrb[0].mxu0
  %v776 = vadd.f32 0.0, %v775
  %v777 = vpop.f32.mrb[0].mxu0
  %v778 = vpop.f32.mrb[0].mxu0
  %v779 = vadd.f32 0.0, %v778
  %v780 = vpop.f32.mrb[0].mxu0
  %781 = vmatprep.mubr.bf16.mxu0 0
  %782 = vmatmul.mubr.bf16.gmra.mrb[0].mxu0 %v677
  %v783 = vpop.f32.mrb[0].mxu0
  %v784 = vadd.f32 0.0, %v783
  %v785 = vpop.f32.mrb[0].mxu0
  %v786 = vpop.f32.mrb[0].mxu0
  %v787 = vadd.f32 0.0, %v786
  %v788 = vpop.f32.mrb[0].mxu0
  %789 = vmatprep.mubr.bf16.mxu0 0
  %790 = vmatmul.mubr.bf16.gmra.mrb[0].mxu0 %v678
  %v791 = vpop.f32.mrb[0].mxu0
  %v792 = vadd.f32 0.0, %v791
  %v793 = vpop.f32.mrb[0].mxu0
  %v794 = vpop.f32.mrb[0].mxu0
  %v795 = vadd.f32 0.0, %v794
  %v796 = vpop.f32.mrb[0].mxu0
  %797 = vmatprep.mubr.bf16.mxu0 0
  %798 = vmatmul.mubr.bf16.gmra.mrb[0].mxu0 %v679
  %v799 = vpop.f32.mrb[0].mxu0
  %v800 = vadd.f32 0.0, %v799
  %v801 = vpop.f32.mrb[0].mxu0
  %v802 = vpop.f32.mrb[0].mxu0
  %v803 = vadd.f32 0.0, %v802
  %v804 = vpop.f32.mrb[0].mxu0
  %805 = vdwg.mxu0
  %v806 = vadd.f32 %v618, %v768
  %v807 = vadd.f32 %v619, %v771
  %v808 = vadd.f32 %v620, %v776
  %v809 = vadd.f32 %v621, %v779
  %v810 = vadd.f32 %v622, %v784
  %v811 = vadd.f32 %v623, %v787
  %v812 = vadd.f32 %v624, %v792
  %v813 = vadd.f32 %v625, %v795
  %v814 = vadd.f32 %v626, %v800
  %v815 = vadd.f32 %v627, %v803
  %816 = vst [vmem:[%s3] sm:$0xff] %v806
  %817 = vst [vmem:[%s3 + $0x8] sm:$0xff] %v807
  %818 = vst [vmem:[%s3 + $0x10] sm:$0xff] %v808
  %819 = vst [vmem:[%s3 + $0x18] sm:$0xff] %v809
  %820 = vst [vmem:[%s3 + $0x20] sm:$0xff] %v810
  %821 = vst [vmem:[%s3 + $0x28] sm:$0xff] %v811
  %822 = vst [vmem:[%s3 + $0x30] sm:$0xff] %v812
  %823 = vst [vmem:[%s3 + $0x38] sm:$0xff] %v813
  %824 = vst [vmem:[%s3 + $0x40] sm:$0xff] %v814
  %825 = vst [vmem:[%s3 + $0x48] sm:$0xff] %v815
  %v826 = vld [vmem:[%s3] sm:$0xff]
  %v827 = vld [vmem:[%s3 + $0x8] sm:$0xff]
  %v828 = vld [vmem:[%s3 + $0x10] sm:$0xff]
  %v829 = vld [vmem:[%s3 + $0x18] sm:$0xff]
  %v830 = vld [vmem:[%s3 + $0x20] sm:$0xff]
  %v831 = vld [vmem:[%s3 + $0x28] sm:$0xff]
  %v832 = vld [vmem:[%s3 + $0x30] sm:$0xff]
  %v833 = vld [vmem:[%s3 + $0x38] sm:$0xff]
  %v834 = vld [vmem:[%s3 + $0x40] sm:$0xff]
  %v835 = vld [vmem:[%s3 + $0x48] sm:$0xff]
  %v836 = vld [vmem:[%s0 + $0x10] sm:$0xf]
  %v837 = vld [vmem:[%s0 + $0x14] sm:$0xf]
  %v838 = vld [vmem:[%s0 + $0x18] sm:$0xf]
  %v839 = vld [vmem:[%s0 + $0x1c] sm:$0xf]
  %v840 = vld [vmem:[%s0 + $0x20] sm:$0xf]
  %v841 = vld [vmem:[%s0 + $0x24] sm:$0xf]
  %v842 = vld [vmem:[%s0 + $0x28] sm:$0xf]
  %v843 = vld [vmem:[%s0 + $0x2c] sm:$0xf]
  %v844 = vld [vmem:[%s0 + $0x30] sm:$0xf]
  %v845 = vld [vmem:[%s0 + $0x34] sm:$0xf]
  %s846 = scalar_lea.vmem %s1, 256
  %v847 = vld [vmem:[%s846] sm:$0xf]
  %v848 = vld [vmem:[%s846 + $0x4] sm:$0xf]
  %v849 = vld [vmem:[%s846 + $0x8] sm:$0xf]
  %v850 = vld [vmem:[%s846 + $0xc] sm:$0xf]
  %v851 = vld [vmem:[%s846 + $0x10] sm:$0xf]
  %v852 = vld [vmem:[%s846 + $0x14] sm:$0xf]
  %v853 = vld [vmem:[%s846 + $0x18] sm:$0xf]
  %v854 = vld [vmem:[%s846 + $0x1c] sm:$0xf]
  %v855 = vld [vmem:[%s846 + $0x20] sm:$0xf]
  %v856 = vld [vmem:[%s846 + $0x24] sm:$0xf]
  %v857 = vld [vmem:[%s846 + $0x28] sm:$0xf]
  %v858 = vld [vmem:[%s846 + $0x2c] sm:$0xf]
  %v859 = vld [vmem:[%s846 + $0x30] sm:$0xf]
  %v860 = vld [vmem:[%s846 + $0x34] sm:$0xf]
  %v861 = vld [vmem:[%s846 + $0x38] sm:$0xf]
  %v862 = vld [vmem:[%s846 + $0x3c] sm:$0xf]
  %v873 = vunpack.c.l.b16 %v836
  %v874 = vunpack.c.l.b16 %v837
  %v875 = vunpack.c.l.b16 %v838
  %v876 = vunpack.c.l.b16 %v839
  %v877 = vunpack.c.l.b16 %v840
  %v878 = vunpack.c.l.b16 %v841
  %v879 = vunpack.c.l.b16 %v842
  %v880 = vunpack.c.l.b16 %v843
  %v881 = vunpack.c.l.b16 %v844
  %v882 = vunpack.c.l.b16 %v845
  %v883 = vpack.c.b16 %v874, %v873
  %v884 = vpack.c.b16 %v876, %v875
  %v885 = vpack.c.b16 %v878, %v877
  %v886 = vpack.c.b16 %v880, %v879
  %v887 = vpack.c.b16 %v882, %v881
  %v909 = vunpack.c.l.b16 %v847
  %v910 = vunpack.c.l.b16 %v848
  %v911 = vunpack.c.l.b16 %v849
  %v912 = vunpack.c.l.b16 %v850
  %v913 = vunpack.c.l.b16 %v851
  %v914 = vunpack.c.l.b16 %v852
  %v915 = vunpack.c.l.b16 %v853
  %v916 = vunpack.c.l.b16 %v854
  %v917 = vunpack.c.l.b16 %v855
  %v918 = vunpack.c.l.b16 %v856
  %v919 = vunpack.c.l.b16 %v857
  %v920 = vunpack.c.l.b16 %v858
  %v921 = vunpack.c.l.b16 %v859
  %v922 = vunpack.c.l.b16 %v860
  %v923 = vunpack.c.l.b16 %v861
  %v924 = vunpack.c.l.b16 %v862
  %v925 = vpack.c.b16 %v910, %v909
  %v926 = vpack.c.b16 %v912, %v911
  %v927 = vpack.c.b16 %v914, %v913
  %v928 = vpack.c.b16 %v916, %v915
  %v929 = vpack.c.b16 %v918, %v917
  %v930 = vpack.c.b16 %v920, %v919
  %v931 = vpack.c.b16 %v922, %v921
  %v932 = vpack.c.b16 %v924, %v923
  %941 = vmatprep.subr.bf16.mxu0 0
  %942 = vmatpush1.bf16.msra.mxu0 %v925
  %943 = vmatprep.subr.bf16.mxu0 0
  %944 = vmatpush1.bf16.msra.mxu0 %v926
  %945 = vmatprep.subr.bf16.mxu0 0
  %946 = vmatpush1.bf16.msra.mxu0 %v927
  %947 = vmatprep.subr.bf16.mxu0 0
  %948 = vmatpush1.bf16.msra.mxu0 %v928
  %949 = vmatprep.subr.bf16.mxu0 0
  %950 = vmatpush1.bf16.msra.mxu0 %v929
  %951 = vmatprep.subr.bf16.mxu0 0
  %952 = vmatpush1.bf16.msra.mxu0 %v930
  %953 = vmatprep.subr.bf16.mxu0 0
  %954 = vmatpush1.bf16.msra.mxu0 %v931
  %955 = vmatprep.subr.bf16.mxu0 0
  %956 = vmatpush1.bf16.msra.mxu0 %v932
  %957 = vmatprep.subr.bf16.mxu0 0
  %958 = vmatpush1.bf16.msra.mxu0 0
  %959 = vmatprep.subr.bf16.mxu0 0
  %960 = vmatpush1.bf16.msra.mxu0 0
  %961 = vmatprep.subr.bf16.mxu0 0
  %962 = vmatpush1.bf16.msra.mxu0 0
  %963 = vmatprep.subr.bf16.mxu0 0
  %964 = vmatpush1.bf16.msra.mxu0 0
  %965 = vmatprep.subr.bf16.mxu0 0
  %966 = vmatpush1.bf16.msra.mxu0 0
  %967 = vmatprep.subr.bf16.mxu0 0
  %968 = vmatpush1.bf16.msra.mxu0 0
  %969 = vmatprep.subr.bf16.mxu0 0
  %970 = vmatpush1.bf16.msra.mxu0 0
  %971 = vmatprep.subr.bf16.mxu0 0
  %972 = vmatpush1.bf16.msra.mxu0 0
  %973 = vmatprep.mubr.bf16.mxu0 0
  %974 = vmatmul.mubr.bf16.gmra.mrb[0].mxu0 %v883
  %v975 = vpop.f32.mrb[0].mxu0
  %v976 = vadd.f32 0.0, %v975
  %v977 = vpop.f32.mrb[0].mxu0
  %v978 = vpop.f32.mrb[0].mxu0
  %v979 = vadd.f32 0.0, %v978
  %v980 = vpop.f32.mrb[0].mxu0
  %981 = vmatprep.mubr.bf16.mxu0 0
  %982 = vmatmul.mubr.bf16.gmra.mrb[0].mxu0 %v884
  %v983 = vpop.f32.mrb[0].mxu0
  %v984 = vadd.f32 0.0, %v983
  %v985 = vpop.f32.mrb[0].mxu0
  %v986 = vpop.f32.mrb[0].mxu0
  %v987 = vadd.f32 0.0, %v986
  %v988 = vpop.f32.mrb[0].mxu0
  %989 = vmatprep.mubr.bf16.mxu0 0
  %990 = vmatmul.mubr.bf16.gmra.mrb[0].mxu0 %v885
  %v991 = vpop.f32.mrb[0].mxu0
  %v992 = vadd.f32 0.0, %v991
  %v993 = vpop.f32.mrb[0].mxu0
  %v994 = vpop.f32.mrb[0].mxu0
  %v995 = vadd.f32 0.0, %v994
  %v996 = vpop.f32.mrb[0].mxu0
  %997 = vmatprep.mubr.bf16.mxu0 0
  %998 = vmatmul.mubr.bf16.gmra.mrb[0].mxu0 %v886
  %v999 = vpop.f32.mrb[0].mxu0
  %v1000 = vadd.f32 0.0, %v999
  %v1001 = vpop.f32.mrb[0].mxu0
  %v1002 = vpop.f32.mrb[0].mxu0
  %v1003 = vadd.f32 0.0, %v1002
  %v1004 = vpop.f32.mrb[0].mxu0
  %1005 = vmatprep.mubr.bf16.mxu0 0
  %1006 = vmatmul.mubr.bf16.gmra.mrb[0].mxu0 %v887
  %v1007 = vpop.f32.mrb[0].mxu0
  %v1008 = vadd.f32 0.0, %v1007
  %v1009 = vpop.f32.mrb[0].mxu0
  %v1010 = vpop.f32.mrb[0].mxu0
  %v1011 = vadd.f32 0.0, %v1010
  %v1012 = vpop.f32.mrb[0].mxu0
  %1013 = vdwg.mxu0
  %v1014 = vadd.f32 %v826, %v976
  %v1015 = vadd.f32 %v827, %v979
  %v1016 = vadd.f32 %v828, %v984
  %v1017 = vadd.f32 %v829, %v987
  %v1018 = vadd.f32 %v830, %v992
  %v1019 = vadd.f32 %v831, %v995
  %v1020 = vadd.f32 %v832, %v1000
  %v1021 = vadd.f32 %v833, %v1003
  %v1022 = vadd.f32 %v834, %v1008
  %v1023 = vadd.f32 %v835, %v1011
  %1024 = vst [vmem:[%s3] sm:$0xff] %v1014
  %1025 = vst [vmem:[%s3 + $0x8] sm:$0xff] %v1015
  %1026 = vst [vmem:[%s3 + $0x10] sm:$0xff] %v1016
  %1027 = vst [vmem:[%s3 + $0x18] sm:$0xff] %v1017
  %1028 = vst [vmem:[%s3 + $0x20] sm:$0xff] %v1018
  %1029 = vst [vmem:[%s3 + $0x28] sm:$0xff] %v1019
  %1030 = vst [vmem:[%s3 + $0x30] sm:$0xff] %v1020
  %1031 = vst [vmem:[%s3 + $0x38] sm:$0xff] %v1021
  %1032 = vst [vmem:[%s3 + $0x40] sm:$0xff] %v1022
  %1033 = vst [vmem:[%s3 + $0x48] sm:$0xff] %v1023
  %v1034 = vld [vmem:[%s3] sm:$0xff]
  %v1035 = vld [vmem:[%s3 + $0x8] sm:$0xff]
  %v1036 = vld [vmem:[%s3 + $0x10] sm:$0xff]
  %v1037 = vld [vmem:[%s3 + $0x18] sm:$0xff]
  %v1038 = vld [vmem:[%s3 + $0x20] sm:$0xff]
  %v1039 = vld [vmem:[%s3 + $0x28] sm:$0xff]
  %v1040 = vld [vmem:[%s3 + $0x30] sm:$0xff]
  %v1041 = vld [vmem:[%s3 + $0x38] sm:$0xff]
  %v1042 = vld [vmem:[%s3 + $0x40] sm:$0xff]
  %v1043 = vld [vmem:[%s3 + $0x48] sm:$0xff]
  %v1044 = vld [vmem:[%s2] sm:$0x1]
  %v1046 = vlaneseq
  %v1047 = vshrl.u32 %v1046, 7
  %v1048 = vsub.s32 0, %v1047
  %v1049 = vrot.slane %v1044, %v1048
  %v1051 = vadd.f32 %v1034, %v1049
  %v1052 = vadd.f32 %v1035, %v1049
  %v1053 = vadd.f32 %v1036, %v1049
  %v1054 = vadd.f32 %v1037, %v1049
  %v1055 = vadd.f32 %v1038, %v1049
  %v1056 = vadd.f32 %v1039, %v1049
  %v1057 = vadd.f32 %v1040, %v1049
  %v1058 = vadd.f32 %v1041, %v1049
  %v1059 = vadd.f32 %v1042, %v1049
  %v1060 = vadd.f32 %v1043, %v1049
  %v1061 = vmax.f32 %v1051, 0.0
  %v1062 = vmax.f32 %v1052, 0.0
  %v1063 = vmax.f32 %v1053, 0.0
  %v1064 = vmax.f32 %v1054, 0.0
  %v1065 = vmax.f32 %v1055, 0.0
  %v1066 = vmax.f32 %v1056, 0.0
  %v1067 = vmax.f32 %v1057, 0.0
  %v1068 = vmax.f32 %v1058, 0.0
  %v1069 = vmax.f32 %v1059, 0.0
  %v1070 = vmax.f32 %v1060, 0.0
  %1071 = vst [vmem:[%s3] sm:$0xff] %v1061
  %1072 = vst [vmem:[%s3 + $0x8] sm:$0xff] %v1062
  %1073 = vst [vmem:[%s3 + $0x10] sm:$0xff] %v1063
  %1074 = vst [vmem:[%s3 + $0x18] sm:$0xff] %v1064
  %1075 = vst [vmem:[%s3 + $0x20] sm:$0xff] %v1065
  %1076 = vst [vmem:[%s3 + $0x28] sm:$0xff] %v1066
  %1077 = vst [vmem:[%s3 + $0x30] sm:$0xff] %v1067
  %1078 = vst [vmem:[%s3 + $0x38] sm:$0xff] %v1068
  %1079 = vst [vmem:[%s3 + $0x40] sm:$0xff] %v1069
  %1080 = vst [vmem:[%s3 + $0x48] sm:$0xff] %v1070
  // Predicated region
  $region14: #{slr_forward.8} parent=0 // pred_check
    _
  $region15: #{slr_forward.8} parent=0 // pred_check_branch
    %1082 = sbr.rel (0) target = $region17
  $region16: #{slr_forward.8} parent=0 // pred_region
    _
  $region17: #{slr_forward.8} parent=0 // pred_fallthru
    _
  // Predicated region
  $region18: #{slr_forward.8} parent=0 // pred_check
    _
  $region19: #{slr_forward.8} parent=0 // pred_check_branch
    %1084 = sbr.rel (0) target = $region21
  $region20: #{slr_forward.8} parent=0 // pred_region
    _
  $region21: #{slr_forward.8} parent=0 // pred_fallthru
    _

// kernel: slr_forward.7
$region0: #{slr_forward.7}
  #allocation0 [shape = 'u32[]', space=smem, size = 0x4, offset = 0x4, fixed_abs, tag = 'smem constant byte address 0x4 - core index']
  #allocation1 [shape = 'u32[144,128]{1,0:T(1,128)}', space=vmem, size = 0x12000, scoped, tag = 'internal scratch']
  %s0 = inlined_call_operand.vmem [shape: bf16[256,128], index: 0, kind: input, shape index: {}]
  %s1 = inlined_call_operand.vmem [shape: bf16[5,128,128], index: 1, kind: input, shape index: {}]
  %s2 = inlined_call_operand.vmem [shape: f32[1,128], index: 2, kind: input, shape index: {}]
  %s3 = inlined_call_operand.vmem [shape: f32[224,128], index: 3, kind: output, shape index: {}]
  %s4 = sld [smem:[#allocation0]]
  $region22: #{slr_forward.7} parent=0
    _
  %s6 = ssub.s32 1, %s4
  %s7 = scalar_select 0, %s6, %s4
  // Predicated region
  $region2: #{slr_forward.7} parent=0 // pred_check
    _
  $region3: #{slr_forward.7} parent=0 // pred_check_branch
    %9 = sbr.rel (0) target = $region5
  $region4: #{slr_forward.7} parent=0 // pred_region
    _
  $region5: #{slr_forward.7} parent=0 // pred_fallthru
    _
  // Predicated region
  $region6: #{slr_forward.7} parent=0 // pred_check
    _
  $region7: #{slr_forward.7} parent=0 // pred_check_branch
    %11 = sbr.rel (0) target = $region9
  $region8: #{slr_forward.7} parent=0 // pred_region
    _
  $region9: #{slr_forward.7} parent=0 // pred_fallthru
    _
  // Predicated region
  $region10: #{slr_forward.7} parent=0 // pred_check
    _
  $region11: #{slr_forward.7} parent=0 // pred_check_branch
    %13 = sbr.rel (0) target = $region13
  $region12: #{slr_forward.7} parent=0 // pred_region
    _
  $region13: #{slr_forward.7} parent=0 // pred_fallthru
    _
  %v15 = vld [vmem:[%s0] sm:$0xf]
  %v16 = vld [vmem:[%s0 + $0x4] sm:$0xf]
  %v17 = vld [vmem:[%s0 + $0x8] sm:$0xf]
  %v18 = vld [vmem:[%s0 + $0xc] sm:$0xf]
  %v19 = vld [vmem:[%s0 + $0x10] sm:$0xf]
  %v20 = vld [vmem:[%s0 + $0x14] sm:$0xf]
  %v21 = vld [vmem:[%s0 + $0x18] sm:$0xf]
  %v22 = vld [vmem:[%s0 + $0x1c] sm:$0xf]
  %v23 = vld [vmem:[%s0 + $0x20] sm:$0xf]
  %v24 = vld [vmem:[%s0 + $0x24] sm:$0xf]
  %v25 = vld [vmem:[%s0 + $0x28] sm:$0xf]
  %v26 = vld [vmem:[%s0 + $0x2c] sm:$0xf]
  %v27 = vld [vmem:[%s0 + $0x30] sm:$0xf]
  %v28 = vld [vmem:[%s0 + $0x34] sm:$0xf]
  %v29 = vld [vmem:[%s0 + $0x38] sm:$0xf]
  %v30 = vld [vmem:[%s0 + $0x3c] sm:$0xf]
  %v31 = vld [vmem:[%s0 + $0x40] sm:$0xf]
  %v32 = vld [vmem:[%s0 + $0x44] sm:$0xf]
  %v33 = vld [vmem:[%s0 + $0x48] sm:$0xf]
  %v34 = vld [vmem:[%s0 + $0x4c] sm:$0xf]
  %v35 = vld [vmem:[%s0 + $0x50] sm:$0xf]
  %v36 = vld [vmem:[%s0 + $0x54] sm:$0xf]
  %v37 = vld [vmem:[%s0 + $0x58] sm:$0xf]
  %v38 = vld [vmem:[%s0 + $0x5c] sm:$0xf]
  %v39 = vld [vmem:[%s0 + $0x60] sm:$0xf]
  %v40 = vld [vmem:[%s0 + $0x64] sm:$0xf]
  %v41 = vld [vmem:[%s0 + $0x68] sm:$0xf]
  %v42 = vld [vmem:[%s0 + $0x6c] sm:$0xf]
  %v43 = vld [vmem:[%s1] sm:$0xf]
  %v44 = vld [vmem:[%s1 + $0x4] sm:$0xf]
  %v45 = vld [vmem:[%s1 + $0x8] sm:$0xf]
  %v46 = vld [vmem:[%s1 + $0xc] sm:$0xf]
  %v47 = vld [vmem:[%s1 + $0x10] sm:$0xf]
  %v48 = vld [vmem:[%s1 + $0x14] sm:$0xf]
  %v49 = vld [vmem:[%s1 + $0x18] sm:$0xf]
  %v50 = vld [vmem:[%s1 + $0x1c] sm:$0xf]
  %v51 = vld [vmem:[%s1 + $0x20] sm:$0xf]
  %v52 = vld [vmem:[%s1 + $0x24] sm:$0xf]
  %v53 = vld [vmem:[%s1 + $0x28] sm:$0xf]
  %v54 = vld [vmem:[%s1 + $0x2c] sm:$0xf]
  %v55 = vld [vmem:[%s1 + $0x30] sm:$0xf]
  %v56 = vld [vmem:[%s1 + $0x34] sm:$0xf]
  %v57 = vld [vmem:[%s1 + $0x38] sm:$0xf]
  %v58 = vld [vmem:[%s1 + $0x3c] sm:$0xf]
  %v87 = vunpack.c.l.b16 %v15
  %v88 = vunpack.c.l.b16 %v16
  %v89 = vunpack.c.l.b16 %v17
  %v90 = vunpack.c.l.b16 %v18
  %v91 = vunpack.c.l.b16 %v19
  %v92 = vunpack.c.l.b16 %v20
  %v93 = vunpack.c.l.b16 %v21
  %v94 = vunpack.c.l.b16 %v22
  %v95 = vunpack.c.l.b16 %v23
  %v96 = vunpack.c.l.b16 %v24
  %v97 = vunpack.c.l.b16 %v25
  %v98 = vunpack.c.l.b16 %v26
  %v99 = vunpack.c.l.b16 %v27
  %v100 = vunpack.c.l.b16 %v28
  %v101 = vunpack.c.l.b16 %v29
  %v102 = vunpack.c.l.b16 %v30
  %v103 = vunpack.c.l.b16 %v31
  %v104 = vunpack.c.l.b16 %v32
  %v105 = vunpack.c.l.b16 %v33
  %v106 = vunpack.c.l.b16 %v34
  %v107 = vunpack.c.l.b16 %v35
  %v108 = vunpack.c.l.b16 %v36
  %v109 = vunpack.c.l.b16 %v37
  %v110 = vunpack.c.l.b16 %v38
  %v111 = vunpack.c.l.b16 %v39
  %v112 = vunpack.c.l.b16 %v40
  %v113 = vunpack.c.l.b16 %v41
  %v114 = vunpack.c.l.b16 %v42
  %v115 = vpack.c.b16 %v88, %v87
  %v116 = vpack.c.b16 %v90, %v89
  %v117 = vpack.c.b16 %v92, %v91
  %v118 = vpack.c.b16 %v94, %v93
  %v119 = vpack.c.b16 %v96, %v95
  %v120 = vpack.c.b16 %v98, %v97
  %v121 = vpack.c.b16 %v100, %v99
  %v122 = vpack.c.b16 %v102, %v101
  %v123 = vpack.c.b16 %v104, %v103
  %v124 = vpack.c.b16 %v106, %v105
  %v125 = vpack.c.b16 %v108, %v107
  %v126 = vpack.c.b16 %v110, %v109
  %v127 = vpack.c.b16 %v112, %v111
  %v128 = vpack.c.b16 %v114, %v113
  %v159 = vunpack.c.l.b16 %v43
  %v160 = vunpack.c.l.b16 %v44
  %v161 = vunpack.c.l.b16 %v45
  %v162 = vunpack.c.l.b16 %v46
  %v163 = vunpack.c.l.b16 %v47
  %v164 = vunpack.c.l.b16 %v48
  %v165 = vunpack.c.l.b16 %v49
  %v166 = vunpack.c.l.b16 %v50
  %v167 = vunpack.c.l.b16 %v51
  %v168 = vunpack.c.l.b16 %v52
  %v169 = vunpack.c.l.b16 %v53
  %v170 = vunpack.c.l.b16 %v54
  %v171 = vunpack.c.l.b16 %v55
  %v172 = vunpack.c.l.b16 %v56
  %v173 = vunpack.c.l.b16 %v57
  %v174 = vunpack.c.l.b16 %v58
  %v175 = vpack.c.b16 %v160, %v159
  %v176 = vpack.c.b16 %v162, %v161
  %v177 = vpack.c.b16 %v164, %v163
  %v178 = vpack.c.b16 %v166, %v165
  %v179 = vpack.c.b16 %v168, %v167
  %v180 = vpack.c.b16 %v170, %v169
  %v181 = vpack.c.b16 %v172, %v171
  %v182 = vpack.c.b16 %v174, %v173
  %191 = vmatprep.subr.bf16.mxu0 0
  %192 = vmatpush1.bf16.msra.mxu0 %v175
  %193 = vmatprep.subr.bf16.mxu0 0
  %194 = vmatpush1.bf16.msra.mxu0 %v176
  %195 = vmatprep.subr.bf16.mxu0 0
  %196 = vmatpush1.bf16.msra.mxu0 %v177
  %197 = vmatprep.subr.bf16.mxu0 0
  %198 = vmatpush1.bf16.msra.mxu0 %v178
  %199 = vmatprep.subr.bf16.mxu0 0
  %200 = vmatpush1.bf16.msra.mxu0 %v179
  %201 = vmatprep.subr.bf16.mxu0 0
  %202 = vmatpush1.bf16.msra.mxu0 %v180
  %203 = vmatprep.subr.bf16.mxu0 0
  %204 = vmatpush1.bf16.msra.mxu0 %v181
  %205 = vmatprep.subr.bf16.mxu0 0
  %206 = vmatpush1.bf16.msra.mxu0 %v182
  %207 = vmatprep.subr.bf16.mxu0 0
  %208 = vmatpush1.bf16.msra.mxu0 0
  %209 = vmatprep.subr.bf16.mxu0 0
  %210 = vmatpush1.bf16.msra.mxu0 0
  %211 = vmatprep.subr.bf16.mxu0 0
  %212 = vmatpush1.bf16.msra.mxu0 0
  %213 = vmatprep.subr.bf16.mxu0 0
  %214 = vmatpush1.bf16.msra.mxu0 0
  %215 = vmatprep.subr.bf16.mxu0 0
  %216 = vmatpush1.bf16.msra.mxu0 0
  %217 = vmatprep.subr.bf16.mxu0 0
  %218 = vmatpush1.bf16.msra.mxu0 0
  %219 = vmatprep.subr.bf16.mxu0 0
  %220 = vmatpush1.bf16.msra.mxu0 0
  %221 = vmatprep.subr.bf16.mxu0 0
  %222 = vmatpush1.bf16.msra.mxu0 0
  %223 = vmatprep.mubr.bf16.mxu0 0
  %224 = vmatmul.mubr.bf16.gmra.mrb[0].mxu0 %v115
  %v225 = vpop.f32.mrb[0].mxu0
  %v226 = vadd.f32 0.0, %v225
  %v227 = vpop.f32.mrb[0].mxu0
  %v228 = vpop.f32.mrb[0].mxu0
  %v229 = vadd.f32 0.0, %v228
  %v230 = vpop.f32.mrb[0].mxu0
  %231 = vmatprep.mubr.bf16.mxu0 0
  %232 = vmatmul.mubr.bf16.gmra.mrb[0].mxu0 %v116
  %v233 = vpop.f32.mrb[0].mxu0
  %v234 = vadd.f32 0.0, %v233
  %v235 = vpop.f32.mrb[0].mxu0
  %v236 = vpop.f32.mrb[0].mxu0
  %v237 = vadd.f32 0.0, %v236
  %v238 = vpop.f32.mrb[0].mxu0
  %239 = vmatprep.mubr.bf16.mxu0 0
  %240 = vmatmul.mubr.bf16.gmra.mrb[0].mxu0 %v117
  %v241 = vpop.f32.mrb[0].mxu0
  %v242 = vadd.f32 0.0, %v241
  %v243 = vpop.f32.mrb[0].mxu0
  %v244 = vpop.f32.mrb[0].mxu0
  %v245 = vadd.f32 0.0, %v244
  %v246 = vpop.f32.mrb[0].mxu0
  %247 = vmatprep.mubr.bf16.mxu0 0
  %248 = vmatmul.mubr.bf16.gmra.mrb[0].mxu0 %v118
  %v249 = vpop.f32.mrb[0].mxu0
  %v250 = vadd.f32 0.0, %v249
  %v251 = vpop.f32.mrb[0].mxu0
  %v252 = vpop.f32.mrb[0].mxu0
  %v253 = vadd.f32 0.0, %v252
  %v254 = vpop.f32.mrb[0].mxu0
  %255 = vmatprep.mubr.bf16.mxu0 0
  %256 = vmatmul.mubr.bf16.gmra.mrb[0].mxu0 %v119
  %v257 = vpop.f32.mrb[0].mxu0
  %v258 = vadd.f32 0.0, %v257
  %v259 = vpop.f32.mrb[0].mxu0
  %v260 = vpop.f32.mrb[0].mxu0
  %v261 = vadd.f32 0.0, %v260
  %v262 = vpop.f32.mrb[0].mxu0
  %263 = vmatprep.mubr.bf16.mxu0 0
  %264 = vmatmul.mubr.bf16.gmra.mrb[0].mxu0 %v120
  %v265 = vpop.f32.mrb[0].mxu0
  %v266 = vadd.f32 0.0, %v265
  %v267 = vpop.f32.mrb[0].mxu0
  %v268 = vpop.f32.mrb[0].mxu0
  %v269 = vadd.f32 0.0, %v268
  %v270 = vpop.f32.mrb[0].mxu0
  %271 = vmatprep.mubr.bf16.mxu0 0
  %272 = vmatmul.mubr.bf16.gmra.mrb[0].mxu0 %v121
  %v273 = vpop.f32.mrb[0].mxu0
  %v274 = vadd.f32 0.0, %v273
  %v275 = vpop.f32.mrb[0].mxu0
  %v276 = vpop.f32.mrb[0].mxu0
  %v277 = vadd.f32 0.0, %v276
  %v278 = vpop.f32.mrb[0].mxu0
  %279 = vmatprep.mubr.bf16.mxu0 0
  %280 = vmatmul.mubr.bf16.gmra.mrb[0].mxu0 %v122
  %v281 = vpop.f32.mrb[0].mxu0
  %v282 = vadd.f32 0.0, %v281
  %v283 = vpop.f32.mrb[0].mxu0
  %v284 = vpop.f32.mrb[0].mxu0
  %v285 = vadd.f32 0.0, %v284
  %v286 = vpop.f32.mrb[0].mxu0
  %287 = vmatprep.mubr.bf16.mxu0 0
  %288 = vmatmul.mubr.bf16.gmra.mrb[0].mxu0 %v123
  %v289 = vpop.f32.mrb[0].mxu0
  %v290 = vadd.f32 0.0, %v289
  %v291 = vpop.f32.mrb[0].mxu0
  %v292 = vpop.f32.mrb[0].mxu0
  %v293 = vadd.f32 0.0, %v292
  %v294 = vpop.f32.mrb[0].mxu0
  %295 = vmatprep.mubr.bf16.mxu0 0
  %296 = vmatmul.mubr.bf16.gmra.mrb[0].mxu0 %v124
  %v297 = vpop.f32.mrb[0].mxu0
  %v298 = vadd.f32 0.0, %v297
  %v299 = vpop.f32.mrb[0].mxu0
  %v300 = vpop.f32.mrb[0].mxu0
  %v301 = vadd.f32 0.0, %v300
  %v302 = vpop.f32.mrb[0].mxu0
  %303 = vmatprep.mubr.bf16.mxu0 0
  %304 = vmatmul.mubr.bf16.gmra.mrb[0].mxu0 %v125
  %v305 = vpop.f32.mrb[0].mxu0
  %v306 = vadd.f32 0.0, %v305
  %v307 = vpop.f32.mrb[0].mxu0
  %v308 = vpop.f32.mrb[0].mxu0
  %v309 = vadd.f32 0.0, %v308
  %v310 = vpop.f32.mrb[0].mxu0
  %311 = vmatprep.mubr.bf16.mxu0 0
  %312 = vmatmul.mubr.bf16.gmra.mrb[0].mxu0 %v126
  %v313 = vpop.f32.mrb[0].mxu0
  %v314 = vadd.f32 0.0, %v313
  %v315 = vpop.f32.mrb[0].mxu0
  %v316 = vpop.f32.mrb[0].mxu0
  %v317 = vadd.f32 0.0, %v316
  %v318 = vpop.f32.mrb[0].mxu0
  %319 = vmatprep.mubr.bf16.mxu0 0
  %320 = vmatmul.mubr.bf16.gmra.mrb[0].mxu0 %v127
  %v321 = vpop.f32.mrb[0].mxu0
  %v322 = vadd.f32 0.0, %v321
  %v323 = vpop.f32.mrb[0].mxu0
  %v324 = vpop.f32.mrb[0].mxu0
  %v325 = vadd.f32 0.0, %v324
  %v326 = vpop.f32.mrb[0].mxu0
  %327 = vmatprep.mubr.bf16.mxu0 0
  %328 = vmatmul.mubr.bf16.gmra.mrb[0].mxu0 %v128
  %v329 = vpop.f32.mrb[0].mxu0
  %v330 = vadd.f32 0.0, %v329
  %v331 = vpop.f32.mrb[0].mxu0
  %v332 = vpop.f32.mrb[0].mxu0
  %v333 = vadd.f32 0.0, %v332
  %v334 = vpop.f32.mrb[0].mxu0
  %335 = vdwg.mxu0
  %336 = vst [vmem:[%s3] sm:$0xff] %v226
  %337 = vst [vmem:[%s3 + $0x8] sm:$0xff] %v229
  %338 = vst [vmem:[%s3 + $0x10] sm:$0xff] %v234
  %339 = vst [vmem:[%s3 + $0x18] sm:$0xff] %v237
  %340 = vst [vmem:[%s3 + $0x20] sm:$0xff] %v242
  %341 = vst [vmem:[%s3 + $0x28] sm:$0xff] %v245
  %342 = vst [vmem:[%s3 + $0x30] sm:$0xff] %v250
  %343 = vst [vmem:[%s3 + $0x38] sm:$0xff] %v253
  %344 = vst [vmem:[%s3 + $0x40] sm:$0xff] %v258
  %345 = vst [vmem:[%s3 + $0x48] sm:$0xff] %v261
  %346 = vst [vmem:[%s3 + $0x50] sm:$0xff] %v266
  %347 = vst [vmem:[%s3 + $0x58] sm:$0xff] %v269
  %348 = vst [vmem:[%s3 + $0x60] sm:$0xff] %v274
  %349 = vst [vmem:[%s3 + $0x68] sm:$0xff] %v277
  %350 = vst [vmem:[%s3 + $0x70] sm:$0xff] %v282
  %351 = vst [vmem:[%s3 + $0x78] sm:$0xff] %v285
  %352 = vst [vmem:[%s3 + $0x80] sm:$0xff] %v290
  %353 = vst [vmem:[%s3 + $0x88] sm:$0xff] %v293
  %354 = vst [vmem:[%s3 + $0x90] sm:$0xff] %v298
  %355 = vst [vmem:[%s3 + $0x98] sm:$0xff] %v301
  %356 = vst [vmem:[%s3 + $0xa0] sm:$0xff] %v306
  %357 = vst [vmem:[%s3 + $0xa8] sm:$0xff] %v309
  %358 = vst [vmem:[%s3 + $0xb0] sm:$0xff] %v314
  %359 = vst [vmem:[%s3 + $0xb8] sm:$0xff] %v317
  %360 = vst [vmem:[%s3 + $0xc0] sm:$0xff] %v322
  %361 = vst [vmem:[%s3 + $0xc8] sm:$0xff] %v325
  %362 = vst [vmem:[%s3 + $0xd0] sm:$0xff] %v330
  %363 = vst [vmem:[%s3 + $0xd8] sm:$0xff] %v333
  %v364 = vld [vmem:[%s3] sm:$0xff]
  %v365 = vld [vmem:[%s3 + $0x8] sm:$0xff]
  %v366 = vld [vmem:[%s3 + $0x10] sm:$0xff]
  %v367 = vld [vmem:[%s3 + $0x18] sm:$0xff]
  %v368 = vld [vmem:[%s3 + $0x20] sm:$0xff]
  %v369 = vld [vmem:[%s3 + $0x28] sm:$0xff]
  %v370 = vld [vmem:[%s3 + $0x30] sm:$0xff]
  %v371 = vld [vmem:[%s3 + $0x38] sm:$0xff]
  %v372 = vld [vmem:[%s3 + $0x40] sm:$0xff]
  %v373 = vld [vmem:[%s3 + $0x48] sm:$0xff]
  %v374 = vld [vmem:[%s3 + $0x50] sm:$0xff]
  %v375 = vld [vmem:[%s3 + $0x58] sm:$0xff]
  %v376 = vld [vmem:[%s3 + $0x60] sm:$0xff]
  %v377 = vld [vmem:[%s3 + $0x68] sm:$0xff]
  %v378 = vld [vmem:[%s3 + $0x70] sm:$0xff]
  %v379 = vld [vmem:[%s3 + $0x78] sm:$0xff]
  %v380 = vld [vmem:[%s3 + $0x80] sm:$0xff]
  %v381 = vld [vmem:[%s3 + $0x88] sm:$0xff]
  %v382 = vld [vmem:[%s3 + $0x90] sm:$0xff]
  %v383 = vld [vmem:[%s3 + $0x98] sm:$0xff]
  %v384 = vld [vmem:[%s3 + $0xa0] sm:$0xff]
  %v385 = vld [vmem:[%s3 + $0xa8] sm:$0xff]
  %v386 = vld [vmem:[%s3 + $0xb0] sm:$0xff]
  %v387 = vld [vmem:[%s3 + $0xb8] sm:$0xff]
  %v388 = vld [vmem:[%s3 + $0xc0] sm:$0xff]
  %v389 = vld [vmem:[%s3 + $0xc8] sm:$0xff]
  %v390 = vld [vmem:[%s3 + $0xd0] sm:$0xff]
  %v391 = vld [vmem:[%s3 + $0xd8] sm:$0xff]
  %v392 = vld [vmem:[%s0 + $0x4] sm:$0xf]
  %v393 = vld [vmem:[%s0 + $0x8] sm:$0xf]
  %v394 = vld [vmem:[%s0 + $0xc] sm:$0xf]
  %v395 = vld [vmem:[%s0 + $0x10] sm:$0xf]
  %v396 = vld [vmem:[%s0 + $0x14] sm:$0xf]
  %v397 = vld [vmem:[%s0 + $0x18] sm:$0xf]
  %v398 = vld [vmem:[%s0 + $0x1c] sm:$0xf]
  %v399 = vld [vmem:[%s0 + $0x20] sm:$0xf]
  %v400 = vld [vmem:[%s0 + $0x24] sm:$0xf]
  %v401 = vld [vmem:[%s0 + $0x28] sm:$0xf]
  %v402 = vld [vmem:[%s0 + $0x2c] sm:$0xf]
  %v403 = vld [vmem:[%s0 + $0x30] sm:$0xf]
  %v404 = vld [vmem:[%s0 + $0x34] sm:$0xf]
  %v405 = vld [vmem:[%s0 + $0x38] sm:$0xf]
  %v406 = vld [vmem:[%s0 + $0x3c] sm:$0xf]
  %v407 = vld [vmem:[%s0 + $0x40] sm:$0xf]
  %v408 = vld [vmem:[%s0 + $0x44] sm:$0xf]
  %v409 = vld [vmem:[%s0 + $0x48] sm:$0xf]
  %v410 = vld [vmem:[%s0 + $0x4c] sm:$0xf]
  %v411 = vld [vmem:[%s0 + $0x50] sm:$0xf]
  %v412 = vld [vmem:[%s0 + $0x54] sm:$0xf]
  %v413 = vld [vmem:[%s0 + $0x58] sm:$0xf]
  %v414 = vld [vmem:[%s0 + $0x5c] sm:$0xf]
  %v415 = vld [vmem:[%s0 + $0x60] sm:$0xf]
  %v416 = vld [vmem:[%s0 + $0x64] sm:$0xf]
  %v417 = vld [vmem:[%s0 + $0x68] sm:$0xf]
  %v418 = vld [vmem:[%s0 + $0x6c] sm:$0xf]
  %v419 = vld [vmem:[%s0 + $0x70] sm:$0xf]
  %s420 = scalar_lea.vmem %s1, 64
  %v421 = vld [vmem:[%s420] sm:$0xf]
  %v422 = vld [vmem:[%s420 + $0x4] sm:$0xf]
  %v423 = vld [vmem:[%s420 + $0x8] sm:$0xf]
  %v424 = vld [vmem:[%s420 + $0xc] sm:$0xf]
  %v425 = vld [vmem:[%s420 + $0x10] sm:$0xf]
  %v426 = vld [vmem:[%s420 + $0x14] sm:$0xf]
  %v427 = vld [vmem:[%s420 + $0x18] sm:$0xf]
  %v428 = vld [vmem:[%s420 + $0x1c] sm:$0xf]
  %v429 = vld [vmem:[%s420 + $0x20] sm:$0xf]
  %v430 = vld [vmem:[%s420 + $0x24] sm:$0xf]
  %v431 = vld [vmem:[%s420 + $0x28] sm:$0xf]
  %v432 = vld [vmem:[%s420 + $0x2c] sm:$0xf]
  %v433 = vld [vmem:[%s420 + $0x30] sm:$0xf]
  %v434 = vld [vmem:[%s420 + $0x34] sm:$0xf]
  %v435 = vld [vmem:[%s420 + $0x38] sm:$0xf]
  %v436 = vld [vmem:[%s420 + $0x3c] sm:$0xf]
  %v465 = vunpack.c.l.b16 %v392
  %v466 = vunpack.c.l.b16 %v393
  %v467 = vunpack.c.l.b16 %v394
  %v468 = vunpack.c.l.b16 %v395
  %v469 = vunpack.c.l.b16 %v396
  %v470 = vunpack.c.l.b16 %v397
  %v471 = vunpack.c.l.b16 %v398
  %v472 = vunpack.c.l.b16 %v399
  %v473 = vunpack.c.l.b16 %v400
  %v474 = vunpack.c.l.b16 %v401
  %v475 = vunpack.c.l.b16 %v402
  %v476 = vunpack.c.l.b16 %v403
  %v477 = vunpack.c.l.b16 %v404
  %v478 = vunpack.c.l.b16 %v405
  %v479 = vunpack.c.l.b16 %v406
  %v480 = vunpack.c.l.b16 %v407
  %v481 = vunpack.c.l.b16 %v408
  %v482 = vunpack.c.l.b16 %v409
  %v483 = vunpack.c.l.b16 %v410
  %v484 = vunpack.c.l.b16 %v411
  %v485 = vunpack.c.l.b16 %v412
  %v486 = vunpack.c.l.b16 %v413
  %v487 = vunpack.c.l.b16 %v414
  %v488 = vunpack.c.l.b16 %v415
  %v489 = vunpack.c.l.b16 %v416
  %v490 = vunpack.c.l.b16 %v417
  %v491 = vunpack.c.l.b16 %v418
  %v492 = vunpack.c.l.b16 %v419
  %v493 = vpack.c.b16 %v466, %v465
  %v494 = vpack.c.b16 %v468, %v467
  %v495 = vpack.c.b16 %v470, %v469
  %v496 = vpack.c.b16 %v472, %v471
  %v497 = vpack.c.b16 %v474, %v473
  %v498 = vpack.c.b16 %v476, %v475
  %v499 = vpack.c.b16 %v478, %v477
  %v500 = vpack.c.b16 %v480, %v479
  %v501 = vpack.c.b16 %v482, %v481
  %v502 = vpack.c.b16 %v484, %v483
  %v503 = vpack.c.b16 %v486, %v485
  %v504 = vpack.c.b16 %v488, %v487
  %v505 = vpack.c.b16 %v490, %v489
  %v506 = vpack.c.b16 %v492, %v491
  %v537 = vunpack.c.l.b16 %v421
  %v538 = vunpack.c.l.b16 %v422
  %v539 = vunpack.c.l.b16 %v423
  %v540 = vunpack.c.l.b16 %v424
  %v541 = vunpack.c.l.b16 %v425
  %v542 = vunpack.c.l.b16 %v426
  %v543 = vunpack.c.l.b16 %v427
  %v544 = vunpack.c.l.b16 %v428
  %v545 = vunpack.c.l.b16 %v429
  %v546 = vunpack.c.l.b16 %v430
  %v547 = vunpack.c.l.b16 %v431
  %v548 = vunpack.c.l.b16 %v432
  %v549 = vunpack.c.l.b16 %v433
  %v550 = vunpack.c.l.b16 %v434
  %v551 = vunpack.c.l.b16 %v435
  %v552 = vunpack.c.l.b16 %v436
  %v553 = vpack.c.b16 %v538, %v537
  %v554 = vpack.c.b16 %v540, %v539
  %v555 = vpack.c.b16 %v542, %v541
  %v556 = vpack.c.b16 %v544, %v543
  %v557 = vpack.c.b16 %v546, %v545
  %v558 = vpack.c.b16 %v548, %v547
  %v559 = vpack.c.b16 %v550, %v549
  %v560 = vpack.c.b16 %v552, %v551
  %569 = vmatprep.subr.bf16.mxu0 0
  %570 = vmatpush1.bf16.msra.mxu0 %v553
  %571 = vmatprep.subr.bf16.mxu0 0
  %572 = vmatpush1.bf16.msra.mxu0 %v554
  %573 = vmatprep.subr.bf16.mxu0 0
  %574 = vmatpush1.bf16.msra.mxu0 %v555
  %575 = vmatprep.subr.bf16.mxu0 0
  %576 = vmatpush1.bf16.msra.mxu0 %v556
  %577 = vmatprep.subr.bf16.mxu0 0
  %578 = vmatpush1.bf16.msra.mxu0 %v557
  %579 = vmatprep.subr.bf16.mxu0 0
  %580 = vmatpush1.bf16.msra.mxu0 %v558
  %581 = vmatprep.subr.bf16.mxu0 0
  %582 = vmatpush1.bf16.msra.mxu0 %v559
  %583 = vmatprep.subr.bf16.mxu0 0
  %584 = vmatpush1.bf16.msra.mxu0 %v560
  %585 = vmatprep.subr.bf16.mxu0 0
  %586 = vmatpush1.bf16.msra.mxu0 0
  %587 = vmatprep.subr.bf16.mxu0 0
  %588 = vmatpush1.bf16.msra.mxu0 0
  %589 = vmatprep.subr.bf16.mxu0 0
  %590 = vmatpush1.bf16.msra.mxu0 0
  %591 = vmatprep.subr.bf16.mxu0 0
  %592 = vmatpush1.bf16.msra.mxu0 0
  %593 = vmatprep.subr.bf16.mxu0 0
  %594 = vmatpush1.bf16.msra.mxu0 0
  %595 = vmatprep.subr.bf16.mxu0 0
  %596 = vmatpush1.bf16.msra.mxu0 0
  %597 = vmatprep.subr.bf16.mxu0 0
  %598 = vmatpush1.bf16.msra.mxu0 0
  %599 = vmatprep.subr.bf16.mxu0 0
  %600 = vmatpush1.bf16.msra.mxu0 0
  %601 = vmatprep.mubr.bf16.mxu0 0
  %602 = vmatmul.mubr.bf16.gmra.mrb[0].mxu0 %v493
  %v603 = vpop.f32.mrb[0].mxu0
  %v604 = vadd.f32 0.0, %v603
  %v605 = vpop.f32.mrb[0].mxu0
  %v606 = vpop.f32.mrb[0].mxu0
  %v607 = vadd.f32 0.0, %v606
  %v608 = vpop.f32.mrb[0].mxu0
  %609 = vmatprep.mubr.bf16.mxu0 0
  %610 = vmatmul.mubr.bf16.gmra.mrb[0].mxu0 %v494
  %v611 = vpop.f32.mrb[0].mxu0
  %v612 = vadd.f32 0.0, %v611
  %v613 = vpop.f32.mrb[0].mxu0
  %v614 = vpop.f32.mrb[0].mxu0
  %v615 = vadd.f32 0.0, %v614
  %v616 = vpop.f32.mrb[0].mxu0
  %617 = vmatprep.mubr.bf16.mxu0 0
  %618 = vmatmul.mubr.bf16.gmra.mrb[0].mxu0 %v495
  %v619 = vpop.f32.mrb[0].mxu0
  %v620 = vadd.f32 0.0, %v619
  %v621 = vpop.f32.mrb[0].mxu0
  %v622 = vpop.f32.mrb[0].mxu0
  %v623 = vadd.f32 0.0, %v622
  %v624 = vpop.f32.mrb[0].mxu0
  %625 = vmatprep.mubr.bf16.mxu0 0
  %626 = vmatmul.mubr.bf16.gmra.mrb[0].mxu0 %v496
  %v627 = vpop.f32.mrb[0].mxu0
  %v628 = vadd.f32 0.0, %v627
  %v629 = vpop.f32.mrb[0].mxu0
  %v630 = vpop.f32.mrb[0].mxu0
  %v631 = vadd.f32 0.0, %v630
  %v632 = vpop.f32.mrb[0].mxu0
  %633 = vmatprep.mubr.bf16.mxu0 0
  %634 = vmatmul.mubr.bf16.gmra.mrb[0].mxu0 %v497
  %v635 = vpop.f32.mrb[0].mxu0
  %v636 = vadd.f32 0.0, %v635
  %v637 = vpop.f32.mrb[0].mxu0
  %v638 = vpop.f32.mrb[0].mxu0
  %v639 = vadd.f32 0.0, %v638
  %v640 = vpop.f32.mrb[0].mxu0
  %641 = vmatprep.mubr.bf16.mxu0 0
  %642 = vmatmul.mubr.bf16.gmra.mrb[0].mxu0 %v498
  %v643 = vpop.f32.mrb[0].mxu0
  %v644 = vadd.f32 0.0, %v643
  %v645 = vpop.f32.mrb[0].mxu0
  %v646 = vpop.f32.mrb[0].mxu0
  %v647 = vadd.f32 0.0, %v646
  %v648 = vpop.f32.mrb[0].mxu0
  %649 = vmatprep.mubr.bf16.mxu0 0
  %650 = vmatmul.mubr.bf16.gmra.mrb[0].mxu0 %v499
  %v651 = vpop.f32.mrb[0].mxu0
  %v652 = vadd.f32 0.0, %v651
  %v653 = vpop.f32.mrb[0].mxu0
  %v654 = vpop.f32.mrb[0].mxu0
  %v655 = vadd.f32 0.0, %v654
  %v656 = vpop.f32.mrb[0].mxu0
  %657 = vmatprep.mubr.bf16.mxu0 0
  %658 = vmatmul.mubr.bf16.gmra.mrb[0].mxu0 %v500
  %v659 = vpop.f32.mrb[0].mxu0
  %v660 = vadd.f32 0.0, %v659
  %v661 = vpop.f32.mrb[0].mxu0
  %v662 = vpop.f32.mrb[0].mxu0
  %v663 = vadd.f32 0.0, %v662
  %v664 = vpop.f32.mrb[0].mxu0
  %665 = vmatprep.mubr.bf16.mxu0 0
  %666 = vmatmul.mubr.bf16.gmra.mrb[0].mxu0 %v501
  %v667 = vpop.f32.mrb[0].mxu0
  %v668 = vadd.f32 0.0, %v667
  %v669 = vpop.f32.mrb[0].mxu0
  %v670 = vpop.f32.mrb[0].mxu0
  %v671 = vadd.f32 0.0, %v670
  %v672 = vpop.f32.mrb[0].mxu0
  %673 = vmatprep.mubr.bf16.mxu0 0
  %674 = vmatmul.mubr.bf16.gmra.mrb[0].mxu0 %v502
  %v675 = vpop.f32.mrb[0].mxu0
  %v676 = vadd.f32 0.0, %v675
  %v677 = vpop.f32.mrb[0].mxu0
  %v678 = vpop.f32.mrb[0].mxu0
  %v679 = vadd.f32 0.0, %v678
  %v680 = vpop.f32.mrb[0].mxu0
  %681 = vmatprep.mubr.bf16.mxu0 0
  %682 = vmatmul.mubr.bf16.gmra.mrb[0].mxu0 %v503
  %v683 = vpop.f32.mrb[0].mxu0
  %v684 = vadd.f32 0.0, %v683
  %v685 = vpop.f32.mrb[0].mxu0
  %v686 = vpop.f32.mrb[0].mxu0
  %v687 = vadd.f32 0.0, %v686
  %v688 = vpop.f32.mrb[0].mxu0
  %689 = vmatprep.mubr.bf16.mxu0 0
  %690 = vmatmul.mubr.bf16.gmra.mrb[0].mxu0 %v504
  %v691 = vpop.f32.mrb[0].mxu0
  %v692 = vadd.f32 0.0, %v691
  %v693 = vpop.f32.mrb[0].mxu0
  %v694 = vpop.f32.mrb[0].mxu0
  %v695 = vadd.f32 0.0, %v694
  %v696 = vpop.f32.mrb[0].mxu0
  %697 = vmatprep.mubr.bf16.mxu0 0
  %698 = vmatmul.mubr.bf16.gmra.mrb[0].mxu0 %v505
  %v699 = vpop.f32.mrb[0].mxu0
  %v700 = vadd.f32 0.0, %v699
  %v701 = vpop.f32.mrb[0].mxu0
  %v702 = vpop.f32.mrb[0].mxu0
  %v703 = vadd.f32 0.0, %v702
  %v704 = vpop.f32.mrb[0].mxu0
  %705 = vmatprep.mubr.bf16.mxu0 0
  %706 = vmatmul.mubr.bf16.gmra.mrb[0].mxu0 %v506
  %v707 = vpop.f32.mrb[0].mxu0
  %v708 = vadd.f32 0.0, %v707
  %v709 = vpop.f32.mrb[0].mxu0
  %v710 = vpop.f32.mrb[0].mxu0
  %v711 = vadd.f32 0.0, %v710
  %v712 = vpop.f32.mrb[0].mxu0
  %713 = vdwg.mxu0
  %v714 = vadd.f32 %v364, %v604
  %v715 = vadd.f32 %v365, %v607
  %v716 = vadd.f32 %v366, %v612
  %v717 = vadd.f32 %v367, %v615
  %v718 = vadd.f32 %v368, %v620
  %v719 = vadd.f32 %v369, %v623
  %v720 = vadd.f32 %v370, %v628
  %v721 = vadd.f32 %v371, %v631
  %v722 = vadd.f32 %v372, %v636
  %v723 = vadd.f32 %v373, %v639
  %v724 = vadd.f32 %v374, %v644
  %v725 = vadd.f32 %v375, %v647
  %v726 = vadd.f32 %v376, %v652
  %v727 = vadd.f32 %v377, %v655
  %v728 = vadd.f32 %v378, %v660
  %v729 = vadd.f32 %v379, %v663
  %v730 = vadd.f32 %v380, %v668
  %v731 = vadd.f32 %v381, %v671
  %v732 = vadd.f32 %v382, %v676
  %v733 = vadd.f32 %v383, %v679
  %v734 = vadd.f32 %v384, %v684
  %v735 = vadd.f32 %v385, %v687
  %v736 = vadd.f32 %v386, %v692
  %v737 = vadd.f32 %v387, %v695
  %v738 = vadd.f32 %v388, %v700
  %v739 = vadd.f32 %v389, %v703
  %v740 = vadd.f32 %v390, %v708
  %v741 = vadd.f32 %v391, %v711
  %742 = vst [vmem:[%s3] sm:$0xff] %v714
  %743 = vst [vmem:[%s3 + $0x8] sm:$0xff] %v715
  %744 = vst [vmem:[%s3 + $0x10] sm:$0xff] %v716
  %745 = vst [vmem:[%s3 + $0x18] sm:$0xff] %v717
  %746 = vst [vmem:[%s3 + $0x20] sm:$0xff] %v718
  %747 = vst [vmem:[%s3 + $0x28] sm:$0xff] %v719
  %748 = vst [vmem:[%s3 + $0x30] sm:$0xff] %v720
  %749 = vst [vmem:[%s3 + $0x38] sm:$0xff] %v721
  %750 = vst [vmem:[%s3 + $0x40] sm:$0xff] %v722
  %751 = vst [vmem:[%s3 + $0x48] sm:$0xff] %v723
  %752 = vst [vmem:[%s3 + $0x50] sm:$0xff] %v724
  %753 = vst [vmem:[%s3 + $0x58] sm:$0xff] %v725
  %754 = vst [vmem:[%s3 + $0x60] sm:$0xff] %v726
  %755 = vst [vmem:[%s3 + $0x68] sm:$0xff] %v727
  %756 = vst [vmem:[%s3 + $0x70] sm:$0xff] %v728
  %757 = vst [vmem:[%s3 + $0x78] sm:$0xff] %v729
  %758 = vst [vmem:[%s3 + $0x80] sm:$0xff] %v730
  %759 = vst [vmem:[%s3 + $0x88] sm:$0xff] %v731
  %760 = vst [vmem:[%s3 + $0x90] sm:$0xff] %v732
  %761 = vst [vmem:[%s3 + $0x98] sm:$0xff] %v733
  %762 = vst [vmem:[%s3 + $0xa0] sm:$0xff] %v734
  %763 = vst [vmem:[%s3 + $0xa8] sm:$0xff] %v735
  %764 = vst [vmem:[%s3 + $0xb0] sm:$0xff] %v736
  %765 = vst [vmem:[%s3 + $0xb8] sm:$0xff] %v737
  %766 = vst [vmem:[%s3 + $0xc0] sm:$0xff] %v738
  %767 = vst [vmem:[%s3 + $0xc8] sm:$0xff] %v739
  %768 = vst [vmem:[%s3 + $0xd0] sm:$0xff] %v740
  %769 = vst [vmem:[%s3 + $0xd8] sm:$0xff] %v741
  %v770 = vld [vmem:[%s3] sm:$0xff]
  %v771 = vld [vmem:[%s3 + $0x8] sm:$0xff]
  %v772 = vld [vmem:[%s3 + $0x10] sm:$0xff]
  %v773 = vld [vmem:[%s3 + $0x18] sm:$0xff]
  %v774 = vld [vmem:[%s3 + $0x20] sm:$0xff]
  %v775 = vld [vmem:[%s3 + $0x28] sm:$0xff]
  %v776 = vld [vmem:[%s3 + $0x30] sm:$0xff]
  %v777 = vld [vmem:[%s3 + $0x38] sm:$0xff]
  %v778 = vld [vmem:[%s3 + $0x40] sm:$0xff]
  %v779 = vld [vmem:[%s3 + $0x48] sm:$0xff]
  %v780 = vld [vmem:[%s3 + $0x50] sm:$0xff]
  %v781 = vld [vmem:[%s3 + $0x58] sm:$0xff]
  %v782 = vld [vmem:[%s3 + $0x60] sm:$0xff]
  %v783 = vld [vmem:[%s3 + $0x68] sm:$0xff]
  %v784 = vld [vmem:[%s3 + $0x70] sm:$0xff]
  %v785 = vld [vmem:[%s3 + $0x78] sm:$0xff]
  %v786 = vld [vmem:[%s3 + $0x80] sm:$0xff]
  %v787 = vld [vmem:[%s3 + $0x88] sm:$0xff]
  %v788 = vld [vmem:[%s3 + $0x90] sm:$0xff]
  %v789 = vld [vmem:[%s3 + $0x98] sm:$0xff]
  %v790 = vld [vmem:[%s3 + $0xa0] sm:$0xff]
  %v791 = vld [vmem:[%s3 + $0xa8] sm:$0xff]
  %v792 = vld [vmem:[%s3 + $0xb0] sm:$0xff]
  %v793 = vld [vmem:[%s3 + $0xb8] sm:$0xff]
  %v794 = vld [vmem:[%s3 + $0xc0] sm:$0xff]
  %v795 = vld [vmem:[%s3 + $0xc8] sm:$0xff]
  %v796 = vld [vmem:[%s3 + $0xd0] sm:$0xff]
  %v797 = vld [vmem:[%s3 + $0xd8] sm:$0xff]
  %v798 = vld [vmem:[%s0 + $0x8] sm:$0xf]
  %v799 = vld [vmem:[%s0 + $0xc] sm:$0xf]
  %v800 = vld [vmem:[%s0 + $0x10] sm:$0xf]
  %v801 = vld [vmem:[%s0 + $0x14] sm:$0xf]
  %v802 = vld [vmem:[%s0 + $0x18] sm:$0xf]
  %v803 = vld [vmem:[%s0 + $0x1c] sm:$0xf]
  %v804 = vld [vmem:[%s0 + $0x20] sm:$0xf]
  %v805 = vld [vmem:[%s0 + $0x24] sm:$0xf]
  %v806 = vld [vmem:[%s0 + $0x28] sm:$0xf]
  %v807 = vld [vmem:[%s0 + $0x2c] sm:$0xf]
  %v808 = vld [vmem:[%s0 + $0x30] sm:$0xf]
  %v809 = vld [vmem:[%s0 + $0x34] sm:$0xf]
  %v810 = vld [vmem:[%s0 + $0x38] sm:$0xf]
  %v811 = vld [vmem:[%s0 + $0x3c] sm:$0xf]
  %v812 = vld [vmem:[%s0 + $0x40] sm:$0xf]
  %v813 = vld [vmem:[%s0 + $0x44] sm:$0xf]
  %v814 = vld [vmem:[%s0 + $0x48] sm:$0xf]
  %v815 = vld [vmem:[%s0 + $0x4c] sm:$0xf]
  %v816 = vld [vmem:[%s0 + $0x50] sm:$0xf]
  %v817 = vld [vmem:[%s0 + $0x54] sm:$0xf]
  %v818 = vld [vmem:[%s0 + $0x58] sm:$0xf]
  %v819 = vld [vmem:[%s0 + $0x5c] sm:$0xf]
  %v820 = vld [vmem:[%s0 + $0x60] sm:$0xf]
  %v821 = vld [vmem:[%s0 + $0x64] sm:$0xf]
  %v822 = vld [vmem:[%s0 + $0x68] sm:$0xf]
  %v823 = vld [vmem:[%s0 + $0x6c] sm:$0xf]
  %v824 = vld [vmem:[%s0 + $0x70] sm:$0xf]
  %v825 = vld [vmem:[%s0 + $0x74] sm:$0xf]
  %s826 = scalar_lea.vmem %s1, 128
  %v827 = vld [vmem:[%s826] sm:$0xf]
  %v828 = vld [vmem:[%s826 + $0x4] sm:$0xf]
  %v829 = vld [vmem:[%s826 + $0x8] sm:$0xf]
  %v830 = vld [vmem:[%s826 + $0xc] sm:$0xf]
  %v831 = vld [vmem:[%s826 + $0x10] sm:$0xf]
  %v832 = vld [vmem:[%s826 + $0x14] sm:$0xf]
  %v833 = vld [vmem:[%s826 + $0x18] sm:$0xf]
  %v834 = vld [vmem:[%s826 + $0x1c] sm:$0xf]
  %v835 = vld [vmem:[%s826 + $0x20] sm:$0xf]
  %v836 = vld [vmem:[%s826 + $0x24] sm:$0xf]
  %v837 = vld [vmem:[%s826 + $0x28] sm:$0xf]
  %v838 = vld [vmem:[%s826 + $0x2c] sm:$0xf]
  %v839 = vld [vmem:[%s826 + $0x30] sm:$0xf]
  %v840 = vld [vmem:[%s826 + $0x34] sm:$0xf]
  %v841 = vld [vmem:[%s826 + $0x38] sm:$0xf]
  %v842 = vld [vmem:[%s826 + $0x3c] sm:$0xf]
  %v871 = vunpack.c.l.b16 %v798
  %v872 = vunpack.c.l.b16 %v799
  %v873 = vunpack.c.l.b16 %v800
  %v874 = vunpack.c.l.b16 %v801
  %v875 = vunpack.c.l.b16 %v802
  %v876 = vunpack.c.l.b16 %v803
  %v877 = vunpack.c.l.b16 %v804
  %v878 = vunpack.c.l.b16 %v805
  %v879 = vunpack.c.l.b16 %v806
  %v880 = vunpack.c.l.b16 %v807
  %v881 = vunpack.c.l.b16 %v808
  %v882 = vunpack.c.l.b16 %v809
  %v883 = vunpack.c.l.b16 %v810
  %v884 = vunpack.c.l.b16 %v811
  %v885 = vunpack.c.l.b16 %v812
  %v886 = vunpack.c.l.b16 %v813
  %v887 = vunpack.c.l.b16 %v814
  %v888 = vunpack.c.l.b16 %v815
  %v889 = vunpack.c.l.b16 %v816
  %v890 = vunpack.c.l.b16 %v817
  %v891 = vunpack.c.l.b16 %v818
  %v892 = vunpack.c.l.b16 %v819
  %v893 = vunpack.c.l.b16 %v820
  %v894 = vunpack.c.l.b16 %v821
  %v895 = vunpack.c.l.b16 %v822
  %v896 = vunpack.c.l.b16 %v823
  %v897 = vunpack.c.l.b16 %v824
  %v898 = vunpack.c.l.b16 %v825
  %v899 = vpack.c.b16 %v872, %v871
  %v900 = vpack.c.b16 %v874, %v873
  %v901 = vpack.c.b16 %v876, %v875
  %v902 = vpack.c.b16 %v878, %v877
  %v903 = vpack.c.b16 %v880, %v879
  %v904 = vpack.c.b16 %v882, %v881
  %v905 = vpack.c.b16 %v884, %v883
  %v906 = vpack.c.b16 %v886, %v885
  %v907 = vpack.c.b16 %v888, %v887
  %v908 = vpack.c.b16 %v890, %v889
  %v909 = vpack.c.b16 %v892, %v891
  %v910 = vpack.c.b16 %v894, %v893
  %v911 = vpack.c.b16 %v896, %v895
  %v912 = vpack.c.b16 %v898, %v897
  %v943 = vunpack.c.l.b16 %v827
  %v944 = vunpack.c.l.b16 %v828
  %v945 = vunpack.c.l.b16 %v829
  %v946 = vunpack.c.l.b16 %v830
  %v947 = vunpack.c.l.b16 %v831
  %v948 = vunpack.c.l.b16 %v832
  %v949 = vunpack.c.l.b16 %v833
  %v950 = vunpack.c.l.b16 %v834
  %v951 = vunpack.c.l.b16 %v835
  %v952 = vunpack.c.l.b16 %v836
  %v953 = vunpack.c.l.b16 %v837
  %v954 = vunpack.c.l.b16 %v838
  %v955 = vunpack.c.l.b16 %v839
  %v956 = vunpack.c.l.b16 %v840
  %v957 = vunpack.c.l.b16 %v841
  %v958 = vunpack.c.l.b16 %v842
  %v959 = vpack.c.b16 %v944, %v943
  %v960 = vpack.c.b16 %v946, %v945
  %v961 = vpack.c.b16 %v948, %v947
  %v962 = vpack.c.b16 %v950, %v949
  %v963 = vpack.c.b16 %v952, %v951
  %v964 = vpack.c.b16 %v954, %v953
  %v965 = vpack.c.b16 %v956, %v955
  %v966 = vpack.c.b16 %v958, %v957
  %975 = vmatprep.subr.bf16.mxu0 0
  %976 = vmatpush1.bf16.msra.mxu0 %v959
  %977 = vmatprep.subr.bf16.mxu0 0
  %978 = vmatpush1.bf16.msra.mxu0 %v960
  %979 = vmatprep.subr.bf16.mxu0 0
  %980 = vmatpush1.bf16.msra.mxu0 %v961
  %981 = vmatprep.subr.bf16.mxu0 0
  %982 = vmatpush1.bf16.msra.mxu0 %v962
  %983 = vmatprep.subr.bf16.mxu0 0
  %984 = vmatpush1.bf16.msra.mxu0 %v963
  %985 = vmatprep.subr.bf16.mxu0 0
  %986 = vmatpush1.bf16.msra.mxu0 %v964
  %987 = vmatprep.subr.bf16.mxu0 0
  %988 = vmatpush1.bf16.msra.mxu0 %v965
  %989 = vmatprep.subr.bf16.mxu0 0
  %990 = vmatpush1.bf16.msra.mxu0 %v966
  %991 = vmatprep.subr.bf16.mxu0 0
  %992 = vmatpush1.bf16.msra.mxu0 0
  %993 = vmatprep.subr.bf16.mxu0 0
  %994 = vmatpush1.bf16.msra.mxu0 0
  %995 = vmatprep.subr.bf16.mxu0 0
  %996 = vmatpush1.bf16.msra.mxu0 0
  %997 = vmatprep.subr.bf16.mxu0 0
  %998 = vmatpush1.bf16.msra.mxu0 0
  %999 = vmatprep.subr.bf16.mxu0 0
  %1000 = vmatpush1.bf16.msra.mxu0 0
  %1001 = vmatprep.subr.bf16.mxu0 0
  %1002 = vmatpush1.bf16.msra.mxu0 0
  %1003 = vmatprep.subr.bf16.mxu0 0
  %1004 = vmatpush1.bf16.msra.mxu0 0
  %1005 = vmatprep.subr.bf16.mxu0 0
  %1006 = vmatpush1.bf16.msra.mxu0 0
  %1007 = vmatprep.mubr.bf16.mxu0 0
  %1008 = vmatmul.mubr.bf16.gmra.mrb[0].mxu0 %v899
  %v1009 = vpop.f32.mrb[0].mxu0
  %v1010 = vadd.f32 0.0, %v1009
  %v1011 = vpop.f32.mrb[0].mxu0
  %v1012 = vpop.f32.mrb[0].mxu0
  %v1013 = vadd.f32 0.0, %v1012
  %v1014 = vpop.f32.mrb[0].mxu0
  %1015 = vmatprep.mubr.bf16.mxu0 0
  %1016 = vmatmul.mubr.bf16.gmra.mrb[0].mxu0 %v900
  %v1017 = vpop.f32.mrb[0].mxu0
  %v1018 = vadd.f32 0.0, %v1017
  %v1019 = vpop.f32.mrb[0].mxu0
  %v1020 = vpop.f32.mrb[0].mxu0
  %v1021 = vadd.f32 0.0, %v1020
  %v1022 = vpop.f32.mrb[0].mxu0
  %1023 = vmatprep.mubr.bf16.mxu0 0
  %1024 = vmatmul.mubr.bf16.gmra.mrb[0].mxu0 %v901
  %v1025 = vpop.f32.mrb[0].mxu0
  %v1026 = vadd.f32 0.0, %v1025
  %v1027 = vpop.f32.mrb[0].mxu0
  %v1028 = vpop.f32.mrb[0].mxu0
  %v1029 = vadd.f32 0.0, %v1028
  %v1030 = vpop.f32.mrb[0].mxu0
  %1031 = vmatprep.mubr.bf16.mxu0 0
  %1032 = vmatmul.mubr.bf16.gmra.mrb[0].mxu0 %v902
  %v1033 = vpop.f32.mrb[0].mxu0
  %v1034 = vadd.f32 0.0, %v1033
  %v1035 = vpop.f32.mrb[0].mxu0
  %v1036 = vpop.f32.mrb[0].mxu0
  %v1037 = vadd.f32 0.0, %v1036
  %v1038 = vpop.f32.mrb[0].mxu0
  %1039 = vmatprep.mubr.bf16.mxu0 0
  %1040 = vmatmul.mubr.bf16.gmra.mrb[0].mxu0 %v903
  %v1041 = vpop.f32.mrb[0].mxu0
  %v1042 = vadd.f32 0.0, %v1041
  %v1043 = vpop.f32.mrb[0].mxu0
  %v1044 = vpop.f32.mrb[0].mxu0
  %v1045 = vadd.f32 0.0, %v1044
  %v1046 = vpop.f32.mrb[0].mxu0
  %1047 = vmatprep.mubr.bf16.mxu0 0
  %1048 = vmatmul.mubr.bf16.gmra.mrb[0].mxu0 %v904
  %v1049 = vpop.f32.mrb[0].mxu0
  %v1050 = vadd.f32 0.0, %v1049
  %v1051 = vpop.f32.mrb[0].mxu0
  %v1052 = vpop.f32.mrb[0].mxu0
  %v1053 = vadd.f32 0.0, %v1052
  %v1054 = vpop.f32.mrb[0].mxu0
  %1055 = vmatprep.mubr.bf16.mxu0 0
  %1056 = vmatmul.mubr.bf16.gmra.mrb[0].mxu0 %v905
  %v1057 = vpop.f32.mrb[0].mxu0
  %v1058 = vadd.f32 0.0, %v1057
  %v1059 = vpop.f32.mrb[0].mxu0
  %v1060 = vpop.f32.mrb[0].mxu0
  %v1061 = vadd.f32 0.0, %v1060
  %v1062 = vpop.f32.mrb[0].mxu0
  %1063 = vmatprep.mubr.bf16.mxu0 0
  %1064 = vmatmul.mubr.bf16.gmra.mrb[0].mxu0 %v906
  %v1065 = vpop.f32.mrb[0].mxu0
  %v1066 = vadd.f32 0.0, %v1065
  %v1067 = vpop.f32.mrb[0].mxu0
  %v1068 = vpop.f32.mrb[0].mxu0
  %v1069 = vadd.f32 0.0, %v1068
  %v1070 = vpop.f32.mrb[0].mxu0
  %1071 = vmatprep.mubr.bf16.mxu0 0
  %1072 = vmatmul.mubr.bf16.gmra.mrb[0].mxu0 %v907
  %v1073 = vpop.f32.mrb[0].mxu0
  %v1074 = vadd.f32 0.0, %v1073
  %v1075 = vpop.f32.mrb[0].mxu0
  %v1076 = vpop.f32.mrb[0].mxu0
  %v1077 = vadd.f32 0.0, %v1076
  %v1078 = vpop.f32.mrb[0].mxu0
  %1079 = vmatprep.mubr.bf16.mxu0 0
  %1080 = vmatmul.mubr.bf16.gmra.mrb[0].mxu0 %v908
  %v1081 = vpop.f32.mrb[0].mxu0
  %v1082 = vadd.f32 0.0, %v1081
  %v1083 = vpop.f32.mrb[0].mxu0
  %v1084 = vpop.f32.mrb[0].mxu0
  %v1085 = vadd.f32 0.0, %v1084
  %v1086 = vpop.f32.mrb[0].mxu0
  %1087 = vmatprep.mubr.bf16.mxu0 0
  %1088 = vmatmul.mubr.bf16.gmra.mrb[0].mxu0 %v909
  %v1089 = vpop.f32.mrb[0].mxu0
  %v1090 = vadd.f32 0.0, %v1089
  %v1091 = vpop.f32.mrb[0].mxu0
  %v1092 = vpop.f32.mrb[0].mxu0
  %v1093 = vadd.f32 0.0, %v1092
  %v1094 = vpop.f32.mrb[0].mxu0
  %1095 = vmatprep.mubr.bf16.mxu0 0
  %1096 = vmatmul.mubr.bf16.gmra.mrb[0].mxu0 %v910
  %v1097 = vpop.f32.mrb[0].mxu0
  %v1098 = vadd.f32 0.0, %v1097
  %v1099 = vpop.f32.mrb[0].mxu0
  %v1100 = vpop.f32.mrb[0].mxu0
  %v1101 = vadd.f32 0.0, %v1100
  %v1102 = vpop.f32.mrb[0].mxu0
  %1103 = vmatprep.mubr.bf16.mxu0 0
  %1104 = vmatmul.mubr.bf16.gmra.mrb[0].mxu0 %v911
  %v1105 = vpop.f32.mrb[0].mxu0
  %v1106 = vadd.f32 0.0, %v1105
  %v1107 = vpop.f32.mrb[0].mxu0
  %v1108 = vpop.f32.mrb[0].mxu0
  %v1109 = vadd.f32 0.0, %v1108
  %v1110 = vpop.f32.mrb[0].mxu0
  %1111 = vmatprep.mubr.bf16.mxu0 0
  %1112 = vmatmul.mubr.bf16.gmra.mrb[0].mxu0 %v912
  %v1113 = vpop.f32.mrb[0].mxu0
  %v1114 = vadd.f32 0.0, %v1113
  %v1115 = vpop.f32.mrb[0].mxu0
  %v1116 = vpop.f32.mrb[0].mxu0
  %v1117 = vadd.f32 0.0, %v1116
  %v1118 = vpop.f32.mrb[0].mxu0
  %1119 = vdwg.mxu0
  %v1120 = vadd.f32 %v770, %v1010
  %v1121 = vadd.f32 %v771, %v1013
  %v1122 = vadd.f32 %v772, %v1018
  %v1123 = vadd.f32 %v773, %v1021
  %v1124 = vadd.f32 %v774, %v1026
  %v1125 = vadd.f32 %v775, %v1029
  %v1126 = vadd.f32 %v776, %v1034
  %v1127 = vadd.f32 %v777, %v1037
  %v1128 = vadd.f32 %v778, %v1042
  %v1129 = vadd.f32 %v779, %v1045
  %v1130 = vadd.f32 %v780, %v1050
  %v1131 = vadd.f32 %v781, %v1053
  %v1132 = vadd.f32 %v782, %v1058
  %v1133 = vadd.f32 %v783, %v1061
  %v1134 = vadd.f32 %v784, %v1066
  %v1135 = vadd.f32 %v785, %v1069
  %v1136 = vadd.f32 %v786, %v1074
  %v1137 = vadd.f32 %v787, %v1077
  %v1138 = vadd.f32 %v788, %v1082
  %v1139 = vadd.f32 %v789, %v1085
  %v1140 = vadd.f32 %v790, %v1090
  %v1141 = vadd.f32 %v791, %v1093
  %v1142 = vadd.f32 %v792, %v1098
  %v1143 = vadd.f32 %v793, %v1101
  %v1144 = vadd.f32 %v794, %v1106
  %v1145 = vadd.f32 %v795, %v1109
  %v1146 = vadd.f32 %v796, %v1114
  %v1147 = vadd.f32 %v797, %v1117
  %1148 = vst [vmem:[%s3] sm:$0xff] %v1120
  %1149 = vst [vmem:[%s3 + $0x8] sm:$0xff] %v1121
  %1150 = vst [vmem:[%s3 + $0x10] sm:$0xff] %v1122
  %1151 = vst [vmem:[%s3 + $0x18] sm:$0xff] %v1123
  %1152 = vst [vmem:[%s3 + $0x20] sm:$0xff] %v1124
  %1153 = vst [vmem:[%s3 + $0x28] sm:$0xff] %v1125
  %1154 = vst [vmem:[%s3 + $0x30] sm:$0xff] %v1126
  %1155 = vst [vmem:[%s3 + $0x38] sm:$0xff] %v1127
  %1156 = vst [vmem:[%s3 + $0x40] sm:$0xff] %v1128
  %1157 = vst [vmem:[%s3 + $0x48] sm:$0xff] %v1129
  %1158 = vst [vmem:[%s3 + $0x50] sm:$0xff] %v1130
  %1159 = vst [vmem:[%s3 + $0x58] sm:$0xff] %v1131
  %1160 = vst [vmem:[%s3 + $0x60] sm:$0xff] %v1132
  %1161 = vst [vmem:[%s3 + $0x68] sm:$0xff] %v1133
  %1162 = vst [vmem:[%s3 + $0x70] sm:$0xff] %v1134
  %1163 = vst [vmem:[%s3 + $0x78] sm:$0xff] %v1135
  %1164 = vst [vmem:[%s3 + $0x80] sm:$0xff] %v1136
  %1165 = vst [vmem:[%s3 + $0x88] sm:$0xff] %v1137
  %1166 = vst [vmem:[%s3 + $0x90] sm:$0xff] %v1138
  %1167 = vst [vmem:[%s3 + $0x98] sm:$0xff] %v1139
  %1168 = vst [vmem:[%s3 + $0xa0] sm:$0xff] %v1140
  %1169 = vst [vmem:[%s3 + $0xa8] sm:$0xff] %v1141
  %1170 = vst [vmem:[%s3 + $0xb0] sm:$0xff] %v1142
  %1171 = vst [vmem:[%s3 + $0xb8] sm:$0xff] %v1143
  %1172 = vst [vmem:[%s3 + $0xc0] sm:$0xff] %v1144
  %1173 = vst [vmem:[%s3 + $0xc8] sm:$0xff] %v1145
  %1174 = vst [vmem:[%s3 + $0xd0] sm:$0xff] %v1146
  %1175 = vst [vmem:[%s3 + $0xd8] sm:$0xff] %v1147
  %v1176 = vld [vmem:[%s3] sm:$0xff]
  %v1177 = vld [vmem:[%s3 + $0x8] sm:$0xff]
  %v1178 = vld [vmem:[%s3 + $0x10] sm:$0xff]
  %v1179 = vld [vmem:[%s3 + $0x18] sm:$0xff]
  %v1180 = vld [vmem:[%s3 + $0x20] sm:$0xff]
  %v1181 = vld [vmem:[%s3 + $0x28] sm:$0xff]
  %v1182 = vld [vmem:[%s3 + $0x30] sm:$0xff]
  %v1183 = vld [vmem:[%s3 + $0x38] sm:$0xff]
  %v1184 = vld [vmem:[%s3 + $0x40] sm:$0xff]
  %v1185 = vld [vmem:[%s3 + $0x48] sm:$0xff]
  %v1186 = vld [vmem:[%s3 + $0x50] sm:$0xff]
  %v1187 = vld [vmem:[%s3 + $0x58] sm:$0xff]
  %v1188 = vld [vmem:[%s3 + $0x60] sm:$0xff]
  %v1189 = vld [vmem:[%s3 + $0x68] sm:$0xff]
  %v1190 = vld [vmem:[%s3 + $0x70] sm:$0xff]
  %v1191 = vld [vmem:[%s3 + $0x78] sm:$0xff]
  %v1192 = vld [vmem:[%s3 + $0x80] sm:$0xff]
  %v1193 = vld [vmem:[%s3 + $0x88] sm:$0xff]
  %v1194 = vld [vmem:[%s3 + $0x90] sm:$0xff]
  %v1195 = vld [vmem:[%s3 + $0x98] sm:$0xff]
  %v1196 = vld [vmem:[%s3 + $0xa0] sm:$0xff]
  %v1197 = vld [vmem:[%s3 + $0xa8] sm:$0xff]
  %v1198 = vld [vmem:[%s3 + $0xb0] sm:$0xff]
  %v1199 = vld [vmem:[%s3 + $0xb8] sm:$0xff]
  %v1200 = vld [vmem:[%s3 + $0xc0] sm:$0xff]
  %v1201 = vld [vmem:[%s3 + $0xc8] sm:$0xff]
  %v1202 = vld [vmem:[%s3 + $0xd0] sm:$0xff]
  %v1203 = vld [vmem:[%s3 + $0xd8] sm:$0xff]
  %v1204 = vld [vmem:[%s0 + $0xc] sm:$0xf]
  %v1205 = vld [vmem:[%s0 + $0x10] sm:$0xf]
  %v1206 = vld [vmem:[%s0 + $0x14] sm:$0xf]
  %v1207 = vld [vmem:[%s0 + $0x18] sm:$0xf]
  %v1208 = vld [vmem:[%s0 + $0x1c] sm:$0xf]
  %v1209 = vld [vmem:[%s0 + $0x20] sm:$0xf]
  %v1210 = vld [vmem:[%s0 + $0x24] sm:$0xf]
  %v1211 = vld [vmem:[%s0 + $0x28] sm:$0xf]
  %v1212 = vld [vmem:[%s0 + $0x2c] sm:$0xf]
  %v1213 = vld [vmem:[%s0 + $0x30] sm:$0xf]
  %v1214 = vld [vmem:[%s0 + $0x34] sm:$0xf]
  %v1215 = vld [vmem:[%s0 + $0x38] sm:$0xf]
  %v1216 = vld [vmem:[%s0 + $0x3c] sm:$0xf]
  %v1217 = vld [vmem:[%s0 + $0x40] sm:$0xf]
  %v1218 = vld [vmem:[%s0 + $0x44] sm:$0xf]
  %v1219 = vld [vmem:[%s0 + $0x48] sm:$0xf]
  %v1220 = vld [vmem:[%s0 + $0x4c] sm:$0xf]
  %v1221 = vld [vmem:[%s0 + $0x50] sm:$0xf]
  %v1222 = vld [vmem:[%s0 + $0x54] sm:$0xf]
  %v1223 = vld [vmem:[%s0 + $0x58] sm:$0xf]
  %v1224 = vld [vmem:[%s0 + $0x5c] sm:$0xf]
  %v1225 = vld [vmem:[%s0 + $0x60] sm:$0xf]
  %v1226 = vld [vmem:[%s0 + $0x64] sm:$0xf]
  %v1227 = vld [vmem:[%s0 + $0x68] sm:$0xf]
  %v1228 = vld [vmem:[%s0 + $0x6c] sm:$0xf]
  %v1229 = vld [vmem:[%s0 + $0x70] sm:$0xf]
  %v1230 = vld [vmem:[%s0 + $0x74] sm:$0xf]
  %v1231 = vld [vmem:[%s0 + $0x78] sm:$0xf]
  %s1232 = scalar_lea.vmem %s1, 192
  %v1233 = vld [vmem:[%s1232] sm:$0xf]
  %v1234 = vld [vmem:[%s1232 + $0x4] sm:$0xf]
  %v1235 = vld [vmem:[%s1232 + $0x8] sm:$0xf]
  %v1236 = vld [vmem:[%s1232 + $0xc] sm:$0xf]
  %v1237 = vld [vmem:[%s1232 + $0x10] sm:$0xf]
  %v1238 = vld [vmem:[%s1232 + $0x14] sm:$0xf]
  %v1239 = vld [vmem:[%s1232 + $0x18] sm:$0xf]
  %v1240 = vld [vmem:[%s1232 + $0x1c] sm:$0xf]
  %v1241 = vld [vmem:[%s1232 + $0x20] sm:$0xf]
  %v1242 = vld [vmem:[%s1232 + $0x24] sm:$0xf]
  %v1243 = vld [vmem:[%s1232 + $0x28] sm:$0xf]
  %v1244 = vld [vmem:[%s1232 + $0x2c] sm:$0xf]
  %v1245 = vld [vmem:[%s1232 + $0x30] sm:$0xf]
  %v1246 = vld [vmem:[%s1232 + $0x34] sm:$0xf]
  %v1247 = vld [vmem:[%s1232 + $0x38] sm:$0xf]
  %v1248 = vld [vmem:[%s1232 + $0x3c] sm:$0xf]
  %v1277 = vunpack.c.l.b16 %v1204
  %v1278 = vunpack.c.l.b16 %v1205
  %v1279 = vunpack.c.l.b16 %v1206
  %v1280 = vunpack.c.l.b16 %v1207
  %v1281 = vunpack.c.l.b16 %v1208
  %v1282 = vunpack.c.l.b16 %v1209
  %v1283 = vunpack.c.l.b16 %v1210
  %v1284 = vunpack.c.l.b16 %v1211
  %v1285 = vunpack.c.l.b16 %v1212
  %v1286 = vunpack.c.l.b16 %v1213
  %v1287 = vunpack.c.l.b16 %v1214
  %v1288 = vunpack.c.l.b16 %v1215
  %v1289 = vunpack.c.l.b16 %v1216
  %v1290 = vunpack.c.l.b16 %v1217
  %v1291 = vunpack.c.l.b16 %v1218
  %v1292 = vunpack.c.l.b16 %v1219
  %v1293 = vunpack.c.l.b16 %v1220
  %v1294 = vunpack.c.l.b16 %v1221
  %v1295 = vunpack.c.l.b16 %v1222
  %v1296 = vunpack.c.l.b16 %v1223
  %v1297 = vunpack.c.l.b16 %v1224
  %v1298 = vunpack.c.l.b16 %v1225
  %v1299 = vunpack.c.l.b16 %v1226
  %v1300 = vunpack.c.l.b16 %v1227
  %v1301 = vunpack.c.l.b16 %v1228
  %v1302 = vunpack.c.l.b16 %v1229
  %v1303 = vunpack.c.l.b16 %v1230
  %v1304 = vunpack.c.l.b16 %v1231
  %v1305 = vpack.c.b16 %v1278, %v1277
  %v1306 = vpack.c.b16 %v1280, %v1279
  %v1307 = vpack.c.b16 %v1282, %v1281
  %v1308 = vpack.c.b16 %v1284, %v1283
  %v1309 = vpack.c.b16 %v1286, %v1285
  %v1310 = vpack.c.b16 %v1288, %v1287
  %v1311 = vpack.c.b16 %v1290, %v1289
  %v1312 = vpack.c.b16 %v1292, %v1291
  %v1313 = vpack.c.b16 %v1294, %v1293
  %v1314 = vpack.c.b16 %v1296, %v1295
  %v1315 = vpack.c.b16 %v1298, %v1297
  %v1316 = vpack.c.b16 %v1300, %v1299
  %v1317 = vpack.c.b16 %v1302, %v1301
  %v1318 = vpack.c.b16 %v1304, %v1303
  %v1349 = vunpack.c.l.b16 %v1233
  %v1350 = vunpack.c.l.b16 %v1234
  %v1351 = vunpack.c.l.b16 %v1235
  %v1352 = vunpack.c.l.b16 %v1236
  %v1353 = vunpack.c.l.b16 %v1237
  %v1354 = vunpack.c.l.b16 %v1238
  %v1355 = vunpack.c.l.b16 %v1239
  %v1356 = vunpack.c.l.b16 %v1240
  %v1357 = vunpack.c.l.b16 %v1241
  %v1358 = vunpack.c.l.b16 %v1242
  %v1359 = vunpack.c.l.b16 %v1243
  %v1360 = vunpack.c.l.b16 %v1244
  %v1361 = vunpack.c.l.b16 %v1245
  %v1362 = vunpack.c.l.b16 %v1246
  %v1363 = vunpack.c.l.b16 %v1247
  %v1364 = vunpack.c.l.b16 %v1248
  %v1365 = vpack.c.b16 %v1350, %v1349
  %v1366 = vpack.c.b16 %v1352, %v1351
  %v1367 = vpack.c.b16 %v1354, %v1353
  %v1368 = vpack.c.b16 %v1356, %v1355
  %v1369 = vpack.c.b16 %v1358, %v1357
  %v1370 = vpack.c.b16 %v1360, %v1359
  %v1371 = vpack.c.b16 %v1362, %v1361
  %v1372 = vpack.c.b16 %v1364, %v1363
  %1381 = vmatprep.subr.bf16.mxu0 0
  %1382 = vmatpush1.bf16.msra.mxu0 %v1365
  %1383 = vmatprep.subr.bf16.mxu0 0
  %1384 = vmatpush1.bf16.msra.mxu0 %v1366
  %1385 = vmatprep.subr.bf16.mxu0 0
  %1386 = vmatpush1.bf16.msra.mxu0 %v1367
  %1387 = vmatprep.subr.bf16.mxu0 0
  %1388 = vmatpush1.bf16.msra.mxu0 %v1368
  %1389 = vmatprep.subr.bf16.mxu0 0
  %1390 = vmatpush1.bf16.msra.mxu0 %v1369
  %1391 = vmatprep.subr.bf16.mxu0 0
  %1392 = vmatpush1.bf16.msra.mxu0 %v1370
  %1393 = vmatprep.subr.bf16.mxu0 0
  %1394 = vmatpush1.bf16.msra.mxu0 %v1371
  %1395 = vmatprep.subr.bf16.mxu0 0
  %1396 = vmatpush1.bf16.msra.mxu0 %v1372
  %1397 = vmatprep.subr.bf16.mxu0 0
  %1398 = vmatpush1.bf16.msra.mxu0 0
  %1399 = vmatprep.subr.bf16.mxu0 0
  %1400 = vmatpush1.bf16.msra.mxu0 0
  %1401 = vmatprep.subr.bf16.mxu0 0
  %1402 = vmatpush1.bf16.msra.mxu0 0
  %1403 = vmatprep.subr.bf16.mxu0 0
  %1404 = vmatpush1.bf16.msra.mxu0 0
  %1405 = vmatprep.subr.bf16.mxu0 0
  %1406 = vmatpush1.bf16.msra.mxu0 0
  %1407 = vmatprep.subr.bf16.mxu0 0
  %1408 = vmatpush1.bf16.msra.mxu0 0
  %1409 = vmatprep.subr.bf16.mxu0 0
  %1410 = vmatpush1.bf16.msra.mxu0 0
  %1411 = vmatprep.subr.bf16.mxu0 0
  %1412 = vmatpush1.bf16.msra.mxu0 0
  %1413 = vmatprep.mubr.bf16.mxu0 0
  %1414 = vmatmul.mubr.bf16.gmra.mrb[0].mxu0 %v1305
  %v1415 = vpop.f32.mrb[0].mxu0
  %v1416 = vadd.f32 0.0, %v1415
  %v1417 = vpop.f32.mrb[0].mxu0
  %v1418 = vpop.f32.mrb[0].mxu0
  %v1419 = vadd.f32 0.0, %v1418
  %v1420 = vpop.f32.mrb[0].mxu0
  %1421 = vmatprep.mubr.bf16.mxu0 0
  %1422 = vmatmul.mubr.bf16.gmra.mrb[0].mxu0 %v1306
  %v1423 = vpop.f32.mrb[0].mxu0
  %v1424 = vadd.f32 0.0, %v1423
  %v1425 = vpop.f32.mrb[0].mxu0
  %v1426 = vpop.f32.mrb[0].mxu0
  %v1427 = vadd.f32 0.0, %v1426
  %v1428 = vpop.f32.mrb[0].mxu0
  %1429 = vmatprep.mubr.bf16.mxu0 0
  %1430 = vmatmul.mubr.bf16.gmra.mrb[0].mxu0 %v1307
  %v1431 = vpop.f32.mrb[0].mxu0
  %v1432 = vadd.f32 0.0, %v1431
  %v1433 = vpop.f32.mrb[0].mxu0
  %v1434 = vpop.f32.mrb[0].mxu0
  %v1435 = vadd.f32 0.0, %v1434
  %v1436 = vpop.f32.mrb[0].mxu0
  %1437 = vmatprep.mubr.bf16.mxu0 0
  %1438 = vmatmul.mubr.bf16.gmra.mrb[0].mxu0 %v1308
  %v1439 = vpop.f32.mrb[0].mxu0
  %v1440 = vadd.f32 0.0, %v1439
  %v1441 = vpop.f32.mrb[0].mxu0
  %v1442 = vpop.f32.mrb[0].mxu0
  %v1443 = vadd.f32 0.0, %v1442
  %v1444 = vpop.f32.mrb[0].mxu0
  %1445 = vmatprep.mubr.bf16.mxu0 0
  %1446 = vmatmul.mubr.bf16.gmra.mrb[0].mxu0 %v1309
  %v1447 = vpop.f32.mrb[0].mxu0
  %v1448 = vadd.f32 0.0, %v1447
  %v1449 = vpop.f32.mrb[0].mxu0
  %v1450 = vpop.f32.mrb[0].mxu0
  %v1451 = vadd.f32 0.0, %v1450
  %v1452 = vpop.f32.mrb[0].mxu0
  %1453 = vmatprep.mubr.bf16.mxu0 0
  %1454 = vmatmul.mubr.bf16.gmra.mrb[0].mxu0 %v1310
  %v1455 = vpop.f32.mrb[0].mxu0
  %v1456 = vadd.f32 0.0, %v1455
  %v1457 = vpop.f32.mrb[0].mxu0
  %v1458 = vpop.f32.mrb[0].mxu0
  %v1459 = vadd.f32 0.0, %v1458
  %v1460 = vpop.f32.mrb[0].mxu0
  %1461 = vmatprep.mubr.bf16.mxu0 0
  %1462 = vmatmul.mubr.bf16.gmra.mrb[0].mxu0 %v1311
  %v1463 = vpop.f32.mrb[0].mxu0
  %v1464 = vadd.f32 0.0, %v1463
  %v1465 = vpop.f32.mrb[0].mxu0
  %v1466 = vpop.f32.mrb[0].mxu0
  %v1467 = vadd.f32 0.0, %v1466
  %v1468 = vpop.f32.mrb[0].mxu0
  %1469 = vmatprep.mubr.bf16.mxu0 0
  %1470 = vmatmul.mubr.bf16.gmra.mrb[0].mxu0 %v1312
  %v1471 = vpop.f32.mrb[0].mxu0
  %v1472 = vadd.f32 0.0, %v1471
  %v1473 = vpop.f32.mrb[0].mxu0
  %v1474 = vpop.f32.mrb[0].mxu0
  %v1475 = vadd.f32 0.0, %v1474
  %v1476 = vpop.f32.mrb[0].mxu0
  %1477 = vmatprep.mubr.bf16.mxu0 0
  %1478 = vmatmul.mubr.bf16.gmra.mrb[0].mxu0 %v1313
  %v1479 = vpop.f32.mrb[0].mxu0
  %v1480 = vadd.f32 0.0, %v1479
  %v1481 = vpop.f32.mrb[0].mxu0
  %v1482 = vpop.f32.mrb[0].mxu0
  %v1483 = vadd.f32 0.0, %v1482
  %v1484 = vpop.f32.mrb[0].mxu0
  %1485 = vmatprep.mubr.bf16.mxu0 0
  %1486 = vmatmul.mubr.bf16.gmra.mrb[0].mxu0 %v1314
  %v1487 = vpop.f32.mrb[0].mxu0
  %v1488 = vadd.f32 0.0, %v1487
  %v1489 = vpop.f32.mrb[0].mxu0
  %v1490 = vpop.f32.mrb[0].mxu0
  %v1491 = vadd.f32 0.0, %v1490
  %v1492 = vpop.f32.mrb[0].mxu0
  %1493 = vmatprep.mubr.bf16.mxu0 0
  %1494 = vmatmul.mubr.bf16.gmra.mrb[0].mxu0 %v1315
  %v1495 = vpop.f32.mrb[0].mxu0
  %v1496 = vadd.f32 0.0, %v1495
  %v1497 = vpop.f32.mrb[0].mxu0
  %v1498 = vpop.f32.mrb[0].mxu0
  %v1499 = vadd.f32 0.0, %v1498
  %v1500 = vpop.f32.mrb[0].mxu0
  %1501 = vmatprep.mubr.bf16.mxu0 0
  %1502 = vmatmul.mubr.bf16.gmra.mrb[0].mxu0 %v1316
  %v1503 = vpop.f32.mrb[0].mxu0
  %v1504 = vadd.f32 0.0, %v1503
  %v1505 = vpop.f32.mrb[0].mxu0
  %v1506 = vpop.f32.mrb[0].mxu0
  %v1507 = vadd.f32 0.0, %v1506
  %v1508 = vpop.f32.mrb[0].mxu0
  %1509 = vmatprep.mubr.bf16.mxu0 0
  %1510 = vmatmul.mubr.bf16.gmra.mrb[0].mxu0 %v1317
  %v1511 = vpop.f32.mrb[0].mxu0
  %v1512 = vadd.f32 0.0, %v1511
  %v1513 = vpop.f32.mrb[0].mxu0
  %v1514 = vpop.f32.mrb[0].mxu0
  %v1515 = vadd.f32 0.0, %v1514
  %v1516 = vpop.f32.mrb[0].mxu0
  %1517 = vmatprep.mubr.bf16.mxu0 0
  %1518 = vmatmul.mubr.bf16.gmra.mrb[0].mxu0 %v1318
  %v1519 = vpop.f32.mrb[0].mxu0
  %v1520 = vadd.f32 0.0, %v1519
  %v1521 = vpop.f32.mrb[0].mxu0
  %v1522 = vpop.f32.mrb[0].mxu0
  %v1523 = vadd.f32 0.0, %v1522
  %v1524 = vpop.f32.mrb[0].mxu0
  %1525 = vdwg.mxu0
  %v1526 = vadd.f32 %v1176, %v1416
  %v1527 = vadd.f32 %v1177, %v1419
  %v1528 = vadd.f32 %v1178, %v1424
  %v1529 = vadd.f32 %v1179, %v1427
  %v1530 = vadd.f32 %v1180, %v1432
  %v1531 = vadd.f32 %v1181, %v1435
  %v1532 = vadd.f32 %v1182, %v1440
  %v1533 = vadd.f32 %v1183, %v1443
  %v1534 = vadd.f32 %v1184, %v1448
  %v1535 = vadd.f32 %v1185, %v1451
  %v1536 = vadd.f32 %v1186, %v1456
  %v1537 = vadd.f32 %v1187, %v1459
  %v1538 = vadd.f32 %v1188, %v1464
  %v1539 = vadd.f32 %v1189, %v1467
  %v1540 = vadd.f32 %v1190, %v1472
  %v1541 = vadd.f32 %v1191, %v1475
  %v1542 = vadd.f32 %v1192, %v1480
  %v1543 = vadd.f32 %v1193, %v1483
  %v1544 = vadd.f32 %v1194, %v1488
  %v1545 = vadd.f32 %v1195, %v1491
  %v1546 = vadd.f32 %v1196, %v1496
  %v1547 = vadd.f32 %v1197, %v1499
  %v1548 = vadd.f32 %v1198, %v1504
  %v1549 = vadd.f32 %v1199, %v1507
  %v1550 = vadd.f32 %v1200, %v1512
  %v1551 = vadd.f32 %v1201, %v1515
  %v1552 = vadd.f32 %v1202, %v1520
  %v1553 = vadd.f32 %v1203, %v1523
  %1554 = vst [vmem:[%s3] sm:$0xff] %v1526
  %1555 = vst [vmem:[%s3 + $0x8] sm:$0xff] %v1527
  %1556 = vst [vmem:[%s3 + $0x10] sm:$0xff] %v1528
  %1557 = vst [vmem:[%s3 + $0x18] sm:$0xff] %v1529
  %1558 = vst [vmem:[%s3 + $0x20] sm:$0xff] %v1530
  %1559 = vst [vmem:[%s3 + $0x28] sm:$0xff] %v1531
  %1560 = vst [vmem:[%s3 + $0x30] sm:$0xff] %v1532
  %1561 = vst [vmem:[%s3 + $0x38] sm:$0xff] %v1533
  %1562 = vst [vmem:[%s3 + $0x40] sm:$0xff] %v1534
  %1563 = vst [vmem:[%s3 + $0x48] sm:$0xff] %v1535
  %1564 = vst [vmem:[%s3 + $0x50] sm:$0xff] %v1536
  %1565 = vst [vmem:[%s3 + $0x58] sm:$0xff] %v1537
  %1566 = vst [vmem:[%s3 + $0x60] sm:$0xff] %v1538
  %1567 = vst [vmem:[%s3 + $0x68] sm:$0xff] %v1539
  %1568 = vst [vmem:[%s3 + $0x70] sm:$0xff] %v1540
  %1569 = vst [vmem:[%s3 + $0x78] sm:$0xff] %v1541
  %1570 = vst [vmem:[%s3 + $0x80] sm:$0xff] %v1542
  %1571 = vst [vmem:[%s3 + $0x88] sm:$0xff] %v1543
  %1572 = vst [vmem:[%s3 + $0x90] sm:$0xff] %v1544
  %1573 = vst [vmem:[%s3 + $0x98] sm:$0xff] %v1545
  %1574 = vst [vmem:[%s3 + $0xa0] sm:$0xff] %v1546
  %1575 = vst [vmem:[%s3 + $0xa8] sm:$0xff] %v1547
  %1576 = vst [vmem:[%s3 + $0xb0] sm:$0xff] %v1548
  %1577 = vst [vmem:[%s3 + $0xb8] sm:$0xff] %v1549
  %1578 = vst [vmem:[%s3 + $0xc0] sm:$0xff] %v1550
  %1579 = vst [vmem:[%s3 + $0xc8] sm:$0xff] %v1551
  %1580 = vst [vmem:[%s3 + $0xd0] sm:$0xff] %v1552
  %1581 = vst [vmem:[%s3 + $0xd8] sm:$0xff] %v1553
  %v1582 = vld [vmem:[%s3] sm:$0xff]
  %v1583 = vld [vmem:[%s3 + $0x8] sm:$0xff]
  %v1584 = vld [vmem:[%s3 + $0x10] sm:$0xff]
  %v1585 = vld [vmem:[%s3 + $0x18] sm:$0xff]
  %v1586 = vld [vmem:[%s3 + $0x20] sm:$0xff]
  %v1587 = vld [vmem:[%s3 + $0x28] sm:$0xff]
  %v1588 = vld [vmem:[%s3 + $0x30] sm:$0xff]
  %v1589 = vld [vmem:[%s3 + $0x38] sm:$0xff]
  %v1590 = vld [vmem:[%s3 + $0x40] sm:$0xff]
  %v1591 = vld [vmem:[%s3 + $0x48] sm:$0xff]
  %v1592 = vld [vmem:[%s3 + $0x50] sm:$0xff]
  %v1593 = vld [vmem:[%s3 + $0x58] sm:$0xff]
  %v1594 = vld [vmem:[%s3 + $0x60] sm:$0xff]
  %v1595 = vld [vmem:[%s3 + $0x68] sm:$0xff]
  %v1596 = vld [vmem:[%s3 + $0x70] sm:$0xff]
  %v1597 = vld [vmem:[%s3 + $0x78] sm:$0xff]
  %v1598 = vld [vmem:[%s3 + $0x80] sm:$0xff]
  %v1599 = vld [vmem:[%s3 + $0x88] sm:$0xff]
  %v1600 = vld [vmem:[%s3 + $0x90] sm:$0xff]
  %v1601 = vld [vmem:[%s3 + $0x98] sm:$0xff]
  %v1602 = vld [vmem:[%s3 + $0xa0] sm:$0xff]
  %v1603 = vld [vmem:[%s3 + $0xa8] sm:$0xff]
  %v1604 = vld [vmem:[%s3 + $0xb0] sm:$0xff]
  %v1605 = vld [vmem:[%s3 + $0xb8] sm:$0xff]
  %v1606 = vld [vmem:[%s3 + $0xc0] sm:$0xff]
  %v1607 = vld [vmem:[%s3 + $0xc8] sm:$0xff]
  %v1608 = vld [vmem:[%s3 + $0xd0] sm:$0xff]
  %v1609 = vld [vmem:[%s3 + $0xd8] sm:$0xff]
  %v1610 = vld [vmem:[%s0 + $0x10] sm:$0xf]
  %v1611 = vld [vmem:[%s0 + $0x14] sm:$0xf]
  %v1612 = vld [vmem:[%s0 + $0x18] sm:$0xf]
  %v1613 = vld [vmem:[%s0 + $0x1c] sm:$0xf]
  %v1614 = vld [vmem:[%s0 + $0x20] sm:$0xf]
  %v1615 = vld [vmem:[%s0 + $0x24] sm:$0xf]
  %v1616 = vld [vmem:[%s0 + $0x28] sm:$0xf]
  %v1617 = vld [vmem:[%s0 + $0x2c] sm:$0xf]
  %v1618 = vld [vmem:[%s0 + $0x30] sm:$0xf]
  %v1619 = vld [vmem:[%s0 + $0x34] sm:$0xf]
  %v1620 = vld [vmem:[%s0 + $0x38] sm:$0xf]
  %v1621 = vld [vmem:[%s0 + $0x3c] sm:$0xf]
  %v1622 = vld [vmem:[%s0 + $0x40] sm:$0xf]
  %v1623 = vld [vmem:[%s0 + $0x44] sm:$0xf]
  %v1624 = vld [vmem:[%s0 + $0x48] sm:$0xf]
  %v1625 = vld [vmem:[%s0 + $0x4c] sm:$0xf]
  %v1626 = vld [vmem:[%s0 + $0x50] sm:$0xf]
  %v1627 = vld [vmem:[%s0 + $0x54] sm:$0xf]
  %v1628 = vld [vmem:[%s0 + $0x58] sm:$0xf]
  %v1629 = vld [vmem:[%s0 + $0x5c] sm:$0xf]
  %v1630 = vld [vmem:[%s0 + $0x60] sm:$0xf]
  %v1631 = vld [vmem:[%s0 + $0x64] sm:$0xf]
  %v1632 = vld [vmem:[%s0 + $0x68] sm:$0xf]
  %v1633 = vld [vmem:[%s0 + $0x6c] sm:$0xf]
  %v1634 = vld [vmem:[%s0 + $0x70] sm:$0xf]
  %v1635 = vld [vmem:[%s0 + $0x74] sm:$0xf]
  %v1636 = vld [vmem:[%s0 + $0x78] sm:$0xf]
  %v1637 = vld [vmem:[%s0 + $0x7c] sm:$0xf]
  %s1638 = scalar_lea.vmem %s1, 256
  %v1639 = vld [vmem:[%s1638] sm:$0xf]
  %v1640 = vld [vmem:[%s1638 + $0x4] sm:$0xf]
  %v1641 = vld [vmem:[%s1638 + $0x8] sm:$0xf]
  %v1642 = vld [vmem:[%s1638 + $0xc] sm:$0xf]
  %v1643 = vld [vmem:[%s1638 + $0x10] sm:$0xf]
  %v1644 = vld [vmem:[%s1638 + $0x14] sm:$0xf]
  %v1645 = vld [vmem:[%s1638 + $0x18] sm:$0xf]
  %v1646 = vld [vmem:[%s1638 + $0x1c] sm:$0xf]
  %v1647 = vld [vmem:[%s1638 + $0x20] sm:$0xf]
  %v1648 = vld [vmem:[%s1638 + $0x24] sm:$0xf]
  %v1649 = vld [vmem:[%s1638 + $0x28] sm:$0xf]
  %v1650 = vld [vmem:[%s1638 + $0x2c] sm:$0xf]
  %v1651 = vld [vmem:[%s1638 + $0x30] sm:$0xf]
  %v1652 = vld [vmem:[%s1638 + $0x34] sm:$0xf]
  %v1653 = vld [vmem:[%s1638 + $0x38] sm:$0xf]
  %v1654 = vld [vmem:[%s1638 + $0x3c] sm:$0xf]
  %v1683 = vunpack.c.l.b16 %v1610
  %v1684 = vunpack.c.l.b16 %v1611
  %v1685 = vunpack.c.l.b16 %v1612
  %v1686 = vunpack.c.l.b16 %v1613
  %v1687 = vunpack.c.l.b16 %v1614
  %v1688 = vunpack.c.l.b16 %v1615
  %v1689 = vunpack.c.l.b16 %v1616
  %v1690 = vunpack.c.l.b16 %v1617
  %v1691 = vunpack.c.l.b16 %v1618
  %v1692 = vunpack.c.l.b16 %v1619
  %v1693 = vunpack.c.l.b16 %v1620
  %v1694 = vunpack.c.l.b16 %v1621
  %v1695 = vunpack.c.l.b16 %v1622
  %v1696 = vunpack.c.l.b16 %v1623
  %v1697 = vunpack.c.l.b16 %v1624
  %v1698 = vunpack.c.l.b16 %v1625
  %v1699 = vunpack.c.l.b16 %v1626
  %v1700 = vunpack.c.l.b16 %v1627
  %v1701 = vunpack.c.l.b16 %v1628
  %v1702 = vunpack.c.l.b16 %v1629
  %v1703 = vunpack.c.l.b16 %v1630
  %v1704 = vunpack.c.l.b16 %v1631
  %v1705 = vunpack.c.l.b16 %v1632
  %v1706 = vunpack.c.l.b16 %v1633
  %v1707 = vunpack.c.l.b16 %v1634
  %v1708 = vunpack.c.l.b16 %v1635
  %v1709 = vunpack.c.l.b16 %v1636
  %v1710 = vunpack.c.l.b16 %v1637
  %v1711 = vpack.c.b16 %v1684, %v1683
  %v1712 = vpack.c.b16 %v1686, %v1685
  %v1713 = vpack.c.b16 %v1688, %v1687
  %v1714 = vpack.c.b16 %v1690, %v1689
  %v1715 = vpack.c.b16 %v1692, %v1691
  %v1716 = vpack.c.b16 %v1694, %v1693
  %v1717 = vpack.c.b16 %v1696, %v1695
  %v1718 = vpack.c.b16 %v1698, %v1697
  %v1719 = vpack.c.b16 %v1700, %v1699
  %v1720 = vpack.c.b16 %v1702, %v1701
  %v1721 = vpack.c.b16 %v1704, %v1703
  %v1722 = vpack.c.b16 %v1706, %v1705
  %v1723 = vpack.c.b16 %v1708, %v1707
  %v1724 = vpack.c.b16 %v1710, %v1709
  %v1755 = vunpack.c.l.b16 %v1639
  %v1756 = vunpack.c.l.b16 %v1640
  %v1757 = vunpack.c.l.b16 %v1641
  %v1758 = vunpack.c.l.b16 %v1642
  %v1759 = vunpack.c.l.b16 %v1643
  %v1760 = vunpack.c.l.b16 %v1644
  %v1761 = vunpack.c.l.b16 %v1645
  %v1762 = vunpack.c.l.b16 %v1646
  %v1763 = vunpack.c.l.b16 %v1647
  %v1764 = vunpack.c.l.b16 %v1648
  %v1765 = vunpack.c.l.b16 %v1649
  %v1766 = vunpack.c.l.b16 %v1650
  %v1767 = vunpack.c.l.b16 %v1651
  %v1768 = vunpack.c.l.b16 %v1652
  %v1769 = vunpack.c.l.b16 %v1653
  %v1770 = vunpack.c.l.b16 %v1654
  %v1771 = vpack.c.b16 %v1756, %v1755
  %v1772 = vpack.c.b16 %v1758, %v1757
  %v1773 = vpack.c.b16 %v1760, %v1759
  %v1774 = vpack.c.b16 %v1762, %v1761
  %v1775 = vpack.c.b16 %v1764, %v1763
  %v1776 = vpack.c.b16 %v1766, %v1765
  %v1777 = vpack.c.b16 %v1768, %v1767
  %v1778 = vpack.c.b16 %v1770, %v1769
  %1787 = vmatprep.subr.bf16.mxu0 0
  %1788 = vmatpush1.bf16.msra.mxu0 %v1771
  %1789 = vmatprep.subr.bf16.mxu0 0
  %1790 = vmatpush1.bf16.msra.mxu0 %v1772
  %1791 = vmatprep.subr.bf16.mxu0 0
  %1792 = vmatpush1.bf16.msra.mxu0 %v1773
  %1793 = vmatprep.subr.bf16.mxu0 0
  %1794 = vmatpush1.bf16.msra.mxu0 %v1774
  %1795 = vmatprep.subr.bf16.mxu0 0
  %1796 = vmatpush1.bf16.msra.mxu0 %v1775
  %1797 = vmatprep.subr.bf16.mxu0 0
  %1798 = vmatpush1.bf16.msra.mxu0 %v1776
  %1799 = vmatprep.subr.bf16.mxu0 0
  %1800 = vmatpush1.bf16.msra.mxu0 %v1777
  %1801 = vmatprep.subr.bf16.mxu0 0
  %1802 = vmatpush1.bf16.msra.mxu0 %v1778
  %1803 = vmatprep.subr.bf16.mxu0 0
  %1804 = vmatpush1.bf16.msra.mxu0 0
  %1805 = vmatprep.subr.bf16.mxu0 0
  %1806 = vmatpush1.bf16.msra.mxu0 0
  %1807 = vmatprep.subr.bf16.mxu0 0
  %1808 = vmatpush1.bf16.msra.mxu0 0
  %1809 = vmatprep.subr.bf16.mxu0 0
  %1810 = vmatpush1.bf16.msra.mxu0 0
  %1811 = vmatprep.subr.bf16.mxu0 0
  %1812 = vmatpush1.bf16.msra.mxu0 0
  %1813 = vmatprep.subr.bf16.mxu0 0
  %1814 = vmatpush1.bf16.msra.mxu0 0
  %1815 = vmatprep.subr.bf16.mxu0 0
  %1816 = vmatpush1.bf16.msra.mxu0 0
  %1817 = vmatprep.subr.bf16.mxu0 0
  %1818 = vmatpush1.bf16.msra.mxu0 0
  %1819 = vmatprep.mubr.bf16.mxu0 0
  %1820 = vmatmul.mubr.bf16.gmra.mrb[0].mxu0 %v1711
  %v1821 = vpop.f32.mrb[0].mxu0
  %v1822 = vadd.f32 0.0, %v1821
  %v1823 = vpop.f32.mrb[0].mxu0
  %v1824 = vpop.f32.mrb[0].mxu0
  %v1825 = vadd.f32 0.0, %v1824
  %v1826 = vpop.f32.mrb[0].mxu0
  %1827 = vmatprep.mubr.bf16.mxu0 0
  %1828 = vmatmul.mubr.bf16.gmra.mrb[0].mxu0 %v1712
  %v1829 = vpop.f32.mrb[0].mxu0
  %v1830 = vadd.f32 0.0, %v1829
  %v1831 = vpop.f32.mrb[0].mxu0
  %v1832 = vpop.f32.mrb[0].mxu0
  %v1833 = vadd.f32 0.0, %v1832
  %v1834 = vpop.f32.mrb[0].mxu0
  %1835 = vmatprep.mubr.bf16.mxu0 0
  %1836 = vmatmul.mubr.bf16.gmra.mrb[0].mxu0 %v1713
  %v1837 = vpop.f32.mrb[0].mxu0
  %v1838 = vadd.f32 0.0, %v1837
  %v1839 = vpop.f32.mrb[0].mxu0
  %v1840 = vpop.f32.mrb[0].mxu0
  %v1841 = vadd.f32 0.0, %v1840
  %v1842 = vpop.f32.mrb[0].mxu0
  %1843 = vmatprep.mubr.bf16.mxu0 0
  %1844 = vmatmul.mubr.bf16.gmra.mrb[0].mxu0 %v1714
  %v1845 = vpop.f32.mrb[0].mxu0
  %v1846 = vadd.f32 0.0, %v1845
  %v1847 = vpop.f32.mrb[0].mxu0
  %v1848 = vpop.f32.mrb[0].mxu0
  %v1849 = vadd.f32 0.0, %v1848
  %v1850 = vpop.f32.mrb[0].mxu0
  %1851 = vmatprep.mubr.bf16.mxu0 0
  %1852 = vmatmul.mubr.bf16.gmra.mrb[0].mxu0 %v1715
  %v1853 = vpop.f32.mrb[0].mxu0
  %v1854 = vadd.f32 0.0, %v1853
  %v1855 = vpop.f32.mrb[0].mxu0
  %v1856 = vpop.f32.mrb[0].mxu0
  %v1857 = vadd.f32 0.0, %v1856
  %v1858 = vpop.f32.mrb[0].mxu0
  %1859 = vmatprep.mubr.bf16.mxu0 0
  %1860 = vmatmul.mubr.bf16.gmra.mrb[0].mxu0 %v1716
  %v1861 = vpop.f32.mrb[0].mxu0
  %v1862 = vadd.f32 0.0, %v1861
  %v1863 = vpop.f32.mrb[0].mxu0
  %v1864 = vpop.f32.mrb[0].mxu0
  %v1865 = vadd.f32 0.0, %v1864
  %v1866 = vpop.f32.mrb[0].mxu0
  %1867 = vmatprep.mubr.bf16.mxu0 0
  %1868 = vmatmul.mubr.bf16.gmra.mrb[0].mxu0 %v1717
  %v1869 = vpop.f32.mrb[0].mxu0
  %v1870 = vadd.f32 0.0, %v1869
  %v1871 = vpop.f32.mrb[0].mxu0
  %v1872 = vpop.f32.mrb[0].mxu0
  %v1873 = vadd.f32 0.0, %v1872
  %v1874 = vpop.f32.mrb[0].mxu0
  %1875 = vmatprep.mubr.bf16.mxu0 0
  %1876 = vmatmul.mubr.bf16.gmra.mrb[0].mxu0 %v1718
  %v1877 = vpop.f32.mrb[0].mxu0
  %v1878 = vadd.f32 0.0, %v1877
  %v1879 = vpop.f32.mrb[0].mxu0
  %v1880 = vpop.f32.mrb[0].mxu0
  %v1881 = vadd.f32 0.0, %v1880
  %v1882 = vpop.f32.mrb[0].mxu0
  %1883 = vmatprep.mubr.bf16.mxu0 0
  %1884 = vmatmul.mubr.bf16.gmra.mrb[0].mxu0 %v1719
  %v1885 = vpop.f32.mrb[0].mxu0
  %v1886 = vadd.f32 0.0, %v1885
  %v1887 = vpop.f32.mrb[0].mxu0
  %v1888 = vpop.f32.mrb[0].mxu0
  %v1889 = vadd.f32 0.0, %v1888
  %v1890 = vpop.f32.mrb[0].mxu0
  %1891 = vmatprep.mubr.bf16.mxu0 0
  %1892 = vmatmul.mubr.bf16.gmra.mrb[0].mxu0 %v1720
  %v1893 = vpop.f32.mrb[0].mxu0
  %v1894 = vadd.f32 0.0, %v1893
  %v1895 = vpop.f32.mrb[0].mxu0
  %v1896 = vpop.f32.mrb[0].mxu0
  %v1897 = vadd.f32 0.0, %v1896
  %v1898 = vpop.f32.mrb[0].mxu0
  %1899 = vmatprep.mubr.bf16.mxu0 0
  %1900 = vmatmul.mubr.bf16.gmra.mrb[0].mxu0 %v1721
  %v1901 = vpop.f32.mrb[0].mxu0
  %v1902 = vadd.f32 0.0, %v1901
  %v1903 = vpop.f32.mrb[0].mxu0
  %v1904 = vpop.f32.mrb[0].mxu0
  %v1905 = vadd.f32 0.0, %v1904
  %v1906 = vpop.f32.mrb[0].mxu0
  %1907 = vmatprep.mubr.bf16.mxu0 0
  %1908 = vmatmul.mubr.bf16.gmra.mrb[0].mxu0 %v1722
  %v1909 = vpop.f32.mrb[0].mxu0
  %v1910 = vadd.f32 0.0, %v1909
  %v1911 = vpop.f32.mrb[0].mxu0
  %v1912 = vpop.f32.mrb[0].mxu0
  %v1913 = vadd.f32 0.0, %v1912
  %v1914 = vpop.f32.mrb[0].mxu0
  %1915 = vmatprep.mubr.bf16.mxu0 0
  %1916 = vmatmul.mubr.bf16.gmra.mrb[0].mxu0 %v1723
  %v1917 = vpop.f32.mrb[0].mxu0
  %v1918 = vadd.f32 0.0, %v1917
  %v1919 = vpop.f32.mrb[0].mxu0
  %v1920 = vpop.f32.mrb[0].mxu0
  %v1921 = vadd.f32 0.0, %v1920
  %v1922 = vpop.f32.mrb[0].mxu0
  %1923 = vmatprep.mubr.bf16.mxu0 0
  %1924 = vmatmul.mubr.bf16.gmra.mrb[0].mxu0 %v1724
  %v1925 = vpop.f32.mrb[0].mxu0
  %v1926 = vadd.f32 0.0, %v1925
  %v1927 = vpop.f32.mrb[0].mxu0
  %v1928 = vpop.f32.mrb[0].mxu0
  %v1929 = vadd.f32 0.0, %v1928
  %v1930 = vpop.f32.mrb[0].mxu0
  %1931 = vdwg.mxu0
  %v1932 = vadd.f32 %v1582, %v1822
  %v1933 = vadd.f32 %v1583, %v1825
  %v1934 = vadd.f32 %v1584, %v1830
  %v1935 = vadd.f32 %v1585, %v1833
  %v1936 = vadd.f32 %v1586, %v1838
  %v1937 = vadd.f32 %v1587, %v1841
  %v1938 = vadd.f32 %v1588, %v1846
  %v1939 = vadd.f32 %v1589, %v1849
  %v1940 = vadd.f32 %v1590, %v1854
  %v1941 = vadd.f32 %v1591, %v1857
  %v1942 = vadd.f32 %v1592, %v1862
  %v1943 = vadd.f32 %v1593, %v1865
  %v1944 = vadd.f32 %v1594, %v1870
  %v1945 = vadd.f32 %v1595, %v1873
  %v1946 = vadd.f32 %v1596, %v1878
  %v1947 = vadd.f32 %v1597, %v1881
  %v1948 = vadd.f32 %v1598, %v1886
  %v1949 = vadd.f32 %v1599, %v1889
  %v1950 = vadd.f32 %v1600, %v1894
  %v1951 = vadd.f32 %v1601, %v1897
  %v1952 = vadd.f32 %v1602, %v1902
  %v1953 = vadd.f32 %v1603, %v1905
  %v1954 = vadd.f32 %v1604, %v1910
  %v1955 = vadd.f32 %v1605, %v1913
  %v1956 = vadd.f32 %v1606, %v1918
  %v1957 = vadd.f32 %v1607, %v1921
  %v1958 = vadd.f32 %v1608, %v1926
  %v1959 = vadd.f32 %v1609, %v1929
  %1960 = vst [vmem:[%s3] sm:$0xff] %v1932
  %1961 = vst [vmem:[%s3 + $0x8] sm:$0xff] %v1933
  %1962 = vst [vmem:[%s3 + $0x10] sm:$0xff] %v1934
  %1963 = vst [vmem:[%s3 + $0x18] sm:$0xff] %v1935
  %1964 = vst [vmem:[%s3 + $0x20] sm:$0xff] %v1936
  %1965 = vst [vmem:[%s3 + $0x28] sm:$0xff] %v1937
  %1966 = vst [vmem:[%s3 + $0x30] sm:$0xff] %v1938
  %1967 = vst [vmem:[%s3 + $0x38] sm:$0xff] %v1939
  %1968 = vst [vmem:[%s3 + $0x40] sm:$0xff] %v1940
  %1969 = vst [vmem:[%s3 + $0x48] sm:$0xff] %v1941
  %1970 = vst [vmem:[%s3 + $0x50] sm:$0xff] %v1942
  %1971 = vst [vmem:[%s3 + $0x58] sm:$0xff] %v1943
  %1972 = vst [vmem:[%s3 + $0x60] sm:$0xff] %v1944
  %1973 = vst [vmem:[%s3 + $0x68] sm:$0xff] %v1945
  %1974 = vst [vmem:[%s3 + $0x70] sm:$0xff] %v1946
  %1975 = vst [vmem:[%s3 + $0x78] sm:$0xff] %v1947
  %1976 = vst [vmem:[%s3 + $0x80] sm:$0xff] %v1948
  %1977 = vst [vmem:[%s3 + $0x88] sm:$0xff] %v1949
  %1978 = vst [vmem:[%s3 + $0x90] sm:$0xff] %v1950
  %1979 = vst [vmem:[%s3 + $0x98] sm:$0xff] %v1951
  %1980 = vst [vmem:[%s3 + $0xa0] sm:$0xff] %v1952
  %1981 = vst [vmem:[%s3 + $0xa8] sm:$0xff] %v1953
  %1982 = vst [vmem:[%s3 + $0xb0] sm:$0xff] %v1954
  %1983 = vst [vmem:[%s3 + $0xb8] sm:$0xff] %v1955
  %1984 = vst [vmem:[%s3 + $0xc0] sm:$0xff] %v1956
  %1985 = vst [vmem:[%s3 + $0xc8] sm:$0xff] %v1957
  %1986 = vst [vmem:[%s3 + $0xd0] sm:$0xff] %v1958
  %1987 = vst [vmem:[%s3 + $0xd8] sm:$0xff] %v1959
  %v1988 = vld [vmem:[%s3] sm:$0xff]
  %v1989 = vld [vmem:[%s3 + $0x8] sm:$0xff]
  %v1990 = vld [vmem:[%s3 + $0x10] sm:$0xff]
  %v1991 = vld [vmem:[%s3 + $0x18] sm:$0xff]
  %v1992 = vld [vmem:[%s3 + $0x20] sm:$0xff]
  %v1993 = vld [vmem:[%s3 + $0x28] sm:$0xff]
  %v1994 = vld [vmem:[%s3 + $0x30] sm:$0xff]
  %v1995 = vld [vmem:[%s3 + $0x38] sm:$0xff]
  %v1996 = vld [vmem:[%s3 + $0x40] sm:$0xff]
  %v1997 = vld [vmem:[%s3 + $0x48] sm:$0xff]
  %v1998 = vld [vmem:[%s3 + $0x50] sm:$0xff]
  %v1999 = vld [vmem:[%s3 + $0x58] sm:$0xff]
  %v2000 = vld [vmem:[%s3 + $0x60] sm:$0xff]
  %v2001 = vld [vmem:[%s3 + $0x68] sm:$0xff]
  %v2002 = vld [vmem:[%s3 + $0x70] sm:$0xff]
  %v2003 = vld [vmem:[%s3 + $0x78] sm:$0xff]
  %v2004 = vld [vmem:[%s3 + $0x80] sm:$0xff]
  %v2005 = vld [vmem:[%s3 + $0x88] sm:$0xff]
  %v2006 = vld [vmem:[%s3 + $0x90] sm:$0xff]
  %v2007 = vld [vmem:[%s3 + $0x98] sm:$0xff]
  %v2008 = vld [vmem:[%s3 + $0xa0] sm:$0xff]
  %v2009 = vld [vmem:[%s3 + $0xa8] sm:$0xff]
  %v2010 = vld [vmem:[%s3 + $0xb0] sm:$0xff]
  %v2011 = vld [vmem:[%s3 + $0xb8] sm:$0xff]
  %v2012 = vld [vmem:[%s3 + $0xc0] sm:$0xff]
  %v2013 = vld [vmem:[%s3 + $0xc8] sm:$0xff]
  %v2014 = vld [vmem:[%s3 + $0xd0] sm:$0xff]
  %v2015 = vld [vmem:[%s3 + $0xd8] sm:$0xff]
  %v2016 = vld [vmem:[%s2] sm:$0x1]
  %v2018 = vlaneseq
  %v2019 = vshrl.u32 %v2018, 7
  %v2020 = vsub.s32 0, %v2019
  %v2021 = vrot.slane %v2016, %v2020
  %v2023 = vadd.f32 %v1988, %v2021
  %v2024 = vadd.f32 %v1989, %v2021
  %v2025 = vadd.f32 %v1990, %v2021
  %v2026 = vadd.f32 %v1991, %v2021
  %v2027 = vadd.f32 %v1992, %v2021
  %v2028 = vadd.f32 %v1993, %v2021
  %v2029 = vadd.f32 %v1994, %v2021
  %v2030 = vadd.f32 %v1995, %v2021
  %v2031 = vadd.f32 %v1996, %v2021
  %v2032 = vadd.f32 %v1997, %v2021
  %v2033 = vadd.f32 %v1998, %v2021
  %v2034 = vadd.f32 %v1999, %v2021
  %v2035 = vadd.f32 %v2000, %v2021
  %v2036 = vadd.f32 %v2001, %v2021
  %v2037 = vadd.f32 %v2002, %v2021
  %v2038 = vadd.f32 %v2003, %v2021
  %v2039 = vadd.f32 %v2004, %v2021
  %v2040 = vadd.f32 %v2005, %v2021
  %v2041 = vadd.f32 %v2006, %v2021
  %v2042 = vadd.f32 %v2007, %v2021
  %v2043 = vadd.f32 %v2008, %v2021
  %v2044 = vadd.f32 %v2009, %v2021
  %v2045 = vadd.f32 %v2010, %v2021
  %v2046 = vadd.f32 %v2011, %v2021
  %v2047 = vadd.f32 %v2012, %v2021
  %v2048 = vadd.f32 %v2013, %v2021
  %v2049 = vadd.f32 %v2014, %v2021
  %v2050 = vadd.f32 %v2015, %v2021
  %v2051 = vmax.f32 %v2023, 0.0
  %v2052 = vmax.f32 %v2024, 0.0
  %v2053 = vmax.f32 %v2025, 0.0
  %v2054 = vmax.f32 %v2026, 0.0
  %v2055 = vmax.f32 %v2027, 0.0
  %v2056 = vmax.f32 %v2028, 0.0
  %v2057 = vmax.f32 %v2029, 0.0
  %v2058 = vmax.f32 %v2030, 0.0
  %v2059 = vmax.f32 %v2031, 0.0
  %v2060 = vmax.f32 %v2032, 0.0
  %v2061 = vmax.f32 %v2033, 0.0
  %v2062 = vmax.f32 %v2034, 0.0
  %v2063 = vmax.f32 %v2035, 0.0
  %v2064 = vmax.f32 %v2036, 0.0
  %v2065 = vmax.f32 %v2037, 0.0
  %v2066 = vmax.f32 %v2038, 0.0
  %v2067 = vmax.f32 %v2039, 0.0
  %v2068 = vmax.f32 %v2040, 0.0
  %v2069 = vmax.f32 %v2041, 0.0
  %v2070 = vmax.f32 %v2042, 0.0
  %v2071 = vmax.f32 %v2043, 0.0
  %v2072 = vmax.f32 %v2044, 0.0
  %v2073 = vmax.f32 %v2045, 0.0
  %v2074 = vmax.f32 %v2046, 0.0
  %v2075 = vmax.f32 %v2047, 0.0
  %v2076 = vmax.f32 %v2048, 0.0
  %v2077 = vmax.f32 %v2049, 0.0
  %v2078 = vmax.f32 %v2050, 0.0
  %2079 = vst [vmem:[%s3] sm:$0xff] %v2051
  %2080 = vst [vmem:[%s3 + $0x8] sm:$0xff] %v2052
  %2081 = vst [vmem:[%s3 + $0x10] sm:$0xff] %v2053
  %2082 = vst [vmem:[%s3 + $0x18] sm:$0xff] %v2054
  %2083 = vst [vmem:[%s3 + $0x20] sm:$0xff] %v2055
  %2084 = vst [vmem:[%s3 + $0x28] sm:$0xff] %v2056
  %2085 = vst [vmem:[%s3 + $0x30] sm:$0xff] %v2057
  %2086 = vst [vmem:[%s3 + $0x38] sm:$0xff] %v2058
  %2087 = vst [vmem:[%s3 + $0x40] sm:$0xff] %v2059
  %2088 = vst [vmem:[%s3 + $0x48] sm:$0xff] %v2060
  %2089 = vst [vmem:[%s3 + $0x50] sm:$0xff] %v2061
  %2090 = vst [vmem:[%s3 + $0x58] sm:$0xff] %v2062
  %2091 = vst [vmem:[%s3 + $0x60] sm:$0xff] %v2063
  %2092 = vst [vmem:[%s3 + $0x68] sm:$0xff] %v2064
  %2093 = vst [vmem:[%s3 + $0x70] sm:$0xff] %v2065
  %2094 = vst [vmem:[%s3 + $0x78] sm:$0xff] %v2066
  %2095 = vst [vmem:[%s3 + $0x80] sm:$0xff] %v2067
  %2096 = vst [vmem:[%s3 + $0x88] sm:$0xff] %v2068
  %2097 = vst [vmem:[%s3 + $0x90] sm:$0xff] %v2069
  %2098 = vst [vmem:[%s3 + $0x98] sm:$0xff] %v2070
  %2099 = vst [vmem:[%s3 + $0xa0] sm:$0xff] %v2071
  %2100 = vst [vmem:[%s3 + $0xa8] sm:$0xff] %v2072
  %2101 = vst [vmem:[%s3 + $0xb0] sm:$0xff] %v2073
  %2102 = vst [vmem:[%s3 + $0xb8] sm:$0xff] %v2074
  %2103 = vst [vmem:[%s3 + $0xc0] sm:$0xff] %v2075
  %2104 = vst [vmem:[%s3 + $0xc8] sm:$0xff] %v2076
  %2105 = vst [vmem:[%s3 + $0xd0] sm:$0xff] %v2077
  %2106 = vst [vmem:[%s3 + $0xd8] sm:$0xff] %v2078
  // Predicated region
  $region14: #{slr_forward.7} parent=0 // pred_check
    _
  $region15: #{slr_forward.7} parent=0 // pred_check_branch
    %2108 = sbr.rel (0) target = $region17
  $region16: #{slr_forward.7} parent=0 // pred_region
    _
  $region17: #{slr_forward.7} parent=0 // pred_fallthru
    _
  // Predicated region
  $region18: #{slr_forward.7} parent=0 // pred_check
    _
  $region19: #{slr_forward.7} parent=0 // pred_check_branch
    %2110 = sbr.rel (0) target = $region21
  $region20: #{slr_forward.7} parent=0 // pred_region
    _
  $region21: #{slr_forward.7} parent=0 // pred_fallthru
    _

// kernel: slr_forward.10
$region0: #{slr_forward.10}
  #allocation0 [shape = 'u32[]', space=smem, size = 0x4, offset = 0x4, fixed_abs, tag = 'smem constant byte address 0x4 - core index']
  #allocation1 [shape = 'u32[144,128]{1,0:T(1,128)}', space=vmem, size = 0x12000, scoped, tag = 'internal scratch']
  #allocation2 [shape = 'f32[2,128]{1,0:T(2,128)}', space=vmem, size = 0x400, scoped, tag = 'scratch operand']
  #allocation3 [shape = 'f32[2,128]{1,0:T(2,128)}', space=vmem, size = 0x400, scoped, tag = 'scratch operand']
  %s0 = inlined_call_operand.vmem [shape: f32[5,2,1024], index: 0, kind: input, shape index: {}]
  %s1 = inlined_call_operand.vmem [shape: f32[2,128,512], index: 1, kind: input, shape index: {}]
  %s2 = inlined_call_operand.vmem [shape: f32[2,5,2,128], index: 2, kind: output, shape index: {}]
  %s3 = sld [smem:[#allocation0]]
  $region83: #{slr_forward.10} parent=0
    _
  %s5 = ssub.s32 1, %s3
  %s6 = scalar_select 0, %s5, %s3
  $region1: #{slr_forward.10} parent=0
    #allocation4 [shape = 'u8[40960]{0}', space=vmem, size = 0xa000, scoped, tag = 'input window, operand 0']
    loop: start=0, step=1, limit=4
    $region2: #{slr_forward.10} parent=1 // loop_pre_header
      _
    $region3: #{slr_forward.10} parent=1 // loop_header
      %s8 = sphi 0, %s12
      %p9 = scmp.ge.s32.totalorder %s8, 4
      %s15 = sphi 0, %s27
      %s16 = sphi 0, %s23
      %s17 = sphi 0, %s15
      %s18 = sphi 0, %s16
      %s19 = sphi 0, %s17
      %s20 = sphi 0, %s18
      %s42 = sphi 0, %s44
      %s45 = sphi 0, %s42
      %s46 = sphi 0, %s45
      %s62 = sphi 0, %s46
      %s68 = sphi 0, %s70
      %s71 = sphi 0, %s68
      %s72 = sphi 0, %s71
      %s88 = sphi 0, %s72
      %s106 = sphi 0, %s108
      %s109 = sphi 0, %s106
      %s110 = sphi 0, %s109
      %s126 = sphi 0, %s110
    $region4: #{slr_forward.10} parent=1 // loop_header_branch
      %11 = sbr.rel (%p9) target = $region8
    $region5: #{slr_forward.10} parent=1 // loop_body
      %s13 = ssub.s32 %s8, 1
      %s14 = ssub.s32 %s8, 2
      %s21 = sadd.s32 1, %s16
      %p22 = scmp.ge.s32.totalorder %s21, 1
      %s23 = scalar_select %p22, 0, %s21
      %s24 = sadd.s32 1, %s15
      %s25 = scalar_select %p22, %s24, %s15
      %p26 = scmp.ge.s32.totalorder %s25, 2
      %s27 = scalar_select %p26, 0, %s25
      %s28 = ssub.s32 1, %s15
      %s29 = smul.u32 %s28, %s16
      %s30 = ssub.s32 0, %s16
      %s31 = smul.u32 %s15, %s30
      %s32 = sadd.s32 %s29, %s31
      %s33 = ssub.s32 1, %s27
      %s34 = smul.u32 %s33, %s23
      %s35 = ssub.s32 0, %s23
      %s36 = smul.u32 %s27, %s35
      %s37 = sadd.s32 %s34, %s36
      %s38 = ssub.s32 %s32, %s37
      %s39 = ssub.s32 %s15, %s27
      %s40 = sor.u32 %s38, %s39
      %p41 = scmp.eq.s32.totalorder %s40, 0
      %s43 = sadd.s32 %s42, 1
      %s44 = scalar_select %p41, %s42, %s43
      %p47 = pneg %p41
      %p48 = scmp.eq.s32.totalorder %s8, 1
      %p49 = por %p47, %p48
      %p50 = scmp.ne.s32.totalorder %s42, %s45
      %p51 = scmp.eq.s32.totalorder %s8, 0
      %p52 = por %p50, %p51
      %p53 = scmp.ne.s32.totalorder %s42, %s45
      %p54 = scmp.eq.s32.totalorder %s13, 1
      %p55 = por %p53, %p54
      %p56 = scmp.ne.s32.totalorder %s45, %s46
      %p57 = scmp.eq.s32.totalorder %s13, 0
      %p58 = por %p56, %p57
      %p59 = scmp.ne.s32.totalorder %s45, %s46
      %p60 = scmp.eq.s32.totalorder %s14, 1
      %p61 = por %p59, %p60
      %p63 = scmp.ne.s32.totalorder %s46, %s62
      %p64 = scmp.eq.s32.totalorder %s14, 0
      %p65 = por %p63, %p64
      %s66 = ssub.s32 %s15, %s27
      %p67 = scmp.eq.s32.totalorder %s66, 0
      %s69 = sadd.s32 %s68, 1
      %s70 = scalar_select %p67, %s68, %s69
      %p73 = pneg %p67
      %p74 = scmp.eq.s32.totalorder %s8, 1
      %p75 = por %p73, %p74
      %p76 = scmp.ne.s32.totalorder %s68, %s71
      %p77 = scmp.eq.s32.totalorder %s8, 0
      %p78 = por %p76, %p77
      %p79 = scmp.ne.s32.totalorder %s68, %s71
      %p80 = scmp.eq.s32.totalorder %s13, 1
      %p81 = por %p79, %p80
      %p82 = scmp.ne.s32.totalorder %s71, %s72
      %p83 = scmp.eq.s32.totalorder %s13, 0
      %p84 = por %p82, %p83
      %p85 = scmp.ne.s32.totalorder %s71, %s72
      %p86 = scmp.eq.s32.totalorder %s14, 1
      %p87 = por %p85, %p86
      %p89 = scmp.ne.s32.totalorder %s72, %s88
      %p90 = scmp.eq.s32.totalorder %s14, 0
      %p91 = por %p89, %p90
      %s92 = ssub.s32 1, %s15
      %s93 = smul.u32 %s92, %s16
      %s94 = ssub.s32 0, %s16
      %s95 = smul.u32 %s15, %s94
      %s96 = sadd.s32 %s93, %s95
      %s97 = ssub.s32 1, %s27
      %s98 = smul.u32 %s97, %s23
      %s99 = ssub.s32 0, %s23
      %s100 = smul.u32 %s27, %s99
      %s101 = sadd.s32 %s98, %s100
      %s102 = ssub.s32 %s15, %s27
      %s103 = ssub.s32 %s96, %s101
      %s104 = sor.u32 %s102, %s103
      %p105 = scmp.eq.s32.totalorder %s104, 0
      %s107 = sadd.s32 %s106, 1
      %s108 = scalar_select %p105, %s106, %s107
      %p111 = pneg %p105
      %p112 = scmp.eq.s32.totalorder %s8, 1
      %p113 = por %p111, %p112
      %p114 = scmp.ne.s32.totalorder %s106, %s109
      %p115 = scmp.eq.s32.totalorder %s8, 0
      %p116 = por %p114, %p115
      %p117 = scmp.ne.s32.totalorder %s106, %s109
      %p118 = scmp.eq.s32.totalorder %s13, 1
      %p119 = por %p117, %p118
      %p120 = scmp.ne.s32.totalorder %s109, %s110
      %p121 = scmp.eq.s32.totalorder %s13, 0
      %p122 = por %p120, %p121
      %p123 = scmp.ne.s32.totalorder %s109, %s110
      %p124 = scmp.eq.s32.totalorder %s14, 1
      %p125 = por %p123, %p124
      %p127 = scmp.ne.s32.totalorder %s110, %s126
      %p128 = scmp.eq.s32.totalorder %s14, 0
      %p129 = por %p127, %p128
      %p130 = scmp.le.s32.totalorder 1, %s8
      %p131 = scmp.lt.s32.totalorder %s8, 3
      %p132 = pnand %p130, %p131
      %p133 = pneg %p132
      // Predicated region
      $region9: #{slr_forward.10} parent=5 // pred_check
        _
      $region10: #{slr_forward.10} parent=5 // pred_check_branch
        %135 = sbr.rel (%p132) target = $region12
      $region11: #{slr_forward.10} parent=5 // pred_region
        %s136 = ssub.s32 %s8, 1
      $region12: #{slr_forward.10} parent=5 // pred_fallthru
        _
      %p137 = scmp.lt.s32.totalorder %s8, 2
      // Predicated region
      $region13: #{slr_forward.10} parent=5 // pred_check
        %p138 = pneg %p137
      $region14: #{slr_forward.10} parent=5 // pred_check_branch
        %140 = sbr.rel (%p138) target = $region16
      $region15: #{slr_forward.10} parent=5 // pred_region
        // Predicated region
        $region17: #{slr_forward.10} parent=15 // pred_check
          %p141 = pneg %p52
        $region18: #{slr_forward.10} parent=15 // pred_check_branch
          %143 = sbr.rel (%p141) target = $region20
        $region19: #{slr_forward.10} parent=15 // pred_region
          %s144 = sand.u32 %s42, 1
          %s145 = sand.u32 %s42, 1
          %s146 = smul.addr %s145, 40
          %s147 = scalar_lea.vmem [#allocation4], %s146
          %s148 = ssub.s32 1, %s15
          %s149 = smul.u32 %s148, %s16
          %s150 = ssub.s32 0, %s16
          %s151 = smul.u32 %s15, %s150
          %s152 = sadd.s32 %s149, %s151
          %s153 = smul.u32 5, %s152
          %s154 = smul.u32 4, %s15
          %s155 = smul.addr %s153, 8
          %s156 = sadd.s32 %s154, %s155
          %s157 = smul.addr %s156, 2
          %s158 = scalar_lea.vmem %s0, %s157
          // Predicated region
          $region21: #{slr_forward.10} parent=19 // pred_check
            _
          $region22: #{slr_forward.10} parent=19 // pred_check_branch
            %160 = sbr.rel (0) target = $region24
          $region23: #{slr_forward.10} parent=19 // pred_region
            // Predicated region
            $region25: #{slr_forward.10} parent=23 // pred_check
              _
            $region26: #{slr_forward.10} parent=23 // pred_check_branch
              %162 = sbr.rel (0) target = $region28
            $region27: #{slr_forward.10} parent=23 // pred_region
              // Predicated region
              $region40: #{slr_forward.10} parent=27 // pred_check
                _
              $region41: #{slr_forward.10} parent=27 // pred_check_branch
                %185 = sbr.rel (0) target = $region43
              $region42: #{slr_forward.10} parent=27 // pred_region
                loop: start=0, step=1, limit=1
                $region44: #{slr_forward.10} parent=42 // loop_pre_header
                  _
                $region45: #{slr_forward.10} parent=42 // loop_header
                  %s187 = sphi 0, %s191
                  %p188 = scmp.ge.s32.totalorder %s187, 1
                  %s192 = sphi %s158, %s158
                  %s193 = sphi %s147, %s147
                $region46: #{slr_forward.10} parent=42 // loop_header_branch
                  %190 = sbr.rel (%p188) target = $region50
                $region47: #{slr_forward.10} parent=42 // loop_body
                  %v194 = vld [vmem:[%s192] sm:$0xff]
                  %195 = vst [vmem:[%s193] sm:$0xff] %v194
                  %v196 = vld [vmem:[%s192 + $0x10] sm:$0xff]
                  %197 = vst [vmem:[%s193 + $0x8] sm:$0xff] %v196
                  %v198 = vld [vmem:[%s192 + $0x20] sm:$0xff]
                  %199 = vst [vmem:[%s193 + $0x10] sm:$0xff] %v198
                  %v200 = vld [vmem:[%s192 + $0x30] sm:$0xff]
                  %201 = vst [vmem:[%s193 + $0x18] sm:$0xff] %v200
                  %v202 = vld [vmem:[%s192 + $0x40] sm:$0xff]
                  %203 = vst [vmem:[%s193 + $0x20] sm:$0xff] %v202
                $region48: #{slr_forward.10} parent=42 // loop_footer
                  %s191 = sadd.s32 1, %s187
                $region49: #{slr_forward.10} parent=42 // loop_footer_branch
                  %186 = sbr.rel target = $region45
                $region50: #{slr_forward.10} parent=42 // loop_exit
                  _
              $region43: #{slr_forward.10} parent=27 // pred_fallthru
                _
              // Predicated region
              $region51: #{slr_forward.10} parent=27 // pred_check
                _
              $region52: #{slr_forward.10} parent=27 // pred_check_branch
                %205 = sbr.rel target = $region54
              $region53: #{slr_forward.10} parent=27 // pred_region
                _
              $region54: #{slr_forward.10} parent=27 // pred_fallthru
                _
            $region28: #{slr_forward.10} parent=23 // pred_fallthru
              _
            // Predicated region
            $region29: #{slr_forward.10} parent=23 // pred_check
              _
            $region30: #{slr_forward.10} parent=23 // pred_check_branch
              %164 = sbr.rel target = $region32
            $region31: #{slr_forward.10} parent=23 // pred_region
              loop: start=0, step=1, limit=1
              $region33: #{slr_forward.10} parent=31 // loop_pre_header
                _
              $region34: #{slr_forward.10} parent=31 // loop_header
                %s167 = sphi 0, %s171
                %p168 = scmp.ge.s32.totalorder %s167, 1
                %s172 = sphi %s158, %s158
                %s173 = sphi %s147, %s147
              $region35: #{slr_forward.10} parent=31 // loop_header_branch
                %170 = sbr.rel (%p168) target = $region39
              $region36: #{slr_forward.10} parent=31 // loop_body
                %v174 = vld [vmem:[%s172] sm:$0xff]
                %175 = vst [vmem:[%s173] sm:$0xff] %v174
                %v176 = vld [vmem:[%s172 + $0x10] sm:$0xff]
                %177 = vst [vmem:[%s173 + $0x8] sm:$0xff] %v176
                %v178 = vld [vmem:[%s172 + $0x20] sm:$0xff]
                %179 = vst [vmem:[%s173 + $0x10] sm:$0xff] %v178
                %v180 = vld [vmem:[%s172 + $0x30] sm:$0xff]
                %181 = vst [vmem:[%s173 + $0x18] sm:$0xff] %v180
                %v182 = vld [vmem:[%s172 + $0x40] sm:$0xff]
                %183 = vst [vmem:[%s173 + $0x20] sm:$0xff] %v182
              $region37: #{slr_forward.10} parent=31 // loop_footer
                %s171 = sadd.s32 1, %s167
              $region38: #{slr_forward.10} parent=31 // loop_footer_branch
                %166 = sbr.rel target = $region34
              $region39: #{slr_forward.10} parent=31 // loop_exit
                _
            $region32: #{slr_forward.10} parent=23 // pred_fallthru
              _
          $region24: #{slr_forward.10} parent=19 // pred_fallthru
            _
          %206 = vnop
        $region20: #{slr_forward.10} parent=15 // pred_fallthru
          _
        // Predicated region
        $region55: #{slr_forward.10} parent=15 // pred_check
          %p207 = pneg %p78
        $region56: #{slr_forward.10} parent=15 // pred_check_branch
          %209 = sbr.rel (%p207) target = $region58
        $region57: #{slr_forward.10} parent=15 // pred_region
          %p210 = scmp.lt.s32.totalorder %s15, 1
          %s211 = scalar_select %p210, %s15, 1
          %s212 = smul.addr %s211, 64
          %s213 = smul.addr %s212, 8
          %s214 = scalar_lea.vmem %s1, %s213
        $region58: #{slr_forward.10} parent=15 // pred_fallthru
          _
      $region16: #{slr_forward.10} parent=5 // pred_fallthru
        _
      %p215 = scmp.le.s32.totalorder 1, %s8
      %p216 = scmp.lt.s32.totalorder %s8, 3
      %p217 = pnand %p215, %p216
      %p218 = pneg %p217
      // Predicated region
      $region59: #{slr_forward.10} parent=5 // pred_check
        _
      $region60: #{slr_forward.10} parent=5 // pred_check_branch
        %220 = sbr.rel (%p217) target = $region62
      $region61: #{slr_forward.10} parent=5 // pred_region
        %s221 = ssub.s32 %s8, 1
        %s222 = sand.u32 %s45, 1
        %s223 = sand.u32 %s45, 1
        %s224 = smul.addr %s223, 40
        %s225 = scalar_lea.vmem [#allocation4], %s224
        // Predicated region
        $region63: #{slr_forward.10} parent=61 // pred_check
          %p226 = pneg %p58
        $region64: #{slr_forward.10} parent=61 // pred_check_branch
          %228 = sbr.rel (%p226) target = $region66
        $region65: #{slr_forward.10} parent=61 // pred_region
          _
        $region66: #{slr_forward.10} parent=61 // pred_fallthru
          _
        %s229 = sand.u32 %s45, 1
        %s230 = sand.u32 %s45, 1
        %s231 = smul.addr %s230, 40
        %s232 = scalar_lea.vmem [#allocation4], %s231
        %p233 = pneg %p58
        %p234 = pneg %p55
        %p235 = scmp.lt.s32.totalorder %s17, 1
        %s236 = scalar_select %p235, %s17, 1
        %s237 = smul.addr %s236, 64
        %s238 = smul.addr %s237, 8
        %s239 = scalar_lea.vmem %s1, %s238
        %p240 = pneg %p84
        %p241 = pneg %p81
        %p242 = pneg %p122
        %p243 = pneg %p119
        %s244 = ssub.s32 1, %s17
        %s245 = smul.u32 %s244, %s18
        %s246 = ssub.s32 0, %s18
        %s247 = smul.u32 %s17, %s246
        %s248 = sadd.s32 %s245, %s247
        %s249 = smul.u32 5, %s248
        %p250 = scmp.lt.s32.totalorder %s17, 1
        %s251 = scalar_select %p250, %s17, 1
        %p252 = scmp.lt.s32.totalorder %s249, 4
        %s253 = scalar_select %p252, %s249, 4
        %s254 = smul.addr %s251, 5
        %s255 = sadd.s32 %s253, %s254
        %s256 = smul.addr %s255, 2
        %s257 = scalar_lea.vmem %s2, %s256
        %s258 = ssub.s32 1, %s17
        %s259 = smul.u32 %s258, %s18
        %s260 = ssub.s32 0, %s18
        %s261 = smul.u32 %s17, %s260
        %s262 = sadd.s32 %s259, %s261
        %s263 = smul.u32 5, %s262
        %s264 = smul.u32 4, %s17
        %p265 = scmp.lt.s32.totalorder %s17, 1
        %s266 = scalar_select %p265, %s17, 1
        %s267 = smul.addr %s266, 64
        %s268 = smul.addr %s267, 8
        %s269 = scalar_lea.vmem %s1, %s268
        %s270 = ssub.s32 1, %s17
        %s271 = smul.u32 %s270, %s18
        %s272 = ssub.s32 0, %s18
        %s273 = smul.u32 %s17, %s272
        %s274 = sadd.s32 %s271, %s273
        %s275 = smul.u32 5, %s274
        %p276 = scmp.lt.s32.totalorder %s17, 1
        %s277 = scalar_select %p276, %s17, 1
        %p278 = scmp.lt.s32.totalorder %s275, 4
        %s279 = scalar_select %p278, %s275, 4
        %s280 = smul.addr %s277, 5
        %s281 = sadd.s32 %s279, %s280
        %s282 = smul.addr %s281, 2
        %s283 = scalar_lea.vmem %s2, %s282
        %s284 = ssub.s32 1, %s17
        %s285 = smul.u32 %s284, %s18
        %s286 = ssub.s32 0, %s18
        %s287 = smul.u32 %s17, %s286
        %s288 = sadd.s32 %s285, %s287
        %s289 = smul.u32 5, %s288
        %p290 = scmp.eq.s32.totalorder %s18, 0
        // Predicated region
        $region67: #{slr_forward.10} parent=61 // pred_check
          %p291 = pneg %p290
        $region68: #{slr_forward.10} parent=61 // pred_check_branch
          %293 = sbr.rel (%p291) target = $region70
        $region69: #{slr_forward.10} parent=61 // pred_region
          %294 = vst [vmem:[#allocation2] sm:$0x3] 0.0
          %295 = vst [vmem:[#allocation3] sm:$0x3] 0.0
        $region70: #{slr_forward.10} parent=61 // pred_fallthru
          _
        %v296 = vld [vmem:[%s269] sm:$0xff]
        %v297 = vld [vmem:[%s269 + $0x8] sm:$0xff]
        %v298 = vld [vmem:[%s269 + $0x10] sm:$0xff]
        %v299 = vld [vmem:[%s269 + $0x18] sm:$0xff]
        %v300 = vld [vmem:[%s269 + $0x20] sm:$0xff]
        %v301 = vld [vmem:[%s269 + $0x28] sm:$0xff]
        %v302 = vld [vmem:[%s269 + $0x30] sm:$0xff]
        %v303 = vld [vmem:[%s269 + $0x38] sm:$0xff]
        %v304 = vld [vmem:[%s269 + $0x40] sm:$0xff]
        %v305 = vld [vmem:[%s269 + $0x48] sm:$0xff]
        %v306 = vld [vmem:[%s269 + $0x50] sm:$0xff]
        %v307 = vld [vmem:[%s269 + $0x58] sm:$0xff]
        %v308 = vld [vmem:[%s269 + $0x60] sm:$0xff]
        %v309 = vld [vmem:[%s269 + $0x68] sm:$0xff]
        %v310 = vld [vmem:[%s269 + $0x70] sm:$0xff]
        %v311 = vld [vmem:[%s269 + $0x78] sm:$0xff]
        %v312 = vld [vmem:[%s269 + $0x80] sm:$0xff]
        %v313 = vld [vmem:[%s269 + $0x88] sm:$0xff]
        %v314 = vld [vmem:[%s269 + $0x90] sm:$0xff]
        %v315 = vld [vmem:[%s269 + $0x98] sm:$0xff]
        %v316 = vld [vmem:[%s269 + $0xa0] sm:$0xff]
        %v317 = vld [vmem:[%s269 + $0xa8] sm:$0xff]
        %v318 = vld [vmem:[%s269 + $0xb0] sm:$0xff]
        %v319 = vld [vmem:[%s269 + $0xb8] sm:$0xff]
        %v320 = vld [vmem:[%s269 + $0xc0] sm:$0xff]
        %v321 = vld [vmem:[%s269 + $0xc8] sm:$0xff]
        %v322 = vld [vmem:[%s269 + $0xd0] sm:$0xff]
        %v323 = vld [vmem:[%s269 + $0xd8] sm:$0xff]
        %v324 = vld [vmem:[%s269 + $0xe0] sm:$0xff]
        %v325 = vld [vmem:[%s269 + $0xe8] sm:$0xff]
        %v326 = vld [vmem:[%s269 + $0xf0] sm:$0xff]
        %v327 = vld [vmem:[%s269 + $0xf8] sm:$0xff]
        %v328 = vld [vmem:[%s269 + $0x100] sm:$0xff]
        %v329 = vld [vmem:[%s269 + $0x108] sm:$0xff]
        %v330 = vld [vmem:[%s269 + $0x110] sm:$0xff]
        %v331 = vld [vmem:[%s269 + $0x118] sm:$0xff]
        %v332 = vld [vmem:[%s269 + $0x120] sm:$0xff]
        %v333 = vld [vmem:[%s269 + $0x128] sm:$0xff]
        %v334 = vld [vmem:[%s269 + $0x130] sm:$0xff]
        %v335 = vld [vmem:[%s269 + $0x138] sm:$0xff]
        %v336 = vld [vmem:[%s269 + $0x140] sm:$0xff]
        %v337 = vld [vmem:[%s269 + $0x148] sm:$0xff]
        %v338 = vld [vmem:[%s269 + $0x150] sm:$0xff]
        %v339 = vld [vmem:[%s269 + $0x158] sm:$0xff]
        %v340 = vld [vmem:[%s269 + $0x160] sm:$0xff]
        %v341 = vld [vmem:[%s269 + $0x168] sm:$0xff]
        %v342 = vld [vmem:[%s269 + $0x170] sm:$0xff]
        %v343 = vld [vmem:[%s269 + $0x178] sm:$0xff]
        %v344 = vld [vmem:[%s269 + $0x180] sm:$0xff]
        %v345 = vld [vmem:[%s269 + $0x188] sm:$0xff]
        %v346 = vld [vmem:[%s269 + $0x190] sm:$0xff]
        %v347 = vld [vmem:[%s269 + $0x198] sm:$0xff]
        %v348 = vld [vmem:[%s269 + $0x1a0] sm:$0xff]
        %v349 = vld [vmem:[%s269 + $0x1a8] sm:$0xff]
        %v350 = vld [vmem:[%s269 + $0x1b0] sm:$0xff]
        %v351 = vld [vmem:[%s269 + $0x1b8] sm:$0xff]
        %v352 = vld [vmem:[%s269 + $0x1c0] sm:$0xff]
        %v353 = vld [vmem:[%s269 + $0x1c8] sm:$0xff]
        %v354 = vld [vmem:[%s269 + $0x1d0] sm:$0xff]
        %v355 = vld [vmem:[%s269 + $0x1d8] sm:$0xff]
        %v356 = vld [vmem:[%s269 + $0x1e0] sm:$0xff]
        %v357 = vld [vmem:[%s269 + $0x1e8] sm:$0xff]
        %v358 = vld [vmem:[%s269 + $0x1f0] sm:$0xff]
        %v359 = vld [vmem:[%s269 + $0x1f8] sm:$0xff]
        %s360 = smul.u32 %s17, 4
        %s361 = smul.u32 %s360, 4
        %s362 = smul.addr %s361, 2
        %s363 = scalar_lea.vmem %s225, %s362 [#allocation4]
        %v364 = vld [vmem:[%s363] sm:$0xff]
        %v365 = vld [vmem:[#allocation2] sm:$0x3]
        %366 = vmatprep.subr.mxu0 %v297
        %367 = vmatpush1.msra.mxu0 %v296
        %368 = vmatprep.subr.mxu0 %v301
        %369 = vmatpush1.msra.mxu0 %v300
        %370 = vmatprep.subr.mxu0 %v305
        %371 = vmatpush1.msra.mxu0 %v304
        %372 = vmatprep.subr.mxu0 %v309
        %373 = vmatpush1.msra.mxu0 %v308
        %374 = vmatprep.subr.mxu0 %v313
        %375 = vmatpush1.msra.mxu0 %v312
        %376 = vmatprep.subr.mxu0 %v317
        %377 = vmatpush1.msra.mxu0 %v316
        %378 = vmatprep.subr.mxu0 %v321
        %379 = vmatpush1.msra.mxu0 %v320
        %380 = vmatprep.subr.mxu0 %v325
        %381 = vmatpush1.msra.mxu0 %v324
        %382 = vmatprep.subr.mxu0 %v329
        %383 = vmatpush1.msra.mxu0 %v328
        %384 = vmatprep.subr.mxu0 %v333
        %385 = vmatpush1.msra.mxu0 %v332
        %386 = vmatprep.subr.mxu0 %v337
        %387 = vmatpush1.msra.mxu0 %v336
        %388 = vmatprep.subr.mxu0 %v341
        %389 = vmatpush1.msra.mxu0 %v340
        %390 = vmatprep.subr.mxu0 %v345
        %391 = vmatpush1.msra.mxu0 %v344
        %392 = vmatprep.subr.mxu0 %v349
        %393 = vmatpush1.msra.mxu0 %v348
        %394 = vmatprep.subr.mxu0 %v353
        %395 = vmatpush1.msra.mxu0 %v352
        %396 = vmatprep.subr.mxu0 %v357
        %397 = vmatpush1.msra.mxu0 %v356
        %398 = vmatprep.subr.mxu0 0.0
        %399 = vmatpush1.msra.mxu0 0.0
        %400 = vmatprep.subr.mxu0 0.0
        %401 = vmatpush1.msra.mxu0 0.0
        %402 = vmatprep.subr.mxu0 0.0
        %403 = vmatpush1.msra.mxu0 0.0
        %404 = vmatprep.subr.mxu0 0.0
        %405 = vmatpush1.msra.mxu0 0.0
        %406 = vmatprep.subr.mxu0 0.0
        %407 = vmatpush1.msra.mxu0 0.0
        %408 = vmatprep.subr.mxu0 0.0
        %409 = vmatpush1.msra.mxu0 0.0
        %410 = vmatprep.subr.mxu0 0.0
        %411 = vmatpush1.msra.mxu0 0.0
        %412 = vmatprep.subr.mxu0 0.0
        %413 = vmatpush1.msra.mxu0 0.0
        %414 = vmatprep.subr.mxu0 0.0
        %415 = vmatpush1.msra.mxu0 0.0
        %416 = vmatprep.subr.mxu0 0.0
        %417 = vmatpush1.msra.mxu0 0.0
        %418 = vmatprep.subr.mxu0 0.0
        %419 = vmatpush1.msra.mxu0 0.0
        %420 = vmatprep.subr.mxu0 0.0
        %421 = vmatpush1.msra.mxu0 0.0
        %422 = vmatprep.subr.mxu0 0.0
        %423 = vmatpush1.msra.mxu0 0.0
        %424 = vmatprep.subr.mxu0 0.0
        %425 = vmatpush1.msra.mxu0 0.0
        %426 = vmatprep.subr.mxu0 0.0
        %427 = vmatpush1.msra.mxu0 0.0
        %428 = vmatprep.subr.mxu0 0.0
        %429 = vmatpush1.msra.mxu0 0.0
        %430 = vmatprep.mubr.f32.mxu0 0.0
        %431 = vmatmul.mubr.f32.gmra.mrb[0].mxu0 %v365
        %v432 = vpop.f32.mrb[0].mxu0
        %v433 = vadd.f32 0.0, %v432
        %v434 = vpop.f32.mrb[0].mxu0
        %v435 = vadd.f32 0.0, %v434
        %436 = vdwg.mxu0
        %437 = vmatprep.subr.mxu0 %v299
        %438 = vmatpush1.msra.mxu0 %v298
        %439 = vmatprep.subr.mxu0 %v303
        %440 = vmatpush1.msra.mxu0 %v302
        %441 = vmatprep.subr.mxu0 %v307
        %442 = vmatpush1.msra.mxu0 %v306
        %443 = vmatprep.subr.mxu0 %v311
        %444 = vmatpush1.msra.mxu0 %v310
        %445 = vmatprep.subr.mxu0 %v315
        %446 = vmatpush1.msra.mxu0 %v314
        %447 = vmatprep.subr.mxu0 %v319
        %448 = vmatpush1.msra.mxu0 %v318
        %449 = vmatprep.subr.mxu0 %v323
        %450 = vmatpush1.msra.mxu0 %v322
        %451 = vmatprep.subr.mxu0 %v327
        %452 = vmatpush1.msra.mxu0 %v326
        %453 = vmatprep.subr.mxu0 %v331
        %454 = vmatpush1.msra.mxu0 %v330
        %455 = vmatprep.subr.mxu0 %v335
        %456 = vmatpush1.msra.mxu0 %v334
        %457 = vmatprep.subr.mxu0 %v339
        %458 = vmatpush1.msra.mxu0 %v338
        %459 = vmatprep.subr.mxu0 %v343
        %460 = vmatpush1.msra.mxu0 %v342
        %461 = vmatprep.subr.mxu0 %v347
        %462 = vmatpush1.msra.mxu0 %v346
        %463 = vmatprep.subr.mxu0 %v351
        %464 = vmatpush1.msra.mxu0 %v350
        %465 = vmatprep.subr.mxu0 %v355
        %466 = vmatpush1.msra.mxu0 %v354
        %467 = vmatprep.subr.mxu0 %v359
        %468 = vmatpush1.msra.mxu0 %v358
        %469 = vmatprep.subr.mxu0 0.0
        %470 = vmatpush1.msra.mxu0 0.0
        %471 = vmatprep.subr.mxu0 0.0
        %472 = vmatpush1.msra.mxu0 0.0
        %473 = vmatprep.subr.mxu0 0.0
        %474 = vmatpush1.msra.mxu0 0.0
        %475 = vmatprep.subr.mxu0 0.0
        %476 = vmatpush1.msra.mxu0 0.0
        %477 = vmatprep.subr.mxu0 0.0
        %478 = vmatpush1.msra.mxu0 0.0
        %479 = vmatprep.subr.mxu0 0.0
        %480 = vmatpush1.msra.mxu0 0.0
        %481 = vmatprep.subr.mxu0 0.0
        %482 = vmatpush1.msra.mxu0 0.0
        %483 = vmatprep.subr.mxu0 0.0
        %484 = vmatpush1.msra.mxu0 0.0
        %485 = vmatprep.subr.mxu0 0.0
        %486 = vmatpush1.msra.mxu0 0.0
        %487 = vmatprep.subr.mxu0 0.0
        %488 = vmatpush1.msra.mxu0 0.0
        %489 = vmatprep.subr.mxu0 0.0
        %490 = vmatpush1.msra.mxu0 0.0
        %491 = vmatprep.subr.mxu0 0.0
        %492 = vmatpush1.msra.mxu0 0.0
        %493 = vmatprep.subr.mxu0 0.0
        %494 = vmatpush1.msra.mxu0 0.0
        %495 = vmatprep.subr.mxu0 0.0
        %496 = vmatpush1.msra.mxu0 0.0
        %497 = vmatprep.subr.mxu0 0.0
        %498 = vmatpush1.msra.mxu0 0.0
        %499 = vmatprep.subr.mxu0 0.0
        %500 = vmatpush1.msra.mxu0 0.0
        %501 = vmatprep.mubr.f32.mxu0 0.0
        %502 = vmatmul.mubr.f32.gmra.mrb[0].mxu0 %v365
        %v503 = vpop.f32.mrb[0].mxu0
        %v504 = vadd.f32 0.0, %v503
        %v505 = vpop.f32.mrb[0].mxu0
        %v506 = vadd.f32 0.0, %v505
        %507 = vdwg.mxu0
        %v512 = vcombine.low %v433, %v435
        %v513 = vcombine.low %v504, %v506
        %v515 = vunpack.c.l.s4 1983009808
        %v516 = vunpack.c.0.s8 %v515
        %v517 = vlaneseq
        %v518 = vshrl.u32 %v517, 7
        %v519 = vsub.s32 %v516, %v518
        %v520 = vrot.slane %v512, %v519
        %v522 = vunpack.c.l.s4 1983009808
        %v523 = vunpack.c.0.s8 %v522
        %v524 = vlaneseq
        %v525 = vshrl.u32 %v524, 7
        %v526 = vsub.s32 %v523, %v525
        %v527 = vrot.slane %v513, %v526
        %v528 = vcombine.low %v520, %v527
        %v530 = vadd.f32 %v364, %v528
        %v531 = vxor.u32 %v530, 2147483648
        %v532 = vmul.f32 %v531, 1.442695
        %v533 = vpow.pop %v532
        %v534 = vadd.f32 %v533, 1.0
        %v535 = vrcp.pop %v534
        %v536 = vmul.f32 1.0, %v535
        %v538 = vrot.slane %v530, 2
        %v540 = vxor.u32 %v538, 2147483648
        %v541 = vmul.f32 %v540, 1.442695
        %v542 = vpow.pop %v541
        %v543 = vadd.f32 %v542, 1.0
        %v544 = vrcp.pop %v543
        %v545 = vmul.f32 1.0, %v544
        %v546 = vrot.slane %v530, 4
        %v548 = vtanh.pop %v546
        %v549 = vrot.slane %v530, 6
        %v551 = vxor.u32 %v549, 2147483648
        %v552 = vmul.f32 %v551, 1.442695
        %v553 = vpow.pop %v552
        %v554 = vadd.f32 %v553, 1.0
        %v555 = vrcp.pop %v554
        %v556 = vmul.f32 1.0, %v555
        %v557 = vld [vmem:[#allocation3] sm:$0x3]
        %v558 = vmul.f32 %v545, %v557
        %v559 = vmul.f32 %v536, %v548
        %v560 = vadd.f32 %v558, %v559
        %v561 = vtanh.pop %v560
        %v562 = vmul.f32 %v556, %v561
        %563 = vst [vmem:[#allocation3] sm:$0x3] %v560
        %564 = vst [vmem:[#allocation2] sm:$0x3] %v562
        %s565 = smul.u32 %s360, 2
        %s566 = scalar_lea.vmem %s283, %s565
        %567 = vst [vmem:[%s566] sm:$0x3] %v562
        %s568 = ssub.s32 1, %s17
        %s569 = smul.u32 %s17, 3
        %s570 = sadd.s32 %s568, %s569
        %s571 = smul.u32 %s570, 4
        %s572 = smul.addr %s571, 2
        %s573 = scalar_lea.vmem %s225, %s572 [#allocation4]
        %v574 = vld [vmem:[%s573] sm:$0xff]
        %v575 = vld [vmem:[#allocation2] sm:$0x3]
        %576 = vmatprep.subr.mxu0 %v297
        %577 = vmatpush1.msra.mxu0 %v296
        %578 = vmatprep.subr.mxu0 %v301
        %579 = vmatpush1.msra.mxu0 %v300
        %580 = vmatprep.subr.mxu0 %v305
        %581 = vmatpush1.msra.mxu0 %v304
        %582 = vmatprep.subr.mxu0 %v309
        %583 = vmatpush1.msra.mxu0 %v308
        %584 = vmatprep.subr.mxu0 %v313
        %585 = vmatpush1.msra.mxu0 %v312
        %586 = vmatprep.subr.mxu0 %v317
        %587 = vmatpush1.msra.mxu0 %v316
        %588 = vmatprep.subr.mxu0 %v321
        %589 = vmatpush1.msra.mxu0 %v320
        %590 = vmatprep.subr.mxu0 %v325
        %591 = vmatpush1.msra.mxu0 %v324
        %592 = vmatprep.subr.mxu0 %v329
        %593 = vmatpush1.msra.mxu0 %v328
        %594 = vmatprep.subr.mxu0 %v333
        %595 = vmatpush1.msra.mxu0 %v332
        %596 = vmatprep.subr.mxu0 %v337
        %597 = vmatpush1.msra.mxu0 %v336
        %598 = vmatprep.subr.mxu0 %v341
        %599 = vmatpush1.msra.mxu0 %v340
        %600 = vmatprep.subr.mxu0 %v345
        %601 = vmatpush1.msra.mxu0 %v344
        %602 = vmatprep.subr.mxu0 %v349
        %603 = vmatpush1.msra.mxu0 %v348
        %604 = vmatprep.subr.mxu0 %v353
        %605 = vmatpush1.msra.mxu0 %v352
        %606 = vmatprep.subr.mxu0 %v357
        %607 = vmatpush1.msra.mxu0 %v356
        %608 = vmatprep.subr.mxu0 0.0
        %609 = vmatpush1.msra.mxu0 0.0
        %610 = vmatprep.subr.mxu0 0.0
        %611 = vmatpush1.msra.mxu0 0.0
        %612 = vmatprep.subr.mxu0 0.0
        %613 = vmatpush1.msra.mxu0 0.0
        %614 = vmatprep.subr.mxu0 0.0
        %615 = vmatpush1.msra.mxu0 0.0
        %616 = vmatprep.subr.mxu0 0.0
        %617 = vmatpush1.msra.mxu0 0.0
        %618 = vmatprep.subr.mxu0 0.0
        %619 = vmatpush1.msra.mxu0 0.0
        %620 = vmatprep.subr.mxu0 0.0
        %621 = vmatpush1.msra.mxu0 0.0
        %622 = vmatprep.subr.mxu0 0.0
        %623 = vmatpush1.msra.mxu0 0.0
        %624 = vmatprep.subr.mxu0 0.0
        %625 = vmatpush1.msra.mxu0 0.0
        %626 = vmatprep.subr.mxu0 0.0
        %627 = vmatpush1.msra.mxu0 0.0
        %628 = vmatprep.subr.mxu0 0.0
        %629 = vmatpush1.msra.mxu0 0.0
        %630 = vmatprep.subr.mxu0 0.0
        %631 = vmatpush1.msra.mxu0 0.0
        %632 = vmatprep.subr.mxu0 0.0
        %633 = vmatpush1.msra.mxu0 0.0
        %634 = vmatprep.subr.mxu0 0.0
        %635 = vmatpush1.msra.mxu0 0.0
        %636 = vmatprep.subr.mxu0 0.0
        %637 = vmatpush1.msra.mxu0 0.0
        %638 = vmatprep.subr.mxu0 0.0
        %639 = vmatpush1.msra.mxu0 0.0
        %640 = vmatprep.mubr.f32.mxu0 0.0
        %641 = vmatmul.mubr.f32.gmra.mrb[0].mxu0 %v575
        %v642 = vpop.f32.mrb[0].mxu0
        %v643 = vadd.f32 0.0, %v642
        %v644 = vpop.f32.mrb[0].mxu0
        %v645 = vadd.f32 0.0, %v644
        %646 = vdwg.mxu0
        %647 = vmatprep.subr.mxu0 %v299
        %648 = vmatpush1.msra.mxu0 %v298
        %649 = vmatprep.subr.mxu0 %v303
        %650 = vmatpush1.msra.mxu0 %v302
        %651 = vmatprep.subr.mxu0 %v307
        %652 = vmatpush1.msra.mxu0 %v306
        %653 = vmatprep.subr.mxu0 %v311
        %654 = vmatpush1.msra.mxu0 %v310
        %655 = vmatprep.subr.mxu0 %v315
        %656 = vmatpush1.msra.mxu0 %v314
        %657 = vmatprep.subr.mxu0 %v319
        %658 = vmatpush1.msra.mxu0 %v318
        %659 = vmatprep.subr.mxu0 %v323
        %660 = vmatpush1.msra.mxu0 %v322
        %661 = vmatprep.subr.mxu0 %v327
        %662 = vmatpush1.msra.mxu0 %v326
        %663 = vmatprep.subr.mxu0 %v331
        %664 = vmatpush1.msra.mxu0 %v330
        %665 = vmatprep.subr.mxu0 %v335
        %666 = vmatpush1.msra.mxu0 %v334
        %667 = vmatprep.subr.mxu0 %v339
        %668 = vmatpush1.msra.mxu0 %v338
        %669 = vmatprep.subr.mxu0 %v343
        %670 = vmatpush1.msra.mxu0 %v342
        %671 = vmatprep.subr.mxu0 %v347
        %672 = vmatpush1.msra.mxu0 %v346
        %673 = vmatprep.subr.mxu0 %v351
        %674 = vmatpush1.msra.mxu0 %v350
        %675 = vmatprep.subr.mxu0 %v355
        %676 = vmatpush1.msra.mxu0 %v354
        %677 = vmatprep.subr.mxu0 %v359
        %678 = vmatpush1.msra.mxu0 %v358
        %679 = vmatprep.subr.mxu0 0.0
        %680 = vmatpush1.msra.mxu0 0.0
        %681 = vmatprep.subr.mxu0 0.0
        %682 = vmatpush1.msra.mxu0 0.0
        %683 = vmatprep.subr.mxu0 0.0
        %684 = vmatpush1.msra.mxu0 0.0
        %685 = vmatprep.subr.mxu0 0.0
        %686 = vmatpush1.msra.mxu0 0.0
        %687 = vmatprep.subr.mxu0 0.0
        %688 = vmatpush1.msra.mxu0 0.0
        %689 = vmatprep.subr.mxu0 0.0
        %690 = vmatpush1.msra.mxu0 0.0
        %691 = vmatprep.subr.mxu0 0.0
        %692 = vmatpush1.msra.mxu0 0.0
        %693 = vmatprep.subr.mxu0 0.0
        %694 = vmatpush1.msra.mxu0 0.0
        %695 = vmatprep.subr.mxu0 0.0
        %696 = vmatpush1.msra.mxu0 0.0
        %697 = vmatprep.subr.mxu0 0.0
        %698 = vmatpush1.msra.mxu0 0.0
        %699 = vmatprep.subr.mxu0 0.0
        %700 = vmatpush1.msra.mxu0 0.0
        %701 = vmatprep.subr.mxu0 0.0
        %702 = vmatpush1.msra.mxu0 0.0
        %703 = vmatprep.subr.mxu0 0.0
        %704 = vmatpush1.msra.mxu0 0.0
        %705 = vmatprep.subr.mxu0 0.0
        %706 = vmatpush1.msra.mxu0 0.0
        %707 = vmatprep.subr.mxu0 0.0
        %708 = vmatpush1.msra.mxu0 0.0
        %709 = vmatprep.subr.mxu0 0.0
        %710 = vmatpush1.msra.mxu0 0.0
        %711 = vmatprep.mubr.f32.mxu0 0.0
        %712 = vmatmul.mubr.f32.gmra.mrb[0].mxu0 %v575
        %v713 = vpop.f32.mrb[0].mxu0
        %v714 = vadd.f32 0.0, %v713
        %v715 = vpop.f32.mrb[0].mxu0
        %v716 = vadd.f32 0.0, %v715
        %717 = vdwg.mxu0
        %v722 = vcombine.low %v643, %v645
        %v723 = vcombine.low %v714, %v716
        %v725 = vunpack.c.l.s4 1983009808
        %v726 = vunpack.c.0.s8 %v725
        %v727 = vlaneseq
        %v728 = vshrl.u32 %v727, 7
        %v729 = vsub.s32 %v726, %v728
        %v730 = vrot.slane %v722, %v729
        %v732 = vunpack.c.l.s4 1983009808
        %v733 = vunpack.c.0.s8 %v732
        %v734 = vlaneseq
        %v735 = vshrl.u32 %v734, 7
        %v736 = vsub.s32 %v733, %v735
        %v737 = vrot.slane %v723, %v736
        %v738 = vcombine.low %v730, %v737
        %v740 = vadd.f32 %v574, %v738
        %v741 = vxor.u32 %v740, 2147483648
        %v742 = vmul.f32 %v741, 1.442695
        %v743 = vpow.pop %v742
        %v744 = vadd.f32 %v743, 1.0
        %v745 = vrcp.pop %v744
        %v746 = vmul.f32 1.0, %v745
        %v748 = vrot.slane %v740, 2
        %v750 = vxor.u32 %v748, 2147483648
        %v751 = vmul.f32 %v750, 1.442695
        %v752 = vpow.pop %v751
        %v753 = vadd.f32 %v752, 1.0
        %v754 = vrcp.pop %v753
        %v755 = vmul.f32 1.0, %v754
        %v756 = vrot.slane %v740, 4
        %v758 = vtanh.pop %v756
        %v759 = vrot.slane %v740, 6
        %v761 = vxor.u32 %v759, 2147483648
        %v762 = vmul.f32 %v761, 1.442695
        %v763 = vpow.pop %v762
        %v764 = vadd.f32 %v763, 1.0
        %v765 = vrcp.pop %v764
        %v766 = vmul.f32 1.0, %v765
        %v767 = vld [vmem:[#allocation3] sm:$0x3]
        %v768 = vmul.f32 %v755, %v767
        %v769 = vmul.f32 %v746, %v758
        %v770 = vadd.f32 %v768, %v769
        %v771 = vtanh.pop %v770
        %v772 = vmul.f32 %v766, %v771
        %773 = vst [vmem:[#allocation3] sm:$0x3] %v770
        %774 = vst [vmem:[#allocation2] sm:$0x3] %v772
        %s775 = smul.u32 %s570, 2
        %s776 = scalar_lea.vmem %s283, %s775
        %777 = vst [vmem:[%s776] sm:$0x3] %v772
        %s778 = smul.u32 %s568, 2
        %s779 = smul.u32 %s17, 2
        %s780 = sadd.s32 %s778, %s779
        %s781 = smul.u32 %s780, 4
        %s782 = smul.addr %s781, 2
        %s783 = scalar_lea.vmem %s225, %s782 [#allocation4]
        %v784 = vld [vmem:[%s783] sm:$0xff]
        %v785 = vld [vmem:[#allocation2] sm:$0x3]
        %786 = vmatprep.subr.mxu0 %v297
        %787 = vmatpush1.msra.mxu0 %v296
        %788 = vmatprep.subr.mxu0 %v301
        %789 = vmatpush1.msra.mxu0 %v300
        %790 = vmatprep.subr.mxu0 %v305
        %791 = vmatpush1.msra.mxu0 %v304
        %792 = vmatprep.subr.mxu0 %v309
        %793 = vmatpush1.msra.mxu0 %v308
        %794 = vmatprep.subr.mxu0 %v313
        %795 = vmatpush1.msra.mxu0 %v312
        %796 = vmatprep.subr.mxu0 %v317
        %797 = vmatpush1.msra.mxu0 %v316
        %798 = vmatprep.subr.mxu0 %v321
        %799 = vmatpush1.msra.mxu0 %v320
        %800 = vmatprep.subr.mxu0 %v325
        %801 = vmatpush1.msra.mxu0 %v324
        %802 = vmatprep.subr.mxu0 %v329
        %803 = vmatpush1.msra.mxu0 %v328
        %804 = vmatprep.subr.mxu0 %v333
        %805 = vmatpush1.msra.mxu0 %v332
        %806 = vmatprep.subr.mxu0 %v337
        %807 = vmatpush1.msra.mxu0 %v336
        %808 = vmatprep.subr.mxu0 %v341
        %809 = vmatpush1.msra.mxu0 %v340
        %810 = vmatprep.subr.mxu0 %v345
        %811 = vmatpush1.msra.mxu0 %v344
        %812 = vmatprep.subr.mxu0 %v349
        %813 = vmatpush1.msra.mxu0 %v348
        %814 = vmatprep.subr.mxu0 %v353
        %815 = vmatpush1.msra.mxu0 %v352
        %816 = vmatprep.subr.mxu0 %v357
        %817 = vmatpush1.msra.mxu0 %v356
        %818 = vmatprep.subr.mxu0 0.0
        %819 = vmatpush1.msra.mxu0 0.0
        %820 = vmatprep.subr.mxu0 0.0
        %821 = vmatpush1.msra.mxu0 0.0
        %822 = vmatprep.subr.mxu0 0.0
        %823 = vmatpush1.msra.mxu0 0.0
        %824 = vmatprep.subr.mxu0 0.0
        %825 = vmatpush1.msra.mxu0 0.0
        %826 = vmatprep.subr.mxu0 0.0
        %827 = vmatpush1.msra.mxu0 0.0
        %828 = vmatprep.subr.mxu0 0.0
        %829 = vmatpush1.msra.mxu0 0.0
        %830 = vmatprep.subr.mxu0 0.0
        %831 = vmatpush1.msra.mxu0 0.0
        %832 = vmatprep.subr.mxu0 0.0
        %833 = vmatpush1.msra.mxu0 0.0
        %834 = vmatprep.subr.mxu0 0.0
        %835 = vmatpush1.msra.mxu0 0.0
        %836 = vmatprep.subr.mxu0 0.0
        %837 = vmatpush1.msra.mxu0 0.0
        %838 = vmatprep.subr.mxu0 0.0
        %839 = vmatpush1.msra.mxu0 0.0
        %840 = vmatprep.subr.mxu0 0.0
        %841 = vmatpush1.msra.mxu0 0.0
        %842 = vmatprep.subr.mxu0 0.0
        %843 = vmatpush1.msra.mxu0 0.0
        %844 = vmatprep.subr.mxu0 0.0
        %845 = vmatpush1.msra.mxu0 0.0
        %846 = vmatprep.subr.mxu0 0.0
        %847 = vmatpush1.msra.mxu0 0.0
        %848 = vmatprep.subr.mxu0 0.0
        %849 = vmatpush1.msra.mxu0 0.0
        %850 = vmatprep.mubr.f32.mxu0 0.0
        %851 = vmatmul.mubr.f32.gmra.mrb[0].mxu0 %v785
        %v852 = vpop.f32.mrb[0].mxu0
        %v853 = vadd.f32 0.0, %v852
        %v854 = vpop.f32.mrb[0].mxu0
        %v855 = vadd.f32 0.0, %v854
        %856 = vdwg.mxu0
        %857 = vmatprep.subr.mxu0 %v299
        %858 = vmatpush1.msra.mxu0 %v298
        %859 = vmatprep.subr.mxu0 %v303
        %860 = vmatpush1.msra.mxu0 %v302
        %861 = vmatprep.subr.mxu0 %v307
        %862 = vmatpush1.msra.mxu0 %v306
        %863 = vmatprep.subr.mxu0 %v311
        %864 = vmatpush1.msra.mxu0 %v310
        %865 = vmatprep.subr.mxu0 %v315
        %866 = vmatpush1.msra.mxu0 %v314
        %867 = vmatprep.subr.mxu0 %v319
        %868 = vmatpush1.msra.mxu0 %v318
        %869 = vmatprep.subr.mxu0 %v323
        %870 = vmatpush1.msra.mxu0 %v322
        %871 = vmatprep.subr.mxu0 %v327
        %872 = vmatpush1.msra.mxu0 %v326
        %873 = vmatprep.subr.mxu0 %v331
        %874 = vmatpush1.msra.mxu0 %v330
        %875 = vmatprep.subr.mxu0 %v335
        %876 = vmatpush1.msra.mxu0 %v334
        %877 = vmatprep.subr.mxu0 %v339
        %878 = vmatpush1.msra.mxu0 %v338
        %879 = vmatprep.subr.mxu0 %v343
        %880 = vmatpush1.msra.mxu0 %v342
        %881 = vmatprep.subr.mxu0 %v347
        %882 = vmatpush1.msra.mxu0 %v346
        %883 = vmatprep.subr.mxu0 %v351
        %884 = vmatpush1.msra.mxu0 %v350
        %885 = vmatprep.subr.mxu0 %v355
        %886 = vmatpush1.msra.mxu0 %v354
        %887 = vmatprep.subr.mxu0 %v359
        %888 = vmatpush1.msra.mxu0 %v358
        %889 = vmatprep.subr.mxu0 0.0
        %890 = vmatpush1.msra.mxu0 0.0
        %891 = vmatprep.subr.mxu0 0.0
        %892 = vmatpush1.msra.mxu0 0.0
        %893 = vmatprep.subr.mxu0 0.0
        %894 = vmatpush1.msra.mxu0 0.0
        %895 = vmatprep.subr.mxu0 0.0
        %896 = vmatpush1.msra.mxu0 0.0
        %897 = vmatprep.subr.mxu0 0.0
        %898 = vmatpush1.msra.mxu0 0.0
        %899 = vmatprep.subr.mxu0 0.0
        %900 = vmatpush1.msra.mxu0 0.0
        %901 = vmatprep.subr.mxu0 0.0
        %902 = vmatpush1.msra.mxu0 0.0
        %903 = vmatprep.subr.mxu0 0.0
        %904 = vmatpush1.msra.mxu0 0.0
        %905 = vmatprep.subr.mxu0 0.0
        %906 = vmatpush1.msra.mxu0 0.0
        %907 = vmatprep.subr.mxu0 0.0
        %908 = vmatpush1.msra.mxu0 0.0
        %909 = vmatprep.subr.mxu0 0.0
        %910 = vmatpush1.msra.mxu0 0.0
        %911 = vmatprep.subr.mxu0 0.0
        %912 = vmatpush1.msra.mxu0 0.0
        %913 = vmatprep.subr.mxu0 0.0
        %914 = vmatpush1.msra.mxu0 0.0
        %915 = vmatprep.subr.mxu0 0.0
        %916 = vmatpush1.msra.mxu0 0.0
        %917 = vmatprep.subr.mxu0 0.0
        %918 = vmatpush1.msra.mxu0 0.0
        %919 = vmatprep.subr.mxu0 0.0
        %920 = vmatpush1.msra.mxu0 0.0
        %921 = vmatprep.mubr.f32.mxu0 0.0
        %922 = vmatmul.mubr.f32.gmra.mrb[0].mxu0 %v785
        %v923 = vpop.f32.mrb[0].mxu0
        %v924 = vadd.f32 0.0, %v923
        %v925 = vpop.f32.mrb[0].mxu0
        %v926 = vadd.f32 0.0, %v925
        %927 = vdwg.mxu0
        %v932 = vcombine.low %v853, %v855
        %v933 = vcombine.low %v924, %v926
        %v935 = vunpack.c.l.s4 1983009808
        %v936 = vunpack.c.0.s8 %v935
        %v937 = vlaneseq
        %v938 = vshrl.u32 %v937, 7
        %v939 = vsub.s32 %v936, %v938
        %v940 = vrot.slane %v932, %v939
        %v942 = vunpack.c.l.s4 1983009808
        %v943 = vunpack.c.0.s8 %v942
        %v944 = vlaneseq
        %v945 = vshrl.u32 %v944, 7
        %v946 = vsub.s32 %v943, %v945
        %v947 = vrot.slane %v933, %v946
        %v948 = vcombine.low %v940, %v947
        %v950 = vadd.f32 %v784, %v948
        %v951 = vxor.u32 %v950, 2147483648
        %v952 = vmul.f32 %v951, 1.442695
        %v953 = vpow.pop %v952
        %v954 = vadd.f32 %v953, 1.0
        %v955 = vrcp.pop %v954
        %v956 = vmul.f32 1.0, %v955
        %v958 = vrot.slane %v950, 2
        %v960 = vxor.u32 %v958, 2147483648
        %v961 = vmul.f32 %v960, 1.442695
        %v962 = vpow.pop %v961
        %v963 = vadd.f32 %v962, 1.0
        %v964 = vrcp.pop %v963
        %v965 = vmul.f32 1.0, %v964
        %v966 = vrot.slane %v950, 4
        %v968 = vtanh.pop %v966
        %v969 = vrot.slane %v950, 6
        %v971 = vxor.u32 %v969, 2147483648
        %v972 = vmul.f32 %v971, 1.442695
        %v973 = vpow.pop %v972
        %v974 = vadd.f32 %v973, 1.0
        %v975 = vrcp.pop %v974
        %v976 = vmul.f32 1.0, %v975
        %v977 = vld [vmem:[#allocation3] sm:$0x3]
        %v978 = vmul.f32 %v965, %v977
        %v979 = vmul.f32 %v956, %v968
        %v980 = vadd.f32 %v978, %v979
        %v981 = vtanh.pop %v980
        %v982 = vmul.f32 %v976, %v981
        %983 = vst [vmem:[#allocation3] sm:$0x3] %v980
        %984 = vst [vmem:[#allocation2] sm:$0x3] %v982
        %s985 = smul.u32 %s780, 2
        %s986 = scalar_lea.vmem %s283, %s985
        %987 = vst [vmem:[%s986] sm:$0x3] %v982
        %s988 = smul.u32 %s568, 3
        %s989 = sadd.s32 %s988, %s17
        %s990 = smul.u32 %s989, 4
        %s991 = smul.addr %s990, 2
        %s992 = scalar_lea.vmem %s225, %s991 [#allocation4]
        %v993 = vld [vmem:[%s992] sm:$0xff]
        %v994 = vld [vmem:[#allocation2] sm:$0x3]
        %995 = vmatprep.subr.mxu0 %v297
        %996 = vmatpush1.msra.mxu0 %v296
        %997 = vmatprep.subr.mxu0 %v301
        %998 = vmatpush1.msra.mxu0 %v300
        %999 = vmatprep.subr.mxu0 %v305
        %1000 = vmatpush1.msra.mxu0 %v304
        %1001 = vmatprep.subr.mxu0 %v309
        %1002 = vmatpush1.msra.mxu0 %v308
        %1003 = vmatprep.subr.mxu0 %v313
        %1004 = vmatpush1.msra.mxu0 %v312
        %1005 = vmatprep.subr.mxu0 %v317
        %1006 = vmatpush1.msra.mxu0 %v316
        %1007 = vmatprep.subr.mxu0 %v321
        %1008 = vmatpush1.msra.mxu0 %v320
        %1009 = vmatprep.subr.mxu0 %v325
        %1010 = vmatpush1.msra.mxu0 %v324
        %1011 = vmatprep.subr.mxu0 %v329
        %1012 = vmatpush1.msra.mxu0 %v328
        %1013 = vmatprep.subr.mxu0 %v333
        %1014 = vmatpush1.msra.mxu0 %v332
        %1015 = vmatprep.subr.mxu0 %v337
        %1016 = vmatpush1.msra.mxu0 %v336
        %1017 = vmatprep.subr.mxu0 %v341
        %1018 = vmatpush1.msra.mxu0 %v340
        %1019 = vmatprep.subr.mxu0 %v345
        %1020 = vmatpush1.msra.mxu0 %v344
        %1021 = vmatprep.subr.mxu0 %v349
        %1022 = vmatpush1.msra.mxu0 %v348
        %1023 = vmatprep.subr.mxu0 %v353
        %1024 = vmatpush1.msra.mxu0 %v352
        %1025 = vmatprep.subr.mxu0 %v357
        %1026 = vmatpush1.msra.mxu0 %v356
        %1027 = vmatprep.subr.mxu0 0.0
        %1028 = vmatpush1.msra.mxu0 0.0
        %1029 = vmatprep.subr.mxu0 0.0
        %1030 = vmatpush1.msra.mxu0 0.0
        %1031 = vmatprep.subr.mxu0 0.0
        %1032 = vmatpush1.msra.mxu0 0.0
        %1033 = vmatprep.subr.mxu0 0.0
        %1034 = vmatpush1.msra.mxu0 0.0
        %1035 = vmatprep.subr.mxu0 0.0
        %1036 = vmatpush1.msra.mxu0 0.0
        %1037 = vmatprep.subr.mxu0 0.0
        %1038 = vmatpush1.msra.mxu0 0.0
        %1039 = vmatprep.subr.mxu0 0.0
        %1040 = vmatpush1.msra.mxu0 0.0
        %1041 = vmatprep.subr.mxu0 0.0
        %1042 = vmatpush1.msra.mxu0 0.0
        %1043 = vmatprep.subr.mxu0 0.0
        %1044 = vmatpush1.msra.mxu0 0.0
        %1045 = vmatprep.subr.mxu0 0.0
        %1046 = vmatpush1.msra.mxu0 0.0
        %1047 = vmatprep.subr.mxu0 0.0
        %1048 = vmatpush1.msra.mxu0 0.0
        %1049 = vmatprep.subr.mxu0 0.0
        %1050 = vmatpush1.msra.mxu0 0.0
        %1051 = vmatprep.subr.mxu0 0.0
        %1052 = vmatpush1.msra.mxu0 0.0
        %1053 = vmatprep.subr.mxu0 0.0
        %1054 = vmatpush1.msra.mxu0 0.0
        %1055 = vmatprep.subr.mxu0 0.0
        %1056 = vmatpush1.msra.mxu0 0.0
        %1057 = vmatprep.subr.mxu0 0.0
        %1058 = vmatpush1.msra.mxu0 0.0
        %1059 = vmatprep.mubr.f32.mxu0 0.0
        %1060 = vmatmul.mubr.f32.gmra.mrb[0].mxu0 %v994
        %v1061 = vpop.f32.mrb[0].mxu0
        %v1062 = vadd.f32 0.0, %v1061
        %v1063 = vpop.f32.mrb[0].mxu0
        %v1064 = vadd.f32 0.0, %v1063
        %1065 = vdwg.mxu0
        %1066 = vmatprep.subr.mxu0 %v299
        %1067 = vmatpush1.msra.mxu0 %v298
        %1068 = vmatprep.subr.mxu0 %v303
        %1069 = vmatpush1.msra.mxu0 %v302
        %1070 = vmatprep.subr.mxu0 %v307
        %1071 = vmatpush1.msra.mxu0 %v306
        %1072 = vmatprep.subr.mxu0 %v311
        %1073 = vmatpush1.msra.mxu0 %v310
        %1074 = vmatprep.subr.mxu0 %v315
        %1075 = vmatpush1.msra.mxu0 %v314
        %1076 = vmatprep.subr.mxu0 %v319
        %1077 = vmatpush1.msra.mxu0 %v318
        %1078 = vmatprep.subr.mxu0 %v323
        %1079 = vmatpush1.msra.mxu0 %v322
        %1080 = vmatprep.subr.mxu0 %v327
        %1081 = vmatpush1.msra.mxu0 %v326
        %1082 = vmatprep.subr.mxu0 %v331
        %1083 = vmatpush1.msra.mxu0 %v330
        %1084 = vmatprep.subr.mxu0 %v335
        %1085 = vmatpush1.msra.mxu0 %v334
        %1086 = vmatprep.subr.mxu0 %v339
        %1087 = vmatpush1.msra.mxu0 %v338
        %1088 = vmatprep.subr.mxu0 %v343
        %1089 = vmatpush1.msra.mxu0 %v342
        %1090 = vmatprep.subr.mxu0 %v347
        %1091 = vmatpush1.msra.mxu0 %v346
        %1092 = vmatprep.subr.mxu0 %v351
        %1093 = vmatpush1.msra.mxu0 %v350
        %1094 = vmatprep.subr.mxu0 %v355
        %1095 = vmatpush1.msra.mxu0 %v354
        %1096 = vmatprep.subr.mxu0 %v359
        %1097 = vmatpush1.msra.mxu0 %v358
        %1098 = vmatprep.subr.mxu0 0.0
        %1099 = vmatpush1.msra.mxu0 0.0
        %1100 = vmatprep.subr.mxu0 0.0
        %1101 = vmatpush1.msra.mxu0 0.0
        %1102 = vmatprep.subr.mxu0 0.0
        %1103 = vmatpush1.msra.mxu0 0.0
        %1104 = vmatprep.subr.mxu0 0.0
        %1105 = vmatpush1.msra.mxu0 0.0
        %1106 = vmatprep.subr.mxu0 0.0
        %1107 = vmatpush1.msra.mxu0 0.0
        %1108 = vmatprep.subr.mxu0 0.0
        %1109 = vmatpush1.msra.mxu0 0.0
        %1110 = vmatprep.subr.mxu0 0.0
        %1111 = vmatpush1.msra.mxu0 0.0
        %1112 = vmatprep.subr.mxu0 0.0
        %1113 = vmatpush1.msra.mxu0 0.0
        %1114 = vmatprep.subr.mxu0 0.0
        %1115 = vmatpush1.msra.mxu0 0.0
        %1116 = vmatprep.subr.mxu0 0.0
        %1117 = vmatpush1.msra.mxu0 0.0
        %1118 = vmatprep.subr.mxu0 0.0
        %1119 = vmatpush1.msra.mxu0 0.0
        %1120 = vmatprep.subr.mxu0 0.0
        %1121 = vmatpush1.msra.mxu0 0.0
        %1122 = vmatprep.subr.mxu0 0.0
        %1123 = vmatpush1.msra.mxu0 0.0
        %1124 = vmatprep.subr.mxu0 0.0
        %1125 = vmatpush1.msra.mxu0 0.0
        %1126 = vmatprep.subr.mxu0 0.0
        %1127 = vmatpush1.msra.mxu0 0.0
        %1128 = vmatprep.subr.mxu0 0.0
        %1129 = vmatpush1.msra.mxu0 0.0
        %1130 = vmatprep.mubr.f32.mxu0 0.0
        %1131 = vmatmul.mubr.f32.gmra.mrb[0].mxu0 %v994
        %v1132 = vpop.f32.mrb[0].mxu0
        %v1133 = vadd.f32 0.0, %v1132
        %v1134 = vpop.f32.mrb[0].mxu0
        %v1135 = vadd.f32 0.0, %v1134
        %1136 = vdwg.mxu0
        %v1141 = vcombine.low %v1062, %v1064
        %v1142 = vcombine.low %v1133, %v1135
        %v1144 = vunpack.c.l.s4 1983009808
        %v1145 = vunpack.c.0.s8 %v1144
        %v1146 = vlaneseq
        %v1147 = vshrl.u32 %v1146, 7
        %v1148 = vsub.s32 %v1145, %v1147
        %v1149 = vrot.slane %v1141, %v1148
        %v1151 = vunpack.c.l.s4 1983009808
        %v1152 = vunpack.c.0.s8 %v1151
        %v1153 = vlaneseq
        %v1154 = vshrl.u32 %v1153, 7
        %v1155 = vsub.s32 %v1152, %v1154
        %v1156 = vrot.slane %v1142, %v1155
        %v1157 = vcombine.low %v1149, %v1156
        %v1159 = vadd.f32 %v993, %v1157
        %v1160 = vxor.u32 %v1159, 2147483648
        %v1161 = vmul.f32 %v1160, 1.442695
        %v1162 = vpow.pop %v1161
        %v1163 = vadd.f32 %v1162, 1.0
        %v1164 = vrcp.pop %v1163
        %v1165 = vmul.f32 1.0, %v1164
        %v1167 = vrot.slane %v1159, 2
        %v1169 = vxor.u32 %v1167, 2147483648
        %v1170 = vmul.f32 %v1169, 1.442695
        %v1171 = vpow.pop %v1170
        %v1172 = vadd.f32 %v1171, 1.0
        %v1173 = vrcp.pop %v1172
        %v1174 = vmul.f32 1.0, %v1173
        %v1175 = vrot.slane %v1159, 4
        %v1177 = vtanh.pop %v1175
        %v1178 = vrot.slane %v1159, 6
        %v1180 = vxor.u32 %v1178, 2147483648
        %v1181 = vmul.f32 %v1180, 1.442695
        %v1182 = vpow.pop %v1181
        %v1183 = vadd.f32 %v1182, 1.0
        %v1184 = vrcp.pop %v1183
        %v1185 = vmul.f32 1.0, %v1184
        %v1186 = vld [vmem:[#allocation3] sm:$0x3]
        %v1187 = vmul.f32 %v1174, %v1186
        %v1188 = vmul.f32 %v1165, %v1177
        %v1189 = vadd.f32 %v1187, %v1188
        %v1190 = vtanh.pop %v1189
        %v1191 = vmul.f32 %v1185, %v1190
        %1192 = vst [vmem:[#allocation3] sm:$0x3] %v1189
        %1193 = vst [vmem:[#allocation2] sm:$0x3] %v1191
        %s1194 = smul.u32 %s989, 2
        %s1195 = scalar_lea.vmem %s283, %s1194
        %1196 = vst [vmem:[%s1195] sm:$0x3] %v1191
        %s1197 = smul.u32 %s568, 4
        %s1198 = smul.u32 %s1197, 4
        %s1199 = smul.addr %s1198, 2
        %s1200 = scalar_lea.vmem %s225, %s1199 [#allocation4]
        %v1201 = vld [vmem:[%s1200] sm:$0xff]
        %v1202 = vld [vmem:[#allocation2] sm:$0x3]
        %1203 = vmatprep.subr.mxu0 %v297
        %1204 = vmatpush1.msra.mxu0 %v296
        %1205 = vmatprep.subr.mxu0 %v301
        %1206 = vmatpush1.msra.mxu0 %v300
        %1207 = vmatprep.subr.mxu0 %v305
        %1208 = vmatpush1.msra.mxu0 %v304
        %1209 = vmatprep.subr.mxu0 %v309
        %1210 = vmatpush1.msra.mxu0 %v308
        %1211 = vmatprep.subr.mxu0 %v313
        %1212 = vmatpush1.msra.mxu0 %v312
        %1213 = vmatprep.subr.mxu0 %v317
        %1214 = vmatpush1.msra.mxu0 %v316
        %1215 = vmatprep.subr.mxu0 %v321
        %1216 = vmatpush1.msra.mxu0 %v320
        %1217 = vmatprep.subr.mxu0 %v325
        %1218 = vmatpush1.msra.mxu0 %v324
        %1219 = vmatprep.subr.mxu0 %v329
        %1220 = vmatpush1.msra.mxu0 %v328
        %1221 = vmatprep.subr.mxu0 %v333
        %1222 = vmatpush1.msra.mxu0 %v332
        %1223 = vmatprep.subr.mxu0 %v337
        %1224 = vmatpush1.msra.mxu0 %v336
        %1225 = vmatprep.subr.mxu0 %v341
        %1226 = vmatpush1.msra.mxu0 %v340
        %1227 = vmatprep.subr.mxu0 %v345
        %1228 = vmatpush1.msra.mxu0 %v344
        %1229 = vmatprep.subr.mxu0 %v349
        %1230 = vmatpush1.msra.mxu0 %v348
        %1231 = vmatprep.subr.mxu0 %v353
        %1232 = vmatpush1.msra.mxu0 %v352
        %1233 = vmatprep.subr.mxu0 %v357
        %1234 = vmatpush1.msra.mxu0 %v356
        %1235 = vmatprep.subr.mxu0 0.0
        %1236 = vmatpush1.msra.mxu0 0.0
        %1237 = vmatprep.subr.mxu0 0.0
        %1238 = vmatpush1.msra.mxu0 0.0
        %1239 = vmatprep.subr.mxu0 0.0
        %1240 = vmatpush1.msra.mxu0 0.0
        %1241 = vmatprep.subr.mxu0 0.0
        %1242 = vmatpush1.msra.mxu0 0.0
        %1243 = vmatprep.subr.mxu0 0.0
        %1244 = vmatpush1.msra.mxu0 0.0
        %1245 = vmatprep.subr.mxu0 0.0
        %1246 = vmatpush1.msra.mxu0 0.0
        %1247 = vmatprep.subr.mxu0 0.0
        %1248 = vmatpush1.msra.mxu0 0.0
        %1249 = vmatprep.subr.mxu0 0.0
        %1250 = vmatpush1.msra.mxu0 0.0
        %1251 = vmatprep.subr.mxu0 0.0
        %1252 = vmatpush1.msra.mxu0 0.0
        %1253 = vmatprep.subr.mxu0 0.0
        %1254 = vmatpush1.msra.mxu0 0.0
        %1255 = vmatprep.subr.mxu0 0.0
        %1256 = vmatpush1.msra.mxu0 0.0
        %1257 = vmatprep.subr.mxu0 0.0
        %1258 = vmatpush1.msra.mxu0 0.0
        %1259 = vmatprep.subr.mxu0 0.0
        %1260 = vmatpush1.msra.mxu0 0.0
        %1261 = vmatprep.subr.mxu0 0.0
        %1262 = vmatpush1.msra.mxu0 0.0
        %1263 = vmatprep.subr.mxu0 0.0
        %1264 = vmatpush1.msra.mxu0 0.0
        %1265 = vmatprep.subr.mxu0 0.0
        %1266 = vmatpush1.msra.mxu0 0.0
        %1267 = vmatprep.mubr.f32.mxu0 0.0
        %1268 = vmatmul.mubr.f32.gmra.mrb[0].mxu0 %v1202
        %v1269 = vpop.f32.mrb[0].mxu0
        %v1270 = vadd.f32 0.0, %v1269
        %v1271 = vpop.f32.mrb[0].mxu0
        %v1272 = vadd.f32 0.0, %v1271
        %1273 = vdwg.mxu0
        %1274 = vmatprep.subr.mxu0 %v299
        %1275 = vmatpush1.msra.mxu0 %v298
        %1276 = vmatprep.subr.mxu0 %v303
        %1277 = vmatpush1.msra.mxu0 %v302
        %1278 = vmatprep.subr.mxu0 %v307
        %1279 = vmatpush1.msra.mxu0 %v306
        %1280 = vmatprep.subr.mxu0 %v311
        %1281 = vmatpush1.msra.mxu0 %v310
        %1282 = vmatprep.subr.mxu0 %v315
        %1283 = vmatpush1.msra.mxu0 %v314
        %1284 = vmatprep.subr.mxu0 %v319
        %1285 = vmatpush1.msra.mxu0 %v318
        %1286 = vmatprep.subr.mxu0 %v323
        %1287 = vmatpush1.msra.mxu0 %v322
        %1288 = vmatprep.subr.mxu0 %v327
        %1289 = vmatpush1.msra.mxu0 %v326
        %1290 = vmatprep.subr.mxu0 %v331
        %1291 = vmatpush1.msra.mxu0 %v330
        %1292 = vmatprep.subr.mxu0 %v335
        %1293 = vmatpush1.msra.mxu0 %v334
        %1294 = vmatprep.subr.mxu0 %v339
        %1295 = vmatpush1.msra.mxu0 %v338
        %1296 = vmatprep.subr.mxu0 %v343
        %1297 = vmatpush1.msra.mxu0 %v342
        %1298 = vmatprep.subr.mxu0 %v347
        %1299 = vmatpush1.msra.mxu0 %v346
        %1300 = vmatprep.subr.mxu0 %v351
        %1301 = vmatpush1.msra.mxu0 %v350
        %1302 = vmatprep.subr.mxu0 %v355
        %1303 = vmatpush1.msra.mxu0 %v354
        %1304 = vmatprep.subr.mxu0 %v359
        %1305 = vmatpush1.msra.mxu0 %v358
        %1306 = vmatprep.subr.mxu0 0.0
        %1307 = vmatpush1.msra.mxu0 0.0
        %1308 = vmatprep.subr.mxu0 0.0
        %1309 = vmatpush1.msra.mxu0 0.0
        %1310 = vmatprep.subr.mxu0 0.0
        %1311 = vmatpush1.msra.mxu0 0.0
        %1312 = vmatprep.subr.mxu0 0.0
        %1313 = vmatpush1.msra.mxu0 0.0
        %1314 = vmatprep.subr.mxu0 0.0
        %1315 = vmatpush1.msra.mxu0 0.0
        %1316 = vmatprep.subr.mxu0 0.0
        %1317 = vmatpush1.msra.mxu0 0.0
        %1318 = vmatprep.subr.mxu0 0.0
        %1319 = vmatpush1.msra.mxu0 0.0
        %1320 = vmatprep.subr.mxu0 0.0
        %1321 = vmatpush1.msra.mxu0 0.0
        %1322 = vmatprep.subr.mxu0 0.0
        %1323 = vmatpush1.msra.mxu0 0.0
        %1324 = vmatprep.subr.mxu0 0.0
        %1325 = vmatpush1.msra.mxu0 0.0
        %1326 = vmatprep.subr.mxu0 0.0
        %1327 = vmatpush1.msra.mxu0 0.0
        %1328 = vmatprep.subr.mxu0 0.0
        %1329 = vmatpush1.msra.mxu0 0.0
        %1330 = vmatprep.subr.mxu0 0.0
        %1331 = vmatpush1.msra.mxu0 0.0
        %1332 = vmatprep.subr.mxu0 0.0
        %1333 = vmatpush1.msra.mxu0 0.0
        %1334 = vmatprep.subr.mxu0 0.0
        %1335 = vmatpush1.msra.mxu0 0.0
        %1336 = vmatprep.subr.mxu0 0.0
        %1337 = vmatpush1.msra.mxu0 0.0
        %1338 = vmatprep.mubr.f32.mxu0 0.0
        %1339 = vmatmul.mubr.f32.gmra.mrb[0].mxu0 %v1202
        %v1340 = vpop.f32.mrb[0].mxu0
        %v1341 = vadd.f32 0.0, %v1340
        %v1342 = vpop.f32.mrb[0].mxu0
        %v1343 = vadd.f32 0.0, %v1342
        %1344 = vdwg.mxu0
        %v1349 = vcombine.low %v1270, %v1272
        %v1350 = vcombine.low %v1341, %v1343
        %v1352 = vunpack.c.l.s4 1983009808
        %v1353 = vunpack.c.0.s8 %v1352
        %v1354 = vlaneseq
        %v1355 = vshrl.u32 %v1354, 7
        %v1356 = vsub.s32 %v1353, %v1355
        %v1357 = vrot.slane %v1349, %v1356
        %v1359 = vunpack.c.l.s4 1983009808
        %v1360 = vunpack.c.0.s8 %v1359
        %v1361 = vlaneseq
        %v1362 = vshrl.u32 %v1361, 7
        %v1363 = vsub.s32 %v1360, %v1362
        %v1364 = vrot.slane %v1350, %v1363
        %v1365 = vcombine.low %v1357, %v1364
        %v1367 = vadd.f32 %v1201, %v1365
        %v1368 = vxor.u32 %v1367, 2147483648
        %v1369 = vmul.f32 %v1368, 1.442695
        %v1370 = vpow.pop %v1369
        %v1371 = vadd.f32 %v1370, 1.0
        %v1372 = vrcp.pop %v1371
        %v1373 = vmul.f32 1.0, %v1372
        %v1375 = vrot.slane %v1367, 2
        %v1377 = vxor.u32 %v1375, 2147483648
        %v1378 = vmul.f32 %v1377, 1.442695
        %v1379 = vpow.pop %v1378
        %v1380 = vadd.f32 %v1379, 1.0
        %v1381 = vrcp.pop %v1380
        %v1382 = vmul.f32 1.0, %v1381
        %v1383 = vrot.slane %v1367, 4
        %v1385 = vtanh.pop %v1383
        %v1386 = vrot.slane %v1367, 6
        %v1388 = vxor.u32 %v1386, 2147483648
        %v1389 = vmul.f32 %v1388, 1.442695
        %v1390 = vpow.pop %v1389
        %v1391 = vadd.f32 %v1390, 1.0
        %v1392 = vrcp.pop %v1391
        %v1393 = vmul.f32 1.0, %v1392
        %v1394 = vld [vmem:[#allocation3] sm:$0x3]
        %v1395 = vmul.f32 %v1382, %v1394
        %v1396 = vmul.f32 %v1373, %v1385
        %v1397 = vadd.f32 %v1395, %v1396
        %v1398 = vtanh.pop %v1397
        %v1399 = vmul.f32 %v1393, %v1398
        %1400 = vst [vmem:[#allocation3] sm:$0x3] %v1397
        %1401 = vst [vmem:[#allocation2] sm:$0x3] %v1399
        %s1402 = smul.u32 %s1197, 2
        %s1403 = scalar_lea.vmem %s283, %s1402
        %1404 = vst [vmem:[%s1403] sm:$0x3] %v1399
        %s1405 = ssub.s32 1, %s17
        %s1406 = smul.u32 %s1405, %s18
        %s1407 = ssub.s32 0, %s18
        %s1408 = smul.u32 %s17, %s1407
        %s1409 = sadd.s32 %s1406, %s1408
        %s1410 = smul.u32 5, %s1409
        %p1411 = scmp.lt.s32.totalorder %s17, 1
        %s1412 = scalar_select %p1411, %s17, 1
        %p1413 = scmp.lt.s32.totalorder %s1410, 4
        %s1414 = scalar_select %p1413, %s1410, 4
        %s1415 = smul.addr %s1412, 5
        %s1416 = sadd.s32 %s1414, %s1415
        %s1417 = smul.addr %s1416, 2
        %s1418 = scalar_lea.vmem %s2, %s1417
        // Predicated region
        $region71: #{slr_forward.10} parent=61 // pred_check
          %p1419 = pneg %p119
        $region72: #{slr_forward.10} parent=61 // pred_check_branch
          %1421 = sbr.rel (%p1419) target = $region74
        $region73: #{slr_forward.10} parent=61 // pred_region
          %s1422 = ssub.s32 1, %s17
          %s1423 = smul.u32 %s1422, %s18
          %s1424 = ssub.s32 0, %s18
          %s1425 = smul.u32 %s17, %s1424
          %s1426 = sadd.s32 %s1423, %s1425
          %s1427 = smul.u32 5, %s1426
        $region74: #{slr_forward.10} parent=61 // pred_fallthru
          _
      $region62: #{slr_forward.10} parent=5 // pred_fallthru
        _
      %p1428 = scmp.le.s32.totalorder 2, %s8
      // Predicated region
      $region75: #{slr_forward.10} parent=5 // pred_check
        %p1429 = pneg %p1428
      $region76: #{slr_forward.10} parent=5 // pred_check_branch
        %1431 = sbr.rel (%p1429) target = $region78
      $region77: #{slr_forward.10} parent=5 // pred_region
        %s1432 = ssub.s32 %s8, 2
        // Predicated region
        $region79: #{slr_forward.10} parent=77 // pred_check
          %p1433 = pneg %p125
        $region80: #{slr_forward.10} parent=77 // pred_check_branch
          %1435 = sbr.rel (%p1433) target = $region82
        $region81: #{slr_forward.10} parent=77 // pred_region
          %s1436 = ssub.s32 1, %s19
          %s1437 = smul.u32 %s1436, %s20
          %s1438 = ssub.s32 0, %s20
          %s1439 = smul.u32 %s19, %s1438
          %s1440 = sadd.s32 %s1437, %s1439
          %s1441 = smul.u32 5, %s1440
          %p1442 = scmp.lt.s32.totalorder %s19, 1
          %s1443 = scalar_select %p1442, %s19, 1
          %p1444 = scmp.lt.s32.totalorder %s1441, 4
          %s1445 = scalar_select %p1444, %s1441, 4
          %s1446 = smul.addr %s1443, 5
          %s1447 = sadd.s32 %s1445, %s1446
          %s1448 = smul.addr %s1447, 2
          %s1449 = scalar_lea.vmem %s2, %s1448
        $region82: #{slr_forward.10} parent=77 // pred_fallthru
          _
      $region78: #{slr_forward.10} parent=5 // pred_fallthru
        _
    $region6: #{slr_forward.10} parent=1 // loop_footer
      %s12 = sadd.s32 1, %s8
    $region7: #{slr_forward.10} parent=1 // loop_footer_branch
      %7 = sbr.rel target = $region3
    $region8: #{slr_forward.10} parent=1 // loop_exit
      _

// kernel: slr_forward.13
$region0: #{slr_forward.13}
  #allocation0 [shape = 'u32[]', space=smem, size = 0x4, offset = 0x4, fixed_abs, tag = 'smem constant byte address 0x4 - core index']
  #allocation1 [shape = 'u32[144,128]{1,0:T(1,128)}', space=vmem, size = 0x12000, scoped, tag = 'internal scratch']
  %s0 = inlined_call_operand.vmem [shape: bf16[24,128], index: 0, kind: input, shape index: {}]
  %s1 = inlined_call_operand.vmem [shape: bf16[128,128], index: 1, kind: input, shape index: {}]
  %s2 = inlined_call_operand.vmem [shape: f32[1,128], index: 2, kind: input, shape index: {}]
  %s3 = inlined_call_operand.vmem [shape: f32[1,128], index: 3, kind: input, shape index: {}]
  %s4 = inlined_call_operand.vmem [shape: f32[24,128], index: 4, kind: output, shape index: {}]
  %s5 = sld [smem:[#allocation0]]
  $region34: #{slr_forward.13} parent=0
    _
  %s7 = ssub.s32 1, %s5
  %s8 = scalar_select 0, %s7, %s5
  // Predicated region
  $region2: #{slr_forward.13} parent=0 // pred_check
    _
  $region3: #{slr_forward.13} parent=0 // pred_check_branch
    %10 = sbr.rel (0) target = $region5
  $region4: #{slr_forward.13} parent=0 // pred_region
    _
  $region5: #{slr_forward.13} parent=0 // pred_fallthru
    _
  // Predicated region
  $region6: #{slr_forward.13} parent=0 // pred_check
    _
  $region7: #{slr_forward.13} parent=0 // pred_check_branch
    %12 = sbr.rel (0) target = $region9
  $region8: #{slr_forward.13} parent=0 // pred_region
    _
  $region9: #{slr_forward.13} parent=0 // pred_fallthru
    _
  // Predicated region
  $region10: #{slr_forward.13} parent=0 // pred_check
    _
  $region11: #{slr_forward.13} parent=0 // pred_check_branch
    %14 = sbr.rel (0) target = $region13
  $region12: #{slr_forward.13} parent=0 // pred_region
    _
  $region13: #{slr_forward.13} parent=0 // pred_fallthru
    _
  // Predicated region
  $region14: #{slr_forward.13} parent=0 // pred_check
    _
  $region15: #{slr_forward.13} parent=0 // pred_check_branch
    %16 = sbr.rel (0) target = $region17
  $region16: #{slr_forward.13} parent=0 // pred_region
    _
  $region17: #{slr_forward.13} parent=0 // pred_fallthru
    _
  %p18 = scmp.eq.s32.totalorder 0, 0
  // Predicated region
  $region18: #{slr_forward.13} parent=0 // pred_check
    %p19 = pneg %p18
  $region19: #{slr_forward.13} parent=0 // pred_check_branch
    %21 = sbr.rel (%p19) target = $region21
  $region20: #{slr_forward.13} parent=0 // pred_region
    %22 = vst [vmem:[%s4] sm:$0xff] 0.0
    %23 = vst [vmem:[%s4 + $0x8] sm:$0xff] 0.0
    %24 = vst [vmem:[%s4 + $0x10] sm:$0xff] 0.0
  $region21: #{slr_forward.13} parent=0 // pred_fallthru
    _
  %v25 = vld [vmem:[%s4] sm:$0xff]
  %v26 = vld [vmem:[%s4 + $0x8] sm:$0xff]
  %v27 = vld [vmem:[%s4 + $0x10] sm:$0xff]
  %v28 = vld [vmem:[%s0] sm:$0xf]
  %v29 = vld [vmem:[%s0 + $0x4] sm:$0xf]
  %v30 = vld [vmem:[%s0 + $0x8] sm:$0xf]
  %v31 = vld [vmem:[%s1] sm:$0xf]
  %v32 = vld [vmem:[%s1 + $0x4] sm:$0xf]
  %v33 = vld [vmem:[%s1 + $0x8] sm:$0xf]
  %v34 = vld [vmem:[%s1 + $0xc] sm:$0xf]
  %v35 = vld [vmem:[%s1 + $0x10] sm:$0xf]
  %v36 = vld [vmem:[%s1 + $0x14] sm:$0xf]
  %v37 = vld [vmem:[%s1 + $0x18] sm:$0xf]
  %v38 = vld [vmem:[%s1 + $0x1c] sm:$0xf]
  %v39 = vld [vmem:[%s1 + $0x20] sm:$0xf]
  %v40 = vld [vmem:[%s1 + $0x24] sm:$0xf]
  %v41 = vld [vmem:[%s1 + $0x28] sm:$0xf]
  %v42 = vld [vmem:[%s1 + $0x2c] sm:$0xf]
  %v43 = vld [vmem:[%s1 + $0x30] sm:$0xf]
  %v44 = vld [vmem:[%s1 + $0x34] sm:$0xf]
  %v45 = vld [vmem:[%s1 + $0x38] sm:$0xf]
  %v46 = vld [vmem:[%s1 + $0x3c] sm:$0xf]
  %v50 = vunpack.c.l.b16 %v28
  %v51 = vunpack.c.l.b16 %v29
  %v52 = vunpack.c.l.b16 %v30
  %v53 = vpack.c.b16 %v51, %v50
  %v54 = vpack.c.b16 %v52, %v52
  %v73 = vunpack.c.l.b16 %v31
  %v74 = vunpack.c.l.b16 %v32
  %v75 = vunpack.c.l.b16 %v33
  %v76 = vunpack.c.l.b16 %v34
  %v77 = vunpack.c.l.b16 %v35
  %v78 = vunpack.c.l.b16 %v36
  %v79 = vunpack.c.l.b16 %v37
  %v80 = vunpack.c.l.b16 %v38
  %v81 = vunpack.c.l.b16 %v39
  %v82 = vunpack.c.l.b16 %v40
  %v83 = vunpack.c.l.b16 %v41
  %v84 = vunpack.c.l.b16 %v42
  %v85 = vunpack.c.l.b16 %v43
  %v86 = vunpack.c.l.b16 %v44
  %v87 = vunpack.c.l.b16 %v45
  %v88 = vunpack.c.l.b16 %v46
  %v89 = vpack.c.b16 %v74, %v73
  %v90 = vpack.c.b16 %v76, %v75
  %v91 = vpack.c.b16 %v78, %v77
  %v92 = vpack.c.b16 %v80, %v79
  %v93 = vpack.c.b16 %v82, %v81
  %v94 = vpack.c.b16 %v84, %v83
  %v95 = vpack.c.b16 %v86, %v85
  %v96 = vpack.c.b16 %v88, %v87
  %105 = vmatprep.subr.bf16.mxu0 0
  %106 = vmatpush1.bf16.msra.mxu0 %v89
  %107 = vmatprep.subr.bf16.mxu0 0
  %108 = vmatpush1.bf16.msra.mxu0 %v90
  %109 = vmatprep.subr.bf16.mxu0 0
  %110 = vmatpush1.bf16.msra.mxu0 %v91
  %111 = vmatprep.subr.bf16.mxu0 0
  %112 = vmatpush1.bf16.msra.mxu0 %v92
  %113 = vmatprep.subr.bf16.mxu0 0
  %114 = vmatpush1.bf16.msra.mxu0 %v93
  %115 = vmatprep.subr.bf16.mxu0 0
  %116 = vmatpush1.bf16.msra.mxu0 %v94
  %117 = vmatprep.subr.bf16.mxu0 0
  %118 = vmatpush1.bf16.msra.mxu0 %v95
  %119 = vmatprep.subr.bf16.mxu0 0
  %120 = vmatpush1.bf16.msra.mxu0 %v96
  %121 = vmatprep.subr.bf16.mxu0 0
  %122 = vmatpush1.bf16.msra.mxu0 0
  %123 = vmatprep.subr.bf16.mxu0 0
  %124 = vmatpush1.bf16.msra.mxu0 0
  %125 = vmatprep.subr.bf16.mxu0 0
  %126 = vmatpush1.bf16.msra.mxu0 0
  %127 = vmatprep.subr.bf16.mxu0 0
  %128 = vmatpush1.bf16.msra.mxu0 0
  %129 = vmatprep.subr.bf16.mxu0 0
  %130 = vmatpush1.bf16.msra.mxu0 0
  %131 = vmatprep.subr.bf16.mxu0 0
  %132 = vmatpush1.bf16.msra.mxu0 0
  %133 = vmatprep.subr.bf16.mxu0 0
  %134 = vmatpush1.bf16.msra.mxu0 0
  %135 = vmatprep.subr.bf16.mxu0 0
  %136 = vmatpush1.bf16.msra.mxu0 0
  %137 = vmatprep.mubr.bf16.mxu0 0
  %138 = vmatmul.mubr.bf16.gmra.mrb[0].mxu0 %v53
  %v139 = vpop.f32.mrb[0].mxu0
  %v140 = vadd.f32 0.0, %v139
  %v141 = vpop.f32.mrb[0].mxu0
  %v142 = vpop.f32.mrb[0].mxu0
  %v143 = vadd.f32 0.0, %v142
  %v144 = vpop.f32.mrb[0].mxu0
  %145 = vmatprep.mubr.bf16.mxu0 0
  %146 = vmatmul.mubr.bf16.gmra.mrb[0].mxu0 %v54
  %v147 = vpop.f32.mrb[0].mxu0
  %v148 = vadd.f32 0.0, %v147
  %v149 = vpop.f32.mrb[0].mxu0
  %v150 = vpop.f32.mrb[0].mxu0
  %v151 = vpop.f32.mrb[0].mxu0
  %152 = vdwg.mxu0
  %v153 = vadd.f32 %v25, %v140
  %v154 = vadd.f32 %v26, %v143
  %v155 = vadd.f32 %v27, %v148
  %156 = vst [vmem:[%s4] sm:$0xff] %v153
  %157 = vst [vmem:[%s4 + $0x8] sm:$0xff] %v154
  %158 = vst [vmem:[%s4 + $0x10] sm:$0xff] %v155
  // Predicated region
  $region22: #{slr_forward.13} parent=0 // pred_check
    %p159 = pneg %p18
  $region23: #{slr_forward.13} parent=0 // pred_check_branch
    %161 = sbr.rel (%p159) target = $region25
  $region24: #{slr_forward.13} parent=0 // pred_region
    %v162 = vld [vmem:[%s4] sm:$0xff]
    %v163 = vld [vmem:[%s4 + $0x8] sm:$0xff]
    %v164 = vld [vmem:[%s4 + $0x10] sm:$0xff]
    %v165 = vld [vmem:[%s2] sm:$0x1]
    %v167 = vlaneseq
    %v168 = vshrl.u32 %v167, 7
    %v169 = vsub.s32 0, %v168
    %v170 = vrot.slane %v165, %v169
    %v172 = vadd.f32 %v162, %v170
    %v173 = vadd.f32 %v163, %v170
    %v174 = vadd.f32 %v164, %v170
    %v175 = vld [vmem:[%s3] sm:$0x1]
    %v177 = vlaneseq
    %v178 = vshrl.u32 %v177, 7
    %v179 = vsub.s32 0, %v178
    %v180 = vrot.slane %v175, %v179
    %v182 = vmul.f32 %v172, %v180
    %v183 = vmul.f32 %v173, %v180
    %v184 = vmul.f32 %v174, %v180
    %185 = vst [vmem:[%s4] sm:$0xff] %v182
    %186 = vst [vmem:[%s4 + $0x8] sm:$0xff] %v183
    %187 = vst [vmem:[%s4 + $0x10] sm:$0xff] %v184
  $region25: #{slr_forward.13} parent=0 // pred_fallthru
    _
  // Predicated region
  $region26: #{slr_forward.13} parent=0 // pred_check
    _
  $region27: #{slr_forward.13} parent=0 // pred_check_branch
    %189 = sbr.rel (0) target = $region29
  $region28: #{slr_forward.13} parent=0 // pred_region
    _
  $region29: #{slr_forward.13} parent=0 // pred_fallthru
    _
  // Predicated region
  $region30: #{slr_forward.13} parent=0 // pred_check
    _
  $region31: #{slr_forward.13} parent=0 // pred_check_branch
    %191 = sbr.rel (0) target = $region33
  $region32: #{slr_forward.13} parent=0 // pred_region
    _
  $region33: #{slr_forward.13} parent=0 // pred_fallthru
    _

</llo_original>
